<compile_context>
chip_gen: v5e
topology: v5e:2x2
jax: 0.10.0
libtpu: 0.0.40
codegen_flags: <defaults>
</compile_context>

<pallas_src>
import jax
import jax.numpy as jnp
from jax.experimental import pallas as pl
from jax.experimental.pallas import tpu as pltpu

LAYER_DIMS = [2601, 1024, 512, 256, 64, 2]
K_PAD = 2688        # 2601 rounded up to 21 * 128 (lane-aligned K for layer 1)
N_OUT_PAD = 128     # final layer output padded 2 -> 128 (avoids masked stores)


def _round_up(v, m):
    return ((v + m - 1) // m) * m


def _mlp_kernel(x_ref,
                w1_ref, b1_ref,
                w2_ref, b2_ref,
                w3_ref, b3_ref,
                w4_ref, b4_ref,
                w5_ref, b5_ref,
                o_ref):
    # bf16 operands into the MXU, f32 accumulate, f32 VPU epilogue (bias + ReLU).
    h = jnp.dot(x_ref[...].astype(jnp.bfloat16), w1_ref[...],
                preferred_element_type=jnp.float32)
    h = jnp.maximum(h + b1_ref[...], 0.0)

    h = jnp.dot(h.astype(jnp.bfloat16), w2_ref[...],
                preferred_element_type=jnp.float32)
    h = jnp.maximum(h + b2_ref[...], 0.0)

    h = jnp.dot(h.astype(jnp.bfloat16), w3_ref[...],
                preferred_element_type=jnp.float32)
    h = jnp.maximum(h + b3_ref[...], 0.0)

    h = jnp.dot(h.astype(jnp.bfloat16), w4_ref[...],
                preferred_element_type=jnp.float32)
    h = jnp.maximum(h + b4_ref[...], 0.0)

    h = jnp.dot(h.astype(jnp.bfloat16), w5_ref[...],
                preferred_element_type=jnp.float32)
    o_ref[...] = (h + b5_ref[...]).astype(o_ref.dtype)


def prepare_params(params):
    """params: list of (W (in,out) f32, b (1,out) f32).

    Returns padded, bf16-cast weights and f32 biases ready for the kernel:
      * W1 zero-padded along K from 2601 -> 2688,
      * W5 / b5 zero-padded along N from 2 -> 128.
    """
    prepped = []
    last = len(params) - 1
    for i, (w, b) in enumerate(params):
        if i == 0:
            w = jnp.pad(w, ((0, K_PAD - w.shape[0]), (0, 0)))
        if i == last:
            w = jnp.pad(w, ((0, 0), (0, N_OUT_PAD - w.shape[1])))
            b = jnp.pad(b, ((0, 0), (0, N_OUT_PAD - b.shape[1])))
        prepped.append((w.astype(jnp.bfloat16), b.astype(jnp.float32)))
    return prepped


def angle_predict_forward(x, prepped):
    """x: (B, 2601) float32; prepped: output of prepare_params()."""
    B, K = x.shape
    assert K == LAYER_DIMS[0], (B, K)

    # Batch tile: up to 256 rows per grid step (v6e/v7x MXU-friendly), but never
    # bigger than the (8-aligned) batch itself.
    tile_m = min(256, _round_up(B, 8))
    Bp = _round_up(B, tile_m)
    num_tiles = Bp // tile_m

    # Zero-pad batch and K (exact).
    xp = jnp.pad(x.astype(jnp.float32), ((0, Bp - B), (0, K_PAD - K)))

    flat_inputs = [xp]
    for (w, b) in prepped:
        flat_inputs.append(w)
        flat_inputs.append(b)

    # BlockSpecs: x/out tiled over the batch grid; weights/biases use a constant
    # block index so they stay resident in VMEM across all batch tiles.
    const2d = lambda i: (0, 0)
    in_specs = [pl.BlockSpec((tile_m, K_PAD), lambda i: (i, 0))]
    for (w, b) in prepped:
        in_specs.append(pl.BlockSpec(w.shape, const2d))
        in_specs.append(pl.BlockSpec(b.shape, const2d))
    out_spec = pl.BlockSpec((tile_m, N_OUT_PAD), lambda i: (i, 0))

    dims = [K_PAD] + LAYER_DIMS[1:-1] + [N_OUT_PAD]
    flops = 2 * Bp * sum(dims[i] * dims[i + 1] for i in range(len(dims) - 1))
    bytes_accessed = (sum(int(a.size) * a.dtype.itemsize for a in flat_inputs)
                      + Bp * N_OUT_PAD * 4)
    cost = pl.CostEstimate(flops=flops, transcendentals=0,
                           bytes_accessed=bytes_accessed)

    out_padded = pl.pallas_call(
        _mlp_kernel,
        out_shape=jax.ShapeDtypeStruct((Bp, N_OUT_PAD), jnp.float32),
        grid_spec=pltpu.PrefetchScalarGridSpec(
            num_scalar_prefetch=0,
            grid=(num_tiles,),
            in_specs=in_specs,
            out_specs=out_spec,
        ),
        compiler_params=pltpu.CompilerParams(
            dimension_semantics=("parallel",),   # v7x: shard batch tiles over 2 TCs
            vmem_limit_bytes=48 << 20,           # fits v7x's 64 MiB VMEM
        ),
        cost_estimate=cost,
    )(*flat_inputs)

    return out_padded[:B, :LAYER_DIMS[-1]]


def init_params(key):
    """Deterministic synthetic parameters matching nn.Linear shapes (f32 master)."""
    params = []
    for i in range(len(LAYER_DIMS) - 1):
        fan_in, fan_out = LAYER_DIMS[i], LAYER_DIMS[i + 1]
        key, wk, bk = jax.random.split(key, 3)
        bound = 1.0 / jnp.sqrt(jnp.float32(fan_in))  # PyTorch default init range
        w = jax.random.uniform(wk, (fan_in, fan_out), jnp.float32, -bound, bound)
        b = jax.random.uniform(bk, (1, fan_out), jnp.float32, -bound, bound)
        params.append((w, b))
    return params


def reference_forward(x, params):
    """Reference with the same bf16-operand / f32-accumulate matmul precision."""
    h = x
    for i, (w, b) in enumerate(params):
        h = jnp.dot(h.astype(jnp.bfloat16), w.astype(jnp.bfloat16),
                    preferred_element_type=jnp.float32) + b
        if i < len(params) - 1:
            h = jnp.maximum(h, 0.0)
    return h


if __name__ == "__main__":
    key = jax.random.PRNGKey(0)
    key, xk = jax.random.split(key)

    B = 8
    x = jax.random.normal(xk, (B, LAYER_DIMS[0]), jnp.float32)
    params = init_params(key)
    prepped = prepare_params(params)

    out = angle_predict_forward(x, prepped)
    out = jax.block_until_ready(out)

    ref = reference_forward(x, params)
    assert out.shape == (B, LAYER_DIMS[-1]), out.shape
    assert jnp.allclose(out, ref, atol=1e-2, rtol=1e-2), "mismatch vs reference"

    print("KERNEL_OK")
</pallas_src>

<mosaic_0001>
module attributes {stable_mosaic.version = 11 : i64} {
  func.func @_mlp_kernel(%arg0: i32, %arg1: memref<8x2688xf32, #tpu.memory_space<vmem>>, %arg2: memref<2688x1024xbf16, #tpu.memory_space<vmem>>, %arg3: memref<1x1024xf32, #tpu.memory_space<vmem>>, %arg4: memref<1024x512xbf16, #tpu.memory_space<vmem>>, %arg5: memref<1x512xf32, #tpu.memory_space<vmem>>, %arg6: memref<512x256xbf16, #tpu.memory_space<vmem>>, %arg7: memref<1x256xf32, #tpu.memory_space<vmem>>, %arg8: memref<256x64xbf16, #tpu.memory_space<vmem>>, %arg9: memref<1x64xf32, #tpu.memory_space<vmem>>, %arg10: memref<64x128xbf16, #tpu.memory_space<vmem>>, %arg11: memref<1x128xf32, #tpu.memory_space<vmem>>, %arg12: memref<8x128xf32, #tpu.memory_space<vmem>>) attributes {dimension_semantics = [#tpu.dimension_semantics<parallel>], iteration_bounds = array<i64: 1>, scalar_prefetch = 0 : i64, scratch_operands = 0 : i64, tpu.core_type = #tpu.core_type<tc>, window_params = [{transform_indices = @transform_0, window_bounds = array<i64: 8, 2688>}, {pipeline_mode = #tpu.pipeline_mode<synchronous>, transform_indices = @transform_1, window_bounds = array<i64: 2688, 1024>}, {pipeline_mode = #tpu.pipeline_mode<synchronous>, transform_indices = @transform_2, window_bounds = array<i64: 1, 1024>}, {pipeline_mode = #tpu.pipeline_mode<synchronous>, transform_indices = @transform_3, window_bounds = array<i64: 1024, 512>}, {pipeline_mode = #tpu.pipeline_mode<synchronous>, transform_indices = @transform_4, window_bounds = array<i64: 1, 512>}, {pipeline_mode = #tpu.pipeline_mode<synchronous>, transform_indices = @transform_5, window_bounds = array<i64: 512, 256>}, {pipeline_mode = #tpu.pipeline_mode<synchronous>, transform_indices = @transform_6, window_bounds = array<i64: 1, 256>}, {pipeline_mode = #tpu.pipeline_mode<synchronous>, transform_indices = @transform_7, window_bounds = array<i64: 256, 64>}, {pipeline_mode = #tpu.pipeline_mode<synchronous>, transform_indices = @transform_8, window_bounds = array<i64: 1, 64>}, {pipeline_mode = #tpu.pipeline_mode<synchronous>, transform_indices = @transform_9, window_bounds = array<i64: 64, 128>}, {pipeline_mode = #tpu.pipeline_mode<synchronous>, transform_indices = @transform_10, window_bounds = array<i64: 1, 128>}, {transform_indices = @transform_11, window_bounds = array<i64: 8, 128>}]} {
    %c0 = arith.constant 0 : index
    %c0_0 = arith.constant 0 : index
    %0 = vector.load %arg1[%c0, %c0_0] : memref<8x2688xf32, #tpu.memory_space<vmem>>, vector<8x2688xf32>
    %1 = arith.truncf %0 : vector<8x2688xf32> to vector<8x2688xbf16>
    %c0_1 = arith.constant 0 : index
    %c0_2 = arith.constant 0 : index
    %2 = vector.load %arg2[%c0_1, %c0_2] : memref<2688x1024xbf16, #tpu.memory_space<vmem>>, vector<2688x1024xbf16>
    %cst = arith.constant dense<0.000000e+00> : vector<8x1024xf32>
    %3 = tpu.matmul %1, %2, %cst {dimension_numbers = #tpu.dot_dimension_numbers<[1], [0], [0], [1], [0, 0, 1, 1], [], []>} : vector<8x2688xbf16>, vector<2688x1024xbf16>, vector<8x1024xf32> -> vector<8x1024xf32>
    %c0_3 = arith.constant 0 : index
    %c0_4 = arith.constant 0 : index
    %4 = vector.load %arg3[%c0_3, %c0_4] : memref<1x1024xf32, #tpu.memory_space<vmem>>, vector<1x1024xf32>
    %5 = vector.broadcast %4 : vector<1x1024xf32> to vector<8x1024xf32>
    %6 = arith.addf %3, %5 : vector<8x1024xf32>
    %cst_5 = arith.constant 0.000000e+00 : f32
    %7 = vector.broadcast %cst_5 : f32 to vector<8x1024xf32>
    %8 = arith.maximumf %6, %7 : vector<8x1024xf32>
    %9 = arith.truncf %8 : vector<8x1024xf32> to vector<8x1024xbf16>
    %c0_6 = arith.constant 0 : index
    %c0_7 = arith.constant 0 : index
    %10 = vector.load %arg4[%c0_6, %c0_7] : memref<1024x512xbf16, #tpu.memory_space<vmem>>, vector<1024x512xbf16>
    %cst_8 = arith.constant dense<0.000000e+00> : vector<8x512xf32>
    %11 = tpu.matmul %9, %10, %cst_8 {dimension_numbers = #tpu.dot_dimension_numbers<[1], [0], [0], [1], [0, 0, 1, 1], [], []>} : vector<8x1024xbf16>, vector<1024x512xbf16>, vector<8x512xf32> -> vector<8x512xf32>
    %c0_9 = arith.constant 0 : index
    %c0_10 = arith.constant 0 : index
    %12 = vector.load %arg5[%c0_9, %c0_10] : memref<1x512xf32, #tpu.memory_space<vmem>>, vector<1x512xf32>
    %13 = vector.broadcast %12 : vector<1x512xf32> to vector<8x512xf32>
    %14 = arith.addf %11, %13 : vector<8x512xf32>
    %cst_11 = arith.constant 0.000000e+00 : f32
    %15 = vector.broadcast %cst_11 : f32 to vector<8x512xf32>
    %16 = arith.maximumf %14, %15 : vector<8x512xf32>
    %17 = arith.truncf %16 : vector<8x512xf32> to vector<8x512xbf16>
    %c0_12 = arith.constant 0 : index
    %c0_13 = arith.constant 0 : index
    %18 = vector.load %arg6[%c0_12, %c0_13] : memref<512x256xbf16, #tpu.memory_space<vmem>>, vector<512x256xbf16>
    %cst_14 = arith.constant dense<0.000000e+00> : vector<8x256xf32>
    %19 = tpu.matmul %17, %18, %cst_14 {dimension_numbers = #tpu.dot_dimension_numbers<[1], [0], [0], [1], [0, 0, 1, 1], [], []>} : vector<8x512xbf16>, vector<512x256xbf16>, vector<8x256xf32> -> vector<8x256xf32>
    %c0_15 = arith.constant 0 : index
    %c0_16 = arith.constant 0 : index
    %20 = vector.load %arg7[%c0_15, %c0_16] : memref<1x256xf32, #tpu.memory_space<vmem>>, vector<1x256xf32>
    %21 = vector.broadcast %20 : vector<1x256xf32> to vector<8x256xf32>
    %22 = arith.addf %19, %21 : vector<8x256xf32>
    %cst_17 = arith.constant 0.000000e+00 : f32
    %23 = vector.broadcast %cst_17 : f32 to vector<8x256xf32>
    %24 = arith.maximumf %22, %23 : vector<8x256xf32>
    %25 = arith.truncf %24 : vector<8x256xf32> to vector<8x256xbf16>
    %c0_18 = arith.constant 0 : index
    %c0_19 = arith.constant 0 : index
    %26 = vector.load %arg8[%c0_18, %c0_19] : memref<256x64xbf16, #tpu.memory_space<vmem>>, vector<256x64xbf16>
    %cst_20 = arith.constant dense<0.000000e+00> : vector<8x64xf32>
    %27 = tpu.matmul %25, %26, %cst_20 {dimension_numbers = #tpu.dot_dimension_numbers<[1], [0], [0], [1], [0, 0, 1, 1], [], []>} : vector<8x256xbf16>, vector<256x64xbf16>, vector<8x64xf32> -> vector<8x64xf32>
    %c0_21 = arith.constant 0 : index
    %c0_22 = arith.constant 0 : index
    %28 = vector.load %arg9[%c0_21, %c0_22] : memref<1x64xf32, #tpu.memory_space<vmem>>, vector<1x64xf32>
    %29 = vector.broadcast %28 : vector<1x64xf32> to vector<8x64xf32>
    %30 = arith.addf %27, %29 : vector<8x64xf32>
    %cst_23 = arith.constant 0.000000e+00 : f32
    %31 = vector.broadcast %cst_23 : f32 to vector<8x64xf32>
    %32 = arith.maximumf %30, %31 : vector<8x64xf32>
    %33 = arith.truncf %32 : vector<8x64xf32> to vector<8x64xbf16>
    %c0_24 = arith.constant 0 : index
    %c0_25 = arith.constant 0 : index
    %34 = vector.load %arg10[%c0_24, %c0_25] : memref<64x128xbf16, #tpu.memory_space<vmem>>, vector<64x128xbf16>
    %cst_26 = arith.constant dense<0.000000e+00> : vector<8x128xf32>
    %35 = tpu.matmul %33, %34, %cst_26 {dimension_numbers = #tpu.dot_dimension_numbers<[1], [0], [0], [1], [0, 0, 1, 1], [], []>} : vector<8x64xbf16>, vector<64x128xbf16>, vector<8x128xf32> -> vector<8x128xf32>
    %c0_27 = arith.constant 0 : index
    %c0_28 = arith.constant 0 : index
    %36 = vector.load %arg11[%c0_27, %c0_28] : memref<1x128xf32, #tpu.memory_space<vmem>>, vector<1x128xf32>
    %37 = vector.broadcast %36 : vector<1x128xf32> to vector<8x128xf32>
    %38 = arith.addf %35, %37 : vector<8x128xf32>
    %c0_29 = arith.constant 0 : index
    %c0_30 = arith.constant 0 : index
    %39 = vector.load %arg12[%c0_29, %c0_30] : memref<8x128xf32, #tpu.memory_space<vmem>>, vector<8x128xf32>
    tpu.vector_store %arg12[%c0_29, %c0_30], %38 {strides = array<i32>} : memref<8x128xf32, #tpu.memory_space<vmem>>, vector<8x128xf32>,
    return
  }
  func.func @transform_0(%arg0: i32) -> (i32, i32) {
    %c0_i32 = arith.constant 0 : i32
    %c0_i32_0 = arith.constant 0 : i32
    return %arg0, %c0_i32 : i32, i32
  }
  func.func @transform_1(%arg0: i32) -> (i32, i32) {
    %c0_i32 = arith.constant 0 : i32
    %c0_i32_0 = arith.constant 0 : i32
    %c0_i32_1 = arith.constant 0 : i32
    return %c0_i32, %c0_i32_0 : i32, i32
  }
  func.func @transform_2(%arg0: i32) -> (i32, i32) {
    %c0_i32 = arith.constant 0 : i32
    %c0_i32_0 = arith.constant 0 : i32
    %c0_i32_1 = arith.constant 0 : i32
    return %c0_i32, %c0_i32_0 : i32, i32
  }
  func.func @transform_3(%arg0: i32) -> (i32, i32) {
    %c0_i32 = arith.constant 0 : i32
    %c0_i32_0 = arith.constant 0 : i32
    %c0_i32_1 = arith.constant 0 : i32
    return %c0_i32, %c0_i32_0 : i32, i32
  }
  func.func @transform_4(%arg0: i32) -> (i32, i32) {
    %c0_i32 = arith.constant 0 : i32
    %c0_i32_0 = arith.constant 0 : i32
    %c0_i32_1 = arith.constant 0 : i32
    return %c0_i32, %c0_i32_0 : i32, i32
  }
  func.func @transform_5(%arg0: i32) -> (i32, i32) {
    %c0_i32 = arith.constant 0 : i32
    %c0_i32_0 = arith.constant 0 : i32
    %c0_i32_1 = arith.constant 0 : i32
    return %c0_i32, %c0_i32_0 : i32, i32
  }
  func.func @transform_6(%arg0: i32) -> (i32, i32) {
    %c0_i32 = arith.constant 0 : i32
    %c0_i32_0 = arith.constant 0 : i32
    %c0_i32_1 = arith.constant 0 : i32
    return %c0_i32, %c0_i32_0 : i32, i32
  }
  func.func @transform_7(%arg0: i32) -> (i32, i32) {
    %c0_i32 = arith.constant 0 : i32
    %c0_i32_0 = arith.constant 0 : i32
    %c0_i32_1 = arith.constant 0 : i32
    return %c0_i32, %c0_i32_0 : i32, i32
  }
  func.func @transform_8(%arg0: i32) -> (i32, i32) {
    %c0_i32 = arith.constant 0 : i32
    %c0_i32_0 = arith.constant 0 : i32
    %c0_i32_1 = arith.constant 0 : i32
    return %c0_i32, %c0_i32_0 : i32, i32
  }
  func.func @transform_9(%arg0: i32) -> (i32, i32) {
    %c0_i32 = arith.constant 0 : i32
    %c0_i32_0 = arith.constant 0 : i32
    %c0_i32_1 = arith.constant 0 : i32
    return %c0_i32, %c0_i32_0 : i32, i32
  }
  func.func @transform_10(%arg0: i32) -> (i32, i32) {
    %c0_i32 = arith.constant 0 : i32
    %c0_i32_0 = arith.constant 0 : i32
    %c0_i32_1 = arith.constant 0 : i32
    return %c0_i32, %c0_i32_0 : i32, i32
  }
  func.func @transform_11(%arg0: i32) -> (i32, i32) {
    %c0_i32 = arith.constant 0 : i32
    %c0_i32_0 = arith.constant 0 : i32
    return %arg0, %c0_i32 : i32, i32
  }
}

</mosaic_0001>

<llo_original>
// kernel: tpu_custom_call.1
$region0: #{tpu_custom_call.1}
  #allocation0 [shape = 'u32[]', space=smem, size = 0x4, offset = 0x4, fixed_abs, tag = 'smem constant byte address 0x4 - core index']
  #allocation1 [shape = 'u32[72,128]{1,0:T(1,128)}', space=vmem, size = 0x9000, scoped, tag = 'internal scratch']
  %s0 = inlined_call_operand.hbm [shape: f32[8,2688], index: 0, kind: input, shape index: {}]
  %s1 = inlined_call_operand.hbm [shape: bf16[2688,1024], index: 1, kind: input, shape index: {}]
  %s2 = inlined_call_operand.hbm [shape: f32[1,1024], index: 2, kind: input, shape index: {}]
  %s3 = inlined_call_operand.hbm [shape: bf16[1024,512], index: 3, kind: input, shape index: {}]
  %s4 = inlined_call_operand.hbm [shape: f32[1,512], index: 4, kind: input, shape index: {}]
  %s5 = inlined_call_operand.hbm [shape: bf16[512,256], index: 5, kind: input, shape index: {}]
  %s6 = inlined_call_operand.hbm [shape: f32[1,256], index: 6, kind: input, shape index: {}]
  %s7 = inlined_call_operand.vmem [shape: bf16[256,64], index: 7, kind: input, shape index: {}]
  %s8 = inlined_call_operand.hbm [shape: f32[1,64], index: 8, kind: input, shape index: {}]
  %s9 = inlined_call_operand.hbm [shape: bf16[64,128], index: 9, kind: input, shape index: {}]
  %s10 = inlined_call_operand.hbm [shape: f32[1,128], index: 10, kind: input, shape index: {}]
  %s11 = inlined_call_operand.hbm [shape: f32[8,128], index: 11, kind: output, shape index: {}]
  %s12 = sld [smem:[#allocation0]]
  $region94: #{tpu_custom_call.1} parent=0
    _
  %s14 = ssub.s32 1, %s12
  %s15 = scalar_select 0, %s14, %s12
  $region1: #{tpu_custom_call.1} parent=0
    #allocation2 [shape = 'u8[86016]{0}', space=vmem, size = 0x15000, scoped, tag = 'input window, operand 0, single buffered']
    #allocation3 [shape = 's32[1]{0}', space=sflag, size = 0x4, scoped, tag = 'scoped memory for tpu_custom_call.1']
    #allocation4 [shape = 's32[1]{0}', space=sflag, size = 0x4, scoped, tag = 'scoped memory for tpu_custom_call.1']
    #allocation5 [shape = 'u8[5505024]{0}', space=vmem, size = 0x540000, scoped, tag = 'input window, operand 1, single buffered']
    #allocation6 [shape = 's32[1]{0}', space=sflag, size = 0x4, scoped, tag = 'scoped memory for tpu_custom_call.1']
    #allocation7 [shape = 'u8[4096]{0}', space=vmem, size = 0x1000, scoped, tag = 'input window, operand 2, single buffered']
    #allocation8 [shape = 'u8[1048576]{0}', space=vmem, size = 0x100000, scoped, tag = 'input window, operand 3, single buffered']
    #allocation9 [shape = 's32[1]{0}', space=sflag, size = 0x4, scoped, tag = 'scoped memory for tpu_custom_call.1']
    #allocation10 [shape = 'u8[2048]{0}', space=vmem, size = 0x800, scoped, tag = 'input window, operand 4, single buffered']
    #allocation11 [shape = 'u8[262144]{0}', space=vmem, size = 0x40000, scoped, tag = 'input window, operand 5, single buffered']
    #allocation12 [shape = 's32[1]{0}', space=sflag, size = 0x4, scoped, tag = 'scoped memory for tpu_custom_call.1']
    #allocation13 [shape = 'u8[1024]{0}', space=vmem, size = 0x400, scoped, tag = 'input window, operand 6, single buffered']
    #allocation14 [shape = 'u8[512]{0}', space=vmem, size = 0x400, scoped, tag = 'input window, operand 8, single buffered']
    #allocation15 [shape = 's32[1]{0}', space=sflag, size = 0x4, scoped, tag = 'scoped memory for tpu_custom_call.1']
    #allocation16 [shape = 'u8[16384]{0}', space=vmem, size = 0x4000, scoped, tag = 'input window, operand 9, single buffered']
    #allocation17 [shape = 'u8[512]{0}', space=vmem, size = 0x400, scoped, tag = 'input window, operand 10, single buffered']
    #allocation18 [shape = 's32[1]{0}', space=sflag, size = 0x4, scoped, tag = 'scoped memory for tpu_custom_call.1']
    #allocation19 [shape = 'u8[4096]{0}', space=vmem, size = 0x1000, scoped, tag = 'output window, operand 0, single buffered']
    %16 = vsyncpa [#allocation3], 0
    %17 = vsyncpa [#allocation6], 0
    %18 = vsyncpa [#allocation9], 0
    %19 = vsyncpa [#allocation12], 0
    %20 = vsyncpa [#allocation15], 0
    %21 = vsyncpa [#allocation18], 0
    %22 = vsyncpa [#allocation4], 0
    // Predicated region
    $region2: #{tpu_custom_call.1} parent=1 // pred_check
      _
    $region3: #{tpu_custom_call.1} parent=1 // pred_check_branch
      %24 = sbr.rel (0) target = $region5
    $region4: #{tpu_custom_call.1} parent=1 // pred_region
      %26 = vsyncadd [#allocation3], 0
      %s28 = sshll.u32 %s0, 4
      %s29 = int_to_ptr.hbm [resolvable:$true] %s28
      %s30 = sshll.u32 [#allocation2], 4
      %s31 = int_to_ptr.vmem [resolvable:$true] %s30
      %33 = dma.hbm_to_vmem [thread:$0]  %s29, 2688, %s31, [#allocation3]
    $region5: #{tpu_custom_call.1} parent=1 // pred_fallthru
      _
    // Predicated region
    $region6: #{tpu_custom_call.1} parent=1 // pred_check
      _
    $region7: #{tpu_custom_call.1} parent=1 // pred_check_branch
      %35 = sbr.rel (0) target = $region9
    $region8: #{tpu_custom_call.1} parent=1 // pred_region
      %37 = vsyncadd [#allocation6], 0
      %s38 = sshll.u32 %s1, 4
      %s39 = int_to_ptr.hbm [resolvable:$true] %s38
      %s40 = sshll.u32 [#allocation5], 4
      %s41 = int_to_ptr.vmem [resolvable:$true] %s40
      %46 = dma.hbm_to_vmem [thread:$0]  %s39, 172032, %s41, [#allocation6], 512, 512, 32
    $region9: #{tpu_custom_call.1} parent=1 // pred_fallthru
      _
    // Predicated region
    $region10: #{tpu_custom_call.1} parent=1 // pred_check
      _
    $region11: #{tpu_custom_call.1} parent=1 // pred_check_branch
      %48 = sbr.rel (0) target = $region13
    $region12: #{tpu_custom_call.1} parent=1 // pred_region
      %50 = vsyncadd [#allocation6], 0
      %s52 = sshll.u32 %s2, 4
      %s53 = int_to_ptr.hbm [resolvable:$true] %s52
      %s54 = sshll.u32 [#allocation7], 4
      %s55 = int_to_ptr.vmem [resolvable:$true] %s54
      %57 = dma.hbm_to_vmem [thread:$0]  %s53, 128, %s55, [#allocation6]
    $region13: #{tpu_custom_call.1} parent=1 // pred_fallthru
      _
    // Predicated region
    $region14: #{tpu_custom_call.1} parent=1 // pred_check
      _
    $region15: #{tpu_custom_call.1} parent=1 // pred_check_branch
      %59 = sbr.rel (0) target = $region17
    $region16: #{tpu_custom_call.1} parent=1 // pred_region
      %61 = vsyncadd [#allocation9], 0
      %s62 = sshll.u32 %s3, 4
      %s63 = int_to_ptr.hbm [resolvable:$true] %s62
      %s64 = sshll.u32 [#allocation8], 4
      %s65 = int_to_ptr.vmem [resolvable:$true] %s64
      %70 = dma.hbm_to_vmem [thread:$0]  %s63, 32768, %s65, [#allocation9], 256, 256, 16
    $region17: #{tpu_custom_call.1} parent=1 // pred_fallthru
      _
    // Predicated region
    $region18: #{tpu_custom_call.1} parent=1 // pred_check
      _
    $region19: #{tpu_custom_call.1} parent=1 // pred_check_branch
      %72 = sbr.rel (0) target = $region21
    $region20: #{tpu_custom_call.1} parent=1 // pred_region
      %74 = vsyncadd [#allocation9], 0
      %s76 = sshll.u32 %s4, 4
      %s77 = int_to_ptr.hbm [resolvable:$true] %s76
      %s78 = sshll.u32 [#allocation10], 4
      %s79 = int_to_ptr.vmem [resolvable:$true] %s78
      %81 = dma.hbm_to_vmem [thread:$0]  %s77, 64, %s79, [#allocation9]
    $region21: #{tpu_custom_call.1} parent=1 // pred_fallthru
      _
    // Predicated region
    $region22: #{tpu_custom_call.1} parent=1 // pred_check
      _
    $region23: #{tpu_custom_call.1} parent=1 // pred_check_branch
      %83 = sbr.rel (0) target = $region25
    $region24: #{tpu_custom_call.1} parent=1 // pred_region
      %85 = vsyncadd [#allocation12], 0
      %s86 = sshll.u32 %s5, 4
      %s87 = int_to_ptr.hbm [resolvable:$true] %s86
      %s88 = sshll.u32 [#allocation11], 4
      %s89 = int_to_ptr.vmem [resolvable:$true] %s88
      %94 = dma.hbm_to_vmem [thread:$0]  %s87, 8192, %s89, [#allocation12], 128, 128, 8
    $region25: #{tpu_custom_call.1} parent=1 // pred_fallthru
      _
    // Predicated region
    $region26: #{tpu_custom_call.1} parent=1 // pred_check
      _
    $region27: #{tpu_custom_call.1} parent=1 // pred_check_branch
      %96 = sbr.rel (0) target = $region29
    $region28: #{tpu_custom_call.1} parent=1 // pred_region
      %98 = vsyncadd [#allocation12], 0
      %s100 = sshll.u32 %s6, 4
      %s101 = int_to_ptr.hbm [resolvable:$true] %s100
      %s102 = sshll.u32 [#allocation13], 4
      %s103 = int_to_ptr.vmem [resolvable:$true] %s102
      %105 = dma.hbm_to_vmem [thread:$0]  %s101, 32, %s103, [#allocation12]
    $region29: #{tpu_custom_call.1} parent=1 // pred_fallthru
      _
    // Predicated region
    $region30: #{tpu_custom_call.1} parent=1 // pred_check
      _
    $region31: #{tpu_custom_call.1} parent=1 // pred_check_branch
      %107 = sbr.rel (0) target = $region33
    $region32: #{tpu_custom_call.1} parent=1 // pred_region
      _
    $region33: #{tpu_custom_call.1} parent=1 // pred_fallthru
      _
    // Predicated region
    $region34: #{tpu_custom_call.1} parent=1 // pred_check
      _
    $region35: #{tpu_custom_call.1} parent=1 // pred_check_branch
      %109 = sbr.rel (0) target = $region37
    $region36: #{tpu_custom_call.1} parent=1 // pred_region
      %111 = vsyncadd [#allocation15], 0
      %s113 = sshll.u32 %s8, 4
      %s114 = int_to_ptr.hbm [resolvable:$true] %s113
      %s115 = sshll.u32 [#allocation14], 4
      %s116 = int_to_ptr.vmem [resolvable:$true] %s115
      %118 = dma.hbm_to_vmem [thread:$0]  %s114, 16, %s116, [#allocation15]
    $region37: #{tpu_custom_call.1} parent=1 // pred_fallthru
      _
    // Predicated region
    $region38: #{tpu_custom_call.1} parent=1 // pred_check
      _
    $region39: #{tpu_custom_call.1} parent=1 // pred_check_branch
      %120 = sbr.rel (0) target = $region41
    $region40: #{tpu_custom_call.1} parent=1 // pred_region
      %122 = vsyncadd [#allocation15], 0
      %s123 = sshll.u32 %s9, 4
      %s124 = int_to_ptr.hbm [resolvable:$true] %s123
      %s125 = sshll.u32 [#allocation16], 4
      %s126 = int_to_ptr.vmem [resolvable:$true] %s125
      %131 = dma.hbm_to_vmem [thread:$0]  %s124, 512, %s126, [#allocation15], 64, 64, 4
    $region41: #{tpu_custom_call.1} parent=1 // pred_fallthru
      _
    // Predicated region
    $region42: #{tpu_custom_call.1} parent=1 // pred_check
      _
    $region43: #{tpu_custom_call.1} parent=1 // pred_check_branch
      %133 = sbr.rel (0) target = $region45
    $region44: #{tpu_custom_call.1} parent=1 // pred_region
      %135 = vsyncadd [#allocation18], 0
      %s137 = sshll.u32 %s10, 4
      %s138 = int_to_ptr.hbm [resolvable:$true] %s137
      %s139 = sshll.u32 [#allocation17], 4
      %s140 = int_to_ptr.vmem [resolvable:$true] %s139
      %142 = dma.hbm_to_vmem [thread:$0]  %s138, 16, %s140, [#allocation18]
    $region45: #{tpu_custom_call.1} parent=1 // pred_fallthru
      _
    // Predicated region
    $region46: #{tpu_custom_call.1} parent=1 // pred_check
      _
    $region47: #{tpu_custom_call.1} parent=1 // pred_check_branch
      %144 = sbr.rel (0) target = $region49
    $region48: #{tpu_custom_call.1} parent=1 // pred_region
      %146 = dma.done [#allocation3], 2688
    $region49: #{tpu_custom_call.1} parent=1 // pred_fallthru
      _
    // Predicated region
    $region50: #{tpu_custom_call.1} parent=1 // pred_check
      _
    $region51: #{tpu_custom_call.1} parent=1 // pred_check_branch
      %148 = sbr.rel (0) target = $region53
    $region52: #{tpu_custom_call.1} parent=1 // pred_region
      %150 = dma.done [#allocation6], 172032
    $region53: #{tpu_custom_call.1} parent=1 // pred_fallthru
      _
    // Predicated region
    $region54: #{tpu_custom_call.1} parent=1 // pred_check
      _
    $region55: #{tpu_custom_call.1} parent=1 // pred_check_branch
      %152 = sbr.rel (0) target = $region57
    $region56: #{tpu_custom_call.1} parent=1 // pred_region
      %154 = dma.done [#allocation6], 128
    $region57: #{tpu_custom_call.1} parent=1 // pred_fallthru
      _
    // Predicated region
    $region58: #{tpu_custom_call.1} parent=1 // pred_check
      _
    $region59: #{tpu_custom_call.1} parent=1 // pred_check_branch
      %156 = sbr.rel (0) target = $region61
    $region60: #{tpu_custom_call.1} parent=1 // pred_region
      %158 = dma.done [#allocation9], 32768
    $region61: #{tpu_custom_call.1} parent=1 // pred_fallthru
      _
    // Predicated region
    $region62: #{tpu_custom_call.1} parent=1 // pred_check
      _
    $region63: #{tpu_custom_call.1} parent=1 // pred_check_branch
      %160 = sbr.rel (0) target = $region65
    $region64: #{tpu_custom_call.1} parent=1 // pred_region
      %162 = dma.done [#allocation9], 64
    $region65: #{tpu_custom_call.1} parent=1 // pred_fallthru
      _
    // Predicated region
    $region66: #{tpu_custom_call.1} parent=1 // pred_check
      _
    $region67: #{tpu_custom_call.1} parent=1 // pred_check_branch
      %164 = sbr.rel (0) target = $region69
    $region68: #{tpu_custom_call.1} parent=1 // pred_region
      %166 = dma.done [#allocation12], 8192
    $region69: #{tpu_custom_call.1} parent=1 // pred_fallthru
      _
    // Predicated region
    $region70: #{tpu_custom_call.1} parent=1 // pred_check
      _
    $region71: #{tpu_custom_call.1} parent=1 // pred_check_branch
      %168 = sbr.rel (0) target = $region73
    $region72: #{tpu_custom_call.1} parent=1 // pred_region
      %170 = dma.done [#allocation12], 32
    $region73: #{tpu_custom_call.1} parent=1 // pred_fallthru
      _
    // Predicated region
    $region74: #{tpu_custom_call.1} parent=1 // pred_check
      _
    $region75: #{tpu_custom_call.1} parent=1 // pred_check_branch
      %172 = sbr.rel (0) target = $region77
    $region76: #{tpu_custom_call.1} parent=1 // pred_region
      %174 = dma.done [#allocation15], 16
    $region77: #{tpu_custom_call.1} parent=1 // pred_fallthru
      _
    // Predicated region
    $region78: #{tpu_custom_call.1} parent=1 // pred_check
      _
    $region79: #{tpu_custom_call.1} parent=1 // pred_check_branch
      %176 = sbr.rel (0) target = $region81
    $region80: #{tpu_custom_call.1} parent=1 // pred_region
      %178 = dma.done [#allocation15], 512
    $region81: #{tpu_custom_call.1} parent=1 // pred_fallthru
      _
    // Predicated region
    $region82: #{tpu_custom_call.1} parent=1 // pred_check
      _
    $region83: #{tpu_custom_call.1} parent=1 // pred_check_branch
      %180 = sbr.rel (0) target = $region85
    $region84: #{tpu_custom_call.1} parent=1 // pred_region
      %182 = dma.done [#allocation18], 16
    $region85: #{tpu_custom_call.1} parent=1 // pred_fallthru
      _
    %v184 = vld [vmem:[#allocation2] sm:$0xff]
    %v185 = vld [vmem:[#allocation2 + $0x8] sm:$0xff]
    %v186 = vld [vmem:[#allocation2 + $0x10] sm:$0xff]
    %v187 = vld [vmem:[#allocation2 + $0x18] sm:$0xff]
    %v188 = vld [vmem:[#allocation2 + $0x20] sm:$0xff]
    %v189 = vld [vmem:[#allocation2 + $0x28] sm:$0xff]
    %v190 = vld [vmem:[#allocation2 + $0x30] sm:$0xff]
    %v191 = vld [vmem:[#allocation2 + $0x38] sm:$0xff]
    %v192 = vld [vmem:[#allocation2 + $0x40] sm:$0xff]
    %v193 = vld [vmem:[#allocation2 + $0x48] sm:$0xff]
    %v194 = vld [vmem:[#allocation2 + $0x50] sm:$0xff]
    %v195 = vld [vmem:[#allocation2 + $0x58] sm:$0xff]
    %v196 = vld [vmem:[#allocation2 + $0x60] sm:$0xff]
    %v197 = vld [vmem:[#allocation2 + $0x68] sm:$0xff]
    %v198 = vld [vmem:[#allocation2 + $0x70] sm:$0xff]
    %v199 = vld [vmem:[#allocation2 + $0x78] sm:$0xff]
    %v200 = vld [vmem:[#allocation2 + $0x80] sm:$0xff]
    %v201 = vld [vmem:[#allocation2 + $0x88] sm:$0xff]
    %v202 = vld [vmem:[#allocation2 + $0x90] sm:$0xff]
    %v203 = vld [vmem:[#allocation2 + $0x98] sm:$0xff]
    %v204 = vld [vmem:[#allocation2 + $0xa0] sm:$0xff]
    %v205 = vpack.c.bf16 %v184, %v184
    %v206 = vpack.c.bf16 %v185, %v185
    %v207 = vpack.c.bf16 %v186, %v186
    %v208 = vpack.c.bf16 %v187, %v187
    %v209 = vpack.c.bf16 %v188, %v188
    %v210 = vpack.c.bf16 %v189, %v189
    %v211 = vpack.c.bf16 %v190, %v190
    %v212 = vpack.c.bf16 %v191, %v191
    %v213 = vpack.c.bf16 %v192, %v192
    %v214 = vpack.c.bf16 %v193, %v193
    %v215 = vpack.c.bf16 %v194, %v194
    %v216 = vpack.c.bf16 %v195, %v195
    %v217 = vpack.c.bf16 %v196, %v196
    %v218 = vpack.c.bf16 %v197, %v197
    %v219 = vpack.c.bf16 %v198, %v198
    %v220 = vpack.c.bf16 %v199, %v199
    %v221 = vpack.c.bf16 %v200, %v200
    %v222 = vpack.c.bf16 %v201, %v201
    %v223 = vpack.c.bf16 %v202, %v202
    %v224 = vpack.c.bf16 %v203, %v203
    %v225 = vpack.c.bf16 %v204, %v204
    %v226 = vld [vmem:[#allocation5] sm:$0xff]
    %v227 = vld [vmem:[#allocation5 + $0x8] sm:$0xff]
    %v228 = vld [vmem:[#allocation5 + $0x10] sm:$0xff]
    %v229 = vld [vmem:[#allocation5 + $0x18] sm:$0xff]
    %v230 = vld [vmem:[#allocation5 + $0x20] sm:$0xff]
    %v231 = vld [vmem:[#allocation5 + $0x28] sm:$0xff]
    %v232 = vld [vmem:[#allocation5 + $0x30] sm:$0xff]
    %v233 = vld [vmem:[#allocation5 + $0x38] sm:$0xff]
    %v234 = vld [vmem:[#allocation5 + $0x40] sm:$0xff]
    %v235 = vld [vmem:[#allocation5 + $0x48] sm:$0xff]
    %v236 = vld [vmem:[#allocation5 + $0x50] sm:$0xff]
    %v237 = vld [vmem:[#allocation5 + $0x58] sm:$0xff]
    %v238 = vld [vmem:[#allocation5 + $0x60] sm:$0xff]
    %v239 = vld [vmem:[#allocation5 + $0x68] sm:$0xff]
    %v240 = vld [vmem:[#allocation5 + $0x70] sm:$0xff]
    %v241 = vld [vmem:[#allocation5 + $0x78] sm:$0xff]
    %v242 = vld [vmem:[#allocation5 + $0x80] sm:$0xff]
    %v243 = vld [vmem:[#allocation5 + $0x88] sm:$0xff]
    %v244 = vld [vmem:[#allocation5 + $0x90] sm:$0xff]
    %v245 = vld [vmem:[#allocation5 + $0x98] sm:$0xff]
    %v246 = vld [vmem:[#allocation5 + $0xa0] sm:$0xff]
    %v247 = vld [vmem:[#allocation5 + $0xa8] sm:$0xff]
    %v248 = vld [vmem:[#allocation5 + $0xb0] sm:$0xff]
    %v249 = vld [vmem:[#allocation5 + $0xb8] sm:$0xff]
    %v250 = vld [vmem:[#allocation5 + $0xc0] sm:$0xff]
    %v251 = vld [vmem:[#allocation5 + $0xc8] sm:$0xff]
    %v252 = vld [vmem:[#allocation5 + $0xd0] sm:$0xff]
    %v253 = vld [vmem:[#allocation5 + $0xd8] sm:$0xff]
    %v254 = vld [vmem:[#allocation5 + $0xe0] sm:$0xff]
    %v255 = vld [vmem:[#allocation5 + $0xe8] sm:$0xff]
    %v256 = vld [vmem:[#allocation5 + $0xf0] sm:$0xff]
    %v257 = vld [vmem:[#allocation5 + $0xf8] sm:$0xff]
    %v258 = vld [vmem:[#allocation5 + $0x100] sm:$0xff]
    %v259 = vld [vmem:[#allocation5 + $0x108] sm:$0xff]
    %v260 = vld [vmem:[#allocation5 + $0x110] sm:$0xff]
    %v261 = vld [vmem:[#allocation5 + $0x118] sm:$0xff]
    %v262 = vld [vmem:[#allocation5 + $0x120] sm:$0xff]
    %v263 = vld [vmem:[#allocation5 + $0x128] sm:$0xff]
    %v264 = vld [vmem:[#allocation5 + $0x130] sm:$0xff]
    %v265 = vld [vmem:[#allocation5 + $0x138] sm:$0xff]
    %v266 = vld [vmem:[#allocation5 + $0x140] sm:$0xff]
    %v267 = vld [vmem:[#allocation5 + $0x148] sm:$0xff]
    %v268 = vld [vmem:[#allocation5 + $0x150] sm:$0xff]
    %v269 = vld [vmem:[#allocation5 + $0x158] sm:$0xff]
    %v270 = vld [vmem:[#allocation5 + $0x160] sm:$0xff]
    %v271 = vld [vmem:[#allocation5 + $0x168] sm:$0xff]
    %v272 = vld [vmem:[#allocation5 + $0x170] sm:$0xff]
    %v273 = vld [vmem:[#allocation5 + $0x178] sm:$0xff]
    %v274 = vld [vmem:[#allocation5 + $0x180] sm:$0xff]
    %v275 = vld [vmem:[#allocation5 + $0x188] sm:$0xff]
    %v276 = vld [vmem:[#allocation5 + $0x190] sm:$0xff]
    %v277 = vld [vmem:[#allocation5 + $0x198] sm:$0xff]
    %v278 = vld [vmem:[#allocation5 + $0x1a0] sm:$0xff]
    %v279 = vld [vmem:[#allocation5 + $0x1a8] sm:$0xff]
    %v280 = vld [vmem:[#allocation5 + $0x1b0] sm:$0xff]
    %v281 = vld [vmem:[#allocation5 + $0x1b8] sm:$0xff]
    %v282 = vld [vmem:[#allocation5 + $0x1c0] sm:$0xff]
    %v283 = vld [vmem:[#allocation5 + $0x1c8] sm:$0xff]
    %v284 = vld [vmem:[#allocation5 + $0x1d0] sm:$0xff]
    %v285 = vld [vmem:[#allocation5 + $0x1d8] sm:$0xff]
    %v286 = vld [vmem:[#allocation5 + $0x1e0] sm:$0xff]
    %v287 = vld [vmem:[#allocation5 + $0x1e8] sm:$0xff]
    %v288 = vld [vmem:[#allocation5 + $0x1f0] sm:$0xff]
    %v289 = vld [vmem:[#allocation5 + $0x1f8] sm:$0xff]
    %v290 = vld [vmem:[#allocation5 + $0x200] sm:$0xff]
    %v291 = vld [vmem:[#allocation5 + $0x208] sm:$0xff]
    %v292 = vld [vmem:[#allocation5 + $0x210] sm:$0xff]
    %v293 = vld [vmem:[#allocation5 + $0x218] sm:$0xff]
    %v294 = vld [vmem:[#allocation5 + $0x220] sm:$0xff]
    %v295 = vld [vmem:[#allocation5 + $0x228] sm:$0xff]
    %v296 = vld [vmem:[#allocation5 + $0x230] sm:$0xff]
    %v297 = vld [vmem:[#allocation5 + $0x238] sm:$0xff]
    %v298 = vld [vmem:[#allocation5 + $0x240] sm:$0xff]
    %v299 = vld [vmem:[#allocation5 + $0x248] sm:$0xff]
    %v300 = vld [vmem:[#allocation5 + $0x250] sm:$0xff]
    %v301 = vld [vmem:[#allocation5 + $0x258] sm:$0xff]
    %v302 = vld [vmem:[#allocation5 + $0x260] sm:$0xff]
    %v303 = vld [vmem:[#allocation5 + $0x268] sm:$0xff]
    %v304 = vld [vmem:[#allocation5 + $0x270] sm:$0xff]
    %v305 = vld [vmem:[#allocation5 + $0x278] sm:$0xff]
    %v306 = vld [vmem:[#allocation5 + $0x280] sm:$0xff]
    %v307 = vld [vmem:[#allocation5 + $0x288] sm:$0xff]
    %v308 = vld [vmem:[#allocation5 + $0x290] sm:$0xff]
    %v309 = vld [vmem:[#allocation5 + $0x298] sm:$0xff]
    %v310 = vld [vmem:[#allocation5 + $0x2a0] sm:$0xff]
    %v311 = vld [vmem:[#allocation5 + $0x2a8] sm:$0xff]
    %v312 = vld [vmem:[#allocation5 + $0x2b0] sm:$0xff]
    %v313 = vld [vmem:[#allocation5 + $0x2b8] sm:$0xff]
    %v314 = vld [vmem:[#allocation5 + $0x2c0] sm:$0xff]
    %v315 = vld [vmem:[#allocation5 + $0x2c8] sm:$0xff]
    %v316 = vld [vmem:[#allocation5 + $0x2d0] sm:$0xff]
    %v317 = vld [vmem:[#allocation5 + $0x2d8] sm:$0xff]
    %v318 = vld [vmem:[#allocation5 + $0x2e0] sm:$0xff]
    %v319 = vld [vmem:[#allocation5 + $0x2e8] sm:$0xff]
    %v320 = vld [vmem:[#allocation5 + $0x2f0] sm:$0xff]
    %v321 = vld [vmem:[#allocation5 + $0x2f8] sm:$0xff]
    %v322 = vld [vmem:[#allocation5 + $0x300] sm:$0xff]
    %v323 = vld [vmem:[#allocation5 + $0x308] sm:$0xff]
    %v324 = vld [vmem:[#allocation5 + $0x310] sm:$0xff]
    %v325 = vld [vmem:[#allocation5 + $0x318] sm:$0xff]
    %v326 = vld [vmem:[#allocation5 + $0x320] sm:$0xff]
    %v327 = vld [vmem:[#allocation5 + $0x328] sm:$0xff]
    %v328 = vld [vmem:[#allocation5 + $0x330] sm:$0xff]
    %v329 = vld [vmem:[#allocation5 + $0x338] sm:$0xff]
    %v330 = vld [vmem:[#allocation5 + $0x340] sm:$0xff]
    %v331 = vld [vmem:[#allocation5 + $0x348] sm:$0xff]
    %v332 = vld [vmem:[#allocation5 + $0x350] sm:$0xff]
    %v333 = vld [vmem:[#allocation5 + $0x358] sm:$0xff]
    %v334 = vld [vmem:[#allocation5 + $0x360] sm:$0xff]
    %v335 = vld [vmem:[#allocation5 + $0x368] sm:$0xff]
    %v336 = vld [vmem:[#allocation5 + $0x370] sm:$0xff]
    %v337 = vld [vmem:[#allocation5 + $0x378] sm:$0xff]
    %v338 = vld [vmem:[#allocation5 + $0x380] sm:$0xff]
    %v339 = vld [vmem:[#allocation5 + $0x388] sm:$0xff]
    %v340 = vld [vmem:[#allocation5 + $0x390] sm:$0xff]
    %v341 = vld [vmem:[#allocation5 + $0x398] sm:$0xff]
    %v342 = vld [vmem:[#allocation5 + $0x3a0] sm:$0xff]
    %v343 = vld [vmem:[#allocation5 + $0x3a8] sm:$0xff]
    %v344 = vld [vmem:[#allocation5 + $0x3b0] sm:$0xff]
    %v345 = vld [vmem:[#allocation5 + $0x3b8] sm:$0xff]
    %v346 = vld [vmem:[#allocation5 + $0x3c0] sm:$0xff]
    %v347 = vld [vmem:[#allocation5 + $0x3c8] sm:$0xff]
    %v348 = vld [vmem:[#allocation5 + $0x3d0] sm:$0xff]
    %v349 = vld [vmem:[#allocation5 + $0x3d8] sm:$0xff]
    %v350 = vld [vmem:[#allocation5 + $0x3e0] sm:$0xff]
    %v351 = vld [vmem:[#allocation5 + $0x3e8] sm:$0xff]
    %v352 = vld [vmem:[#allocation5 + $0x3f0] sm:$0xff]
    %v353 = vld [vmem:[#allocation5 + $0x3f8] sm:$0xff]
    %v354 = vld [vmem:[#allocation5 + $0x400] sm:$0xff]
    %v355 = vld [vmem:[#allocation5 + $0x408] sm:$0xff]
    %v356 = vld [vmem:[#allocation5 + $0x410] sm:$0xff]
    %v357 = vld [vmem:[#allocation5 + $0x418] sm:$0xff]
    %v358 = vld [vmem:[#allocation5 + $0x420] sm:$0xff]
    %v359 = vld [vmem:[#allocation5 + $0x428] sm:$0xff]
    %v360 = vld [vmem:[#allocation5 + $0x430] sm:$0xff]
    %v361 = vld [vmem:[#allocation5 + $0x438] sm:$0xff]
    %v362 = vld [vmem:[#allocation5 + $0x440] sm:$0xff]
    %v363 = vld [vmem:[#allocation5 + $0x448] sm:$0xff]
    %v364 = vld [vmem:[#allocation5 + $0x450] sm:$0xff]
    %v365 = vld [vmem:[#allocation5 + $0x458] sm:$0xff]
    %v366 = vld [vmem:[#allocation5 + $0x460] sm:$0xff]
    %v367 = vld [vmem:[#allocation5 + $0x468] sm:$0xff]
    %v368 = vld [vmem:[#allocation5 + $0x470] sm:$0xff]
    %v369 = vld [vmem:[#allocation5 + $0x478] sm:$0xff]
    %v370 = vld [vmem:[#allocation5 + $0x480] sm:$0xff]
    %v371 = vld [vmem:[#allocation5 + $0x488] sm:$0xff]
    %v372 = vld [vmem:[#allocation5 + $0x490] sm:$0xff]
    %v373 = vld [vmem:[#allocation5 + $0x498] sm:$0xff]
    %v374 = vld [vmem:[#allocation5 + $0x4a0] sm:$0xff]
    %v375 = vld [vmem:[#allocation5 + $0x4a8] sm:$0xff]
    %v376 = vld [vmem:[#allocation5 + $0x4b0] sm:$0xff]
    %v377 = vld [vmem:[#allocation5 + $0x4b8] sm:$0xff]
    %v378 = vld [vmem:[#allocation5 + $0x4c0] sm:$0xff]
    %v379 = vld [vmem:[#allocation5 + $0x4c8] sm:$0xff]
    %v380 = vld [vmem:[#allocation5 + $0x4d0] sm:$0xff]
    %v381 = vld [vmem:[#allocation5 + $0x4d8] sm:$0xff]
    %v382 = vld [vmem:[#allocation5 + $0x4e0] sm:$0xff]
    %v383 = vld [vmem:[#allocation5 + $0x4e8] sm:$0xff]
    %v384 = vld [vmem:[#allocation5 + $0x4f0] sm:$0xff]
    %v385 = vld [vmem:[#allocation5 + $0x4f8] sm:$0xff]
    %v386 = vld [vmem:[#allocation5 + $0x500] sm:$0xff]
    %v387 = vld [vmem:[#allocation5 + $0x508] sm:$0xff]
    %v388 = vld [vmem:[#allocation5 + $0x510] sm:$0xff]
    %v389 = vld [vmem:[#allocation5 + $0x518] sm:$0xff]
    %v390 = vld [vmem:[#allocation5 + $0x520] sm:$0xff]
    %v391 = vld [vmem:[#allocation5 + $0x528] sm:$0xff]
    %v392 = vld [vmem:[#allocation5 + $0x530] sm:$0xff]
    %v393 = vld [vmem:[#allocation5 + $0x538] sm:$0xff]
    %v394 = vld [vmem:[#allocation5 + $0x540] sm:$0xff]
    %v395 = vld [vmem:[#allocation5 + $0x548] sm:$0xff]
    %v396 = vld [vmem:[#allocation5 + $0x550] sm:$0xff]
    %v397 = vld [vmem:[#allocation5 + $0x558] sm:$0xff]
    %v398 = vld [vmem:[#allocation5 + $0x560] sm:$0xff]
    %v399 = vld [vmem:[#allocation5 + $0x568] sm:$0xff]
    %v400 = vld [vmem:[#allocation5 + $0x570] sm:$0xff]
    %v401 = vld [vmem:[#allocation5 + $0x578] sm:$0xff]
    %v402 = vld [vmem:[#allocation5 + $0x580] sm:$0xff]
    %v403 = vld [vmem:[#allocation5 + $0x588] sm:$0xff]
    %v404 = vld [vmem:[#allocation5 + $0x590] sm:$0xff]
    %v405 = vld [vmem:[#allocation5 + $0x598] sm:$0xff]
    %v406 = vld [vmem:[#allocation5 + $0x5a0] sm:$0xff]
    %v407 = vld [vmem:[#allocation5 + $0x5a8] sm:$0xff]
    %v408 = vld [vmem:[#allocation5 + $0x5b0] sm:$0xff]
    %v409 = vld [vmem:[#allocation5 + $0x5b8] sm:$0xff]
    %v410 = vld [vmem:[#allocation5 + $0x5c0] sm:$0xff]
    %v411 = vld [vmem:[#allocation5 + $0x5c8] sm:$0xff]
    %v412 = vld [vmem:[#allocation5 + $0x5d0] sm:$0xff]
    %v413 = vld [vmem:[#allocation5 + $0x5d8] sm:$0xff]
    %v414 = vld [vmem:[#allocation5 + $0x5e0] sm:$0xff]
    %v415 = vld [vmem:[#allocation5 + $0x5e8] sm:$0xff]
    %v416 = vld [vmem:[#allocation5 + $0x5f0] sm:$0xff]
    %v417 = vld [vmem:[#allocation5 + $0x5f8] sm:$0xff]
    %v418 = vld [vmem:[#allocation5 + $0x600] sm:$0xff]
    %v419 = vld [vmem:[#allocation5 + $0x608] sm:$0xff]
    %v420 = vld [vmem:[#allocation5 + $0x610] sm:$0xff]
    %v421 = vld [vmem:[#allocation5 + $0x618] sm:$0xff]
    %v422 = vld [vmem:[#allocation5 + $0x620] sm:$0xff]
    %v423 = vld [vmem:[#allocation5 + $0x628] sm:$0xff]
    %v424 = vld [vmem:[#allocation5 + $0x630] sm:$0xff]
    %v425 = vld [vmem:[#allocation5 + $0x638] sm:$0xff]
    %v426 = vld [vmem:[#allocation5 + $0x640] sm:$0xff]
    %v427 = vld [vmem:[#allocation5 + $0x648] sm:$0xff]
    %v428 = vld [vmem:[#allocation5 + $0x650] sm:$0xff]
    %v429 = vld [vmem:[#allocation5 + $0x658] sm:$0xff]
    %v430 = vld [vmem:[#allocation5 + $0x660] sm:$0xff]
    %v431 = vld [vmem:[#allocation5 + $0x668] sm:$0xff]
    %v432 = vld [vmem:[#allocation5 + $0x670] sm:$0xff]
    %v433 = vld [vmem:[#allocation5 + $0x678] sm:$0xff]
    %v434 = vld [vmem:[#allocation5 + $0x680] sm:$0xff]
    %v435 = vld [vmem:[#allocation5 + $0x688] sm:$0xff]
    %v436 = vld [vmem:[#allocation5 + $0x690] sm:$0xff]
    %v437 = vld [vmem:[#allocation5 + $0x698] sm:$0xff]
    %v438 = vld [vmem:[#allocation5 + $0x6a0] sm:$0xff]
    %v439 = vld [vmem:[#allocation5 + $0x6a8] sm:$0xff]
    %v440 = vld [vmem:[#allocation5 + $0x6b0] sm:$0xff]
    %v441 = vld [vmem:[#allocation5 + $0x6b8] sm:$0xff]
    %v442 = vld [vmem:[#allocation5 + $0x6c0] sm:$0xff]
    %v443 = vld [vmem:[#allocation5 + $0x6c8] sm:$0xff]
    %v444 = vld [vmem:[#allocation5 + $0x6d0] sm:$0xff]
    %v445 = vld [vmem:[#allocation5 + $0x6d8] sm:$0xff]
    %v446 = vld [vmem:[#allocation5 + $0x6e0] sm:$0xff]
    %v447 = vld [vmem:[#allocation5 + $0x6e8] sm:$0xff]
    %v448 = vld [vmem:[#allocation5 + $0x6f0] sm:$0xff]
    %v449 = vld [vmem:[#allocation5 + $0x6f8] sm:$0xff]
    %v450 = vld [vmem:[#allocation5 + $0x700] sm:$0xff]
    %v451 = vld [vmem:[#allocation5 + $0x708] sm:$0xff]
    %v452 = vld [vmem:[#allocation5 + $0x710] sm:$0xff]
    %v453 = vld [vmem:[#allocation5 + $0x718] sm:$0xff]
    %v454 = vld [vmem:[#allocation5 + $0x720] sm:$0xff]
    %v455 = vld [vmem:[#allocation5 + $0x728] sm:$0xff]
    %v456 = vld [vmem:[#allocation5 + $0x730] sm:$0xff]
    %v457 = vld [vmem:[#allocation5 + $0x738] sm:$0xff]
    %v458 = vld [vmem:[#allocation5 + $0x740] sm:$0xff]
    %v459 = vld [vmem:[#allocation5 + $0x748] sm:$0xff]
    %v460 = vld [vmem:[#allocation5 + $0x750] sm:$0xff]
    %v461 = vld [vmem:[#allocation5 + $0x758] sm:$0xff]
    %v462 = vld [vmem:[#allocation5 + $0x760] sm:$0xff]
    %v463 = vld [vmem:[#allocation5 + $0x768] sm:$0xff]
    %v464 = vld [vmem:[#allocation5 + $0x770] sm:$0xff]
    %v465 = vld [vmem:[#allocation5 + $0x778] sm:$0xff]
    %v466 = vld [vmem:[#allocation5 + $0x780] sm:$0xff]
    %v467 = vld [vmem:[#allocation5 + $0x788] sm:$0xff]
    %v468 = vld [vmem:[#allocation5 + $0x790] sm:$0xff]
    %v469 = vld [vmem:[#allocation5 + $0x798] sm:$0xff]
    %v470 = vld [vmem:[#allocation5 + $0x7a0] sm:$0xff]
    %v471 = vld [vmem:[#allocation5 + $0x7a8] sm:$0xff]
    %v472 = vld [vmem:[#allocation5 + $0x7b0] sm:$0xff]
    %v473 = vld [vmem:[#allocation5 + $0x7b8] sm:$0xff]
    %v474 = vld [vmem:[#allocation5 + $0x7c0] sm:$0xff]
    %v475 = vld [vmem:[#allocation5 + $0x7c8] sm:$0xff]
    %v476 = vld [vmem:[#allocation5 + $0x7d0] sm:$0xff]
    %v477 = vld [vmem:[#allocation5 + $0x7d8] sm:$0xff]
    %v478 = vld [vmem:[#allocation5 + $0x7e0] sm:$0xff]
    %v479 = vld [vmem:[#allocation5 + $0x7e8] sm:$0xff]
    %v480 = vld [vmem:[#allocation5 + $0x7f0] sm:$0xff]
    %v481 = vld [vmem:[#allocation5 + $0x7f8] sm:$0xff]
    %v482 = vld [vmem:[#allocation5 + $0x800] sm:$0xff]
    %v483 = vld [vmem:[#allocation5 + $0x808] sm:$0xff]
    %v484 = vld [vmem:[#allocation5 + $0x810] sm:$0xff]
    %v485 = vld [vmem:[#allocation5 + $0x818] sm:$0xff]
    %v486 = vld [vmem:[#allocation5 + $0x820] sm:$0xff]
    %v487 = vld [vmem:[#allocation5 + $0x828] sm:$0xff]
    %v488 = vld [vmem:[#allocation5 + $0x830] sm:$0xff]
    %v489 = vld [vmem:[#allocation5 + $0x838] sm:$0xff]
    %v490 = vld [vmem:[#allocation5 + $0x840] sm:$0xff]
    %v491 = vld [vmem:[#allocation5 + $0x848] sm:$0xff]
    %v492 = vld [vmem:[#allocation5 + $0x850] sm:$0xff]
    %v493 = vld [vmem:[#allocation5 + $0x858] sm:$0xff]
    %v494 = vld [vmem:[#allocation5 + $0x860] sm:$0xff]
    %v495 = vld [vmem:[#allocation5 + $0x868] sm:$0xff]
    %v496 = vld [vmem:[#allocation5 + $0x870] sm:$0xff]
    %v497 = vld [vmem:[#allocation5 + $0x878] sm:$0xff]
    %v498 = vld [vmem:[#allocation5 + $0x880] sm:$0xff]
    %v499 = vld [vmem:[#allocation5 + $0x888] sm:$0xff]
    %v500 = vld [vmem:[#allocation5 + $0x890] sm:$0xff]
    %v501 = vld [vmem:[#allocation5 + $0x898] sm:$0xff]
    %v502 = vld [vmem:[#allocation5 + $0x8a0] sm:$0xff]
    %v503 = vld [vmem:[#allocation5 + $0x8a8] sm:$0xff]
    %v504 = vld [vmem:[#allocation5 + $0x8b0] sm:$0xff]
    %v505 = vld [vmem:[#allocation5 + $0x8b8] sm:$0xff]
    %v506 = vld [vmem:[#allocation5 + $0x8c0] sm:$0xff]
    %v507 = vld [vmem:[#allocation5 + $0x8c8] sm:$0xff]
    %v508 = vld [vmem:[#allocation5 + $0x8d0] sm:$0xff]
    %v509 = vld [vmem:[#allocation5 + $0x8d8] sm:$0xff]
    %v510 = vld [vmem:[#allocation5 + $0x8e0] sm:$0xff]
    %v511 = vld [vmem:[#allocation5 + $0x8e8] sm:$0xff]
    %v512 = vld [vmem:[#allocation5 + $0x8f0] sm:$0xff]
    %v513 = vld [vmem:[#allocation5 + $0x8f8] sm:$0xff]
    %v514 = vld [vmem:[#allocation5 + $0x900] sm:$0xff]
    %v515 = vld [vmem:[#allocation5 + $0x908] sm:$0xff]
    %v516 = vld [vmem:[#allocation5 + $0x910] sm:$0xff]
    %v517 = vld [vmem:[#allocation5 + $0x918] sm:$0xff]
    %v518 = vld [vmem:[#allocation5 + $0x920] sm:$0xff]
    %v519 = vld [vmem:[#allocation5 + $0x928] sm:$0xff]
    %v520 = vld [vmem:[#allocation5 + $0x930] sm:$0xff]
    %v521 = vld [vmem:[#allocation5 + $0x938] sm:$0xff]
    %v522 = vld [vmem:[#allocation5 + $0x940] sm:$0xff]
    %v523 = vld [vmem:[#allocation5 + $0x948] sm:$0xff]
    %v524 = vld [vmem:[#allocation5 + $0x950] sm:$0xff]
    %v525 = vld [vmem:[#allocation5 + $0x958] sm:$0xff]
    %v526 = vld [vmem:[#allocation5 + $0x960] sm:$0xff]
    %v527 = vld [vmem:[#allocation5 + $0x968] sm:$0xff]
    %v528 = vld [vmem:[#allocation5 + $0x970] sm:$0xff]
    %v529 = vld [vmem:[#allocation5 + $0x978] sm:$0xff]
    %v530 = vld [vmem:[#allocation5 + $0x980] sm:$0xff]
    %v531 = vld [vmem:[#allocation5 + $0x988] sm:$0xff]
    %v532 = vld [vmem:[#allocation5 + $0x990] sm:$0xff]
    %v533 = vld [vmem:[#allocation5 + $0x998] sm:$0xff]
    %v534 = vld [vmem:[#allocation5 + $0x9a0] sm:$0xff]
    %v535 = vld [vmem:[#allocation5 + $0x9a8] sm:$0xff]
    %v536 = vld [vmem:[#allocation5 + $0x9b0] sm:$0xff]
    %v537 = vld [vmem:[#allocation5 + $0x9b8] sm:$0xff]
    %v538 = vld [vmem:[#allocation5 + $0x9c0] sm:$0xff]
    %v539 = vld [vmem:[#allocation5 + $0x9c8] sm:$0xff]
    %v540 = vld [vmem:[#allocation5 + $0x9d0] sm:$0xff]
    %v541 = vld [vmem:[#allocation5 + $0x9d8] sm:$0xff]
    %v542 = vld [vmem:[#allocation5 + $0x9e0] sm:$0xff]
    %v543 = vld [vmem:[#allocation5 + $0x9e8] sm:$0xff]
    %v544 = vld [vmem:[#allocation5 + $0x9f0] sm:$0xff]
    %v545 = vld [vmem:[#allocation5 + $0x9f8] sm:$0xff]
    %v546 = vld [vmem:[#allocation5 + $0xa00] sm:$0xff]
    %v547 = vld [vmem:[#allocation5 + $0xa08] sm:$0xff]
    %v548 = vld [vmem:[#allocation5 + $0xa10] sm:$0xff]
    %v549 = vld [vmem:[#allocation5 + $0xa18] sm:$0xff]
    %v550 = vld [vmem:[#allocation5 + $0xa20] sm:$0xff]
    %v551 = vld [vmem:[#allocation5 + $0xa28] sm:$0xff]
    %v552 = vld [vmem:[#allocation5 + $0xa30] sm:$0xff]
    %v553 = vld [vmem:[#allocation5 + $0xa38] sm:$0xff]
    %v554 = vld [vmem:[#allocation5 + $0xa40] sm:$0xff]
    %v555 = vld [vmem:[#allocation5 + $0xa48] sm:$0xff]
    %v556 = vld [vmem:[#allocation5 + $0xa50] sm:$0xff]
    %v557 = vld [vmem:[#allocation5 + $0xa58] sm:$0xff]
    %v558 = vld [vmem:[#allocation5 + $0xa60] sm:$0xff]
    %v559 = vld [vmem:[#allocation5 + $0xa68] sm:$0xff]
    %v560 = vld [vmem:[#allocation5 + $0xa70] sm:$0xff]
    %v561 = vld [vmem:[#allocation5 + $0xa78] sm:$0xff]
    %v562 = vld [vmem:[#allocation5 + $0xa80] sm:$0xff]
    %v563 = vld [vmem:[#allocation5 + $0xa88] sm:$0xff]
    %v564 = vld [vmem:[#allocation5 + $0xa90] sm:$0xff]
    %v565 = vld [vmem:[#allocation5 + $0xa98] sm:$0xff]
    %v566 = vld [vmem:[#allocation5 + $0xaa0] sm:$0xff]
    %v567 = vld [vmem:[#allocation5 + $0xaa8] sm:$0xff]
    %v568 = vld [vmem:[#allocation5 + $0xab0] sm:$0xff]
    %v569 = vld [vmem:[#allocation5 + $0xab8] sm:$0xff]
    %v570 = vld [vmem:[#allocation5 + $0xac0] sm:$0xff]
    %v571 = vld [vmem:[#allocation5 + $0xac8] sm:$0xff]
    %v572 = vld [vmem:[#allocation5 + $0xad0] sm:$0xff]
    %v573 = vld [vmem:[#allocation5 + $0xad8] sm:$0xff]
    %v574 = vld [vmem:[#allocation5 + $0xae0] sm:$0xff]
    %v575 = vld [vmem:[#allocation5 + $0xae8] sm:$0xff]
    %v576 = vld [vmem:[#allocation5 + $0xaf0] sm:$0xff]
    %v577 = vld [vmem:[#allocation5 + $0xaf8] sm:$0xff]
    %v578 = vld [vmem:[#allocation5 + $0xb00] sm:$0xff]
    %v579 = vld [vmem:[#allocation5 + $0xb08] sm:$0xff]
    %v580 = vld [vmem:[#allocation5 + $0xb10] sm:$0xff]
    %v581 = vld [vmem:[#allocation5 + $0xb18] sm:$0xff]
    %v582 = vld [vmem:[#allocation5 + $0xb20] sm:$0xff]
    %v583 = vld [vmem:[#allocation5 + $0xb28] sm:$0xff]
    %v584 = vld [vmem:[#allocation5 + $0xb30] sm:$0xff]
    %v585 = vld [vmem:[#allocation5 + $0xb38] sm:$0xff]
    %v586 = vld [vmem:[#allocation5 + $0xb40] sm:$0xff]
    %v587 = vld [vmem:[#allocation5 + $0xb48] sm:$0xff]
    %v588 = vld [vmem:[#allocation5 + $0xb50] sm:$0xff]
    %v589 = vld [vmem:[#allocation5 + $0xb58] sm:$0xff]
    %v590 = vld [vmem:[#allocation5 + $0xb60] sm:$0xff]
    %v591 = vld [vmem:[#allocation5 + $0xb68] sm:$0xff]
    %v592 = vld [vmem:[#allocation5 + $0xb70] sm:$0xff]
    %v593 = vld [vmem:[#allocation5 + $0xb78] sm:$0xff]
    %v594 = vld [vmem:[#allocation5 + $0xb80] sm:$0xff]
    %v595 = vld [vmem:[#allocation5 + $0xb88] sm:$0xff]
    %v596 = vld [vmem:[#allocation5 + $0xb90] sm:$0xff]
    %v597 = vld [vmem:[#allocation5 + $0xb98] sm:$0xff]
    %v598 = vld [vmem:[#allocation5 + $0xba0] sm:$0xff]
    %v599 = vld [vmem:[#allocation5 + $0xba8] sm:$0xff]
    %v600 = vld [vmem:[#allocation5 + $0xbb0] sm:$0xff]
    %v601 = vld [vmem:[#allocation5 + $0xbb8] sm:$0xff]
    %v602 = vld [vmem:[#allocation5 + $0xbc0] sm:$0xff]
    %v603 = vld [vmem:[#allocation5 + $0xbc8] sm:$0xff]
    %v604 = vld [vmem:[#allocation5 + $0xbd0] sm:$0xff]
    %v605 = vld [vmem:[#allocation5 + $0xbd8] sm:$0xff]
    %v606 = vld [vmem:[#allocation5 + $0xbe0] sm:$0xff]
    %v607 = vld [vmem:[#allocation5 + $0xbe8] sm:$0xff]
    %v608 = vld [vmem:[#allocation5 + $0xbf0] sm:$0xff]
    %v609 = vld [vmem:[#allocation5 + $0xbf8] sm:$0xff]
    %v610 = vld [vmem:[#allocation5 + $0xc00] sm:$0xff]
    %v611 = vld [vmem:[#allocation5 + $0xc08] sm:$0xff]
    %v612 = vld [vmem:[#allocation5 + $0xc10] sm:$0xff]
    %v613 = vld [vmem:[#allocation5 + $0xc18] sm:$0xff]
    %v614 = vld [vmem:[#allocation5 + $0xc20] sm:$0xff]
    %v615 = vld [vmem:[#allocation5 + $0xc28] sm:$0xff]
    %v616 = vld [vmem:[#allocation5 + $0xc30] sm:$0xff]
    %v617 = vld [vmem:[#allocation5 + $0xc38] sm:$0xff]
    %v618 = vld [vmem:[#allocation5 + $0xc40] sm:$0xff]
    %v619 = vld [vmem:[#allocation5 + $0xc48] sm:$0xff]
    %v620 = vld [vmem:[#allocation5 + $0xc50] sm:$0xff]
    %v621 = vld [vmem:[#allocation5 + $0xc58] sm:$0xff]
    %v622 = vld [vmem:[#allocation5 + $0xc60] sm:$0xff]
    %v623 = vld [vmem:[#allocation5 + $0xc68] sm:$0xff]
    %v624 = vld [vmem:[#allocation5 + $0xc70] sm:$0xff]
    %v625 = vld [vmem:[#allocation5 + $0xc78] sm:$0xff]
    %v626 = vld [vmem:[#allocation5 + $0xc80] sm:$0xff]
    %v627 = vld [vmem:[#allocation5 + $0xc88] sm:$0xff]
    %v628 = vld [vmem:[#allocation5 + $0xc90] sm:$0xff]
    %v629 = vld [vmem:[#allocation5 + $0xc98] sm:$0xff]
    %v630 = vld [vmem:[#allocation5 + $0xca0] sm:$0xff]
    %v631 = vld [vmem:[#allocation5 + $0xca8] sm:$0xff]
    %v632 = vld [vmem:[#allocation5 + $0xcb0] sm:$0xff]
    %v633 = vld [vmem:[#allocation5 + $0xcb8] sm:$0xff]
    %v634 = vld [vmem:[#allocation5 + $0xcc0] sm:$0xff]
    %v635 = vld [vmem:[#allocation5 + $0xcc8] sm:$0xff]
    %v636 = vld [vmem:[#allocation5 + $0xcd0] sm:$0xff]
    %v637 = vld [vmem:[#allocation5 + $0xcd8] sm:$0xff]
    %v638 = vld [vmem:[#allocation5 + $0xce0] sm:$0xff]
    %v639 = vld [vmem:[#allocation5 + $0xce8] sm:$0xff]
    %v640 = vld [vmem:[#allocation5 + $0xcf0] sm:$0xff]
    %v641 = vld [vmem:[#allocation5 + $0xcf8] sm:$0xff]
    %v642 = vld [vmem:[#allocation5 + $0xd00] sm:$0xff]
    %v643 = vld [vmem:[#allocation5 + $0xd08] sm:$0xff]
    %v644 = vld [vmem:[#allocation5 + $0xd10] sm:$0xff]
    %v645 = vld [vmem:[#allocation5 + $0xd18] sm:$0xff]
    %v646 = vld [vmem:[#allocation5 + $0xd20] sm:$0xff]
    %v647 = vld [vmem:[#allocation5 + $0xd28] sm:$0xff]
    %v648 = vld [vmem:[#allocation5 + $0xd30] sm:$0xff]
    %v649 = vld [vmem:[#allocation5 + $0xd38] sm:$0xff]
    %v650 = vld [vmem:[#allocation5 + $0xd40] sm:$0xff]
    %v651 = vld [vmem:[#allocation5 + $0xd48] sm:$0xff]
    %v652 = vld [vmem:[#allocation5 + $0xd50] sm:$0xff]
    %v653 = vld [vmem:[#allocation5 + $0xd58] sm:$0xff]
    %v654 = vld [vmem:[#allocation5 + $0xd60] sm:$0xff]
    %v655 = vld [vmem:[#allocation5 + $0xd68] sm:$0xff]
    %v656 = vld [vmem:[#allocation5 + $0xd70] sm:$0xff]
    %v657 = vld [vmem:[#allocation5 + $0xd78] sm:$0xff]
    %v658 = vld [vmem:[#allocation5 + $0xd80] sm:$0xff]
    %v659 = vld [vmem:[#allocation5 + $0xd88] sm:$0xff]
    %v660 = vld [vmem:[#allocation5 + $0xd90] sm:$0xff]
    %v661 = vld [vmem:[#allocation5 + $0xd98] sm:$0xff]
    %v662 = vld [vmem:[#allocation5 + $0xda0] sm:$0xff]
    %v663 = vld [vmem:[#allocation5 + $0xda8] sm:$0xff]
    %v664 = vld [vmem:[#allocation5 + $0xdb0] sm:$0xff]
    %v665 = vld [vmem:[#allocation5 + $0xdb8] sm:$0xff]
    %v666 = vld [vmem:[#allocation5 + $0xdc0] sm:$0xff]
    %v667 = vld [vmem:[#allocation5 + $0xdc8] sm:$0xff]
    %v668 = vld [vmem:[#allocation5 + $0xdd0] sm:$0xff]
    %v669 = vld [vmem:[#allocation5 + $0xdd8] sm:$0xff]
    %v670 = vld [vmem:[#allocation5 + $0xde0] sm:$0xff]
    %v671 = vld [vmem:[#allocation5 + $0xde8] sm:$0xff]
    %v672 = vld [vmem:[#allocation5 + $0xdf0] sm:$0xff]
    %v673 = vld [vmem:[#allocation5 + $0xdf8] sm:$0xff]
    %v674 = vld [vmem:[#allocation5 + $0xe00] sm:$0xff]
    %v675 = vld [vmem:[#allocation5 + $0xe08] sm:$0xff]
    %v676 = vld [vmem:[#allocation5 + $0xe10] sm:$0xff]
    %v677 = vld [vmem:[#allocation5 + $0xe18] sm:$0xff]
    %v678 = vld [vmem:[#allocation5 + $0xe20] sm:$0xff]
    %v679 = vld [vmem:[#allocation5 + $0xe28] sm:$0xff]
    %v680 = vld [vmem:[#allocation5 + $0xe30] sm:$0xff]
    %v681 = vld [vmem:[#allocation5 + $0xe38] sm:$0xff]
    %v682 = vld [vmem:[#allocation5 + $0xe40] sm:$0xff]
    %v683 = vld [vmem:[#allocation5 + $0xe48] sm:$0xff]
    %v684 = vld [vmem:[#allocation5 + $0xe50] sm:$0xff]
    %v685 = vld [vmem:[#allocation5 + $0xe58] sm:$0xff]
    %v686 = vld [vmem:[#allocation5 + $0xe60] sm:$0xff]
    %v687 = vld [vmem:[#allocation5 + $0xe68] sm:$0xff]
    %v688 = vld [vmem:[#allocation5 + $0xe70] sm:$0xff]
    %v689 = vld [vmem:[#allocation5 + $0xe78] sm:$0xff]
    %v690 = vld [vmem:[#allocation5 + $0xe80] sm:$0xff]
    %v691 = vld [vmem:[#allocation5 + $0xe88] sm:$0xff]
    %v692 = vld [vmem:[#allocation5 + $0xe90] sm:$0xff]
    %v693 = vld [vmem:[#allocation5 + $0xe98] sm:$0xff]
    %v694 = vld [vmem:[#allocation5 + $0xea0] sm:$0xff]
    %v695 = vld [vmem:[#allocation5 + $0xea8] sm:$0xff]
    %v696 = vld [vmem:[#allocation5 + $0xeb0] sm:$0xff]
    %v697 = vld [vmem:[#allocation5 + $0xeb8] sm:$0xff]
    %v698 = vld [vmem:[#allocation5 + $0xec0] sm:$0xff]
    %v699 = vld [vmem:[#allocation5 + $0xec8] sm:$0xff]
    %v700 = vld [vmem:[#allocation5 + $0xed0] sm:$0xff]
    %v701 = vld [vmem:[#allocation5 + $0xed8] sm:$0xff]
    %v702 = vld [vmem:[#allocation5 + $0xee0] sm:$0xff]
    %v703 = vld [vmem:[#allocation5 + $0xee8] sm:$0xff]
    %v704 = vld [vmem:[#allocation5 + $0xef0] sm:$0xff]
    %v705 = vld [vmem:[#allocation5 + $0xef8] sm:$0xff]
    %v706 = vld [vmem:[#allocation5 + $0xf00] sm:$0xff]
    %v707 = vld [vmem:[#allocation5 + $0xf08] sm:$0xff]
    %v708 = vld [vmem:[#allocation5 + $0xf10] sm:$0xff]
    %v709 = vld [vmem:[#allocation5 + $0xf18] sm:$0xff]
    %v710 = vld [vmem:[#allocation5 + $0xf20] sm:$0xff]
    %v711 = vld [vmem:[#allocation5 + $0xf28] sm:$0xff]
    %v712 = vld [vmem:[#allocation5 + $0xf30] sm:$0xff]
    %v713 = vld [vmem:[#allocation5 + $0xf38] sm:$0xff]
    %v714 = vld [vmem:[#allocation5 + $0xf40] sm:$0xff]
    %v715 = vld [vmem:[#allocation5 + $0xf48] sm:$0xff]
    %v716 = vld [vmem:[#allocation5 + $0xf50] sm:$0xff]
    %v717 = vld [vmem:[#allocation5 + $0xf58] sm:$0xff]
    %v718 = vld [vmem:[#allocation5 + $0xf60] sm:$0xff]
    %v719 = vld [vmem:[#allocation5 + $0xf68] sm:$0xff]
    %v720 = vld [vmem:[#allocation5 + $0xf70] sm:$0xff]
    %v721 = vld [vmem:[#allocation5 + $0xf78] sm:$0xff]
    %v722 = vld [vmem:[#allocation5 + $0xf80] sm:$0xff]
    %v723 = vld [vmem:[#allocation5 + $0xf88] sm:$0xff]
    %v724 = vld [vmem:[#allocation5 + $0xf90] sm:$0xff]
    %v725 = vld [vmem:[#allocation5 + $0xf98] sm:$0xff]
    %v726 = vld [vmem:[#allocation5 + $0xfa0] sm:$0xff]
    %v727 = vld [vmem:[#allocation5 + $0xfa8] sm:$0xff]
    %v728 = vld [vmem:[#allocation5 + $0xfb0] sm:$0xff]
    %v729 = vld [vmem:[#allocation5 + $0xfb8] sm:$0xff]
    %v730 = vld [vmem:[#allocation5 + $0xfc0] sm:$0xff]
    %v731 = vld [vmem:[#allocation5 + $0xfc8] sm:$0xff]
    %v732 = vld [vmem:[#allocation5 + $0xfd0] sm:$0xff]
    %v733 = vld [vmem:[#allocation5 + $0xfd8] sm:$0xff]
    %v734 = vld [vmem:[#allocation5 + $0xfe0] sm:$0xff]
    %v735 = vld [vmem:[#allocation5 + $0xfe8] sm:$0xff]
    %v736 = vld [vmem:[#allocation5 + $0xff0] sm:$0xff]
    %v737 = vld [vmem:[#allocation5 + $0xff8] sm:$0xff]
    %v738 = vld [vmem:[#allocation5 + $0x1000] sm:$0xff]
    %v739 = vld [vmem:[#allocation5 + $0x1008] sm:$0xff]
    %v740 = vld [vmem:[#allocation5 + $0x1010] sm:$0xff]
    %v741 = vld [vmem:[#allocation5 + $0x1018] sm:$0xff]
    %v742 = vld [vmem:[#allocation5 + $0x1020] sm:$0xff]
    %v743 = vld [vmem:[#allocation5 + $0x1028] sm:$0xff]
    %v744 = vld [vmem:[#allocation5 + $0x1030] sm:$0xff]
    %v745 = vld [vmem:[#allocation5 + $0x1038] sm:$0xff]
    %v746 = vld [vmem:[#allocation5 + $0x1040] sm:$0xff]
    %v747 = vld [vmem:[#allocation5 + $0x1048] sm:$0xff]
    %v748 = vld [vmem:[#allocation5 + $0x1050] sm:$0xff]
    %v749 = vld [vmem:[#allocation5 + $0x1058] sm:$0xff]
    %v750 = vld [vmem:[#allocation5 + $0x1060] sm:$0xff]
    %v751 = vld [vmem:[#allocation5 + $0x1068] sm:$0xff]
    %v752 = vld [vmem:[#allocation5 + $0x1070] sm:$0xff]
    %v753 = vld [vmem:[#allocation5 + $0x1078] sm:$0xff]
    %v754 = vld [vmem:[#allocation5 + $0x1080] sm:$0xff]
    %v755 = vld [vmem:[#allocation5 + $0x1088] sm:$0xff]
    %v756 = vld [vmem:[#allocation5 + $0x1090] sm:$0xff]
    %v757 = vld [vmem:[#allocation5 + $0x1098] sm:$0xff]
    %v758 = vld [vmem:[#allocation5 + $0x10a0] sm:$0xff]
    %v759 = vld [vmem:[#allocation5 + $0x10a8] sm:$0xff]
    %v760 = vld [vmem:[#allocation5 + $0x10b0] sm:$0xff]
    %v761 = vld [vmem:[#allocation5 + $0x10b8] sm:$0xff]
    %v762 = vld [vmem:[#allocation5 + $0x10c0] sm:$0xff]
    %v763 = vld [vmem:[#allocation5 + $0x10c8] sm:$0xff]
    %v764 = vld [vmem:[#allocation5 + $0x10d0] sm:$0xff]
    %v765 = vld [vmem:[#allocation5 + $0x10d8] sm:$0xff]
    %v766 = vld [vmem:[#allocation5 + $0x10e0] sm:$0xff]
    %v767 = vld [vmem:[#allocation5 + $0x10e8] sm:$0xff]
    %v768 = vld [vmem:[#allocation5 + $0x10f0] sm:$0xff]
    %v769 = vld [vmem:[#allocation5 + $0x10f8] sm:$0xff]
    %v770 = vld [vmem:[#allocation5 + $0x1100] sm:$0xff]
    %v771 = vld [vmem:[#allocation5 + $0x1108] sm:$0xff]
    %v772 = vld [vmem:[#allocation5 + $0x1110] sm:$0xff]
    %v773 = vld [vmem:[#allocation5 + $0x1118] sm:$0xff]
    %v774 = vld [vmem:[#allocation5 + $0x1120] sm:$0xff]
    %v775 = vld [vmem:[#allocation5 + $0x1128] sm:$0xff]
    %v776 = vld [vmem:[#allocation5 + $0x1130] sm:$0xff]
    %v777 = vld [vmem:[#allocation5 + $0x1138] sm:$0xff]
    %v778 = vld [vmem:[#allocation5 + $0x1140] sm:$0xff]
    %v779 = vld [vmem:[#allocation5 + $0x1148] sm:$0xff]
    %v780 = vld [vmem:[#allocation5 + $0x1150] sm:$0xff]
    %v781 = vld [vmem:[#allocation5 + $0x1158] sm:$0xff]
    %v782 = vld [vmem:[#allocation5 + $0x1160] sm:$0xff]
    %v783 = vld [vmem:[#allocation5 + $0x1168] sm:$0xff]
    %v784 = vld [vmem:[#allocation5 + $0x1170] sm:$0xff]
    %v785 = vld [vmem:[#allocation5 + $0x1178] sm:$0xff]
    %v786 = vld [vmem:[#allocation5 + $0x1180] sm:$0xff]
    %v787 = vld [vmem:[#allocation5 + $0x1188] sm:$0xff]
    %v788 = vld [vmem:[#allocation5 + $0x1190] sm:$0xff]
    %v789 = vld [vmem:[#allocation5 + $0x1198] sm:$0xff]
    %v790 = vld [vmem:[#allocation5 + $0x11a0] sm:$0xff]
    %v791 = vld [vmem:[#allocation5 + $0x11a8] sm:$0xff]
    %v792 = vld [vmem:[#allocation5 + $0x11b0] sm:$0xff]
    %v793 = vld [vmem:[#allocation5 + $0x11b8] sm:$0xff]
    %v794 = vld [vmem:[#allocation5 + $0x11c0] sm:$0xff]
    %v795 = vld [vmem:[#allocation5 + $0x11c8] sm:$0xff]
    %v796 = vld [vmem:[#allocation5 + $0x11d0] sm:$0xff]
    %v797 = vld [vmem:[#allocation5 + $0x11d8] sm:$0xff]
    %v798 = vld [vmem:[#allocation5 + $0x11e0] sm:$0xff]
    %v799 = vld [vmem:[#allocation5 + $0x11e8] sm:$0xff]
    %v800 = vld [vmem:[#allocation5 + $0x11f0] sm:$0xff]
    %v801 = vld [vmem:[#allocation5 + $0x11f8] sm:$0xff]
    %v802 = vld [vmem:[#allocation5 + $0x1200] sm:$0xff]
    %v803 = vld [vmem:[#allocation5 + $0x1208] sm:$0xff]
    %v804 = vld [vmem:[#allocation5 + $0x1210] sm:$0xff]
    %v805 = vld [vmem:[#allocation5 + $0x1218] sm:$0xff]
    %v806 = vld [vmem:[#allocation5 + $0x1220] sm:$0xff]
    %v807 = vld [vmem:[#allocation5 + $0x1228] sm:$0xff]
    %v808 = vld [vmem:[#allocation5 + $0x1230] sm:$0xff]
    %v809 = vld [vmem:[#allocation5 + $0x1238] sm:$0xff]
    %v810 = vld [vmem:[#allocation5 + $0x1240] sm:$0xff]
    %v811 = vld [vmem:[#allocation5 + $0x1248] sm:$0xff]
    %v812 = vld [vmem:[#allocation5 + $0x1250] sm:$0xff]
    %v813 = vld [vmem:[#allocation5 + $0x1258] sm:$0xff]
    %v814 = vld [vmem:[#allocation5 + $0x1260] sm:$0xff]
    %v815 = vld [vmem:[#allocation5 + $0x1268] sm:$0xff]
    %v816 = vld [vmem:[#allocation5 + $0x1270] sm:$0xff]
    %v817 = vld [vmem:[#allocation5 + $0x1278] sm:$0xff]
    %v818 = vld [vmem:[#allocation5 + $0x1280] sm:$0xff]
    %v819 = vld [vmem:[#allocation5 + $0x1288] sm:$0xff]
    %v820 = vld [vmem:[#allocation5 + $0x1290] sm:$0xff]
    %v821 = vld [vmem:[#allocation5 + $0x1298] sm:$0xff]
    %v822 = vld [vmem:[#allocation5 + $0x12a0] sm:$0xff]
    %v823 = vld [vmem:[#allocation5 + $0x12a8] sm:$0xff]
    %v824 = vld [vmem:[#allocation5 + $0x12b0] sm:$0xff]
    %v825 = vld [vmem:[#allocation5 + $0x12b8] sm:$0xff]
    %v826 = vld [vmem:[#allocation5 + $0x12c0] sm:$0xff]
    %v827 = vld [vmem:[#allocation5 + $0x12c8] sm:$0xff]
    %v828 = vld [vmem:[#allocation5 + $0x12d0] sm:$0xff]
    %v829 = vld [vmem:[#allocation5 + $0x12d8] sm:$0xff]
    %v830 = vld [vmem:[#allocation5 + $0x12e0] sm:$0xff]
    %v831 = vld [vmem:[#allocation5 + $0x12e8] sm:$0xff]
    %v832 = vld [vmem:[#allocation5 + $0x12f0] sm:$0xff]
    %v833 = vld [vmem:[#allocation5 + $0x12f8] sm:$0xff]
    %v834 = vld [vmem:[#allocation5 + $0x1300] sm:$0xff]
    %v835 = vld [vmem:[#allocation5 + $0x1308] sm:$0xff]
    %v836 = vld [vmem:[#allocation5 + $0x1310] sm:$0xff]
    %v837 = vld [vmem:[#allocation5 + $0x1318] sm:$0xff]
    %v838 = vld [vmem:[#allocation5 + $0x1320] sm:$0xff]
    %v839 = vld [vmem:[#allocation5 + $0x1328] sm:$0xff]
    %v840 = vld [vmem:[#allocation5 + $0x1330] sm:$0xff]
    %v841 = vld [vmem:[#allocation5 + $0x1338] sm:$0xff]
    %v842 = vld [vmem:[#allocation5 + $0x1340] sm:$0xff]
    %v843 = vld [vmem:[#allocation5 + $0x1348] sm:$0xff]
    %v844 = vld [vmem:[#allocation5 + $0x1350] sm:$0xff]
    %v845 = vld [vmem:[#allocation5 + $0x1358] sm:$0xff]
    %v846 = vld [vmem:[#allocation5 + $0x1360] sm:$0xff]
    %v847 = vld [vmem:[#allocation5 + $0x1368] sm:$0xff]
    %v848 = vld [vmem:[#allocation5 + $0x1370] sm:$0xff]
    %v849 = vld [vmem:[#allocation5 + $0x1378] sm:$0xff]
    %v850 = vld [vmem:[#allocation5 + $0x1380] sm:$0xff]
    %v851 = vld [vmem:[#allocation5 + $0x1388] sm:$0xff]
    %v852 = vld [vmem:[#allocation5 + $0x1390] sm:$0xff]
    %v853 = vld [vmem:[#allocation5 + $0x1398] sm:$0xff]
    %v854 = vld [vmem:[#allocation5 + $0x13a0] sm:$0xff]
    %v855 = vld [vmem:[#allocation5 + $0x13a8] sm:$0xff]
    %v856 = vld [vmem:[#allocation5 + $0x13b0] sm:$0xff]
    %v857 = vld [vmem:[#allocation5 + $0x13b8] sm:$0xff]
    %v858 = vld [vmem:[#allocation5 + $0x13c0] sm:$0xff]
    %v859 = vld [vmem:[#allocation5 + $0x13c8] sm:$0xff]
    %v860 = vld [vmem:[#allocation5 + $0x13d0] sm:$0xff]
    %v861 = vld [vmem:[#allocation5 + $0x13d8] sm:$0xff]
    %v862 = vld [vmem:[#allocation5 + $0x13e0] sm:$0xff]
    %v863 = vld [vmem:[#allocation5 + $0x13e8] sm:$0xff]
    %v864 = vld [vmem:[#allocation5 + $0x13f0] sm:$0xff]
    %v865 = vld [vmem:[#allocation5 + $0x13f8] sm:$0xff]
    %v866 = vld [vmem:[#allocation5 + $0x1400] sm:$0xff]
    %v867 = vld [vmem:[#allocation5 + $0x1408] sm:$0xff]
    %v868 = vld [vmem:[#allocation5 + $0x1410] sm:$0xff]
    %v869 = vld [vmem:[#allocation5 + $0x1418] sm:$0xff]
    %v870 = vld [vmem:[#allocation5 + $0x1420] sm:$0xff]
    %v871 = vld [vmem:[#allocation5 + $0x1428] sm:$0xff]
    %v872 = vld [vmem:[#allocation5 + $0x1430] sm:$0xff]
    %v873 = vld [vmem:[#allocation5 + $0x1438] sm:$0xff]
    %v874 = vld [vmem:[#allocation5 + $0x1440] sm:$0xff]
    %v875 = vld [vmem:[#allocation5 + $0x1448] sm:$0xff]
    %v876 = vld [vmem:[#allocation5 + $0x1450] sm:$0xff]
    %v877 = vld [vmem:[#allocation5 + $0x1458] sm:$0xff]
    %v878 = vld [vmem:[#allocation5 + $0x1460] sm:$0xff]
    %v879 = vld [vmem:[#allocation5 + $0x1468] sm:$0xff]
    %v880 = vld [vmem:[#allocation5 + $0x1470] sm:$0xff]
    %v881 = vld [vmem:[#allocation5 + $0x1478] sm:$0xff]
    %v882 = vld [vmem:[#allocation5 + $0x1480] sm:$0xff]
    %v883 = vld [vmem:[#allocation5 + $0x1488] sm:$0xff]
    %v884 = vld [vmem:[#allocation5 + $0x1490] sm:$0xff]
    %v885 = vld [vmem:[#allocation5 + $0x1498] sm:$0xff]
    %v886 = vld [vmem:[#allocation5 + $0x14a0] sm:$0xff]
    %v887 = vld [vmem:[#allocation5 + $0x14a8] sm:$0xff]
    %v888 = vld [vmem:[#allocation5 + $0x14b0] sm:$0xff]
    %v889 = vld [vmem:[#allocation5 + $0x14b8] sm:$0xff]
    %v890 = vld [vmem:[#allocation5 + $0x14c0] sm:$0xff]
    %v891 = vld [vmem:[#allocation5 + $0x14c8] sm:$0xff]
    %v892 = vld [vmem:[#allocation5 + $0x14d0] sm:$0xff]
    %v893 = vld [vmem:[#allocation5 + $0x14d8] sm:$0xff]
    %v894 = vld [vmem:[#allocation5 + $0x14e0] sm:$0xff]
    %v895 = vld [vmem:[#allocation5 + $0x14e8] sm:$0xff]
    %v896 = vld [vmem:[#allocation5 + $0x14f0] sm:$0xff]
    %v897 = vld [vmem:[#allocation5 + $0x14f8] sm:$0xff]
    %v898 = vld [vmem:[#allocation5 + $0x1500] sm:$0xff]
    %v899 = vld [vmem:[#allocation5 + $0x1508] sm:$0xff]
    %v900 = vld [vmem:[#allocation5 + $0x1510] sm:$0xff]
    %v901 = vld [vmem:[#allocation5 + $0x1518] sm:$0xff]
    %v902 = vld [vmem:[#allocation5 + $0x1520] sm:$0xff]
    %v903 = vld [vmem:[#allocation5 + $0x1528] sm:$0xff]
    %v904 = vld [vmem:[#allocation5 + $0x1530] sm:$0xff]
    %v905 = vld [vmem:[#allocation5 + $0x1538] sm:$0xff]
    %v906 = vld [vmem:[#allocation5 + $0x1540] sm:$0xff]
    %v907 = vld [vmem:[#allocation5 + $0x1548] sm:$0xff]
    %v908 = vld [vmem:[#allocation5 + $0x1550] sm:$0xff]
    %v909 = vld [vmem:[#allocation5 + $0x1558] sm:$0xff]
    %v910 = vld [vmem:[#allocation5 + $0x1560] sm:$0xff]
    %v911 = vld [vmem:[#allocation5 + $0x1568] sm:$0xff]
    %v912 = vld [vmem:[#allocation5 + $0x1570] sm:$0xff]
    %v913 = vld [vmem:[#allocation5 + $0x1578] sm:$0xff]
    %v914 = vld [vmem:[#allocation5 + $0x1580] sm:$0xff]
    %v915 = vld [vmem:[#allocation5 + $0x1588] sm:$0xff]
    %v916 = vld [vmem:[#allocation5 + $0x1590] sm:$0xff]
    %v917 = vld [vmem:[#allocation5 + $0x1598] sm:$0xff]
    %v918 = vld [vmem:[#allocation5 + $0x15a0] sm:$0xff]
    %v919 = vld [vmem:[#allocation5 + $0x15a8] sm:$0xff]
    %v920 = vld [vmem:[#allocation5 + $0x15b0] sm:$0xff]
    %v921 = vld [vmem:[#allocation5 + $0x15b8] sm:$0xff]
    %v922 = vld [vmem:[#allocation5 + $0x15c0] sm:$0xff]
    %v923 = vld [vmem:[#allocation5 + $0x15c8] sm:$0xff]
    %v924 = vld [vmem:[#allocation5 + $0x15d0] sm:$0xff]
    %v925 = vld [vmem:[#allocation5 + $0x15d8] sm:$0xff]
    %v926 = vld [vmem:[#allocation5 + $0x15e0] sm:$0xff]
    %v927 = vld [vmem:[#allocation5 + $0x15e8] sm:$0xff]
    %v928 = vld [vmem:[#allocation5 + $0x15f0] sm:$0xff]
    %v929 = vld [vmem:[#allocation5 + $0x15f8] sm:$0xff]
    %v930 = vld [vmem:[#allocation5 + $0x1600] sm:$0xff]
    %v931 = vld [vmem:[#allocation5 + $0x1608] sm:$0xff]
    %v932 = vld [vmem:[#allocation5 + $0x1610] sm:$0xff]
    %v933 = vld [vmem:[#allocation5 + $0x1618] sm:$0xff]
    %v934 = vld [vmem:[#allocation5 + $0x1620] sm:$0xff]
    %v935 = vld [vmem:[#allocation5 + $0x1628] sm:$0xff]
    %v936 = vld [vmem:[#allocation5 + $0x1630] sm:$0xff]
    %v937 = vld [vmem:[#allocation5 + $0x1638] sm:$0xff]
    %v938 = vld [vmem:[#allocation5 + $0x1640] sm:$0xff]
    %v939 = vld [vmem:[#allocation5 + $0x1648] sm:$0xff]
    %v940 = vld [vmem:[#allocation5 + $0x1650] sm:$0xff]
    %v941 = vld [vmem:[#allocation5 + $0x1658] sm:$0xff]
    %v942 = vld [vmem:[#allocation5 + $0x1660] sm:$0xff]
    %v943 = vld [vmem:[#allocation5 + $0x1668] sm:$0xff]
    %v944 = vld [vmem:[#allocation5 + $0x1670] sm:$0xff]
    %v945 = vld [vmem:[#allocation5 + $0x1678] sm:$0xff]
    %v946 = vld [vmem:[#allocation5 + $0x1680] sm:$0xff]
    %v947 = vld [vmem:[#allocation5 + $0x1688] sm:$0xff]
    %v948 = vld [vmem:[#allocation5 + $0x1690] sm:$0xff]
    %v949 = vld [vmem:[#allocation5 + $0x1698] sm:$0xff]
    %v950 = vld [vmem:[#allocation5 + $0x16a0] sm:$0xff]
    %v951 = vld [vmem:[#allocation5 + $0x16a8] sm:$0xff]
    %v952 = vld [vmem:[#allocation5 + $0x16b0] sm:$0xff]
    %v953 = vld [vmem:[#allocation5 + $0x16b8] sm:$0xff]
    %v954 = vld [vmem:[#allocation5 + $0x16c0] sm:$0xff]
    %v955 = vld [vmem:[#allocation5 + $0x16c8] sm:$0xff]
    %v956 = vld [vmem:[#allocation5 + $0x16d0] sm:$0xff]
    %v957 = vld [vmem:[#allocation5 + $0x16d8] sm:$0xff]
    %v958 = vld [vmem:[#allocation5 + $0x16e0] sm:$0xff]
    %v959 = vld [vmem:[#allocation5 + $0x16e8] sm:$0xff]
    %v960 = vld [vmem:[#allocation5 + $0x16f0] sm:$0xff]
    %v961 = vld [vmem:[#allocation5 + $0x16f8] sm:$0xff]
    %v962 = vld [vmem:[#allocation5 + $0x1700] sm:$0xff]
    %v963 = vld [vmem:[#allocation5 + $0x1708] sm:$0xff]
    %v964 = vld [vmem:[#allocation5 + $0x1710] sm:$0xff]
    %v965 = vld [vmem:[#allocation5 + $0x1718] sm:$0xff]
    %v966 = vld [vmem:[#allocation5 + $0x1720] sm:$0xff]
    %v967 = vld [vmem:[#allocation5 + $0x1728] sm:$0xff]
    %v968 = vld [vmem:[#allocation5 + $0x1730] sm:$0xff]
    %v969 = vld [vmem:[#allocation5 + $0x1738] sm:$0xff]
    %v970 = vld [vmem:[#allocation5 + $0x1740] sm:$0xff]
    %v971 = vld [vmem:[#allocation5 + $0x1748] sm:$0xff]
    %v972 = vld [vmem:[#allocation5 + $0x1750] sm:$0xff]
    %v973 = vld [vmem:[#allocation5 + $0x1758] sm:$0xff]
    %v974 = vld [vmem:[#allocation5 + $0x1760] sm:$0xff]
    %v975 = vld [vmem:[#allocation5 + $0x1768] sm:$0xff]
    %v976 = vld [vmem:[#allocation5 + $0x1770] sm:$0xff]
    %v977 = vld [vmem:[#allocation5 + $0x1778] sm:$0xff]
    %v978 = vld [vmem:[#allocation5 + $0x1780] sm:$0xff]
    %v979 = vld [vmem:[#allocation5 + $0x1788] sm:$0xff]
    %v980 = vld [vmem:[#allocation5 + $0x1790] sm:$0xff]
    %v981 = vld [vmem:[#allocation5 + $0x1798] sm:$0xff]
    %v982 = vld [vmem:[#allocation5 + $0x17a0] sm:$0xff]
    %v983 = vld [vmem:[#allocation5 + $0x17a8] sm:$0xff]
    %v984 = vld [vmem:[#allocation5 + $0x17b0] sm:$0xff]
    %v985 = vld [vmem:[#allocation5 + $0x17b8] sm:$0xff]
    %v986 = vld [vmem:[#allocation5 + $0x17c0] sm:$0xff]
    %v987 = vld [vmem:[#allocation5 + $0x17c8] sm:$0xff]
    %v988 = vld [vmem:[#allocation5 + $0x17d0] sm:$0xff]
    %v989 = vld [vmem:[#allocation5 + $0x17d8] sm:$0xff]
    %v990 = vld [vmem:[#allocation5 + $0x17e0] sm:$0xff]
    %v991 = vld [vmem:[#allocation5 + $0x17e8] sm:$0xff]
    %v992 = vld [vmem:[#allocation5 + $0x17f0] sm:$0xff]
    %v993 = vld [vmem:[#allocation5 + $0x17f8] sm:$0xff]
    %v994 = vld [vmem:[#allocation5 + $0x1800] sm:$0xff]
    %v995 = vld [vmem:[#allocation5 + $0x1808] sm:$0xff]
    %v996 = vld [vmem:[#allocation5 + $0x1810] sm:$0xff]
    %v997 = vld [vmem:[#allocation5 + $0x1818] sm:$0xff]
    %v998 = vld [vmem:[#allocation5 + $0x1820] sm:$0xff]
    %v999 = vld [vmem:[#allocation5 + $0x1828] sm:$0xff]
    %v1000 = vld [vmem:[#allocation5 + $0x1830] sm:$0xff]
    %v1001 = vld [vmem:[#allocation5 + $0x1838] sm:$0xff]
    %v1002 = vld [vmem:[#allocation5 + $0x1840] sm:$0xff]
    %v1003 = vld [vmem:[#allocation5 + $0x1848] sm:$0xff]
    %v1004 = vld [vmem:[#allocation5 + $0x1850] sm:$0xff]
    %v1005 = vld [vmem:[#allocation5 + $0x1858] sm:$0xff]
    %v1006 = vld [vmem:[#allocation5 + $0x1860] sm:$0xff]
    %v1007 = vld [vmem:[#allocation5 + $0x1868] sm:$0xff]
    %v1008 = vld [vmem:[#allocation5 + $0x1870] sm:$0xff]
    %v1009 = vld [vmem:[#allocation5 + $0x1878] sm:$0xff]
    %v1010 = vld [vmem:[#allocation5 + $0x1880] sm:$0xff]
    %v1011 = vld [vmem:[#allocation5 + $0x1888] sm:$0xff]
    %v1012 = vld [vmem:[#allocation5 + $0x1890] sm:$0xff]
    %v1013 = vld [vmem:[#allocation5 + $0x1898] sm:$0xff]
    %v1014 = vld [vmem:[#allocation5 + $0x18a0] sm:$0xff]
    %v1015 = vld [vmem:[#allocation5 + $0x18a8] sm:$0xff]
    %v1016 = vld [vmem:[#allocation5 + $0x18b0] sm:$0xff]
    %v1017 = vld [vmem:[#allocation5 + $0x18b8] sm:$0xff]
    %v1018 = vld [vmem:[#allocation5 + $0x18c0] sm:$0xff]
    %v1019 = vld [vmem:[#allocation5 + $0x18c8] sm:$0xff]
    %v1020 = vld [vmem:[#allocation5 + $0x18d0] sm:$0xff]
    %v1021 = vld [vmem:[#allocation5 + $0x18d8] sm:$0xff]
    %v1022 = vld [vmem:[#allocation5 + $0x18e0] sm:$0xff]
    %v1023 = vld [vmem:[#allocation5 + $0x18e8] sm:$0xff]
    %v1024 = vld [vmem:[#allocation5 + $0x18f0] sm:$0xff]
    %v1025 = vld [vmem:[#allocation5 + $0x18f8] sm:$0xff]
    %v1026 = vld [vmem:[#allocation5 + $0x1900] sm:$0xff]
    %v1027 = vld [vmem:[#allocation5 + $0x1908] sm:$0xff]
    %v1028 = vld [vmem:[#allocation5 + $0x1910] sm:$0xff]
    %v1029 = vld [vmem:[#allocation5 + $0x1918] sm:$0xff]
    %v1030 = vld [vmem:[#allocation5 + $0x1920] sm:$0xff]
    %v1031 = vld [vmem:[#allocation5 + $0x1928] sm:$0xff]
    %v1032 = vld [vmem:[#allocation5 + $0x1930] sm:$0xff]
    %v1033 = vld [vmem:[#allocation5 + $0x1938] sm:$0xff]
    %v1034 = vld [vmem:[#allocation5 + $0x1940] sm:$0xff]
    %v1035 = vld [vmem:[#allocation5 + $0x1948] sm:$0xff]
    %v1036 = vld [vmem:[#allocation5 + $0x1950] sm:$0xff]
    %v1037 = vld [vmem:[#allocation5 + $0x1958] sm:$0xff]
    %v1038 = vld [vmem:[#allocation5 + $0x1960] sm:$0xff]
    %v1039 = vld [vmem:[#allocation5 + $0x1968] sm:$0xff]
    %v1040 = vld [vmem:[#allocation5 + $0x1970] sm:$0xff]
    %v1041 = vld [vmem:[#allocation5 + $0x1978] sm:$0xff]
    %v1042 = vld [vmem:[#allocation5 + $0x1980] sm:$0xff]
    %v1043 = vld [vmem:[#allocation5 + $0x1988] sm:$0xff]
    %v1044 = vld [vmem:[#allocation5 + $0x1990] sm:$0xff]
    %v1045 = vld [vmem:[#allocation5 + $0x1998] sm:$0xff]
    %v1046 = vld [vmem:[#allocation5 + $0x19a0] sm:$0xff]
    %v1047 = vld [vmem:[#allocation5 + $0x19a8] sm:$0xff]
    %v1048 = vld [vmem:[#allocation5 + $0x19b0] sm:$0xff]
    %v1049 = vld [vmem:[#allocation5 + $0x19b8] sm:$0xff]
    %v1050 = vld [vmem:[#allocation5 + $0x19c0] sm:$0xff]
    %v1051 = vld [vmem:[#allocation5 + $0x19c8] sm:$0xff]
    %v1052 = vld [vmem:[#allocation5 + $0x19d0] sm:$0xff]
    %v1053 = vld [vmem:[#allocation5 + $0x19d8] sm:$0xff]
    %v1054 = vld [vmem:[#allocation5 + $0x19e0] sm:$0xff]
    %v1055 = vld [vmem:[#allocation5 + $0x19e8] sm:$0xff]
    %v1056 = vld [vmem:[#allocation5 + $0x19f0] sm:$0xff]
    %v1057 = vld [vmem:[#allocation5 + $0x19f8] sm:$0xff]
    %v1058 = vld [vmem:[#allocation5 + $0x1a00] sm:$0xff]
    %v1059 = vld [vmem:[#allocation5 + $0x1a08] sm:$0xff]
    %v1060 = vld [vmem:[#allocation5 + $0x1a10] sm:$0xff]
    %v1061 = vld [vmem:[#allocation5 + $0x1a18] sm:$0xff]
    %v1062 = vld [vmem:[#allocation5 + $0x1a20] sm:$0xff]
    %v1063 = vld [vmem:[#allocation5 + $0x1a28] sm:$0xff]
    %v1064 = vld [vmem:[#allocation5 + $0x1a30] sm:$0xff]
    %v1065 = vld [vmem:[#allocation5 + $0x1a38] sm:$0xff]
    %v1066 = vld [vmem:[#allocation5 + $0x1a40] sm:$0xff]
    %v1067 = vld [vmem:[#allocation5 + $0x1a48] sm:$0xff]
    %v1068 = vld [vmem:[#allocation5 + $0x1a50] sm:$0xff]
    %v1069 = vld [vmem:[#allocation5 + $0x1a58] sm:$0xff]
    %v1070 = vld [vmem:[#allocation5 + $0x1a60] sm:$0xff]
    %v1071 = vld [vmem:[#allocation5 + $0x1a68] sm:$0xff]
    %v1072 = vld [vmem:[#allocation5 + $0x1a70] sm:$0xff]
    %v1073 = vld [vmem:[#allocation5 + $0x1a78] sm:$0xff]
    %v1074 = vld [vmem:[#allocation5 + $0x1a80] sm:$0xff]
    %v1075 = vld [vmem:[#allocation5 + $0x1a88] sm:$0xff]
    %v1076 = vld [vmem:[#allocation5 + $0x1a90] sm:$0xff]
    %v1077 = vld [vmem:[#allocation5 + $0x1a98] sm:$0xff]
    %v1078 = vld [vmem:[#allocation5 + $0x1aa0] sm:$0xff]
    %v1079 = vld [vmem:[#allocation5 + $0x1aa8] sm:$0xff]
    %v1080 = vld [vmem:[#allocation5 + $0x1ab0] sm:$0xff]
    %v1081 = vld [vmem:[#allocation5 + $0x1ab8] sm:$0xff]
    %v1082 = vld [vmem:[#allocation5 + $0x1ac0] sm:$0xff]
    %v1083 = vld [vmem:[#allocation5 + $0x1ac8] sm:$0xff]
    %v1084 = vld [vmem:[#allocation5 + $0x1ad0] sm:$0xff]
    %v1085 = vld [vmem:[#allocation5 + $0x1ad8] sm:$0xff]
    %v1086 = vld [vmem:[#allocation5 + $0x1ae0] sm:$0xff]
    %v1087 = vld [vmem:[#allocation5 + $0x1ae8] sm:$0xff]
    %v1088 = vld [vmem:[#allocation5 + $0x1af0] sm:$0xff]
    %v1089 = vld [vmem:[#allocation5 + $0x1af8] sm:$0xff]
    %v1090 = vld [vmem:[#allocation5 + $0x1b00] sm:$0xff]
    %v1091 = vld [vmem:[#allocation5 + $0x1b08] sm:$0xff]
    %v1092 = vld [vmem:[#allocation5 + $0x1b10] sm:$0xff]
    %v1093 = vld [vmem:[#allocation5 + $0x1b18] sm:$0xff]
    %v1094 = vld [vmem:[#allocation5 + $0x1b20] sm:$0xff]
    %v1095 = vld [vmem:[#allocation5 + $0x1b28] sm:$0xff]
    %v1096 = vld [vmem:[#allocation5 + $0x1b30] sm:$0xff]
    %v1097 = vld [vmem:[#allocation5 + $0x1b38] sm:$0xff]
    %v1098 = vld [vmem:[#allocation5 + $0x1b40] sm:$0xff]
    %v1099 = vld [vmem:[#allocation5 + $0x1b48] sm:$0xff]
    %v1100 = vld [vmem:[#allocation5 + $0x1b50] sm:$0xff]
    %v1101 = vld [vmem:[#allocation5 + $0x1b58] sm:$0xff]
    %v1102 = vld [vmem:[#allocation5 + $0x1b60] sm:$0xff]
    %v1103 = vld [vmem:[#allocation5 + $0x1b68] sm:$0xff]
    %v1104 = vld [vmem:[#allocation5 + $0x1b70] sm:$0xff]
    %v1105 = vld [vmem:[#allocation5 + $0x1b78] sm:$0xff]
    %v1106 = vld [vmem:[#allocation5 + $0x1b80] sm:$0xff]
    %v1107 = vld [vmem:[#allocation5 + $0x1b88] sm:$0xff]
    %v1108 = vld [vmem:[#allocation5 + $0x1b90] sm:$0xff]
    %v1109 = vld [vmem:[#allocation5 + $0x1b98] sm:$0xff]
    %v1110 = vld [vmem:[#allocation5 + $0x1ba0] sm:$0xff]
    %v1111 = vld [vmem:[#allocation5 + $0x1ba8] sm:$0xff]
    %v1112 = vld [vmem:[#allocation5 + $0x1bb0] sm:$0xff]
    %v1113 = vld [vmem:[#allocation5 + $0x1bb8] sm:$0xff]
    %v1114 = vld [vmem:[#allocation5 + $0x1bc0] sm:$0xff]
    %v1115 = vld [vmem:[#allocation5 + $0x1bc8] sm:$0xff]
    %v1116 = vld [vmem:[#allocation5 + $0x1bd0] sm:$0xff]
    %v1117 = vld [vmem:[#allocation5 + $0x1bd8] sm:$0xff]
    %v1118 = vld [vmem:[#allocation5 + $0x1be0] sm:$0xff]
    %v1119 = vld [vmem:[#allocation5 + $0x1be8] sm:$0xff]
    %v1120 = vld [vmem:[#allocation5 + $0x1bf0] sm:$0xff]
    %v1121 = vld [vmem:[#allocation5 + $0x1bf8] sm:$0xff]
    %v1122 = vld [vmem:[#allocation5 + $0x1c00] sm:$0xff]
    %v1123 = vld [vmem:[#allocation5 + $0x1c08] sm:$0xff]
    %v1124 = vld [vmem:[#allocation5 + $0x1c10] sm:$0xff]
    %v1125 = vld [vmem:[#allocation5 + $0x1c18] sm:$0xff]
    %v1126 = vld [vmem:[#allocation5 + $0x1c20] sm:$0xff]
    %v1127 = vld [vmem:[#allocation5 + $0x1c28] sm:$0xff]
    %v1128 = vld [vmem:[#allocation5 + $0x1c30] sm:$0xff]
    %v1129 = vld [vmem:[#allocation5 + $0x1c38] sm:$0xff]
    %v1130 = vld [vmem:[#allocation5 + $0x1c40] sm:$0xff]
    %v1131 = vld [vmem:[#allocation5 + $0x1c48] sm:$0xff]
    %v1132 = vld [vmem:[#allocation5 + $0x1c50] sm:$0xff]
    %v1133 = vld [vmem:[#allocation5 + $0x1c58] sm:$0xff]
    %v1134 = vld [vmem:[#allocation5 + $0x1c60] sm:$0xff]
    %v1135 = vld [vmem:[#allocation5 + $0x1c68] sm:$0xff]
    %v1136 = vld [vmem:[#allocation5 + $0x1c70] sm:$0xff]
    %v1137 = vld [vmem:[#allocation5 + $0x1c78] sm:$0xff]
    %v1138 = vld [vmem:[#allocation5 + $0x1c80] sm:$0xff]
    %v1139 = vld [vmem:[#allocation5 + $0x1c88] sm:$0xff]
    %v1140 = vld [vmem:[#allocation5 + $0x1c90] sm:$0xff]
    %v1141 = vld [vmem:[#allocation5 + $0x1c98] sm:$0xff]
    %v1142 = vld [vmem:[#allocation5 + $0x1ca0] sm:$0xff]
    %v1143 = vld [vmem:[#allocation5 + $0x1ca8] sm:$0xff]
    %v1144 = vld [vmem:[#allocation5 + $0x1cb0] sm:$0xff]
    %v1145 = vld [vmem:[#allocation5 + $0x1cb8] sm:$0xff]
    %v1146 = vld [vmem:[#allocation5 + $0x1cc0] sm:$0xff]
    %v1147 = vld [vmem:[#allocation5 + $0x1cc8] sm:$0xff]
    %v1148 = vld [vmem:[#allocation5 + $0x1cd0] sm:$0xff]
    %v1149 = vld [vmem:[#allocation5 + $0x1cd8] sm:$0xff]
    %v1150 = vld [vmem:[#allocation5 + $0x1ce0] sm:$0xff]
    %v1151 = vld [vmem:[#allocation5 + $0x1ce8] sm:$0xff]
    %v1152 = vld [vmem:[#allocation5 + $0x1cf0] sm:$0xff]
    %v1153 = vld [vmem:[#allocation5 + $0x1cf8] sm:$0xff]
    %v1154 = vld [vmem:[#allocation5 + $0x1d00] sm:$0xff]
    %v1155 = vld [vmem:[#allocation5 + $0x1d08] sm:$0xff]
    %v1156 = vld [vmem:[#allocation5 + $0x1d10] sm:$0xff]
    %v1157 = vld [vmem:[#allocation5 + $0x1d18] sm:$0xff]
    %v1158 = vld [vmem:[#allocation5 + $0x1d20] sm:$0xff]
    %v1159 = vld [vmem:[#allocation5 + $0x1d28] sm:$0xff]
    %v1160 = vld [vmem:[#allocation5 + $0x1d30] sm:$0xff]
    %v1161 = vld [vmem:[#allocation5 + $0x1d38] sm:$0xff]
    %v1162 = vld [vmem:[#allocation5 + $0x1d40] sm:$0xff]
    %v1163 = vld [vmem:[#allocation5 + $0x1d48] sm:$0xff]
    %v1164 = vld [vmem:[#allocation5 + $0x1d50] sm:$0xff]
    %v1165 = vld [vmem:[#allocation5 + $0x1d58] sm:$0xff]
    %v1166 = vld [vmem:[#allocation5 + $0x1d60] sm:$0xff]
    %v1167 = vld [vmem:[#allocation5 + $0x1d68] sm:$0xff]
    %v1168 = vld [vmem:[#allocation5 + $0x1d70] sm:$0xff]
    %v1169 = vld [vmem:[#allocation5 + $0x1d78] sm:$0xff]
    %v1170 = vld [vmem:[#allocation5 + $0x1d80] sm:$0xff]
    %v1171 = vld [vmem:[#allocation5 + $0x1d88] sm:$0xff]
    %v1172 = vld [vmem:[#allocation5 + $0x1d90] sm:$0xff]
    %v1173 = vld [vmem:[#allocation5 + $0x1d98] sm:$0xff]
    %v1174 = vld [vmem:[#allocation5 + $0x1da0] sm:$0xff]
    %v1175 = vld [vmem:[#allocation5 + $0x1da8] sm:$0xff]
    %v1176 = vld [vmem:[#allocation5 + $0x1db0] sm:$0xff]
    %v1177 = vld [vmem:[#allocation5 + $0x1db8] sm:$0xff]
    %v1178 = vld [vmem:[#allocation5 + $0x1dc0] sm:$0xff]
    %v1179 = vld [vmem:[#allocation5 + $0x1dc8] sm:$0xff]
    %v1180 = vld [vmem:[#allocation5 + $0x1dd0] sm:$0xff]
    %v1181 = vld [vmem:[#allocation5 + $0x1dd8] sm:$0xff]
    %v1182 = vld [vmem:[#allocation5 + $0x1de0] sm:$0xff]
    %v1183 = vld [vmem:[#allocation5 + $0x1de8] sm:$0xff]
    %v1184 = vld [vmem:[#allocation5 + $0x1df0] sm:$0xff]
    %v1185 = vld [vmem:[#allocation5 + $0x1df8] sm:$0xff]
    %v1186 = vld [vmem:[#allocation5 + $0x1e00] sm:$0xff]
    %v1187 = vld [vmem:[#allocation5 + $0x1e08] sm:$0xff]
    %v1188 = vld [vmem:[#allocation5 + $0x1e10] sm:$0xff]
    %v1189 = vld [vmem:[#allocation5 + $0x1e18] sm:$0xff]
    %v1190 = vld [vmem:[#allocation5 + $0x1e20] sm:$0xff]
    %v1191 = vld [vmem:[#allocation5 + $0x1e28] sm:$0xff]
    %v1192 = vld [vmem:[#allocation5 + $0x1e30] sm:$0xff]
    %v1193 = vld [vmem:[#allocation5 + $0x1e38] sm:$0xff]
    %v1194 = vld [vmem:[#allocation5 + $0x1e40] sm:$0xff]
    %v1195 = vld [vmem:[#allocation5 + $0x1e48] sm:$0xff]
    %v1196 = vld [vmem:[#allocation5 + $0x1e50] sm:$0xff]
    %v1197 = vld [vmem:[#allocation5 + $0x1e58] sm:$0xff]
    %v1198 = vld [vmem:[#allocation5 + $0x1e60] sm:$0xff]
    %v1199 = vld [vmem:[#allocation5 + $0x1e68] sm:$0xff]
    %v1200 = vld [vmem:[#allocation5 + $0x1e70] sm:$0xff]
    %v1201 = vld [vmem:[#allocation5 + $0x1e78] sm:$0xff]
    %v1202 = vld [vmem:[#allocation5 + $0x1e80] sm:$0xff]
    %v1203 = vld [vmem:[#allocation5 + $0x1e88] sm:$0xff]
    %v1204 = vld [vmem:[#allocation5 + $0x1e90] sm:$0xff]
    %v1205 = vld [vmem:[#allocation5 + $0x1e98] sm:$0xff]
    %v1206 = vld [vmem:[#allocation5 + $0x1ea0] sm:$0xff]
    %v1207 = vld [vmem:[#allocation5 + $0x1ea8] sm:$0xff]
    %v1208 = vld [vmem:[#allocation5 + $0x1eb0] sm:$0xff]
    %v1209 = vld [vmem:[#allocation5 + $0x1eb8] sm:$0xff]
    %v1210 = vld [vmem:[#allocation5 + $0x1ec0] sm:$0xff]
    %v1211 = vld [vmem:[#allocation5 + $0x1ec8] sm:$0xff]
    %v1212 = vld [vmem:[#allocation5 + $0x1ed0] sm:$0xff]
    %v1213 = vld [vmem:[#allocation5 + $0x1ed8] sm:$0xff]
    %v1214 = vld [vmem:[#allocation5 + $0x1ee0] sm:$0xff]
    %v1215 = vld [vmem:[#allocation5 + $0x1ee8] sm:$0xff]
    %v1216 = vld [vmem:[#allocation5 + $0x1ef0] sm:$0xff]
    %v1217 = vld [vmem:[#allocation5 + $0x1ef8] sm:$0xff]
    %v1218 = vld [vmem:[#allocation5 + $0x1f00] sm:$0xff]
    %v1219 = vld [vmem:[#allocation5 + $0x1f08] sm:$0xff]
    %v1220 = vld [vmem:[#allocation5 + $0x1f10] sm:$0xff]
    %v1221 = vld [vmem:[#allocation5 + $0x1f18] sm:$0xff]
    %v1222 = vld [vmem:[#allocation5 + $0x1f20] sm:$0xff]
    %v1223 = vld [vmem:[#allocation5 + $0x1f28] sm:$0xff]
    %v1224 = vld [vmem:[#allocation5 + $0x1f30] sm:$0xff]
    %v1225 = vld [vmem:[#allocation5 + $0x1f38] sm:$0xff]
    %v1226 = vld [vmem:[#allocation5 + $0x1f40] sm:$0xff]
    %v1227 = vld [vmem:[#allocation5 + $0x1f48] sm:$0xff]
    %v1228 = vld [vmem:[#allocation5 + $0x1f50] sm:$0xff]
    %v1229 = vld [vmem:[#allocation5 + $0x1f58] sm:$0xff]
    %v1230 = vld [vmem:[#allocation5 + $0x1f60] sm:$0xff]
    %v1231 = vld [vmem:[#allocation5 + $0x1f68] sm:$0xff]
    %v1232 = vld [vmem:[#allocation5 + $0x1f70] sm:$0xff]
    %v1233 = vld [vmem:[#allocation5 + $0x1f78] sm:$0xff]
    %v1234 = vld [vmem:[#allocation5 + $0x1f80] sm:$0xff]
    %v1235 = vld [vmem:[#allocation5 + $0x1f88] sm:$0xff]
    %v1236 = vld [vmem:[#allocation5 + $0x1f90] sm:$0xff]
    %v1237 = vld [vmem:[#allocation5 + $0x1f98] sm:$0xff]
    %v1238 = vld [vmem:[#allocation5 + $0x1fa0] sm:$0xff]
    %v1239 = vld [vmem:[#allocation5 + $0x1fa8] sm:$0xff]
    %v1240 = vld [vmem:[#allocation5 + $0x1fb0] sm:$0xff]
    %v1241 = vld [vmem:[#allocation5 + $0x1fb8] sm:$0xff]
    %v1242 = vld [vmem:[#allocation5 + $0x1fc0] sm:$0xff]
    %v1243 = vld [vmem:[#allocation5 + $0x1fc8] sm:$0xff]
    %v1244 = vld [vmem:[#allocation5 + $0x1fd0] sm:$0xff]
    %v1245 = vld [vmem:[#allocation5 + $0x1fd8] sm:$0xff]
    %v1246 = vld [vmem:[#allocation5 + $0x1fe0] sm:$0xff]
    %v1247 = vld [vmem:[#allocation5 + $0x1fe8] sm:$0xff]
    %v1248 = vld [vmem:[#allocation5 + $0x1ff0] sm:$0xff]
    %v1249 = vld [vmem:[#allocation5 + $0x1ff8] sm:$0xff]
    %v1250 = vld [vmem:[#allocation5 + $0x2000] sm:$0xff]
    %v1251 = vld [vmem:[#allocation5 + $0x2008] sm:$0xff]
    %v1252 = vld [vmem:[#allocation5 + $0x2010] sm:$0xff]
    %v1253 = vld [vmem:[#allocation5 + $0x2018] sm:$0xff]
    %v1254 = vld [vmem:[#allocation5 + $0x2020] sm:$0xff]
    %v1255 = vld [vmem:[#allocation5 + $0x2028] sm:$0xff]
    %v1256 = vld [vmem:[#allocation5 + $0x2030] sm:$0xff]
    %v1257 = vld [vmem:[#allocation5 + $0x2038] sm:$0xff]
    %v1258 = vld [vmem:[#allocation5 + $0x2040] sm:$0xff]
    %v1259 = vld [vmem:[#allocation5 + $0x2048] sm:$0xff]
    %v1260 = vld [vmem:[#allocation5 + $0x2050] sm:$0xff]
    %v1261 = vld [vmem:[#allocation5 + $0x2058] sm:$0xff]
    %v1262 = vld [vmem:[#allocation5 + $0x2060] sm:$0xff]
    %v1263 = vld [vmem:[#allocation5 + $0x2068] sm:$0xff]
    %v1264 = vld [vmem:[#allocation5 + $0x2070] sm:$0xff]
    %v1265 = vld [vmem:[#allocation5 + $0x2078] sm:$0xff]
    %v1266 = vld [vmem:[#allocation5 + $0x2080] sm:$0xff]
    %v1267 = vld [vmem:[#allocation5 + $0x2088] sm:$0xff]
    %v1268 = vld [vmem:[#allocation5 + $0x2090] sm:$0xff]
    %v1269 = vld [vmem:[#allocation5 + $0x2098] sm:$0xff]
    %v1270 = vld [vmem:[#allocation5 + $0x20a0] sm:$0xff]
    %v1271 = vld [vmem:[#allocation5 + $0x20a8] sm:$0xff]
    %v1272 = vld [vmem:[#allocation5 + $0x20b0] sm:$0xff]
    %v1273 = vld [vmem:[#allocation5 + $0x20b8] sm:$0xff]
    %v1274 = vld [vmem:[#allocation5 + $0x20c0] sm:$0xff]
    %v1275 = vld [vmem:[#allocation5 + $0x20c8] sm:$0xff]
    %v1276 = vld [vmem:[#allocation5 + $0x20d0] sm:$0xff]
    %v1277 = vld [vmem:[#allocation5 + $0x20d8] sm:$0xff]
    %v1278 = vld [vmem:[#allocation5 + $0x20e0] sm:$0xff]
    %v1279 = vld [vmem:[#allocation5 + $0x20e8] sm:$0xff]
    %v1280 = vld [vmem:[#allocation5 + $0x20f0] sm:$0xff]
    %v1281 = vld [vmem:[#allocation5 + $0x20f8] sm:$0xff]
    %v1282 = vld [vmem:[#allocation5 + $0x2100] sm:$0xff]
    %v1283 = vld [vmem:[#allocation5 + $0x2108] sm:$0xff]
    %v1284 = vld [vmem:[#allocation5 + $0x2110] sm:$0xff]
    %v1285 = vld [vmem:[#allocation5 + $0x2118] sm:$0xff]
    %v1286 = vld [vmem:[#allocation5 + $0x2120] sm:$0xff]
    %v1287 = vld [vmem:[#allocation5 + $0x2128] sm:$0xff]
    %v1288 = vld [vmem:[#allocation5 + $0x2130] sm:$0xff]
    %v1289 = vld [vmem:[#allocation5 + $0x2138] sm:$0xff]
    %v1290 = vld [vmem:[#allocation5 + $0x2140] sm:$0xff]
    %v1291 = vld [vmem:[#allocation5 + $0x2148] sm:$0xff]
    %v1292 = vld [vmem:[#allocation5 + $0x2150] sm:$0xff]
    %v1293 = vld [vmem:[#allocation5 + $0x2158] sm:$0xff]
    %v1294 = vld [vmem:[#allocation5 + $0x2160] sm:$0xff]
    %v1295 = vld [vmem:[#allocation5 + $0x2168] sm:$0xff]
    %v1296 = vld [vmem:[#allocation5 + $0x2170] sm:$0xff]
    %v1297 = vld [vmem:[#allocation5 + $0x2178] sm:$0xff]
    %v1298 = vld [vmem:[#allocation5 + $0x2180] sm:$0xff]
    %v1299 = vld [vmem:[#allocation5 + $0x2188] sm:$0xff]
    %v1300 = vld [vmem:[#allocation5 + $0x2190] sm:$0xff]
    %v1301 = vld [vmem:[#allocation5 + $0x2198] sm:$0xff]
    %v1302 = vld [vmem:[#allocation5 + $0x21a0] sm:$0xff]
    %v1303 = vld [vmem:[#allocation5 + $0x21a8] sm:$0xff]
    %v1304 = vld [vmem:[#allocation5 + $0x21b0] sm:$0xff]
    %v1305 = vld [vmem:[#allocation5 + $0x21b8] sm:$0xff]
    %v1306 = vld [vmem:[#allocation5 + $0x21c0] sm:$0xff]
    %v1307 = vld [vmem:[#allocation5 + $0x21c8] sm:$0xff]
    %v1308 = vld [vmem:[#allocation5 + $0x21d0] sm:$0xff]
    %v1309 = vld [vmem:[#allocation5 + $0x21d8] sm:$0xff]
    %v1310 = vld [vmem:[#allocation5 + $0x21e0] sm:$0xff]
    %v1311 = vld [vmem:[#allocation5 + $0x21e8] sm:$0xff]
    %v1312 = vld [vmem:[#allocation5 + $0x21f0] sm:$0xff]
    %v1313 = vld [vmem:[#allocation5 + $0x21f8] sm:$0xff]
    %v1314 = vld [vmem:[#allocation5 + $0x2200] sm:$0xff]
    %v1315 = vld [vmem:[#allocation5 + $0x2208] sm:$0xff]
    %v1316 = vld [vmem:[#allocation5 + $0x2210] sm:$0xff]
    %v1317 = vld [vmem:[#allocation5 + $0x2218] sm:$0xff]
    %v1318 = vld [vmem:[#allocation5 + $0x2220] sm:$0xff]
    %v1319 = vld [vmem:[#allocation5 + $0x2228] sm:$0xff]
    %v1320 = vld [vmem:[#allocation5 + $0x2230] sm:$0xff]
    %v1321 = vld [vmem:[#allocation5 + $0x2238] sm:$0xff]
    %v1322 = vld [vmem:[#allocation5 + $0x2240] sm:$0xff]
    %v1323 = vld [vmem:[#allocation5 + $0x2248] sm:$0xff]
    %v1324 = vld [vmem:[#allocation5 + $0x2250] sm:$0xff]
    %v1325 = vld [vmem:[#allocation5 + $0x2258] sm:$0xff]
    %v1326 = vld [vmem:[#allocation5 + $0x2260] sm:$0xff]
    %v1327 = vld [vmem:[#allocation5 + $0x2268] sm:$0xff]
    %v1328 = vld [vmem:[#allocation5 + $0x2270] sm:$0xff]
    %v1329 = vld [vmem:[#allocation5 + $0x2278] sm:$0xff]
    %v1330 = vld [vmem:[#allocation5 + $0x2280] sm:$0xff]
    %v1331 = vld [vmem:[#allocation5 + $0x2288] sm:$0xff]
    %v1332 = vld [vmem:[#allocation5 + $0x2290] sm:$0xff]
    %v1333 = vld [vmem:[#allocation5 + $0x2298] sm:$0xff]
    %v1334 = vld [vmem:[#allocation5 + $0x22a0] sm:$0xff]
    %v1335 = vld [vmem:[#allocation5 + $0x22a8] sm:$0xff]
    %v1336 = vld [vmem:[#allocation5 + $0x22b0] sm:$0xff]
    %v1337 = vld [vmem:[#allocation5 + $0x22b8] sm:$0xff]
    %v1338 = vld [vmem:[#allocation5 + $0x22c0] sm:$0xff]
    %v1339 = vld [vmem:[#allocation5 + $0x22c8] sm:$0xff]
    %v1340 = vld [vmem:[#allocation5 + $0x22d0] sm:$0xff]
    %v1341 = vld [vmem:[#allocation5 + $0x22d8] sm:$0xff]
    %v1342 = vld [vmem:[#allocation5 + $0x22e0] sm:$0xff]
    %v1343 = vld [vmem:[#allocation5 + $0x22e8] sm:$0xff]
    %v1344 = vld [vmem:[#allocation5 + $0x22f0] sm:$0xff]
    %v1345 = vld [vmem:[#allocation5 + $0x22f8] sm:$0xff]
    %v1346 = vld [vmem:[#allocation5 + $0x2300] sm:$0xff]
    %v1347 = vld [vmem:[#allocation5 + $0x2308] sm:$0xff]
    %v1348 = vld [vmem:[#allocation5 + $0x2310] sm:$0xff]
    %v1349 = vld [vmem:[#allocation5 + $0x2318] sm:$0xff]
    %v1350 = vld [vmem:[#allocation5 + $0x2320] sm:$0xff]
    %v1351 = vld [vmem:[#allocation5 + $0x2328] sm:$0xff]
    %v1352 = vld [vmem:[#allocation5 + $0x2330] sm:$0xff]
    %v1353 = vld [vmem:[#allocation5 + $0x2338] sm:$0xff]
    %v1354 = vld [vmem:[#allocation5 + $0x2340] sm:$0xff]
    %v1355 = vld [vmem:[#allocation5 + $0x2348] sm:$0xff]
    %v1356 = vld [vmem:[#allocation5 + $0x2350] sm:$0xff]
    %v1357 = vld [vmem:[#allocation5 + $0x2358] sm:$0xff]
    %v1358 = vld [vmem:[#allocation5 + $0x2360] sm:$0xff]
    %v1359 = vld [vmem:[#allocation5 + $0x2368] sm:$0xff]
    %v1360 = vld [vmem:[#allocation5 + $0x2370] sm:$0xff]
    %v1361 = vld [vmem:[#allocation5 + $0x2378] sm:$0xff]
    %v1362 = vld [vmem:[#allocation5 + $0x2380] sm:$0xff]
    %v1363 = vld [vmem:[#allocation5 + $0x2388] sm:$0xff]
    %v1364 = vld [vmem:[#allocation5 + $0x2390] sm:$0xff]
    %v1365 = vld [vmem:[#allocation5 + $0x2398] sm:$0xff]
    %v1366 = vld [vmem:[#allocation5 + $0x23a0] sm:$0xff]
    %v1367 = vld [vmem:[#allocation5 + $0x23a8] sm:$0xff]
    %v1368 = vld [vmem:[#allocation5 + $0x23b0] sm:$0xff]
    %v1369 = vld [vmem:[#allocation5 + $0x23b8] sm:$0xff]
    %v1370 = vld [vmem:[#allocation5 + $0x23c0] sm:$0xff]
    %v1371 = vld [vmem:[#allocation5 + $0x23c8] sm:$0xff]
    %v1372 = vld [vmem:[#allocation5 + $0x23d0] sm:$0xff]
    %v1373 = vld [vmem:[#allocation5 + $0x23d8] sm:$0xff]
    %v1374 = vld [vmem:[#allocation5 + $0x23e0] sm:$0xff]
    %v1375 = vld [vmem:[#allocation5 + $0x23e8] sm:$0xff]
    %v1376 = vld [vmem:[#allocation5 + $0x23f0] sm:$0xff]
    %v1377 = vld [vmem:[#allocation5 + $0x23f8] sm:$0xff]
    %v1378 = vld [vmem:[#allocation5 + $0x2400] sm:$0xff]
    %v1379 = vld [vmem:[#allocation5 + $0x2408] sm:$0xff]
    %v1380 = vld [vmem:[#allocation5 + $0x2410] sm:$0xff]
    %v1381 = vld [vmem:[#allocation5 + $0x2418] sm:$0xff]
    %v1382 = vld [vmem:[#allocation5 + $0x2420] sm:$0xff]
    %v1383 = vld [vmem:[#allocation5 + $0x2428] sm:$0xff]
    %v1384 = vld [vmem:[#allocation5 + $0x2430] sm:$0xff]
    %v1385 = vld [vmem:[#allocation5 + $0x2438] sm:$0xff]
    %v1386 = vld [vmem:[#allocation5 + $0x2440] sm:$0xff]
    %v1387 = vld [vmem:[#allocation5 + $0x2448] sm:$0xff]
    %v1388 = vld [vmem:[#allocation5 + $0x2450] sm:$0xff]
    %v1389 = vld [vmem:[#allocation5 + $0x2458] sm:$0xff]
    %v1390 = vld [vmem:[#allocation5 + $0x2460] sm:$0xff]
    %v1391 = vld [vmem:[#allocation5 + $0x2468] sm:$0xff]
    %v1392 = vld [vmem:[#allocation5 + $0x2470] sm:$0xff]
    %v1393 = vld [vmem:[#allocation5 + $0x2478] sm:$0xff]
    %v1394 = vld [vmem:[#allocation5 + $0x2480] sm:$0xff]
    %v1395 = vld [vmem:[#allocation5 + $0x2488] sm:$0xff]
    %v1396 = vld [vmem:[#allocation5 + $0x2490] sm:$0xff]
    %v1397 = vld [vmem:[#allocation5 + $0x2498] sm:$0xff]
    %v1398 = vld [vmem:[#allocation5 + $0x24a0] sm:$0xff]
    %v1399 = vld [vmem:[#allocation5 + $0x24a8] sm:$0xff]
    %v1400 = vld [vmem:[#allocation5 + $0x24b0] sm:$0xff]
    %v1401 = vld [vmem:[#allocation5 + $0x24b8] sm:$0xff]
    %v1402 = vld [vmem:[#allocation5 + $0x24c0] sm:$0xff]
    %v1403 = vld [vmem:[#allocation5 + $0x24c8] sm:$0xff]
    %v1404 = vld [vmem:[#allocation5 + $0x24d0] sm:$0xff]
    %v1405 = vld [vmem:[#allocation5 + $0x24d8] sm:$0xff]
    %v1406 = vld [vmem:[#allocation5 + $0x24e0] sm:$0xff]
    %v1407 = vld [vmem:[#allocation5 + $0x24e8] sm:$0xff]
    %v1408 = vld [vmem:[#allocation5 + $0x24f0] sm:$0xff]
    %v1409 = vld [vmem:[#allocation5 + $0x24f8] sm:$0xff]
    %v1410 = vld [vmem:[#allocation5 + $0x2500] sm:$0xff]
    %v1411 = vld [vmem:[#allocation5 + $0x2508] sm:$0xff]
    %v1412 = vld [vmem:[#allocation5 + $0x2510] sm:$0xff]
    %v1413 = vld [vmem:[#allocation5 + $0x2518] sm:$0xff]
    %v1414 = vld [vmem:[#allocation5 + $0x2520] sm:$0xff]
    %v1415 = vld [vmem:[#allocation5 + $0x2528] sm:$0xff]
    %v1416 = vld [vmem:[#allocation5 + $0x2530] sm:$0xff]
    %v1417 = vld [vmem:[#allocation5 + $0x2538] sm:$0xff]
    %v1418 = vld [vmem:[#allocation5 + $0x2540] sm:$0xff]
    %v1419 = vld [vmem:[#allocation5 + $0x2548] sm:$0xff]
    %v1420 = vld [vmem:[#allocation5 + $0x2550] sm:$0xff]
    %v1421 = vld [vmem:[#allocation5 + $0x2558] sm:$0xff]
    %v1422 = vld [vmem:[#allocation5 + $0x2560] sm:$0xff]
    %v1423 = vld [vmem:[#allocation5 + $0x2568] sm:$0xff]
    %v1424 = vld [vmem:[#allocation5 + $0x2570] sm:$0xff]
    %v1425 = vld [vmem:[#allocation5 + $0x2578] sm:$0xff]
    %v1426 = vld [vmem:[#allocation5 + $0x2580] sm:$0xff]
    %v1427 = vld [vmem:[#allocation5 + $0x2588] sm:$0xff]
    %v1428 = vld [vmem:[#allocation5 + $0x2590] sm:$0xff]
    %v1429 = vld [vmem:[#allocation5 + $0x2598] sm:$0xff]
    %v1430 = vld [vmem:[#allocation5 + $0x25a0] sm:$0xff]
    %v1431 = vld [vmem:[#allocation5 + $0x25a8] sm:$0xff]
    %v1432 = vld [vmem:[#allocation5 + $0x25b0] sm:$0xff]
    %v1433 = vld [vmem:[#allocation5 + $0x25b8] sm:$0xff]
    %v1434 = vld [vmem:[#allocation5 + $0x25c0] sm:$0xff]
    %v1435 = vld [vmem:[#allocation5 + $0x25c8] sm:$0xff]
    %v1436 = vld [vmem:[#allocation5 + $0x25d0] sm:$0xff]
    %v1437 = vld [vmem:[#allocation5 + $0x25d8] sm:$0xff]
    %v1438 = vld [vmem:[#allocation5 + $0x25e0] sm:$0xff]
    %v1439 = vld [vmem:[#allocation5 + $0x25e8] sm:$0xff]
    %v1440 = vld [vmem:[#allocation5 + $0x25f0] sm:$0xff]
    %v1441 = vld [vmem:[#allocation5 + $0x25f8] sm:$0xff]
    %v1442 = vld [vmem:[#allocation5 + $0x2600] sm:$0xff]
    %v1443 = vld [vmem:[#allocation5 + $0x2608] sm:$0xff]
    %v1444 = vld [vmem:[#allocation5 + $0x2610] sm:$0xff]
    %v1445 = vld [vmem:[#allocation5 + $0x2618] sm:$0xff]
    %v1446 = vld [vmem:[#allocation5 + $0x2620] sm:$0xff]
    %v1447 = vld [vmem:[#allocation5 + $0x2628] sm:$0xff]
    %v1448 = vld [vmem:[#allocation5 + $0x2630] sm:$0xff]
    %v1449 = vld [vmem:[#allocation5 + $0x2638] sm:$0xff]
    %v1450 = vld [vmem:[#allocation5 + $0x2640] sm:$0xff]
    %v1451 = vld [vmem:[#allocation5 + $0x2648] sm:$0xff]
    %v1452 = vld [vmem:[#allocation5 + $0x2650] sm:$0xff]
    %v1453 = vld [vmem:[#allocation5 + $0x2658] sm:$0xff]
    %v1454 = vld [vmem:[#allocation5 + $0x2660] sm:$0xff]
    %v1455 = vld [vmem:[#allocation5 + $0x2668] sm:$0xff]
    %v1456 = vld [vmem:[#allocation5 + $0x2670] sm:$0xff]
    %v1457 = vld [vmem:[#allocation5 + $0x2678] sm:$0xff]
    %v1458 = vld [vmem:[#allocation5 + $0x2680] sm:$0xff]
    %v1459 = vld [vmem:[#allocation5 + $0x2688] sm:$0xff]
    %v1460 = vld [vmem:[#allocation5 + $0x2690] sm:$0xff]
    %v1461 = vld [vmem:[#allocation5 + $0x2698] sm:$0xff]
    %v1462 = vld [vmem:[#allocation5 + $0x26a0] sm:$0xff]
    %v1463 = vld [vmem:[#allocation5 + $0x26a8] sm:$0xff]
    %v1464 = vld [vmem:[#allocation5 + $0x26b0] sm:$0xff]
    %v1465 = vld [vmem:[#allocation5 + $0x26b8] sm:$0xff]
    %v1466 = vld [vmem:[#allocation5 + $0x26c0] sm:$0xff]
    %v1467 = vld [vmem:[#allocation5 + $0x26c8] sm:$0xff]
    %v1468 = vld [vmem:[#allocation5 + $0x26d0] sm:$0xff]
    %v1469 = vld [vmem:[#allocation5 + $0x26d8] sm:$0xff]
    %v1470 = vld [vmem:[#allocation5 + $0x26e0] sm:$0xff]
    %v1471 = vld [vmem:[#allocation5 + $0x26e8] sm:$0xff]
    %v1472 = vld [vmem:[#allocation5 + $0x26f0] sm:$0xff]
    %v1473 = vld [vmem:[#allocation5 + $0x26f8] sm:$0xff]
    %v1474 = vld [vmem:[#allocation5 + $0x2700] sm:$0xff]
    %v1475 = vld [vmem:[#allocation5 + $0x2708] sm:$0xff]
    %v1476 = vld [vmem:[#allocation5 + $0x2710] sm:$0xff]
    %v1477 = vld [vmem:[#allocation5 + $0x2718] sm:$0xff]
    %v1478 = vld [vmem:[#allocation5 + $0x2720] sm:$0xff]
    %v1479 = vld [vmem:[#allocation5 + $0x2728] sm:$0xff]
    %v1480 = vld [vmem:[#allocation5 + $0x2730] sm:$0xff]
    %v1481 = vld [vmem:[#allocation5 + $0x2738] sm:$0xff]
    %v1482 = vld [vmem:[#allocation5 + $0x2740] sm:$0xff]
    %v1483 = vld [vmem:[#allocation5 + $0x2748] sm:$0xff]
    %v1484 = vld [vmem:[#allocation5 + $0x2750] sm:$0xff]
    %v1485 = vld [vmem:[#allocation5 + $0x2758] sm:$0xff]
    %v1486 = vld [vmem:[#allocation5 + $0x2760] sm:$0xff]
    %v1487 = vld [vmem:[#allocation5 + $0x2768] sm:$0xff]
    %v1488 = vld [vmem:[#allocation5 + $0x2770] sm:$0xff]
    %v1489 = vld [vmem:[#allocation5 + $0x2778] sm:$0xff]
    %v1490 = vld [vmem:[#allocation5 + $0x2780] sm:$0xff]
    %v1491 = vld [vmem:[#allocation5 + $0x2788] sm:$0xff]
    %v1492 = vld [vmem:[#allocation5 + $0x2790] sm:$0xff]
    %v1493 = vld [vmem:[#allocation5 + $0x2798] sm:$0xff]
    %v1494 = vld [vmem:[#allocation5 + $0x27a0] sm:$0xff]
    %v1495 = vld [vmem:[#allocation5 + $0x27a8] sm:$0xff]
    %v1496 = vld [vmem:[#allocation5 + $0x27b0] sm:$0xff]
    %v1497 = vld [vmem:[#allocation5 + $0x27b8] sm:$0xff]
    %v1498 = vld [vmem:[#allocation5 + $0x27c0] sm:$0xff]
    %v1499 = vld [vmem:[#allocation5 + $0x27c8] sm:$0xff]
    %v1500 = vld [vmem:[#allocation5 + $0x27d0] sm:$0xff]
    %v1501 = vld [vmem:[#allocation5 + $0x27d8] sm:$0xff]
    %v1502 = vld [vmem:[#allocation5 + $0x27e0] sm:$0xff]
    %v1503 = vld [vmem:[#allocation5 + $0x27e8] sm:$0xff]
    %v1504 = vld [vmem:[#allocation5 + $0x27f0] sm:$0xff]
    %v1505 = vld [vmem:[#allocation5 + $0x27f8] sm:$0xff]
    %v1506 = vld [vmem:[#allocation5 + $0x2800] sm:$0xff]
    %v1507 = vld [vmem:[#allocation5 + $0x2808] sm:$0xff]
    %v1508 = vld [vmem:[#allocation5 + $0x2810] sm:$0xff]
    %v1509 = vld [vmem:[#allocation5 + $0x2818] sm:$0xff]
    %v1510 = vld [vmem:[#allocation5 + $0x2820] sm:$0xff]
    %v1511 = vld [vmem:[#allocation5 + $0x2828] sm:$0xff]
    %v1512 = vld [vmem:[#allocation5 + $0x2830] sm:$0xff]
    %v1513 = vld [vmem:[#allocation5 + $0x2838] sm:$0xff]
    %v1514 = vld [vmem:[#allocation5 + $0x2840] sm:$0xff]
    %v1515 = vld [vmem:[#allocation5 + $0x2848] sm:$0xff]
    %v1516 = vld [vmem:[#allocation5 + $0x2850] sm:$0xff]
    %v1517 = vld [vmem:[#allocation5 + $0x2858] sm:$0xff]
    %v1518 = vld [vmem:[#allocation5 + $0x2860] sm:$0xff]
    %v1519 = vld [vmem:[#allocation5 + $0x2868] sm:$0xff]
    %v1520 = vld [vmem:[#allocation5 + $0x2870] sm:$0xff]
    %v1521 = vld [vmem:[#allocation5 + $0x2878] sm:$0xff]
    %v1522 = vld [vmem:[#allocation5 + $0x2880] sm:$0xff]
    %v1523 = vld [vmem:[#allocation5 + $0x2888] sm:$0xff]
    %v1524 = vld [vmem:[#allocation5 + $0x2890] sm:$0xff]
    %v1525 = vld [vmem:[#allocation5 + $0x2898] sm:$0xff]
    %v1526 = vld [vmem:[#allocation5 + $0x28a0] sm:$0xff]
    %v1527 = vld [vmem:[#allocation5 + $0x28a8] sm:$0xff]
    %v1528 = vld [vmem:[#allocation5 + $0x28b0] sm:$0xff]
    %v1529 = vld [vmem:[#allocation5 + $0x28b8] sm:$0xff]
    %v1530 = vld [vmem:[#allocation5 + $0x28c0] sm:$0xff]
    %v1531 = vld [vmem:[#allocation5 + $0x28c8] sm:$0xff]
    %v1532 = vld [vmem:[#allocation5 + $0x28d0] sm:$0xff]
    %v1533 = vld [vmem:[#allocation5 + $0x28d8] sm:$0xff]
    %v1534 = vld [vmem:[#allocation5 + $0x28e0] sm:$0xff]
    %v1535 = vld [vmem:[#allocation5 + $0x28e8] sm:$0xff]
    %v1536 = vld [vmem:[#allocation5 + $0x28f0] sm:$0xff]
    %v1537 = vld [vmem:[#allocation5 + $0x28f8] sm:$0xff]
    %v1538 = vld [vmem:[#allocation5 + $0x2900] sm:$0xff]
    %v1539 = vld [vmem:[#allocation5 + $0x2908] sm:$0xff]
    %v1540 = vld [vmem:[#allocation5 + $0x2910] sm:$0xff]
    %v1541 = vld [vmem:[#allocation5 + $0x2918] sm:$0xff]
    %v1542 = vld [vmem:[#allocation5 + $0x2920] sm:$0xff]
    %v1543 = vld [vmem:[#allocation5 + $0x2928] sm:$0xff]
    %v1544 = vld [vmem:[#allocation5 + $0x2930] sm:$0xff]
    %v1545 = vld [vmem:[#allocation5 + $0x2938] sm:$0xff]
    %v1546 = vld [vmem:[#allocation5 + $0x2940] sm:$0xff]
    %v1547 = vld [vmem:[#allocation5 + $0x2948] sm:$0xff]
    %v1548 = vld [vmem:[#allocation5 + $0x2950] sm:$0xff]
    %v1549 = vld [vmem:[#allocation5 + $0x2958] sm:$0xff]
    %v1550 = vld [vmem:[#allocation5 + $0x2960] sm:$0xff]
    %v1551 = vld [vmem:[#allocation5 + $0x2968] sm:$0xff]
    %v1552 = vld [vmem:[#allocation5 + $0x2970] sm:$0xff]
    %v1553 = vld [vmem:[#allocation5 + $0x2978] sm:$0xff]
    %v1554 = vld [vmem:[#allocation5 + $0x2980] sm:$0xff]
    %v1555 = vld [vmem:[#allocation5 + $0x2988] sm:$0xff]
    %v1556 = vld [vmem:[#allocation5 + $0x2990] sm:$0xff]
    %v1557 = vld [vmem:[#allocation5 + $0x2998] sm:$0xff]
    %v1558 = vld [vmem:[#allocation5 + $0x29a0] sm:$0xff]
    %v1559 = vld [vmem:[#allocation5 + $0x29a8] sm:$0xff]
    %v1560 = vld [vmem:[#allocation5 + $0x29b0] sm:$0xff]
    %v1561 = vld [vmem:[#allocation5 + $0x29b8] sm:$0xff]
    %v1562 = vld [vmem:[#allocation5 + $0x29c0] sm:$0xff]
    %v1563 = vld [vmem:[#allocation5 + $0x29c8] sm:$0xff]
    %v1564 = vld [vmem:[#allocation5 + $0x29d0] sm:$0xff]
    %v1565 = vld [vmem:[#allocation5 + $0x29d8] sm:$0xff]
    %v1566 = vld [vmem:[#allocation5 + $0x29e0] sm:$0xff]
    %v1567 = vld [vmem:[#allocation5 + $0x29e8] sm:$0xff]
    %v1568 = vld [vmem:[#allocation5 + $0x29f0] sm:$0xff]
    %v1569 = vld [vmem:[#allocation5 + $0x29f8] sm:$0xff]
    %v1570 = vld [vmem:[#allocation7] sm:$0xff]
    %v1572 = vperm.slane %v1570, 0
    %v1573 = vperm.slane %v1570, 1
    %v1574 = vperm.slane %v1570, 2
    %v1575 = vperm.slane %v1570, 3
    %v1576 = vperm.slane %v1570, 4
    %v1577 = vperm.slane %v1570, 5
    %v1578 = vperm.slane %v1570, 6
    %v1579 = vperm.slane %v1570, 7
    %v2932 = vunpack.c.l.b16 %v226
    %v2933 = vunpack.c.h.b16 %v226
    %v2934 = vunpack.c.l.b16 %v227
    %v2935 = vunpack.c.h.b16 %v227
    %v2936 = vunpack.c.l.b16 %v228
    %v2937 = vunpack.c.h.b16 %v228
    %v2938 = vunpack.c.l.b16 %v229
    %v2939 = vunpack.c.h.b16 %v229
    %v2940 = vunpack.c.l.b16 %v230
    %v2941 = vunpack.c.h.b16 %v230
    %v2942 = vunpack.c.l.b16 %v231
    %v2943 = vunpack.c.h.b16 %v231
    %v2944 = vunpack.c.l.b16 %v232
    %v2945 = vunpack.c.h.b16 %v232
    %v2946 = vunpack.c.l.b16 %v233
    %v2947 = vunpack.c.h.b16 %v233
    %v2948 = vunpack.c.l.b16 %v234
    %v2949 = vunpack.c.h.b16 %v234
    %v2950 = vunpack.c.l.b16 %v235
    %v2951 = vunpack.c.h.b16 %v235
    %v2952 = vunpack.c.l.b16 %v236
    %v2953 = vunpack.c.h.b16 %v236
    %v2954 = vunpack.c.l.b16 %v237
    %v2955 = vunpack.c.h.b16 %v237
    %v2956 = vunpack.c.l.b16 %v238
    %v2957 = vunpack.c.h.b16 %v238
    %v2958 = vunpack.c.l.b16 %v239
    %v2959 = vunpack.c.h.b16 %v239
    %v2960 = vunpack.c.l.b16 %v240
    %v2961 = vunpack.c.h.b16 %v240
    %v2962 = vunpack.c.l.b16 %v241
    %v2963 = vunpack.c.h.b16 %v241
    %v2964 = vunpack.c.l.b16 %v242
    %v2965 = vunpack.c.h.b16 %v242
    %v2966 = vunpack.c.l.b16 %v243
    %v2967 = vunpack.c.h.b16 %v243
    %v2968 = vunpack.c.l.b16 %v244
    %v2969 = vunpack.c.h.b16 %v244
    %v2970 = vunpack.c.l.b16 %v245
    %v2971 = vunpack.c.h.b16 %v245
    %v2972 = vunpack.c.l.b16 %v246
    %v2973 = vunpack.c.h.b16 %v246
    %v2974 = vunpack.c.l.b16 %v247
    %v2975 = vunpack.c.h.b16 %v247
    %v2976 = vunpack.c.l.b16 %v248
    %v2977 = vunpack.c.h.b16 %v248
    %v2978 = vunpack.c.l.b16 %v249
    %v2979 = vunpack.c.h.b16 %v249
    %v2980 = vunpack.c.l.b16 %v250
    %v2981 = vunpack.c.h.b16 %v250
    %v2982 = vunpack.c.l.b16 %v251
    %v2983 = vunpack.c.h.b16 %v251
    %v2984 = vunpack.c.l.b16 %v252
    %v2985 = vunpack.c.h.b16 %v252
    %v2986 = vunpack.c.l.b16 %v253
    %v2987 = vunpack.c.h.b16 %v253
    %v2988 = vunpack.c.l.b16 %v254
    %v2989 = vunpack.c.h.b16 %v254
    %v2990 = vunpack.c.l.b16 %v255
    %v2991 = vunpack.c.h.b16 %v255
    %v2992 = vunpack.c.l.b16 %v256
    %v2993 = vunpack.c.h.b16 %v256
    %v2994 = vunpack.c.l.b16 %v257
    %v2995 = vunpack.c.h.b16 %v257
    %v2996 = vunpack.c.l.b16 %v258
    %v2997 = vunpack.c.h.b16 %v258
    %v2998 = vunpack.c.l.b16 %v259
    %v2999 = vunpack.c.h.b16 %v259
    %v3000 = vunpack.c.l.b16 %v260
    %v3001 = vunpack.c.h.b16 %v260
    %v3002 = vunpack.c.l.b16 %v261
    %v3003 = vunpack.c.h.b16 %v261
    %v3004 = vunpack.c.l.b16 %v262
    %v3005 = vunpack.c.h.b16 %v262
    %v3006 = vunpack.c.l.b16 %v263
    %v3007 = vunpack.c.h.b16 %v263
    %v3008 = vunpack.c.l.b16 %v264
    %v3009 = vunpack.c.h.b16 %v264
    %v3010 = vunpack.c.l.b16 %v265
    %v3011 = vunpack.c.h.b16 %v265
    %v3012 = vunpack.c.l.b16 %v266
    %v3013 = vunpack.c.h.b16 %v266
    %v3014 = vunpack.c.l.b16 %v267
    %v3015 = vunpack.c.h.b16 %v267
    %v3016 = vunpack.c.l.b16 %v268
    %v3017 = vunpack.c.h.b16 %v268
    %v3018 = vunpack.c.l.b16 %v269
    %v3019 = vunpack.c.h.b16 %v269
    %v3020 = vunpack.c.l.b16 %v270
    %v3021 = vunpack.c.h.b16 %v270
    %v3022 = vunpack.c.l.b16 %v271
    %v3023 = vunpack.c.h.b16 %v271
    %v3024 = vunpack.c.l.b16 %v272
    %v3025 = vunpack.c.h.b16 %v272
    %v3026 = vunpack.c.l.b16 %v273
    %v3027 = vunpack.c.h.b16 %v273
    %v3028 = vunpack.c.l.b16 %v274
    %v3029 = vunpack.c.h.b16 %v274
    %v3030 = vunpack.c.l.b16 %v275
    %v3031 = vunpack.c.h.b16 %v275
    %v3032 = vunpack.c.l.b16 %v276
    %v3033 = vunpack.c.h.b16 %v276
    %v3034 = vunpack.c.l.b16 %v277
    %v3035 = vunpack.c.h.b16 %v277
    %v3036 = vunpack.c.l.b16 %v278
    %v3037 = vunpack.c.h.b16 %v278
    %v3038 = vunpack.c.l.b16 %v279
    %v3039 = vunpack.c.h.b16 %v279
    %v3040 = vunpack.c.l.b16 %v280
    %v3041 = vunpack.c.h.b16 %v280
    %v3042 = vunpack.c.l.b16 %v281
    %v3043 = vunpack.c.h.b16 %v281
    %v3044 = vunpack.c.l.b16 %v282
    %v3045 = vunpack.c.h.b16 %v282
    %v3046 = vunpack.c.l.b16 %v283
    %v3047 = vunpack.c.h.b16 %v283
    %v3048 = vunpack.c.l.b16 %v284
    %v3049 = vunpack.c.h.b16 %v284
    %v3050 = vunpack.c.l.b16 %v285
    %v3051 = vunpack.c.h.b16 %v285
    %v3052 = vunpack.c.l.b16 %v286
    %v3053 = vunpack.c.h.b16 %v286
    %v3054 = vunpack.c.l.b16 %v287
    %v3055 = vunpack.c.h.b16 %v287
    %v3056 = vunpack.c.l.b16 %v288
    %v3057 = vunpack.c.h.b16 %v288
    %v3058 = vunpack.c.l.b16 %v289
    %v3059 = vunpack.c.h.b16 %v289
    %v3060 = vunpack.c.l.b16 %v290
    %v3061 = vunpack.c.h.b16 %v290
    %v3062 = vunpack.c.l.b16 %v291
    %v3063 = vunpack.c.h.b16 %v291
    %v3064 = vunpack.c.l.b16 %v292
    %v3065 = vunpack.c.h.b16 %v292
    %v3066 = vunpack.c.l.b16 %v293
    %v3067 = vunpack.c.h.b16 %v293
    %v3068 = vunpack.c.l.b16 %v294
    %v3069 = vunpack.c.h.b16 %v294
    %v3070 = vunpack.c.l.b16 %v295
    %v3071 = vunpack.c.h.b16 %v295
    %v3072 = vunpack.c.l.b16 %v296
    %v3073 = vunpack.c.h.b16 %v296
    %v3074 = vunpack.c.l.b16 %v297
    %v3075 = vunpack.c.h.b16 %v297
    %v3076 = vunpack.c.l.b16 %v298
    %v3077 = vunpack.c.h.b16 %v298
    %v3078 = vunpack.c.l.b16 %v299
    %v3079 = vunpack.c.h.b16 %v299
    %v3080 = vunpack.c.l.b16 %v300
    %v3081 = vunpack.c.h.b16 %v300
    %v3082 = vunpack.c.l.b16 %v301
    %v3083 = vunpack.c.h.b16 %v301
    %v3084 = vunpack.c.l.b16 %v302
    %v3085 = vunpack.c.h.b16 %v302
    %v3086 = vunpack.c.l.b16 %v303
    %v3087 = vunpack.c.h.b16 %v303
    %v3088 = vunpack.c.l.b16 %v304
    %v3089 = vunpack.c.h.b16 %v304
    %v3090 = vunpack.c.l.b16 %v305
    %v3091 = vunpack.c.h.b16 %v305
    %v3092 = vunpack.c.l.b16 %v306
    %v3093 = vunpack.c.h.b16 %v306
    %v3094 = vunpack.c.l.b16 %v307
    %v3095 = vunpack.c.h.b16 %v307
    %v3096 = vunpack.c.l.b16 %v308
    %v3097 = vunpack.c.h.b16 %v308
    %v3098 = vunpack.c.l.b16 %v309
    %v3099 = vunpack.c.h.b16 %v309
    %v3100 = vunpack.c.l.b16 %v310
    %v3101 = vunpack.c.h.b16 %v310
    %v3102 = vunpack.c.l.b16 %v311
    %v3103 = vunpack.c.h.b16 %v311
    %v3104 = vunpack.c.l.b16 %v312
    %v3105 = vunpack.c.h.b16 %v312
    %v3106 = vunpack.c.l.b16 %v313
    %v3107 = vunpack.c.h.b16 %v313
    %v3108 = vunpack.c.l.b16 %v314
    %v3109 = vunpack.c.h.b16 %v314
    %v3110 = vunpack.c.l.b16 %v315
    %v3111 = vunpack.c.h.b16 %v315
    %v3112 = vunpack.c.l.b16 %v316
    %v3113 = vunpack.c.h.b16 %v316
    %v3114 = vunpack.c.l.b16 %v317
    %v3115 = vunpack.c.h.b16 %v317
    %v3116 = vunpack.c.l.b16 %v318
    %v3117 = vunpack.c.h.b16 %v318
    %v3118 = vunpack.c.l.b16 %v319
    %v3119 = vunpack.c.h.b16 %v319
    %v3120 = vunpack.c.l.b16 %v320
    %v3121 = vunpack.c.h.b16 %v320
    %v3122 = vunpack.c.l.b16 %v321
    %v3123 = vunpack.c.h.b16 %v321
    %v3124 = vunpack.c.l.b16 %v322
    %v3125 = vunpack.c.h.b16 %v322
    %v3126 = vunpack.c.l.b16 %v323
    %v3127 = vunpack.c.h.b16 %v323
    %v3128 = vunpack.c.l.b16 %v324
    %v3129 = vunpack.c.h.b16 %v324
    %v3130 = vunpack.c.l.b16 %v325
    %v3131 = vunpack.c.h.b16 %v325
    %v3132 = vunpack.c.l.b16 %v326
    %v3133 = vunpack.c.h.b16 %v326
    %v3134 = vunpack.c.l.b16 %v327
    %v3135 = vunpack.c.h.b16 %v327
    %v3136 = vunpack.c.l.b16 %v328
    %v3137 = vunpack.c.h.b16 %v328
    %v3138 = vunpack.c.l.b16 %v329
    %v3139 = vunpack.c.h.b16 %v329
    %v3140 = vunpack.c.l.b16 %v330
    %v3141 = vunpack.c.h.b16 %v330
    %v3142 = vunpack.c.l.b16 %v331
    %v3143 = vunpack.c.h.b16 %v331
    %v3144 = vunpack.c.l.b16 %v332
    %v3145 = vunpack.c.h.b16 %v332
    %v3146 = vunpack.c.l.b16 %v333
    %v3147 = vunpack.c.h.b16 %v333
    %v3148 = vunpack.c.l.b16 %v334
    %v3149 = vunpack.c.h.b16 %v334
    %v3150 = vunpack.c.l.b16 %v335
    %v3151 = vunpack.c.h.b16 %v335
    %v3152 = vunpack.c.l.b16 %v336
    %v3153 = vunpack.c.h.b16 %v336
    %v3154 = vunpack.c.l.b16 %v337
    %v3155 = vunpack.c.h.b16 %v337
    %v3156 = vunpack.c.l.b16 %v338
    %v3157 = vunpack.c.h.b16 %v338
    %v3158 = vunpack.c.l.b16 %v339
    %v3159 = vunpack.c.h.b16 %v339
    %v3160 = vunpack.c.l.b16 %v340
    %v3161 = vunpack.c.h.b16 %v340
    %v3162 = vunpack.c.l.b16 %v341
    %v3163 = vunpack.c.h.b16 %v341
    %v3164 = vunpack.c.l.b16 %v342
    %v3165 = vunpack.c.h.b16 %v342
    %v3166 = vunpack.c.l.b16 %v343
    %v3167 = vunpack.c.h.b16 %v343
    %v3168 = vunpack.c.l.b16 %v344
    %v3169 = vunpack.c.h.b16 %v344
    %v3170 = vunpack.c.l.b16 %v345
    %v3171 = vunpack.c.h.b16 %v345
    %v3172 = vunpack.c.l.b16 %v346
    %v3173 = vunpack.c.h.b16 %v346
    %v3174 = vunpack.c.l.b16 %v347
    %v3175 = vunpack.c.h.b16 %v347
    %v3176 = vunpack.c.l.b16 %v348
    %v3177 = vunpack.c.h.b16 %v348
    %v3178 = vunpack.c.l.b16 %v349
    %v3179 = vunpack.c.h.b16 %v349
    %v3180 = vunpack.c.l.b16 %v350
    %v3181 = vunpack.c.h.b16 %v350
    %v3182 = vunpack.c.l.b16 %v351
    %v3183 = vunpack.c.h.b16 %v351
    %v3184 = vunpack.c.l.b16 %v352
    %v3185 = vunpack.c.h.b16 %v352
    %v3186 = vunpack.c.l.b16 %v353
    %v3187 = vunpack.c.h.b16 %v353
    %v3188 = vunpack.c.l.b16 %v354
    %v3189 = vunpack.c.h.b16 %v354
    %v3190 = vunpack.c.l.b16 %v355
    %v3191 = vunpack.c.h.b16 %v355
    %v3192 = vunpack.c.l.b16 %v356
    %v3193 = vunpack.c.h.b16 %v356
    %v3194 = vunpack.c.l.b16 %v357
    %v3195 = vunpack.c.h.b16 %v357
    %v3196 = vunpack.c.l.b16 %v358
    %v3197 = vunpack.c.h.b16 %v358
    %v3198 = vunpack.c.l.b16 %v359
    %v3199 = vunpack.c.h.b16 %v359
    %v3200 = vunpack.c.l.b16 %v360
    %v3201 = vunpack.c.h.b16 %v360
    %v3202 = vunpack.c.l.b16 %v361
    %v3203 = vunpack.c.h.b16 %v361
    %v3204 = vunpack.c.l.b16 %v362
    %v3205 = vunpack.c.h.b16 %v362
    %v3206 = vunpack.c.l.b16 %v363
    %v3207 = vunpack.c.h.b16 %v363
    %v3208 = vunpack.c.l.b16 %v364
    %v3209 = vunpack.c.h.b16 %v364
    %v3210 = vunpack.c.l.b16 %v365
    %v3211 = vunpack.c.h.b16 %v365
    %v3212 = vunpack.c.l.b16 %v366
    %v3213 = vunpack.c.h.b16 %v366
    %v3214 = vunpack.c.l.b16 %v367
    %v3215 = vunpack.c.h.b16 %v367
    %v3216 = vunpack.c.l.b16 %v368
    %v3217 = vunpack.c.h.b16 %v368
    %v3218 = vunpack.c.l.b16 %v369
    %v3219 = vunpack.c.h.b16 %v369
    %v3220 = vunpack.c.l.b16 %v370
    %v3221 = vunpack.c.h.b16 %v370
    %v3222 = vunpack.c.l.b16 %v371
    %v3223 = vunpack.c.h.b16 %v371
    %v3224 = vunpack.c.l.b16 %v372
    %v3225 = vunpack.c.h.b16 %v372
    %v3226 = vunpack.c.l.b16 %v373
    %v3227 = vunpack.c.h.b16 %v373
    %v3228 = vunpack.c.l.b16 %v374
    %v3229 = vunpack.c.h.b16 %v374
    %v3230 = vunpack.c.l.b16 %v375
    %v3231 = vunpack.c.h.b16 %v375
    %v3232 = vunpack.c.l.b16 %v376
    %v3233 = vunpack.c.h.b16 %v376
    %v3234 = vunpack.c.l.b16 %v377
    %v3235 = vunpack.c.h.b16 %v377
    %v3236 = vunpack.c.l.b16 %v378
    %v3237 = vunpack.c.h.b16 %v378
    %v3238 = vunpack.c.l.b16 %v379
    %v3239 = vunpack.c.h.b16 %v379
    %v3240 = vunpack.c.l.b16 %v380
    %v3241 = vunpack.c.h.b16 %v380
    %v3242 = vunpack.c.l.b16 %v381
    %v3243 = vunpack.c.h.b16 %v381
    %v3244 = vunpack.c.l.b16 %v382
    %v3245 = vunpack.c.h.b16 %v382
    %v3246 = vunpack.c.l.b16 %v383
    %v3247 = vunpack.c.h.b16 %v383
    %v3248 = vunpack.c.l.b16 %v384
    %v3249 = vunpack.c.h.b16 %v384
    %v3250 = vunpack.c.l.b16 %v385
    %v3251 = vunpack.c.h.b16 %v385
    %v3252 = vunpack.c.l.b16 %v386
    %v3253 = vunpack.c.h.b16 %v386
    %v3254 = vunpack.c.l.b16 %v387
    %v3255 = vunpack.c.h.b16 %v387
    %v3256 = vunpack.c.l.b16 %v388
    %v3257 = vunpack.c.h.b16 %v388
    %v3258 = vunpack.c.l.b16 %v389
    %v3259 = vunpack.c.h.b16 %v389
    %v3260 = vunpack.c.l.b16 %v390
    %v3261 = vunpack.c.h.b16 %v390
    %v3262 = vunpack.c.l.b16 %v391
    %v3263 = vunpack.c.h.b16 %v391
    %v3264 = vunpack.c.l.b16 %v392
    %v3265 = vunpack.c.h.b16 %v392
    %v3266 = vunpack.c.l.b16 %v393
    %v3267 = vunpack.c.h.b16 %v393
    %v3268 = vunpack.c.l.b16 %v394
    %v3269 = vunpack.c.h.b16 %v394
    %v3270 = vunpack.c.l.b16 %v395
    %v3271 = vunpack.c.h.b16 %v395
    %v3272 = vunpack.c.l.b16 %v396
    %v3273 = vunpack.c.h.b16 %v396
    %v3274 = vunpack.c.l.b16 %v397
    %v3275 = vunpack.c.h.b16 %v397
    %v3276 = vunpack.c.l.b16 %v398
    %v3277 = vunpack.c.h.b16 %v398
    %v3278 = vunpack.c.l.b16 %v399
    %v3279 = vunpack.c.h.b16 %v399
    %v3280 = vunpack.c.l.b16 %v400
    %v3281 = vunpack.c.h.b16 %v400
    %v3282 = vunpack.c.l.b16 %v401
    %v3283 = vunpack.c.h.b16 %v401
    %v3284 = vunpack.c.l.b16 %v402
    %v3285 = vunpack.c.h.b16 %v402
    %v3286 = vunpack.c.l.b16 %v403
    %v3287 = vunpack.c.h.b16 %v403
    %v3288 = vunpack.c.l.b16 %v404
    %v3289 = vunpack.c.h.b16 %v404
    %v3290 = vunpack.c.l.b16 %v405
    %v3291 = vunpack.c.h.b16 %v405
    %v3292 = vunpack.c.l.b16 %v406
    %v3293 = vunpack.c.h.b16 %v406
    %v3294 = vunpack.c.l.b16 %v407
    %v3295 = vunpack.c.h.b16 %v407
    %v3296 = vunpack.c.l.b16 %v408
    %v3297 = vunpack.c.h.b16 %v408
    %v3298 = vunpack.c.l.b16 %v409
    %v3299 = vunpack.c.h.b16 %v409
    %v3300 = vunpack.c.l.b16 %v410
    %v3301 = vunpack.c.h.b16 %v410
    %v3302 = vunpack.c.l.b16 %v411
    %v3303 = vunpack.c.h.b16 %v411
    %v3304 = vunpack.c.l.b16 %v412
    %v3305 = vunpack.c.h.b16 %v412
    %v3306 = vunpack.c.l.b16 %v413
    %v3307 = vunpack.c.h.b16 %v413
    %v3308 = vunpack.c.l.b16 %v414
    %v3309 = vunpack.c.h.b16 %v414
    %v3310 = vunpack.c.l.b16 %v415
    %v3311 = vunpack.c.h.b16 %v415
    %v3312 = vunpack.c.l.b16 %v416
    %v3313 = vunpack.c.h.b16 %v416
    %v3314 = vunpack.c.l.b16 %v417
    %v3315 = vunpack.c.h.b16 %v417
    %v3316 = vunpack.c.l.b16 %v418
    %v3317 = vunpack.c.h.b16 %v418
    %v3318 = vunpack.c.l.b16 %v419
    %v3319 = vunpack.c.h.b16 %v419
    %v3320 = vunpack.c.l.b16 %v420
    %v3321 = vunpack.c.h.b16 %v420
    %v3322 = vunpack.c.l.b16 %v421
    %v3323 = vunpack.c.h.b16 %v421
    %v3324 = vunpack.c.l.b16 %v422
    %v3325 = vunpack.c.h.b16 %v422
    %v3326 = vunpack.c.l.b16 %v423
    %v3327 = vunpack.c.h.b16 %v423
    %v3328 = vunpack.c.l.b16 %v424
    %v3329 = vunpack.c.h.b16 %v424
    %v3330 = vunpack.c.l.b16 %v425
    %v3331 = vunpack.c.h.b16 %v425
    %v3332 = vunpack.c.l.b16 %v426
    %v3333 = vunpack.c.h.b16 %v426
    %v3334 = vunpack.c.l.b16 %v427
    %v3335 = vunpack.c.h.b16 %v427
    %v3336 = vunpack.c.l.b16 %v428
    %v3337 = vunpack.c.h.b16 %v428
    %v3338 = vunpack.c.l.b16 %v429
    %v3339 = vunpack.c.h.b16 %v429
    %v3340 = vunpack.c.l.b16 %v430
    %v3341 = vunpack.c.h.b16 %v430
    %v3342 = vunpack.c.l.b16 %v431
    %v3343 = vunpack.c.h.b16 %v431
    %v3344 = vunpack.c.l.b16 %v432
    %v3345 = vunpack.c.h.b16 %v432
    %v3346 = vunpack.c.l.b16 %v433
    %v3347 = vunpack.c.h.b16 %v433
    %v3348 = vunpack.c.l.b16 %v434
    %v3349 = vunpack.c.h.b16 %v434
    %v3350 = vunpack.c.l.b16 %v435
    %v3351 = vunpack.c.h.b16 %v435
    %v3352 = vunpack.c.l.b16 %v436
    %v3353 = vunpack.c.h.b16 %v436
    %v3354 = vunpack.c.l.b16 %v437
    %v3355 = vunpack.c.h.b16 %v437
    %v3356 = vunpack.c.l.b16 %v438
    %v3357 = vunpack.c.h.b16 %v438
    %v3358 = vunpack.c.l.b16 %v439
    %v3359 = vunpack.c.h.b16 %v439
    %v3360 = vunpack.c.l.b16 %v440
    %v3361 = vunpack.c.h.b16 %v440
    %v3362 = vunpack.c.l.b16 %v441
    %v3363 = vunpack.c.h.b16 %v441
    %v3364 = vunpack.c.l.b16 %v442
    %v3365 = vunpack.c.h.b16 %v442
    %v3366 = vunpack.c.l.b16 %v443
    %v3367 = vunpack.c.h.b16 %v443
    %v3368 = vunpack.c.l.b16 %v444
    %v3369 = vunpack.c.h.b16 %v444
    %v3370 = vunpack.c.l.b16 %v445
    %v3371 = vunpack.c.h.b16 %v445
    %v3372 = vunpack.c.l.b16 %v446
    %v3373 = vunpack.c.h.b16 %v446
    %v3374 = vunpack.c.l.b16 %v447
    %v3375 = vunpack.c.h.b16 %v447
    %v3376 = vunpack.c.l.b16 %v448
    %v3377 = vunpack.c.h.b16 %v448
    %v3378 = vunpack.c.l.b16 %v449
    %v3379 = vunpack.c.h.b16 %v449
    %v3380 = vunpack.c.l.b16 %v450
    %v3381 = vunpack.c.h.b16 %v450
    %v3382 = vunpack.c.l.b16 %v451
    %v3383 = vunpack.c.h.b16 %v451
    %v3384 = vunpack.c.l.b16 %v452
    %v3385 = vunpack.c.h.b16 %v452
    %v3386 = vunpack.c.l.b16 %v453
    %v3387 = vunpack.c.h.b16 %v453
    %v3388 = vunpack.c.l.b16 %v454
    %v3389 = vunpack.c.h.b16 %v454
    %v3390 = vunpack.c.l.b16 %v455
    %v3391 = vunpack.c.h.b16 %v455
    %v3392 = vunpack.c.l.b16 %v456
    %v3393 = vunpack.c.h.b16 %v456
    %v3394 = vunpack.c.l.b16 %v457
    %v3395 = vunpack.c.h.b16 %v457
    %v3396 = vunpack.c.l.b16 %v458
    %v3397 = vunpack.c.h.b16 %v458
    %v3398 = vunpack.c.l.b16 %v459
    %v3399 = vunpack.c.h.b16 %v459
    %v3400 = vunpack.c.l.b16 %v460
    %v3401 = vunpack.c.h.b16 %v460
    %v3402 = vunpack.c.l.b16 %v461
    %v3403 = vunpack.c.h.b16 %v461
    %v3404 = vunpack.c.l.b16 %v462
    %v3405 = vunpack.c.h.b16 %v462
    %v3406 = vunpack.c.l.b16 %v463
    %v3407 = vunpack.c.h.b16 %v463
    %v3408 = vunpack.c.l.b16 %v464
    %v3409 = vunpack.c.h.b16 %v464
    %v3410 = vunpack.c.l.b16 %v465
    %v3411 = vunpack.c.h.b16 %v465
    %v3412 = vunpack.c.l.b16 %v466
    %v3413 = vunpack.c.h.b16 %v466
    %v3414 = vunpack.c.l.b16 %v467
    %v3415 = vunpack.c.h.b16 %v467
    %v3416 = vunpack.c.l.b16 %v468
    %v3417 = vunpack.c.h.b16 %v468
    %v3418 = vunpack.c.l.b16 %v469
    %v3419 = vunpack.c.h.b16 %v469
    %v3420 = vunpack.c.l.b16 %v470
    %v3421 = vunpack.c.h.b16 %v470
    %v3422 = vunpack.c.l.b16 %v471
    %v3423 = vunpack.c.h.b16 %v471
    %v3424 = vunpack.c.l.b16 %v472
    %v3425 = vunpack.c.h.b16 %v472
    %v3426 = vunpack.c.l.b16 %v473
    %v3427 = vunpack.c.h.b16 %v473
    %v3428 = vunpack.c.l.b16 %v474
    %v3429 = vunpack.c.h.b16 %v474
    %v3430 = vunpack.c.l.b16 %v475
    %v3431 = vunpack.c.h.b16 %v475
    %v3432 = vunpack.c.l.b16 %v476
    %v3433 = vunpack.c.h.b16 %v476
    %v3434 = vunpack.c.l.b16 %v477
    %v3435 = vunpack.c.h.b16 %v477
    %v3436 = vunpack.c.l.b16 %v478
    %v3437 = vunpack.c.h.b16 %v478
    %v3438 = vunpack.c.l.b16 %v479
    %v3439 = vunpack.c.h.b16 %v479
    %v3440 = vunpack.c.l.b16 %v480
    %v3441 = vunpack.c.h.b16 %v480
    %v3442 = vunpack.c.l.b16 %v481
    %v3443 = vunpack.c.h.b16 %v481
    %v3444 = vunpack.c.l.b16 %v482
    %v3445 = vunpack.c.h.b16 %v482
    %v3446 = vunpack.c.l.b16 %v483
    %v3447 = vunpack.c.h.b16 %v483
    %v3448 = vunpack.c.l.b16 %v484
    %v3449 = vunpack.c.h.b16 %v484
    %v3450 = vunpack.c.l.b16 %v485
    %v3451 = vunpack.c.h.b16 %v485
    %v3452 = vunpack.c.l.b16 %v486
    %v3453 = vunpack.c.h.b16 %v486
    %v3454 = vunpack.c.l.b16 %v487
    %v3455 = vunpack.c.h.b16 %v487
    %v3456 = vunpack.c.l.b16 %v488
    %v3457 = vunpack.c.h.b16 %v488
    %v3458 = vunpack.c.l.b16 %v489
    %v3459 = vunpack.c.h.b16 %v489
    %v3460 = vunpack.c.l.b16 %v490
    %v3461 = vunpack.c.h.b16 %v490
    %v3462 = vunpack.c.l.b16 %v491
    %v3463 = vunpack.c.h.b16 %v491
    %v3464 = vunpack.c.l.b16 %v492
    %v3465 = vunpack.c.h.b16 %v492
    %v3466 = vunpack.c.l.b16 %v493
    %v3467 = vunpack.c.h.b16 %v493
    %v3468 = vunpack.c.l.b16 %v494
    %v3469 = vunpack.c.h.b16 %v494
    %v3470 = vunpack.c.l.b16 %v495
    %v3471 = vunpack.c.h.b16 %v495
    %v3472 = vunpack.c.l.b16 %v496
    %v3473 = vunpack.c.h.b16 %v496
    %v3474 = vunpack.c.l.b16 %v497
    %v3475 = vunpack.c.h.b16 %v497
    %v3476 = vunpack.c.l.b16 %v498
    %v3477 = vunpack.c.h.b16 %v498
    %v3478 = vunpack.c.l.b16 %v499
    %v3479 = vunpack.c.h.b16 %v499
    %v3480 = vunpack.c.l.b16 %v500
    %v3481 = vunpack.c.h.b16 %v500
    %v3482 = vunpack.c.l.b16 %v501
    %v3483 = vunpack.c.h.b16 %v501
    %v3484 = vunpack.c.l.b16 %v502
    %v3485 = vunpack.c.h.b16 %v502
    %v3486 = vunpack.c.l.b16 %v503
    %v3487 = vunpack.c.h.b16 %v503
    %v3488 = vunpack.c.l.b16 %v504
    %v3489 = vunpack.c.h.b16 %v504
    %v3490 = vunpack.c.l.b16 %v505
    %v3491 = vunpack.c.h.b16 %v505
    %v3492 = vunpack.c.l.b16 %v506
    %v3493 = vunpack.c.h.b16 %v506
    %v3494 = vunpack.c.l.b16 %v507
    %v3495 = vunpack.c.h.b16 %v507
    %v3496 = vunpack.c.l.b16 %v508
    %v3497 = vunpack.c.h.b16 %v508
    %v3498 = vunpack.c.l.b16 %v509
    %v3499 = vunpack.c.h.b16 %v509
    %v3500 = vunpack.c.l.b16 %v510
    %v3501 = vunpack.c.h.b16 %v510
    %v3502 = vunpack.c.l.b16 %v511
    %v3503 = vunpack.c.h.b16 %v511
    %v3504 = vunpack.c.l.b16 %v512
    %v3505 = vunpack.c.h.b16 %v512
    %v3506 = vunpack.c.l.b16 %v513
    %v3507 = vunpack.c.h.b16 %v513
    %v3508 = vunpack.c.l.b16 %v514
    %v3509 = vunpack.c.h.b16 %v514
    %v3510 = vunpack.c.l.b16 %v515
    %v3511 = vunpack.c.h.b16 %v515
    %v3512 = vunpack.c.l.b16 %v516
    %v3513 = vunpack.c.h.b16 %v516
    %v3514 = vunpack.c.l.b16 %v517
    %v3515 = vunpack.c.h.b16 %v517
    %v3516 = vunpack.c.l.b16 %v518
    %v3517 = vunpack.c.h.b16 %v518
    %v3518 = vunpack.c.l.b16 %v519
    %v3519 = vunpack.c.h.b16 %v519
    %v3520 = vunpack.c.l.b16 %v520
    %v3521 = vunpack.c.h.b16 %v520
    %v3522 = vunpack.c.l.b16 %v521
    %v3523 = vunpack.c.h.b16 %v521
    %v3524 = vunpack.c.l.b16 %v522
    %v3525 = vunpack.c.h.b16 %v522
    %v3526 = vunpack.c.l.b16 %v523
    %v3527 = vunpack.c.h.b16 %v523
    %v3528 = vunpack.c.l.b16 %v524
    %v3529 = vunpack.c.h.b16 %v524
    %v3530 = vunpack.c.l.b16 %v525
    %v3531 = vunpack.c.h.b16 %v525
    %v3532 = vunpack.c.l.b16 %v526
    %v3533 = vunpack.c.h.b16 %v526
    %v3534 = vunpack.c.l.b16 %v527
    %v3535 = vunpack.c.h.b16 %v527
    %v3536 = vunpack.c.l.b16 %v528
    %v3537 = vunpack.c.h.b16 %v528
    %v3538 = vunpack.c.l.b16 %v529
    %v3539 = vunpack.c.h.b16 %v529
    %v3540 = vunpack.c.l.b16 %v530
    %v3541 = vunpack.c.h.b16 %v530
    %v3542 = vunpack.c.l.b16 %v531
    %v3543 = vunpack.c.h.b16 %v531
    %v3544 = vunpack.c.l.b16 %v532
    %v3545 = vunpack.c.h.b16 %v532
    %v3546 = vunpack.c.l.b16 %v533
    %v3547 = vunpack.c.h.b16 %v533
    %v3548 = vunpack.c.l.b16 %v534
    %v3549 = vunpack.c.h.b16 %v534
    %v3550 = vunpack.c.l.b16 %v535
    %v3551 = vunpack.c.h.b16 %v535
    %v3552 = vunpack.c.l.b16 %v536
    %v3553 = vunpack.c.h.b16 %v536
    %v3554 = vunpack.c.l.b16 %v537
    %v3555 = vunpack.c.h.b16 %v537
    %v3556 = vunpack.c.l.b16 %v538
    %v3557 = vunpack.c.h.b16 %v538
    %v3558 = vunpack.c.l.b16 %v539
    %v3559 = vunpack.c.h.b16 %v539
    %v3560 = vunpack.c.l.b16 %v540
    %v3561 = vunpack.c.h.b16 %v540
    %v3562 = vunpack.c.l.b16 %v541
    %v3563 = vunpack.c.h.b16 %v541
    %v3564 = vunpack.c.l.b16 %v542
    %v3565 = vunpack.c.h.b16 %v542
    %v3566 = vunpack.c.l.b16 %v543
    %v3567 = vunpack.c.h.b16 %v543
    %v3568 = vunpack.c.l.b16 %v544
    %v3569 = vunpack.c.h.b16 %v544
    %v3570 = vunpack.c.l.b16 %v545
    %v3571 = vunpack.c.h.b16 %v545
    %v3572 = vunpack.c.l.b16 %v546
    %v3573 = vunpack.c.h.b16 %v546
    %v3574 = vunpack.c.l.b16 %v547
    %v3575 = vunpack.c.h.b16 %v547
    %v3576 = vunpack.c.l.b16 %v548
    %v3577 = vunpack.c.h.b16 %v548
    %v3578 = vunpack.c.l.b16 %v549
    %v3579 = vunpack.c.h.b16 %v549
    %v3580 = vunpack.c.l.b16 %v550
    %v3581 = vunpack.c.h.b16 %v550
    %v3582 = vunpack.c.l.b16 %v551
    %v3583 = vunpack.c.h.b16 %v551
    %v3584 = vunpack.c.l.b16 %v552
    %v3585 = vunpack.c.h.b16 %v552
    %v3586 = vunpack.c.l.b16 %v553
    %v3587 = vunpack.c.h.b16 %v553
    %v3588 = vunpack.c.l.b16 %v554
    %v3589 = vunpack.c.h.b16 %v554
    %v3590 = vunpack.c.l.b16 %v555
    %v3591 = vunpack.c.h.b16 %v555
    %v3592 = vunpack.c.l.b16 %v556
    %v3593 = vunpack.c.h.b16 %v556
    %v3594 = vunpack.c.l.b16 %v557
    %v3595 = vunpack.c.h.b16 %v557
    %v3596 = vunpack.c.l.b16 %v558
    %v3597 = vunpack.c.h.b16 %v558
    %v3598 = vunpack.c.l.b16 %v559
    %v3599 = vunpack.c.h.b16 %v559
    %v3600 = vunpack.c.l.b16 %v560
    %v3601 = vunpack.c.h.b16 %v560
    %v3602 = vunpack.c.l.b16 %v561
    %v3603 = vunpack.c.h.b16 %v561
    %v3604 = vunpack.c.l.b16 %v562
    %v3605 = vunpack.c.h.b16 %v562
    %v3606 = vunpack.c.l.b16 %v563
    %v3607 = vunpack.c.h.b16 %v563
    %v3608 = vunpack.c.l.b16 %v564
    %v3609 = vunpack.c.h.b16 %v564
    %v3610 = vunpack.c.l.b16 %v565
    %v3611 = vunpack.c.h.b16 %v565
    %v3612 = vunpack.c.l.b16 %v566
    %v3613 = vunpack.c.h.b16 %v566
    %v3614 = vunpack.c.l.b16 %v567
    %v3615 = vunpack.c.h.b16 %v567
    %v3616 = vunpack.c.l.b16 %v568
    %v3617 = vunpack.c.h.b16 %v568
    %v3618 = vunpack.c.l.b16 %v569
    %v3619 = vunpack.c.h.b16 %v569
    %v3620 = vunpack.c.l.b16 %v570
    %v3621 = vunpack.c.h.b16 %v570
    %v3622 = vunpack.c.l.b16 %v571
    %v3623 = vunpack.c.h.b16 %v571
    %v3624 = vunpack.c.l.b16 %v572
    %v3625 = vunpack.c.h.b16 %v572
    %v3626 = vunpack.c.l.b16 %v573
    %v3627 = vunpack.c.h.b16 %v573
    %v3628 = vunpack.c.l.b16 %v574
    %v3629 = vunpack.c.h.b16 %v574
    %v3630 = vunpack.c.l.b16 %v575
    %v3631 = vunpack.c.h.b16 %v575
    %v3632 = vunpack.c.l.b16 %v576
    %v3633 = vunpack.c.h.b16 %v576
    %v3634 = vunpack.c.l.b16 %v577
    %v3635 = vunpack.c.h.b16 %v577
    %v3636 = vunpack.c.l.b16 %v578
    %v3637 = vunpack.c.h.b16 %v578
    %v3638 = vunpack.c.l.b16 %v579
    %v3639 = vunpack.c.h.b16 %v579
    %v3640 = vunpack.c.l.b16 %v580
    %v3641 = vunpack.c.h.b16 %v580
    %v3642 = vunpack.c.l.b16 %v581
    %v3643 = vunpack.c.h.b16 %v581
    %v3644 = vunpack.c.l.b16 %v582
    %v3645 = vunpack.c.h.b16 %v582
    %v3646 = vunpack.c.l.b16 %v583
    %v3647 = vunpack.c.h.b16 %v583
    %v3648 = vunpack.c.l.b16 %v584
    %v3649 = vunpack.c.h.b16 %v584
    %v3650 = vunpack.c.l.b16 %v585
    %v3651 = vunpack.c.h.b16 %v585
    %v3652 = vunpack.c.l.b16 %v586
    %v3653 = vunpack.c.h.b16 %v586
    %v3654 = vunpack.c.l.b16 %v587
    %v3655 = vunpack.c.h.b16 %v587
    %v3656 = vunpack.c.l.b16 %v588
    %v3657 = vunpack.c.h.b16 %v588
    %v3658 = vunpack.c.l.b16 %v589
    %v3659 = vunpack.c.h.b16 %v589
    %v3660 = vunpack.c.l.b16 %v590
    %v3661 = vunpack.c.h.b16 %v590
    %v3662 = vunpack.c.l.b16 %v591
    %v3663 = vunpack.c.h.b16 %v591
    %v3664 = vunpack.c.l.b16 %v592
    %v3665 = vunpack.c.h.b16 %v592
    %v3666 = vunpack.c.l.b16 %v593
    %v3667 = vunpack.c.h.b16 %v593
    %v3668 = vunpack.c.l.b16 %v594
    %v3669 = vunpack.c.h.b16 %v594
    %v3670 = vunpack.c.l.b16 %v595
    %v3671 = vunpack.c.h.b16 %v595
    %v3672 = vunpack.c.l.b16 %v596
    %v3673 = vunpack.c.h.b16 %v596
    %v3674 = vunpack.c.l.b16 %v597
    %v3675 = vunpack.c.h.b16 %v597
    %v3676 = vunpack.c.l.b16 %v598
    %v3677 = vunpack.c.h.b16 %v598
    %v3678 = vunpack.c.l.b16 %v599
    %v3679 = vunpack.c.h.b16 %v599
    %v3680 = vunpack.c.l.b16 %v600
    %v3681 = vunpack.c.h.b16 %v600
    %v3682 = vunpack.c.l.b16 %v601
    %v3683 = vunpack.c.h.b16 %v601
    %v3684 = vunpack.c.l.b16 %v602
    %v3685 = vunpack.c.h.b16 %v602
    %v3686 = vunpack.c.l.b16 %v603
    %v3687 = vunpack.c.h.b16 %v603
    %v3688 = vunpack.c.l.b16 %v604
    %v3689 = vunpack.c.h.b16 %v604
    %v3690 = vunpack.c.l.b16 %v605
    %v3691 = vunpack.c.h.b16 %v605
    %v3692 = vunpack.c.l.b16 %v606
    %v3693 = vunpack.c.h.b16 %v606
    %v3694 = vunpack.c.l.b16 %v607
    %v3695 = vunpack.c.h.b16 %v607
    %v3696 = vunpack.c.l.b16 %v608
    %v3697 = vunpack.c.h.b16 %v608
    %v3698 = vunpack.c.l.b16 %v609
    %v3699 = vunpack.c.h.b16 %v609
    %v3700 = vunpack.c.l.b16 %v610
    %v3701 = vunpack.c.h.b16 %v610
    %v3702 = vunpack.c.l.b16 %v611
    %v3703 = vunpack.c.h.b16 %v611
    %v3704 = vunpack.c.l.b16 %v612
    %v3705 = vunpack.c.h.b16 %v612
    %v3706 = vunpack.c.l.b16 %v613
    %v3707 = vunpack.c.h.b16 %v613
    %v3708 = vunpack.c.l.b16 %v614
    %v3709 = vunpack.c.h.b16 %v614
    %v3710 = vunpack.c.l.b16 %v615
    %v3711 = vunpack.c.h.b16 %v615
    %v3712 = vunpack.c.l.b16 %v616
    %v3713 = vunpack.c.h.b16 %v616
    %v3714 = vunpack.c.l.b16 %v617
    %v3715 = vunpack.c.h.b16 %v617
    %v3716 = vunpack.c.l.b16 %v618
    %v3717 = vunpack.c.h.b16 %v618
    %v3718 = vunpack.c.l.b16 %v619
    %v3719 = vunpack.c.h.b16 %v619
    %v3720 = vunpack.c.l.b16 %v620
    %v3721 = vunpack.c.h.b16 %v620
    %v3722 = vunpack.c.l.b16 %v621
    %v3723 = vunpack.c.h.b16 %v621
    %v3724 = vunpack.c.l.b16 %v622
    %v3725 = vunpack.c.h.b16 %v622
    %v3726 = vunpack.c.l.b16 %v623
    %v3727 = vunpack.c.h.b16 %v623
    %v3728 = vunpack.c.l.b16 %v624
    %v3729 = vunpack.c.h.b16 %v624
    %v3730 = vunpack.c.l.b16 %v625
    %v3731 = vunpack.c.h.b16 %v625
    %v3732 = vunpack.c.l.b16 %v626
    %v3733 = vunpack.c.h.b16 %v626
    %v3734 = vunpack.c.l.b16 %v627
    %v3735 = vunpack.c.h.b16 %v627
    %v3736 = vunpack.c.l.b16 %v628
    %v3737 = vunpack.c.h.b16 %v628
    %v3738 = vunpack.c.l.b16 %v629
    %v3739 = vunpack.c.h.b16 %v629
    %v3740 = vunpack.c.l.b16 %v630
    %v3741 = vunpack.c.h.b16 %v630
    %v3742 = vunpack.c.l.b16 %v631
    %v3743 = vunpack.c.h.b16 %v631
    %v3744 = vunpack.c.l.b16 %v632
    %v3745 = vunpack.c.h.b16 %v632
    %v3746 = vunpack.c.l.b16 %v633
    %v3747 = vunpack.c.h.b16 %v633
    %v3748 = vunpack.c.l.b16 %v634
    %v3749 = vunpack.c.h.b16 %v634
    %v3750 = vunpack.c.l.b16 %v635
    %v3751 = vunpack.c.h.b16 %v635
    %v3752 = vunpack.c.l.b16 %v636
    %v3753 = vunpack.c.h.b16 %v636
    %v3754 = vunpack.c.l.b16 %v637
    %v3755 = vunpack.c.h.b16 %v637
    %v3756 = vunpack.c.l.b16 %v638
    %v3757 = vunpack.c.h.b16 %v638
    %v3758 = vunpack.c.l.b16 %v639
    %v3759 = vunpack.c.h.b16 %v639
    %v3760 = vunpack.c.l.b16 %v640
    %v3761 = vunpack.c.h.b16 %v640
    %v3762 = vunpack.c.l.b16 %v641
    %v3763 = vunpack.c.h.b16 %v641
    %v3764 = vunpack.c.l.b16 %v642
    %v3765 = vunpack.c.h.b16 %v642
    %v3766 = vunpack.c.l.b16 %v643
    %v3767 = vunpack.c.h.b16 %v643
    %v3768 = vunpack.c.l.b16 %v644
    %v3769 = vunpack.c.h.b16 %v644
    %v3770 = vunpack.c.l.b16 %v645
    %v3771 = vunpack.c.h.b16 %v645
    %v3772 = vunpack.c.l.b16 %v646
    %v3773 = vunpack.c.h.b16 %v646
    %v3774 = vunpack.c.l.b16 %v647
    %v3775 = vunpack.c.h.b16 %v647
    %v3776 = vunpack.c.l.b16 %v648
    %v3777 = vunpack.c.h.b16 %v648
    %v3778 = vunpack.c.l.b16 %v649
    %v3779 = vunpack.c.h.b16 %v649
    %v3780 = vunpack.c.l.b16 %v650
    %v3781 = vunpack.c.h.b16 %v650
    %v3782 = vunpack.c.l.b16 %v651
    %v3783 = vunpack.c.h.b16 %v651
    %v3784 = vunpack.c.l.b16 %v652
    %v3785 = vunpack.c.h.b16 %v652
    %v3786 = vunpack.c.l.b16 %v653
    %v3787 = vunpack.c.h.b16 %v653
    %v3788 = vunpack.c.l.b16 %v654
    %v3789 = vunpack.c.h.b16 %v654
    %v3790 = vunpack.c.l.b16 %v655
    %v3791 = vunpack.c.h.b16 %v655
    %v3792 = vunpack.c.l.b16 %v656
    %v3793 = vunpack.c.h.b16 %v656
    %v3794 = vunpack.c.l.b16 %v657
    %v3795 = vunpack.c.h.b16 %v657
    %v3796 = vunpack.c.l.b16 %v658
    %v3797 = vunpack.c.h.b16 %v658
    %v3798 = vunpack.c.l.b16 %v659
    %v3799 = vunpack.c.h.b16 %v659
    %v3800 = vunpack.c.l.b16 %v660
    %v3801 = vunpack.c.h.b16 %v660
    %v3802 = vunpack.c.l.b16 %v661
    %v3803 = vunpack.c.h.b16 %v661
    %v3804 = vunpack.c.l.b16 %v662
    %v3805 = vunpack.c.h.b16 %v662
    %v3806 = vunpack.c.l.b16 %v663
    %v3807 = vunpack.c.h.b16 %v663
    %v3808 = vunpack.c.l.b16 %v664
    %v3809 = vunpack.c.h.b16 %v664
    %v3810 = vunpack.c.l.b16 %v665
    %v3811 = vunpack.c.h.b16 %v665
    %v3812 = vunpack.c.l.b16 %v666
    %v3813 = vunpack.c.h.b16 %v666
    %v3814 = vunpack.c.l.b16 %v667
    %v3815 = vunpack.c.h.b16 %v667
    %v3816 = vunpack.c.l.b16 %v668
    %v3817 = vunpack.c.h.b16 %v668
    %v3818 = vunpack.c.l.b16 %v669
    %v3819 = vunpack.c.h.b16 %v669
    %v3820 = vunpack.c.l.b16 %v670
    %v3821 = vunpack.c.h.b16 %v670
    %v3822 = vunpack.c.l.b16 %v671
    %v3823 = vunpack.c.h.b16 %v671
    %v3824 = vunpack.c.l.b16 %v672
    %v3825 = vunpack.c.h.b16 %v672
    %v3826 = vunpack.c.l.b16 %v673
    %v3827 = vunpack.c.h.b16 %v673
    %v3828 = vunpack.c.l.b16 %v674
    %v3829 = vunpack.c.h.b16 %v674
    %v3830 = vunpack.c.l.b16 %v675
    %v3831 = vunpack.c.h.b16 %v675
    %v3832 = vunpack.c.l.b16 %v676
    %v3833 = vunpack.c.h.b16 %v676
    %v3834 = vunpack.c.l.b16 %v677
    %v3835 = vunpack.c.h.b16 %v677
    %v3836 = vunpack.c.l.b16 %v678
    %v3837 = vunpack.c.h.b16 %v678
    %v3838 = vunpack.c.l.b16 %v679
    %v3839 = vunpack.c.h.b16 %v679
    %v3840 = vunpack.c.l.b16 %v680
    %v3841 = vunpack.c.h.b16 %v680
    %v3842 = vunpack.c.l.b16 %v681
    %v3843 = vunpack.c.h.b16 %v681
    %v3844 = vunpack.c.l.b16 %v682
    %v3845 = vunpack.c.h.b16 %v682
    %v3846 = vunpack.c.l.b16 %v683
    %v3847 = vunpack.c.h.b16 %v683
    %v3848 = vunpack.c.l.b16 %v684
    %v3849 = vunpack.c.h.b16 %v684
    %v3850 = vunpack.c.l.b16 %v685
    %v3851 = vunpack.c.h.b16 %v685
    %v3852 = vunpack.c.l.b16 %v686
    %v3853 = vunpack.c.h.b16 %v686
    %v3854 = vunpack.c.l.b16 %v687
    %v3855 = vunpack.c.h.b16 %v687
    %v3856 = vunpack.c.l.b16 %v688
    %v3857 = vunpack.c.h.b16 %v688
    %v3858 = vunpack.c.l.b16 %v689
    %v3859 = vunpack.c.h.b16 %v689
    %v3860 = vunpack.c.l.b16 %v690
    %v3861 = vunpack.c.h.b16 %v690
    %v3862 = vunpack.c.l.b16 %v691
    %v3863 = vunpack.c.h.b16 %v691
    %v3864 = vunpack.c.l.b16 %v692
    %v3865 = vunpack.c.h.b16 %v692
    %v3866 = vunpack.c.l.b16 %v693
    %v3867 = vunpack.c.h.b16 %v693
    %v3868 = vunpack.c.l.b16 %v694
    %v3869 = vunpack.c.h.b16 %v694
    %v3870 = vunpack.c.l.b16 %v695
    %v3871 = vunpack.c.h.b16 %v695
    %v3872 = vunpack.c.l.b16 %v696
    %v3873 = vunpack.c.h.b16 %v696
    %v3874 = vunpack.c.l.b16 %v697
    %v3875 = vunpack.c.h.b16 %v697
    %v3876 = vunpack.c.l.b16 %v698
    %v3877 = vunpack.c.h.b16 %v698
    %v3878 = vunpack.c.l.b16 %v699
    %v3879 = vunpack.c.h.b16 %v699
    %v3880 = vunpack.c.l.b16 %v700
    %v3881 = vunpack.c.h.b16 %v700
    %v3882 = vunpack.c.l.b16 %v701
    %v3883 = vunpack.c.h.b16 %v701
    %v3884 = vunpack.c.l.b16 %v702
    %v3885 = vunpack.c.h.b16 %v702
    %v3886 = vunpack.c.l.b16 %v703
    %v3887 = vunpack.c.h.b16 %v703
    %v3888 = vunpack.c.l.b16 %v704
    %v3889 = vunpack.c.h.b16 %v704
    %v3890 = vunpack.c.l.b16 %v705
    %v3891 = vunpack.c.h.b16 %v705
    %v3892 = vunpack.c.l.b16 %v706
    %v3893 = vunpack.c.h.b16 %v706
    %v3894 = vunpack.c.l.b16 %v707
    %v3895 = vunpack.c.h.b16 %v707
    %v3896 = vunpack.c.l.b16 %v708
    %v3897 = vunpack.c.h.b16 %v708
    %v3898 = vunpack.c.l.b16 %v709
    %v3899 = vunpack.c.h.b16 %v709
    %v3900 = vunpack.c.l.b16 %v710
    %v3901 = vunpack.c.h.b16 %v710
    %v3902 = vunpack.c.l.b16 %v711
    %v3903 = vunpack.c.h.b16 %v711
    %v3904 = vunpack.c.l.b16 %v712
    %v3905 = vunpack.c.h.b16 %v712
    %v3906 = vunpack.c.l.b16 %v713
    %v3907 = vunpack.c.h.b16 %v713
    %v3908 = vunpack.c.l.b16 %v714
    %v3909 = vunpack.c.h.b16 %v714
    %v3910 = vunpack.c.l.b16 %v715
    %v3911 = vunpack.c.h.b16 %v715
    %v3912 = vunpack.c.l.b16 %v716
    %v3913 = vunpack.c.h.b16 %v716
    %v3914 = vunpack.c.l.b16 %v717
    %v3915 = vunpack.c.h.b16 %v717
    %v3916 = vunpack.c.l.b16 %v718
    %v3917 = vunpack.c.h.b16 %v718
    %v3918 = vunpack.c.l.b16 %v719
    %v3919 = vunpack.c.h.b16 %v719
    %v3920 = vunpack.c.l.b16 %v720
    %v3921 = vunpack.c.h.b16 %v720
    %v3922 = vunpack.c.l.b16 %v721
    %v3923 = vunpack.c.h.b16 %v721
    %v3924 = vunpack.c.l.b16 %v722
    %v3925 = vunpack.c.h.b16 %v722
    %v3926 = vunpack.c.l.b16 %v723
    %v3927 = vunpack.c.h.b16 %v723
    %v3928 = vunpack.c.l.b16 %v724
    %v3929 = vunpack.c.h.b16 %v724
    %v3930 = vunpack.c.l.b16 %v725
    %v3931 = vunpack.c.h.b16 %v725
    %v3932 = vunpack.c.l.b16 %v726
    %v3933 = vunpack.c.h.b16 %v726
    %v3934 = vunpack.c.l.b16 %v727
    %v3935 = vunpack.c.h.b16 %v727
    %v3936 = vunpack.c.l.b16 %v728
    %v3937 = vunpack.c.h.b16 %v728
    %v3938 = vunpack.c.l.b16 %v729
    %v3939 = vunpack.c.h.b16 %v729
    %v3940 = vunpack.c.l.b16 %v730
    %v3941 = vunpack.c.h.b16 %v730
    %v3942 = vunpack.c.l.b16 %v731
    %v3943 = vunpack.c.h.b16 %v731
    %v3944 = vunpack.c.l.b16 %v732
    %v3945 = vunpack.c.h.b16 %v732
    %v3946 = vunpack.c.l.b16 %v733
    %v3947 = vunpack.c.h.b16 %v733
    %v3948 = vunpack.c.l.b16 %v734
    %v3949 = vunpack.c.h.b16 %v734
    %v3950 = vunpack.c.l.b16 %v735
    %v3951 = vunpack.c.h.b16 %v735
    %v3952 = vunpack.c.l.b16 %v736
    %v3953 = vunpack.c.h.b16 %v736
    %v3954 = vunpack.c.l.b16 %v737
    %v3955 = vunpack.c.h.b16 %v737
    %v3956 = vunpack.c.l.b16 %v738
    %v3957 = vunpack.c.h.b16 %v738
    %v3958 = vunpack.c.l.b16 %v739
    %v3959 = vunpack.c.h.b16 %v739
    %v3960 = vunpack.c.l.b16 %v740
    %v3961 = vunpack.c.h.b16 %v740
    %v3962 = vunpack.c.l.b16 %v741
    %v3963 = vunpack.c.h.b16 %v741
    %v3964 = vunpack.c.l.b16 %v742
    %v3965 = vunpack.c.h.b16 %v742
    %v3966 = vunpack.c.l.b16 %v743
    %v3967 = vunpack.c.h.b16 %v743
    %v3968 = vunpack.c.l.b16 %v744
    %v3969 = vunpack.c.h.b16 %v744
    %v3970 = vunpack.c.l.b16 %v745
    %v3971 = vunpack.c.h.b16 %v745
    %v3972 = vunpack.c.l.b16 %v746
    %v3973 = vunpack.c.h.b16 %v746
    %v3974 = vunpack.c.l.b16 %v747
    %v3975 = vunpack.c.h.b16 %v747
    %v3976 = vunpack.c.l.b16 %v748
    %v3977 = vunpack.c.h.b16 %v748
    %v3978 = vunpack.c.l.b16 %v749
    %v3979 = vunpack.c.h.b16 %v749
    %v3980 = vunpack.c.l.b16 %v750
    %v3981 = vunpack.c.h.b16 %v750
    %v3982 = vunpack.c.l.b16 %v751
    %v3983 = vunpack.c.h.b16 %v751
    %v3984 = vunpack.c.l.b16 %v752
    %v3985 = vunpack.c.h.b16 %v752
    %v3986 = vunpack.c.l.b16 %v753
    %v3987 = vunpack.c.h.b16 %v753
    %v3988 = vunpack.c.l.b16 %v754
    %v3989 = vunpack.c.h.b16 %v754
    %v3990 = vunpack.c.l.b16 %v755
    %v3991 = vunpack.c.h.b16 %v755
    %v3992 = vunpack.c.l.b16 %v756
    %v3993 = vunpack.c.h.b16 %v756
    %v3994 = vunpack.c.l.b16 %v757
    %v3995 = vunpack.c.h.b16 %v757
    %v3996 = vunpack.c.l.b16 %v758
    %v3997 = vunpack.c.h.b16 %v758
    %v3998 = vunpack.c.l.b16 %v759
    %v3999 = vunpack.c.h.b16 %v759
    %v4000 = vunpack.c.l.b16 %v760
    %v4001 = vunpack.c.h.b16 %v760
    %v4002 = vunpack.c.l.b16 %v761
    %v4003 = vunpack.c.h.b16 %v761
    %v4004 = vunpack.c.l.b16 %v762
    %v4005 = vunpack.c.h.b16 %v762
    %v4006 = vunpack.c.l.b16 %v763
    %v4007 = vunpack.c.h.b16 %v763
    %v4008 = vunpack.c.l.b16 %v764
    %v4009 = vunpack.c.h.b16 %v764
    %v4010 = vunpack.c.l.b16 %v765
    %v4011 = vunpack.c.h.b16 %v765
    %v4012 = vunpack.c.l.b16 %v766
    %v4013 = vunpack.c.h.b16 %v766
    %v4014 = vunpack.c.l.b16 %v767
    %v4015 = vunpack.c.h.b16 %v767
    %v4016 = vunpack.c.l.b16 %v768
    %v4017 = vunpack.c.h.b16 %v768
    %v4018 = vunpack.c.l.b16 %v769
    %v4019 = vunpack.c.h.b16 %v769
    %v4020 = vunpack.c.l.b16 %v770
    %v4021 = vunpack.c.h.b16 %v770
    %v4022 = vunpack.c.l.b16 %v771
    %v4023 = vunpack.c.h.b16 %v771
    %v4024 = vunpack.c.l.b16 %v772
    %v4025 = vunpack.c.h.b16 %v772
    %v4026 = vunpack.c.l.b16 %v773
    %v4027 = vunpack.c.h.b16 %v773
    %v4028 = vunpack.c.l.b16 %v774
    %v4029 = vunpack.c.h.b16 %v774
    %v4030 = vunpack.c.l.b16 %v775
    %v4031 = vunpack.c.h.b16 %v775
    %v4032 = vunpack.c.l.b16 %v776
    %v4033 = vunpack.c.h.b16 %v776
    %v4034 = vunpack.c.l.b16 %v777
    %v4035 = vunpack.c.h.b16 %v777
    %v4036 = vunpack.c.l.b16 %v778
    %v4037 = vunpack.c.h.b16 %v778
    %v4038 = vunpack.c.l.b16 %v779
    %v4039 = vunpack.c.h.b16 %v779
    %v4040 = vunpack.c.l.b16 %v780
    %v4041 = vunpack.c.h.b16 %v780
    %v4042 = vunpack.c.l.b16 %v781
    %v4043 = vunpack.c.h.b16 %v781
    %v4044 = vunpack.c.l.b16 %v782
    %v4045 = vunpack.c.h.b16 %v782
    %v4046 = vunpack.c.l.b16 %v783
    %v4047 = vunpack.c.h.b16 %v783
    %v4048 = vunpack.c.l.b16 %v784
    %v4049 = vunpack.c.h.b16 %v784
    %v4050 = vunpack.c.l.b16 %v785
    %v4051 = vunpack.c.h.b16 %v785
    %v4052 = vunpack.c.l.b16 %v786
    %v4053 = vunpack.c.h.b16 %v786
    %v4054 = vunpack.c.l.b16 %v787
    %v4055 = vunpack.c.h.b16 %v787
    %v4056 = vunpack.c.l.b16 %v788
    %v4057 = vunpack.c.h.b16 %v788
    %v4058 = vunpack.c.l.b16 %v789
    %v4059 = vunpack.c.h.b16 %v789
    %v4060 = vunpack.c.l.b16 %v790
    %v4061 = vunpack.c.h.b16 %v790
    %v4062 = vunpack.c.l.b16 %v791
    %v4063 = vunpack.c.h.b16 %v791
    %v4064 = vunpack.c.l.b16 %v792
    %v4065 = vunpack.c.h.b16 %v792
    %v4066 = vunpack.c.l.b16 %v793
    %v4067 = vunpack.c.h.b16 %v793
    %v4068 = vunpack.c.l.b16 %v794
    %v4069 = vunpack.c.h.b16 %v794
    %v4070 = vunpack.c.l.b16 %v795
    %v4071 = vunpack.c.h.b16 %v795
    %v4072 = vunpack.c.l.b16 %v796
    %v4073 = vunpack.c.h.b16 %v796
    %v4074 = vunpack.c.l.b16 %v797
    %v4075 = vunpack.c.h.b16 %v797
    %v4076 = vunpack.c.l.b16 %v798
    %v4077 = vunpack.c.h.b16 %v798
    %v4078 = vunpack.c.l.b16 %v799
    %v4079 = vunpack.c.h.b16 %v799
    %v4080 = vunpack.c.l.b16 %v800
    %v4081 = vunpack.c.h.b16 %v800
    %v4082 = vunpack.c.l.b16 %v801
    %v4083 = vunpack.c.h.b16 %v801
    %v4084 = vunpack.c.l.b16 %v802
    %v4085 = vunpack.c.h.b16 %v802
    %v4086 = vunpack.c.l.b16 %v803
    %v4087 = vunpack.c.h.b16 %v803
    %v4088 = vunpack.c.l.b16 %v804
    %v4089 = vunpack.c.h.b16 %v804
    %v4090 = vunpack.c.l.b16 %v805
    %v4091 = vunpack.c.h.b16 %v805
    %v4092 = vunpack.c.l.b16 %v806
    %v4093 = vunpack.c.h.b16 %v806
    %v4094 = vunpack.c.l.b16 %v807
    %v4095 = vunpack.c.h.b16 %v807
    %v4096 = vunpack.c.l.b16 %v808
    %v4097 = vunpack.c.h.b16 %v808
    %v4098 = vunpack.c.l.b16 %v809
    %v4099 = vunpack.c.h.b16 %v809
    %v4100 = vunpack.c.l.b16 %v810
    %v4101 = vunpack.c.h.b16 %v810
    %v4102 = vunpack.c.l.b16 %v811
    %v4103 = vunpack.c.h.b16 %v811
    %v4104 = vunpack.c.l.b16 %v812
    %v4105 = vunpack.c.h.b16 %v812
    %v4106 = vunpack.c.l.b16 %v813
    %v4107 = vunpack.c.h.b16 %v813
    %v4108 = vunpack.c.l.b16 %v814
    %v4109 = vunpack.c.h.b16 %v814
    %v4110 = vunpack.c.l.b16 %v815
    %v4111 = vunpack.c.h.b16 %v815
    %v4112 = vunpack.c.l.b16 %v816
    %v4113 = vunpack.c.h.b16 %v816
    %v4114 = vunpack.c.l.b16 %v817
    %v4115 = vunpack.c.h.b16 %v817
    %v4116 = vunpack.c.l.b16 %v818
    %v4117 = vunpack.c.h.b16 %v818
    %v4118 = vunpack.c.l.b16 %v819
    %v4119 = vunpack.c.h.b16 %v819
    %v4120 = vunpack.c.l.b16 %v820
    %v4121 = vunpack.c.h.b16 %v820
    %v4122 = vunpack.c.l.b16 %v821
    %v4123 = vunpack.c.h.b16 %v821
    %v4124 = vunpack.c.l.b16 %v822
    %v4125 = vunpack.c.h.b16 %v822
    %v4126 = vunpack.c.l.b16 %v823
    %v4127 = vunpack.c.h.b16 %v823
    %v4128 = vunpack.c.l.b16 %v824
    %v4129 = vunpack.c.h.b16 %v824
    %v4130 = vunpack.c.l.b16 %v825
    %v4131 = vunpack.c.h.b16 %v825
    %v4132 = vunpack.c.l.b16 %v826
    %v4133 = vunpack.c.h.b16 %v826
    %v4134 = vunpack.c.l.b16 %v827
    %v4135 = vunpack.c.h.b16 %v827
    %v4136 = vunpack.c.l.b16 %v828
    %v4137 = vunpack.c.h.b16 %v828
    %v4138 = vunpack.c.l.b16 %v829
    %v4139 = vunpack.c.h.b16 %v829
    %v4140 = vunpack.c.l.b16 %v830
    %v4141 = vunpack.c.h.b16 %v830
    %v4142 = vunpack.c.l.b16 %v831
    %v4143 = vunpack.c.h.b16 %v831
    %v4144 = vunpack.c.l.b16 %v832
    %v4145 = vunpack.c.h.b16 %v832
    %v4146 = vunpack.c.l.b16 %v833
    %v4147 = vunpack.c.h.b16 %v833
    %v4148 = vunpack.c.l.b16 %v834
    %v4149 = vunpack.c.h.b16 %v834
    %v4150 = vunpack.c.l.b16 %v835
    %v4151 = vunpack.c.h.b16 %v835
    %v4152 = vunpack.c.l.b16 %v836
    %v4153 = vunpack.c.h.b16 %v836
    %v4154 = vunpack.c.l.b16 %v837
    %v4155 = vunpack.c.h.b16 %v837
    %v4156 = vunpack.c.l.b16 %v838
    %v4157 = vunpack.c.h.b16 %v838
    %v4158 = vunpack.c.l.b16 %v839
    %v4159 = vunpack.c.h.b16 %v839
    %v4160 = vunpack.c.l.b16 %v840
    %v4161 = vunpack.c.h.b16 %v840
    %v4162 = vunpack.c.l.b16 %v841
    %v4163 = vunpack.c.h.b16 %v841
    %v4164 = vunpack.c.l.b16 %v842
    %v4165 = vunpack.c.h.b16 %v842
    %v4166 = vunpack.c.l.b16 %v843
    %v4167 = vunpack.c.h.b16 %v843
    %v4168 = vunpack.c.l.b16 %v844
    %v4169 = vunpack.c.h.b16 %v844
    %v4170 = vunpack.c.l.b16 %v845
    %v4171 = vunpack.c.h.b16 %v845
    %v4172 = vunpack.c.l.b16 %v846
    %v4173 = vunpack.c.h.b16 %v846
    %v4174 = vunpack.c.l.b16 %v847
    %v4175 = vunpack.c.h.b16 %v847
    %v4176 = vunpack.c.l.b16 %v848
    %v4177 = vunpack.c.h.b16 %v848
    %v4178 = vunpack.c.l.b16 %v849
    %v4179 = vunpack.c.h.b16 %v849
    %v4180 = vunpack.c.l.b16 %v850
    %v4181 = vunpack.c.h.b16 %v850
    %v4182 = vunpack.c.l.b16 %v851
    %v4183 = vunpack.c.h.b16 %v851
    %v4184 = vunpack.c.l.b16 %v852
    %v4185 = vunpack.c.h.b16 %v852
    %v4186 = vunpack.c.l.b16 %v853
    %v4187 = vunpack.c.h.b16 %v853
    %v4188 = vunpack.c.l.b16 %v854
    %v4189 = vunpack.c.h.b16 %v854
    %v4190 = vunpack.c.l.b16 %v855
    %v4191 = vunpack.c.h.b16 %v855
    %v4192 = vunpack.c.l.b16 %v856
    %v4193 = vunpack.c.h.b16 %v856
    %v4194 = vunpack.c.l.b16 %v857
    %v4195 = vunpack.c.h.b16 %v857
    %v4196 = vunpack.c.l.b16 %v858
    %v4197 = vunpack.c.h.b16 %v858
    %v4198 = vunpack.c.l.b16 %v859
    %v4199 = vunpack.c.h.b16 %v859
    %v4200 = vunpack.c.l.b16 %v860
    %v4201 = vunpack.c.h.b16 %v860
    %v4202 = vunpack.c.l.b16 %v861
    %v4203 = vunpack.c.h.b16 %v861
    %v4204 = vunpack.c.l.b16 %v862
    %v4205 = vunpack.c.h.b16 %v862
    %v4206 = vunpack.c.l.b16 %v863
    %v4207 = vunpack.c.h.b16 %v863
    %v4208 = vunpack.c.l.b16 %v864
    %v4209 = vunpack.c.h.b16 %v864
    %v4210 = vunpack.c.l.b16 %v865
    %v4211 = vunpack.c.h.b16 %v865
    %v4212 = vunpack.c.l.b16 %v866
    %v4213 = vunpack.c.h.b16 %v866
    %v4214 = vunpack.c.l.b16 %v867
    %v4215 = vunpack.c.h.b16 %v867
    %v4216 = vunpack.c.l.b16 %v868
    %v4217 = vunpack.c.h.b16 %v868
    %v4218 = vunpack.c.l.b16 %v869
    %v4219 = vunpack.c.h.b16 %v869
    %v4220 = vunpack.c.l.b16 %v870
    %v4221 = vunpack.c.h.b16 %v870
    %v4222 = vunpack.c.l.b16 %v871
    %v4223 = vunpack.c.h.b16 %v871
    %v4224 = vunpack.c.l.b16 %v872
    %v4225 = vunpack.c.h.b16 %v872
    %v4226 = vunpack.c.l.b16 %v873
    %v4227 = vunpack.c.h.b16 %v873
    %v4228 = vunpack.c.l.b16 %v874
    %v4229 = vunpack.c.h.b16 %v874
    %v4230 = vunpack.c.l.b16 %v875
    %v4231 = vunpack.c.h.b16 %v875
    %v4232 = vunpack.c.l.b16 %v876
    %v4233 = vunpack.c.h.b16 %v876
    %v4234 = vunpack.c.l.b16 %v877
    %v4235 = vunpack.c.h.b16 %v877
    %v4236 = vunpack.c.l.b16 %v878
    %v4237 = vunpack.c.h.b16 %v878
    %v4238 = vunpack.c.l.b16 %v879
    %v4239 = vunpack.c.h.b16 %v879
    %v4240 = vunpack.c.l.b16 %v880
    %v4241 = vunpack.c.h.b16 %v880
    %v4242 = vunpack.c.l.b16 %v881
    %v4243 = vunpack.c.h.b16 %v881
    %v4244 = vunpack.c.l.b16 %v882
    %v4245 = vunpack.c.h.b16 %v882
    %v4246 = vunpack.c.l.b16 %v883
    %v4247 = vunpack.c.h.b16 %v883
    %v4248 = vunpack.c.l.b16 %v884
    %v4249 = vunpack.c.h.b16 %v884
    %v4250 = vunpack.c.l.b16 %v885
    %v4251 = vunpack.c.h.b16 %v885
    %v4252 = vunpack.c.l.b16 %v886
    %v4253 = vunpack.c.h.b16 %v886
    %v4254 = vunpack.c.l.b16 %v887
    %v4255 = vunpack.c.h.b16 %v887
    %v4256 = vunpack.c.l.b16 %v888
    %v4257 = vunpack.c.h.b16 %v888
    %v4258 = vunpack.c.l.b16 %v889
    %v4259 = vunpack.c.h.b16 %v889
    %v4260 = vunpack.c.l.b16 %v890
    %v4261 = vunpack.c.h.b16 %v890
    %v4262 = vunpack.c.l.b16 %v891
    %v4263 = vunpack.c.h.b16 %v891
    %v4264 = vunpack.c.l.b16 %v892
    %v4265 = vunpack.c.h.b16 %v892
    %v4266 = vunpack.c.l.b16 %v893
    %v4267 = vunpack.c.h.b16 %v893
    %v4268 = vunpack.c.l.b16 %v894
    %v4269 = vunpack.c.h.b16 %v894
    %v4270 = vunpack.c.l.b16 %v895
    %v4271 = vunpack.c.h.b16 %v895
    %v4272 = vunpack.c.l.b16 %v896
    %v4273 = vunpack.c.h.b16 %v896
    %v4274 = vunpack.c.l.b16 %v897
    %v4275 = vunpack.c.h.b16 %v897
    %v4276 = vunpack.c.l.b16 %v898
    %v4277 = vunpack.c.h.b16 %v898
    %v4278 = vunpack.c.l.b16 %v899
    %v4279 = vunpack.c.h.b16 %v899
    %v4280 = vunpack.c.l.b16 %v900
    %v4281 = vunpack.c.h.b16 %v900
    %v4282 = vunpack.c.l.b16 %v901
    %v4283 = vunpack.c.h.b16 %v901
    %v4284 = vunpack.c.l.b16 %v902
    %v4285 = vunpack.c.h.b16 %v902
    %v4286 = vunpack.c.l.b16 %v903
    %v4287 = vunpack.c.h.b16 %v903
    %v4288 = vunpack.c.l.b16 %v904
    %v4289 = vunpack.c.h.b16 %v904
    %v4290 = vunpack.c.l.b16 %v905
    %v4291 = vunpack.c.h.b16 %v905
    %v4292 = vunpack.c.l.b16 %v906
    %v4293 = vunpack.c.h.b16 %v906
    %v4294 = vunpack.c.l.b16 %v907
    %v4295 = vunpack.c.h.b16 %v907
    %v4296 = vunpack.c.l.b16 %v908
    %v4297 = vunpack.c.h.b16 %v908
    %v4298 = vunpack.c.l.b16 %v909
    %v4299 = vunpack.c.h.b16 %v909
    %v4300 = vunpack.c.l.b16 %v910
    %v4301 = vunpack.c.h.b16 %v910
    %v4302 = vunpack.c.l.b16 %v911
    %v4303 = vunpack.c.h.b16 %v911
    %v4304 = vunpack.c.l.b16 %v912
    %v4305 = vunpack.c.h.b16 %v912
    %v4306 = vunpack.c.l.b16 %v913
    %v4307 = vunpack.c.h.b16 %v913
    %v4308 = vunpack.c.l.b16 %v914
    %v4309 = vunpack.c.h.b16 %v914
    %v4310 = vunpack.c.l.b16 %v915
    %v4311 = vunpack.c.h.b16 %v915
    %v4312 = vunpack.c.l.b16 %v916
    %v4313 = vunpack.c.h.b16 %v916
    %v4314 = vunpack.c.l.b16 %v917
    %v4315 = vunpack.c.h.b16 %v917
    %v4316 = vunpack.c.l.b16 %v918
    %v4317 = vunpack.c.h.b16 %v918
    %v4318 = vunpack.c.l.b16 %v919
    %v4319 = vunpack.c.h.b16 %v919
    %v4320 = vunpack.c.l.b16 %v920
    %v4321 = vunpack.c.h.b16 %v920
    %v4322 = vunpack.c.l.b16 %v921
    %v4323 = vunpack.c.h.b16 %v921
    %v4324 = vunpack.c.l.b16 %v922
    %v4325 = vunpack.c.h.b16 %v922
    %v4326 = vunpack.c.l.b16 %v923
    %v4327 = vunpack.c.h.b16 %v923
    %v4328 = vunpack.c.l.b16 %v924
    %v4329 = vunpack.c.h.b16 %v924
    %v4330 = vunpack.c.l.b16 %v925
    %v4331 = vunpack.c.h.b16 %v925
    %v4332 = vunpack.c.l.b16 %v926
    %v4333 = vunpack.c.h.b16 %v926
    %v4334 = vunpack.c.l.b16 %v927
    %v4335 = vunpack.c.h.b16 %v927
    %v4336 = vunpack.c.l.b16 %v928
    %v4337 = vunpack.c.h.b16 %v928
    %v4338 = vunpack.c.l.b16 %v929
    %v4339 = vunpack.c.h.b16 %v929
    %v4340 = vunpack.c.l.b16 %v930
    %v4341 = vunpack.c.h.b16 %v930
    %v4342 = vunpack.c.l.b16 %v931
    %v4343 = vunpack.c.h.b16 %v931
    %v4344 = vunpack.c.l.b16 %v932
    %v4345 = vunpack.c.h.b16 %v932
    %v4346 = vunpack.c.l.b16 %v933
    %v4347 = vunpack.c.h.b16 %v933
    %v4348 = vunpack.c.l.b16 %v934
    %v4349 = vunpack.c.h.b16 %v934
    %v4350 = vunpack.c.l.b16 %v935
    %v4351 = vunpack.c.h.b16 %v935
    %v4352 = vunpack.c.l.b16 %v936
    %v4353 = vunpack.c.h.b16 %v936
    %v4354 = vunpack.c.l.b16 %v937
    %v4355 = vunpack.c.h.b16 %v937
    %v4356 = vunpack.c.l.b16 %v938
    %v4357 = vunpack.c.h.b16 %v938
    %v4358 = vunpack.c.l.b16 %v939
    %v4359 = vunpack.c.h.b16 %v939
    %v4360 = vunpack.c.l.b16 %v940
    %v4361 = vunpack.c.h.b16 %v940
    %v4362 = vunpack.c.l.b16 %v941
    %v4363 = vunpack.c.h.b16 %v941
    %v4364 = vunpack.c.l.b16 %v942
    %v4365 = vunpack.c.h.b16 %v942
    %v4366 = vunpack.c.l.b16 %v943
    %v4367 = vunpack.c.h.b16 %v943
    %v4368 = vunpack.c.l.b16 %v944
    %v4369 = vunpack.c.h.b16 %v944
    %v4370 = vunpack.c.l.b16 %v945
    %v4371 = vunpack.c.h.b16 %v945
    %v4372 = vunpack.c.l.b16 %v946
    %v4373 = vunpack.c.h.b16 %v946
    %v4374 = vunpack.c.l.b16 %v947
    %v4375 = vunpack.c.h.b16 %v947
    %v4376 = vunpack.c.l.b16 %v948
    %v4377 = vunpack.c.h.b16 %v948
    %v4378 = vunpack.c.l.b16 %v949
    %v4379 = vunpack.c.h.b16 %v949
    %v4380 = vunpack.c.l.b16 %v950
    %v4381 = vunpack.c.h.b16 %v950
    %v4382 = vunpack.c.l.b16 %v951
    %v4383 = vunpack.c.h.b16 %v951
    %v4384 = vunpack.c.l.b16 %v952
    %v4385 = vunpack.c.h.b16 %v952
    %v4386 = vunpack.c.l.b16 %v953
    %v4387 = vunpack.c.h.b16 %v953
    %v4388 = vunpack.c.l.b16 %v954
    %v4389 = vunpack.c.h.b16 %v954
    %v4390 = vunpack.c.l.b16 %v955
    %v4391 = vunpack.c.h.b16 %v955
    %v4392 = vunpack.c.l.b16 %v956
    %v4393 = vunpack.c.h.b16 %v956
    %v4394 = vunpack.c.l.b16 %v957
    %v4395 = vunpack.c.h.b16 %v957
    %v4396 = vunpack.c.l.b16 %v958
    %v4397 = vunpack.c.h.b16 %v958
    %v4398 = vunpack.c.l.b16 %v959
    %v4399 = vunpack.c.h.b16 %v959
    %v4400 = vunpack.c.l.b16 %v960
    %v4401 = vunpack.c.h.b16 %v960
    %v4402 = vunpack.c.l.b16 %v961
    %v4403 = vunpack.c.h.b16 %v961
    %v4404 = vunpack.c.l.b16 %v962
    %v4405 = vunpack.c.h.b16 %v962
    %v4406 = vunpack.c.l.b16 %v963
    %v4407 = vunpack.c.h.b16 %v963
    %v4408 = vunpack.c.l.b16 %v964
    %v4409 = vunpack.c.h.b16 %v964
    %v4410 = vunpack.c.l.b16 %v965
    %v4411 = vunpack.c.h.b16 %v965
    %v4412 = vunpack.c.l.b16 %v966
    %v4413 = vunpack.c.h.b16 %v966
    %v4414 = vunpack.c.l.b16 %v967
    %v4415 = vunpack.c.h.b16 %v967
    %v4416 = vunpack.c.l.b16 %v968
    %v4417 = vunpack.c.h.b16 %v968
    %v4418 = vunpack.c.l.b16 %v969
    %v4419 = vunpack.c.h.b16 %v969
    %v4420 = vunpack.c.l.b16 %v970
    %v4421 = vunpack.c.h.b16 %v970
    %v4422 = vunpack.c.l.b16 %v971
    %v4423 = vunpack.c.h.b16 %v971
    %v4424 = vunpack.c.l.b16 %v972
    %v4425 = vunpack.c.h.b16 %v972
    %v4426 = vunpack.c.l.b16 %v973
    %v4427 = vunpack.c.h.b16 %v973
    %v4428 = vunpack.c.l.b16 %v974
    %v4429 = vunpack.c.h.b16 %v974
    %v4430 = vunpack.c.l.b16 %v975
    %v4431 = vunpack.c.h.b16 %v975
    %v4432 = vunpack.c.l.b16 %v976
    %v4433 = vunpack.c.h.b16 %v976
    %v4434 = vunpack.c.l.b16 %v977
    %v4435 = vunpack.c.h.b16 %v977
    %v4436 = vunpack.c.l.b16 %v978
    %v4437 = vunpack.c.h.b16 %v978
    %v4438 = vunpack.c.l.b16 %v979
    %v4439 = vunpack.c.h.b16 %v979
    %v4440 = vunpack.c.l.b16 %v980
    %v4441 = vunpack.c.h.b16 %v980
    %v4442 = vunpack.c.l.b16 %v981
    %v4443 = vunpack.c.h.b16 %v981
    %v4444 = vunpack.c.l.b16 %v982
    %v4445 = vunpack.c.h.b16 %v982
    %v4446 = vunpack.c.l.b16 %v983
    %v4447 = vunpack.c.h.b16 %v983
    %v4448 = vunpack.c.l.b16 %v984
    %v4449 = vunpack.c.h.b16 %v984
    %v4450 = vunpack.c.l.b16 %v985
    %v4451 = vunpack.c.h.b16 %v985
    %v4452 = vunpack.c.l.b16 %v986
    %v4453 = vunpack.c.h.b16 %v986
    %v4454 = vunpack.c.l.b16 %v987
    %v4455 = vunpack.c.h.b16 %v987
    %v4456 = vunpack.c.l.b16 %v988
    %v4457 = vunpack.c.h.b16 %v988
    %v4458 = vunpack.c.l.b16 %v989
    %v4459 = vunpack.c.h.b16 %v989
    %v4460 = vunpack.c.l.b16 %v990
    %v4461 = vunpack.c.h.b16 %v990
    %v4462 = vunpack.c.l.b16 %v991
    %v4463 = vunpack.c.h.b16 %v991
    %v4464 = vunpack.c.l.b16 %v992
    %v4465 = vunpack.c.h.b16 %v992
    %v4466 = vunpack.c.l.b16 %v993
    %v4467 = vunpack.c.h.b16 %v993
    %v4468 = vunpack.c.l.b16 %v994
    %v4469 = vunpack.c.h.b16 %v994
    %v4470 = vunpack.c.l.b16 %v995
    %v4471 = vunpack.c.h.b16 %v995
    %v4472 = vunpack.c.l.b16 %v996
    %v4473 = vunpack.c.h.b16 %v996
    %v4474 = vunpack.c.l.b16 %v997
    %v4475 = vunpack.c.h.b16 %v997
    %v4476 = vunpack.c.l.b16 %v998
    %v4477 = vunpack.c.h.b16 %v998
    %v4478 = vunpack.c.l.b16 %v999
    %v4479 = vunpack.c.h.b16 %v999
    %v4480 = vunpack.c.l.b16 %v1000
    %v4481 = vunpack.c.h.b16 %v1000
    %v4482 = vunpack.c.l.b16 %v1001
    %v4483 = vunpack.c.h.b16 %v1001
    %v4484 = vunpack.c.l.b16 %v1002
    %v4485 = vunpack.c.h.b16 %v1002
    %v4486 = vunpack.c.l.b16 %v1003
    %v4487 = vunpack.c.h.b16 %v1003
    %v4488 = vunpack.c.l.b16 %v1004
    %v4489 = vunpack.c.h.b16 %v1004
    %v4490 = vunpack.c.l.b16 %v1005
    %v4491 = vunpack.c.h.b16 %v1005
    %v4492 = vunpack.c.l.b16 %v1006
    %v4493 = vunpack.c.h.b16 %v1006
    %v4494 = vunpack.c.l.b16 %v1007
    %v4495 = vunpack.c.h.b16 %v1007
    %v4496 = vunpack.c.l.b16 %v1008
    %v4497 = vunpack.c.h.b16 %v1008
    %v4498 = vunpack.c.l.b16 %v1009
    %v4499 = vunpack.c.h.b16 %v1009
    %v4500 = vunpack.c.l.b16 %v1010
    %v4501 = vunpack.c.h.b16 %v1010
    %v4502 = vunpack.c.l.b16 %v1011
    %v4503 = vunpack.c.h.b16 %v1011
    %v4504 = vunpack.c.l.b16 %v1012
    %v4505 = vunpack.c.h.b16 %v1012
    %v4506 = vunpack.c.l.b16 %v1013
    %v4507 = vunpack.c.h.b16 %v1013
    %v4508 = vunpack.c.l.b16 %v1014
    %v4509 = vunpack.c.h.b16 %v1014
    %v4510 = vunpack.c.l.b16 %v1015
    %v4511 = vunpack.c.h.b16 %v1015
    %v4512 = vunpack.c.l.b16 %v1016
    %v4513 = vunpack.c.h.b16 %v1016
    %v4514 = vunpack.c.l.b16 %v1017
    %v4515 = vunpack.c.h.b16 %v1017
    %v4516 = vunpack.c.l.b16 %v1018
    %v4517 = vunpack.c.h.b16 %v1018
    %v4518 = vunpack.c.l.b16 %v1019
    %v4519 = vunpack.c.h.b16 %v1019
    %v4520 = vunpack.c.l.b16 %v1020
    %v4521 = vunpack.c.h.b16 %v1020
    %v4522 = vunpack.c.l.b16 %v1021
    %v4523 = vunpack.c.h.b16 %v1021
    %v4524 = vunpack.c.l.b16 %v1022
    %v4525 = vunpack.c.h.b16 %v1022
    %v4526 = vunpack.c.l.b16 %v1023
    %v4527 = vunpack.c.h.b16 %v1023
    %v4528 = vunpack.c.l.b16 %v1024
    %v4529 = vunpack.c.h.b16 %v1024
    %v4530 = vunpack.c.l.b16 %v1025
    %v4531 = vunpack.c.h.b16 %v1025
    %v4532 = vunpack.c.l.b16 %v1026
    %v4533 = vunpack.c.h.b16 %v1026
    %v4534 = vunpack.c.l.b16 %v1027
    %v4535 = vunpack.c.h.b16 %v1027
    %v4536 = vunpack.c.l.b16 %v1028
    %v4537 = vunpack.c.h.b16 %v1028
    %v4538 = vunpack.c.l.b16 %v1029
    %v4539 = vunpack.c.h.b16 %v1029
    %v4540 = vunpack.c.l.b16 %v1030
    %v4541 = vunpack.c.h.b16 %v1030
    %v4542 = vunpack.c.l.b16 %v1031
    %v4543 = vunpack.c.h.b16 %v1031
    %v4544 = vunpack.c.l.b16 %v1032
    %v4545 = vunpack.c.h.b16 %v1032
    %v4546 = vunpack.c.l.b16 %v1033
    %v4547 = vunpack.c.h.b16 %v1033
    %v4548 = vunpack.c.l.b16 %v1034
    %v4549 = vunpack.c.h.b16 %v1034
    %v4550 = vunpack.c.l.b16 %v1035
    %v4551 = vunpack.c.h.b16 %v1035
    %v4552 = vunpack.c.l.b16 %v1036
    %v4553 = vunpack.c.h.b16 %v1036
    %v4554 = vunpack.c.l.b16 %v1037
    %v4555 = vunpack.c.h.b16 %v1037
    %v4556 = vunpack.c.l.b16 %v1038
    %v4557 = vunpack.c.h.b16 %v1038
    %v4558 = vunpack.c.l.b16 %v1039
    %v4559 = vunpack.c.h.b16 %v1039
    %v4560 = vunpack.c.l.b16 %v1040
    %v4561 = vunpack.c.h.b16 %v1040
    %v4562 = vunpack.c.l.b16 %v1041
    %v4563 = vunpack.c.h.b16 %v1041
    %v4564 = vunpack.c.l.b16 %v1042
    %v4565 = vunpack.c.h.b16 %v1042
    %v4566 = vunpack.c.l.b16 %v1043
    %v4567 = vunpack.c.h.b16 %v1043
    %v4568 = vunpack.c.l.b16 %v1044
    %v4569 = vunpack.c.h.b16 %v1044
    %v4570 = vunpack.c.l.b16 %v1045
    %v4571 = vunpack.c.h.b16 %v1045
    %v4572 = vunpack.c.l.b16 %v1046
    %v4573 = vunpack.c.h.b16 %v1046
    %v4574 = vunpack.c.l.b16 %v1047
    %v4575 = vunpack.c.h.b16 %v1047
    %v4576 = vunpack.c.l.b16 %v1048
    %v4577 = vunpack.c.h.b16 %v1048
    %v4578 = vunpack.c.l.b16 %v1049
    %v4579 = vunpack.c.h.b16 %v1049
    %v4580 = vunpack.c.l.b16 %v1050
    %v4581 = vunpack.c.h.b16 %v1050
    %v4582 = vunpack.c.l.b16 %v1051
    %v4583 = vunpack.c.h.b16 %v1051
    %v4584 = vunpack.c.l.b16 %v1052
    %v4585 = vunpack.c.h.b16 %v1052
    %v4586 = vunpack.c.l.b16 %v1053
    %v4587 = vunpack.c.h.b16 %v1053
    %v4588 = vunpack.c.l.b16 %v1054
    %v4589 = vunpack.c.h.b16 %v1054
    %v4590 = vunpack.c.l.b16 %v1055
    %v4591 = vunpack.c.h.b16 %v1055
    %v4592 = vunpack.c.l.b16 %v1056
    %v4593 = vunpack.c.h.b16 %v1056
    %v4594 = vunpack.c.l.b16 %v1057
    %v4595 = vunpack.c.h.b16 %v1057
    %v4596 = vunpack.c.l.b16 %v1058
    %v4597 = vunpack.c.h.b16 %v1058
    %v4598 = vunpack.c.l.b16 %v1059
    %v4599 = vunpack.c.h.b16 %v1059
    %v4600 = vunpack.c.l.b16 %v1060
    %v4601 = vunpack.c.h.b16 %v1060
    %v4602 = vunpack.c.l.b16 %v1061
    %v4603 = vunpack.c.h.b16 %v1061
    %v4604 = vunpack.c.l.b16 %v1062
    %v4605 = vunpack.c.h.b16 %v1062
    %v4606 = vunpack.c.l.b16 %v1063
    %v4607 = vunpack.c.h.b16 %v1063
    %v4608 = vunpack.c.l.b16 %v1064
    %v4609 = vunpack.c.h.b16 %v1064
    %v4610 = vunpack.c.l.b16 %v1065
    %v4611 = vunpack.c.h.b16 %v1065
    %v4612 = vunpack.c.l.b16 %v1066
    %v4613 = vunpack.c.h.b16 %v1066
    %v4614 = vunpack.c.l.b16 %v1067
    %v4615 = vunpack.c.h.b16 %v1067
    %v4616 = vunpack.c.l.b16 %v1068
    %v4617 = vunpack.c.h.b16 %v1068
    %v4618 = vunpack.c.l.b16 %v1069
    %v4619 = vunpack.c.h.b16 %v1069
    %v4620 = vunpack.c.l.b16 %v1070
    %v4621 = vunpack.c.h.b16 %v1070
    %v4622 = vunpack.c.l.b16 %v1071
    %v4623 = vunpack.c.h.b16 %v1071
    %v4624 = vunpack.c.l.b16 %v1072
    %v4625 = vunpack.c.h.b16 %v1072
    %v4626 = vunpack.c.l.b16 %v1073
    %v4627 = vunpack.c.h.b16 %v1073
    %v4628 = vunpack.c.l.b16 %v1074
    %v4629 = vunpack.c.h.b16 %v1074
    %v4630 = vunpack.c.l.b16 %v1075
    %v4631 = vunpack.c.h.b16 %v1075
    %v4632 = vunpack.c.l.b16 %v1076
    %v4633 = vunpack.c.h.b16 %v1076
    %v4634 = vunpack.c.l.b16 %v1077
    %v4635 = vunpack.c.h.b16 %v1077
    %v4636 = vunpack.c.l.b16 %v1078
    %v4637 = vunpack.c.h.b16 %v1078
    %v4638 = vunpack.c.l.b16 %v1079
    %v4639 = vunpack.c.h.b16 %v1079
    %v4640 = vunpack.c.l.b16 %v1080
    %v4641 = vunpack.c.h.b16 %v1080
    %v4642 = vunpack.c.l.b16 %v1081
    %v4643 = vunpack.c.h.b16 %v1081
    %v4644 = vunpack.c.l.b16 %v1082
    %v4645 = vunpack.c.h.b16 %v1082
    %v4646 = vunpack.c.l.b16 %v1083
    %v4647 = vunpack.c.h.b16 %v1083
    %v4648 = vunpack.c.l.b16 %v1084
    %v4649 = vunpack.c.h.b16 %v1084
    %v4650 = vunpack.c.l.b16 %v1085
    %v4651 = vunpack.c.h.b16 %v1085
    %v4652 = vunpack.c.l.b16 %v1086
    %v4653 = vunpack.c.h.b16 %v1086
    %v4654 = vunpack.c.l.b16 %v1087
    %v4655 = vunpack.c.h.b16 %v1087
    %v4656 = vunpack.c.l.b16 %v1088
    %v4657 = vunpack.c.h.b16 %v1088
    %v4658 = vunpack.c.l.b16 %v1089
    %v4659 = vunpack.c.h.b16 %v1089
    %v4660 = vunpack.c.l.b16 %v1090
    %v4661 = vunpack.c.h.b16 %v1090
    %v4662 = vunpack.c.l.b16 %v1091
    %v4663 = vunpack.c.h.b16 %v1091
    %v4664 = vunpack.c.l.b16 %v1092
    %v4665 = vunpack.c.h.b16 %v1092
    %v4666 = vunpack.c.l.b16 %v1093
    %v4667 = vunpack.c.h.b16 %v1093
    %v4668 = vunpack.c.l.b16 %v1094
    %v4669 = vunpack.c.h.b16 %v1094
    %v4670 = vunpack.c.l.b16 %v1095
    %v4671 = vunpack.c.h.b16 %v1095
    %v4672 = vunpack.c.l.b16 %v1096
    %v4673 = vunpack.c.h.b16 %v1096
    %v4674 = vunpack.c.l.b16 %v1097
    %v4675 = vunpack.c.h.b16 %v1097
    %v4676 = vunpack.c.l.b16 %v1098
    %v4677 = vunpack.c.h.b16 %v1098
    %v4678 = vunpack.c.l.b16 %v1099
    %v4679 = vunpack.c.h.b16 %v1099
    %v4680 = vunpack.c.l.b16 %v1100
    %v4681 = vunpack.c.h.b16 %v1100
    %v4682 = vunpack.c.l.b16 %v1101
    %v4683 = vunpack.c.h.b16 %v1101
    %v4684 = vunpack.c.l.b16 %v1102
    %v4685 = vunpack.c.h.b16 %v1102
    %v4686 = vunpack.c.l.b16 %v1103
    %v4687 = vunpack.c.h.b16 %v1103
    %v4688 = vunpack.c.l.b16 %v1104
    %v4689 = vunpack.c.h.b16 %v1104
    %v4690 = vunpack.c.l.b16 %v1105
    %v4691 = vunpack.c.h.b16 %v1105
    %v4692 = vunpack.c.l.b16 %v1106
    %v4693 = vunpack.c.h.b16 %v1106
    %v4694 = vunpack.c.l.b16 %v1107
    %v4695 = vunpack.c.h.b16 %v1107
    %v4696 = vunpack.c.l.b16 %v1108
    %v4697 = vunpack.c.h.b16 %v1108
    %v4698 = vunpack.c.l.b16 %v1109
    %v4699 = vunpack.c.h.b16 %v1109
    %v4700 = vunpack.c.l.b16 %v1110
    %v4701 = vunpack.c.h.b16 %v1110
    %v4702 = vunpack.c.l.b16 %v1111
    %v4703 = vunpack.c.h.b16 %v1111
    %v4704 = vunpack.c.l.b16 %v1112
    %v4705 = vunpack.c.h.b16 %v1112
    %v4706 = vunpack.c.l.b16 %v1113
    %v4707 = vunpack.c.h.b16 %v1113
    %v4708 = vunpack.c.l.b16 %v1114
    %v4709 = vunpack.c.h.b16 %v1114
    %v4710 = vunpack.c.l.b16 %v1115
    %v4711 = vunpack.c.h.b16 %v1115
    %v4712 = vunpack.c.l.b16 %v1116
    %v4713 = vunpack.c.h.b16 %v1116
    %v4714 = vunpack.c.l.b16 %v1117
    %v4715 = vunpack.c.h.b16 %v1117
    %v4716 = vunpack.c.l.b16 %v1118
    %v4717 = vunpack.c.h.b16 %v1118
    %v4718 = vunpack.c.l.b16 %v1119
    %v4719 = vunpack.c.h.b16 %v1119
    %v4720 = vunpack.c.l.b16 %v1120
    %v4721 = vunpack.c.h.b16 %v1120
    %v4722 = vunpack.c.l.b16 %v1121
    %v4723 = vunpack.c.h.b16 %v1121
    %v4724 = vunpack.c.l.b16 %v1122
    %v4725 = vunpack.c.h.b16 %v1122
    %v4726 = vunpack.c.l.b16 %v1123
    %v4727 = vunpack.c.h.b16 %v1123
    %v4728 = vunpack.c.l.b16 %v1124
    %v4729 = vunpack.c.h.b16 %v1124
    %v4730 = vunpack.c.l.b16 %v1125
    %v4731 = vunpack.c.h.b16 %v1125
    %v4732 = vunpack.c.l.b16 %v1126
    %v4733 = vunpack.c.h.b16 %v1126
    %v4734 = vunpack.c.l.b16 %v1127
    %v4735 = vunpack.c.h.b16 %v1127
    %v4736 = vunpack.c.l.b16 %v1128
    %v4737 = vunpack.c.h.b16 %v1128
    %v4738 = vunpack.c.l.b16 %v1129
    %v4739 = vunpack.c.h.b16 %v1129
    %v4740 = vunpack.c.l.b16 %v1130
    %v4741 = vunpack.c.h.b16 %v1130
    %v4742 = vunpack.c.l.b16 %v1131
    %v4743 = vunpack.c.h.b16 %v1131
    %v4744 = vunpack.c.l.b16 %v1132
    %v4745 = vunpack.c.h.b16 %v1132
    %v4746 = vunpack.c.l.b16 %v1133
    %v4747 = vunpack.c.h.b16 %v1133
    %v4748 = vunpack.c.l.b16 %v1134
    %v4749 = vunpack.c.h.b16 %v1134
    %v4750 = vunpack.c.l.b16 %v1135
    %v4751 = vunpack.c.h.b16 %v1135
    %v4752 = vunpack.c.l.b16 %v1136
    %v4753 = vunpack.c.h.b16 %v1136
    %v4754 = vunpack.c.l.b16 %v1137
    %v4755 = vunpack.c.h.b16 %v1137
    %v4756 = vunpack.c.l.b16 %v1138
    %v4757 = vunpack.c.h.b16 %v1138
    %v4758 = vunpack.c.l.b16 %v1139
    %v4759 = vunpack.c.h.b16 %v1139
    %v4760 = vunpack.c.l.b16 %v1140
    %v4761 = vunpack.c.h.b16 %v1140
    %v4762 = vunpack.c.l.b16 %v1141
    %v4763 = vunpack.c.h.b16 %v1141
    %v4764 = vunpack.c.l.b16 %v1142
    %v4765 = vunpack.c.h.b16 %v1142
    %v4766 = vunpack.c.l.b16 %v1143
    %v4767 = vunpack.c.h.b16 %v1143
    %v4768 = vunpack.c.l.b16 %v1144
    %v4769 = vunpack.c.h.b16 %v1144
    %v4770 = vunpack.c.l.b16 %v1145
    %v4771 = vunpack.c.h.b16 %v1145
    %v4772 = vunpack.c.l.b16 %v1146
    %v4773 = vunpack.c.h.b16 %v1146
    %v4774 = vunpack.c.l.b16 %v1147
    %v4775 = vunpack.c.h.b16 %v1147
    %v4776 = vunpack.c.l.b16 %v1148
    %v4777 = vunpack.c.h.b16 %v1148
    %v4778 = vunpack.c.l.b16 %v1149
    %v4779 = vunpack.c.h.b16 %v1149
    %v4780 = vunpack.c.l.b16 %v1150
    %v4781 = vunpack.c.h.b16 %v1150
    %v4782 = vunpack.c.l.b16 %v1151
    %v4783 = vunpack.c.h.b16 %v1151
    %v4784 = vunpack.c.l.b16 %v1152
    %v4785 = vunpack.c.h.b16 %v1152
    %v4786 = vunpack.c.l.b16 %v1153
    %v4787 = vunpack.c.h.b16 %v1153
    %v4788 = vunpack.c.l.b16 %v1154
    %v4789 = vunpack.c.h.b16 %v1154
    %v4790 = vunpack.c.l.b16 %v1155
    %v4791 = vunpack.c.h.b16 %v1155
    %v4792 = vunpack.c.l.b16 %v1156
    %v4793 = vunpack.c.h.b16 %v1156
    %v4794 = vunpack.c.l.b16 %v1157
    %v4795 = vunpack.c.h.b16 %v1157
    %v4796 = vunpack.c.l.b16 %v1158
    %v4797 = vunpack.c.h.b16 %v1158
    %v4798 = vunpack.c.l.b16 %v1159
    %v4799 = vunpack.c.h.b16 %v1159
    %v4800 = vunpack.c.l.b16 %v1160
    %v4801 = vunpack.c.h.b16 %v1160
    %v4802 = vunpack.c.l.b16 %v1161
    %v4803 = vunpack.c.h.b16 %v1161
    %v4804 = vunpack.c.l.b16 %v1162
    %v4805 = vunpack.c.h.b16 %v1162
    %v4806 = vunpack.c.l.b16 %v1163
    %v4807 = vunpack.c.h.b16 %v1163
    %v4808 = vunpack.c.l.b16 %v1164
    %v4809 = vunpack.c.h.b16 %v1164
    %v4810 = vunpack.c.l.b16 %v1165
    %v4811 = vunpack.c.h.b16 %v1165
    %v4812 = vunpack.c.l.b16 %v1166
    %v4813 = vunpack.c.h.b16 %v1166
    %v4814 = vunpack.c.l.b16 %v1167
    %v4815 = vunpack.c.h.b16 %v1167
    %v4816 = vunpack.c.l.b16 %v1168
    %v4817 = vunpack.c.h.b16 %v1168
    %v4818 = vunpack.c.l.b16 %v1169
    %v4819 = vunpack.c.h.b16 %v1169
    %v4820 = vunpack.c.l.b16 %v1170
    %v4821 = vunpack.c.h.b16 %v1170
    %v4822 = vunpack.c.l.b16 %v1171
    %v4823 = vunpack.c.h.b16 %v1171
    %v4824 = vunpack.c.l.b16 %v1172
    %v4825 = vunpack.c.h.b16 %v1172
    %v4826 = vunpack.c.l.b16 %v1173
    %v4827 = vunpack.c.h.b16 %v1173
    %v4828 = vunpack.c.l.b16 %v1174
    %v4829 = vunpack.c.h.b16 %v1174
    %v4830 = vunpack.c.l.b16 %v1175
    %v4831 = vunpack.c.h.b16 %v1175
    %v4832 = vunpack.c.l.b16 %v1176
    %v4833 = vunpack.c.h.b16 %v1176
    %v4834 = vunpack.c.l.b16 %v1177
    %v4835 = vunpack.c.h.b16 %v1177
    %v4836 = vunpack.c.l.b16 %v1178
    %v4837 = vunpack.c.h.b16 %v1178
    %v4838 = vunpack.c.l.b16 %v1179
    %v4839 = vunpack.c.h.b16 %v1179
    %v4840 = vunpack.c.l.b16 %v1180
    %v4841 = vunpack.c.h.b16 %v1180
    %v4842 = vunpack.c.l.b16 %v1181
    %v4843 = vunpack.c.h.b16 %v1181
    %v4844 = vunpack.c.l.b16 %v1182
    %v4845 = vunpack.c.h.b16 %v1182
    %v4846 = vunpack.c.l.b16 %v1183
    %v4847 = vunpack.c.h.b16 %v1183
    %v4848 = vunpack.c.l.b16 %v1184
    %v4849 = vunpack.c.h.b16 %v1184
    %v4850 = vunpack.c.l.b16 %v1185
    %v4851 = vunpack.c.h.b16 %v1185
    %v4852 = vunpack.c.l.b16 %v1186
    %v4853 = vunpack.c.h.b16 %v1186
    %v4854 = vunpack.c.l.b16 %v1187
    %v4855 = vunpack.c.h.b16 %v1187
    %v4856 = vunpack.c.l.b16 %v1188
    %v4857 = vunpack.c.h.b16 %v1188
    %v4858 = vunpack.c.l.b16 %v1189
    %v4859 = vunpack.c.h.b16 %v1189
    %v4860 = vunpack.c.l.b16 %v1190
    %v4861 = vunpack.c.h.b16 %v1190
    %v4862 = vunpack.c.l.b16 %v1191
    %v4863 = vunpack.c.h.b16 %v1191
    %v4864 = vunpack.c.l.b16 %v1192
    %v4865 = vunpack.c.h.b16 %v1192
    %v4866 = vunpack.c.l.b16 %v1193
    %v4867 = vunpack.c.h.b16 %v1193
    %v4868 = vunpack.c.l.b16 %v1194
    %v4869 = vunpack.c.h.b16 %v1194
    %v4870 = vunpack.c.l.b16 %v1195
    %v4871 = vunpack.c.h.b16 %v1195
    %v4872 = vunpack.c.l.b16 %v1196
    %v4873 = vunpack.c.h.b16 %v1196
    %v4874 = vunpack.c.l.b16 %v1197
    %v4875 = vunpack.c.h.b16 %v1197
    %v4876 = vunpack.c.l.b16 %v1198
    %v4877 = vunpack.c.h.b16 %v1198
    %v4878 = vunpack.c.l.b16 %v1199
    %v4879 = vunpack.c.h.b16 %v1199
    %v4880 = vunpack.c.l.b16 %v1200
    %v4881 = vunpack.c.h.b16 %v1200
    %v4882 = vunpack.c.l.b16 %v1201
    %v4883 = vunpack.c.h.b16 %v1201
    %v4884 = vunpack.c.l.b16 %v1202
    %v4885 = vunpack.c.h.b16 %v1202
    %v4886 = vunpack.c.l.b16 %v1203
    %v4887 = vunpack.c.h.b16 %v1203
    %v4888 = vunpack.c.l.b16 %v1204
    %v4889 = vunpack.c.h.b16 %v1204
    %v4890 = vunpack.c.l.b16 %v1205
    %v4891 = vunpack.c.h.b16 %v1205
    %v4892 = vunpack.c.l.b16 %v1206
    %v4893 = vunpack.c.h.b16 %v1206
    %v4894 = vunpack.c.l.b16 %v1207
    %v4895 = vunpack.c.h.b16 %v1207
    %v4896 = vunpack.c.l.b16 %v1208
    %v4897 = vunpack.c.h.b16 %v1208
    %v4898 = vunpack.c.l.b16 %v1209
    %v4899 = vunpack.c.h.b16 %v1209
    %v4900 = vunpack.c.l.b16 %v1210
    %v4901 = vunpack.c.h.b16 %v1210
    %v4902 = vunpack.c.l.b16 %v1211
    %v4903 = vunpack.c.h.b16 %v1211
    %v4904 = vunpack.c.l.b16 %v1212
    %v4905 = vunpack.c.h.b16 %v1212
    %v4906 = vunpack.c.l.b16 %v1213
    %v4907 = vunpack.c.h.b16 %v1213
    %v4908 = vunpack.c.l.b16 %v1214
    %v4909 = vunpack.c.h.b16 %v1214
    %v4910 = vunpack.c.l.b16 %v1215
    %v4911 = vunpack.c.h.b16 %v1215
    %v4912 = vunpack.c.l.b16 %v1216
    %v4913 = vunpack.c.h.b16 %v1216
    %v4914 = vunpack.c.l.b16 %v1217
    %v4915 = vunpack.c.h.b16 %v1217
    %v4916 = vunpack.c.l.b16 %v1218
    %v4917 = vunpack.c.h.b16 %v1218
    %v4918 = vunpack.c.l.b16 %v1219
    %v4919 = vunpack.c.h.b16 %v1219
    %v4920 = vunpack.c.l.b16 %v1220
    %v4921 = vunpack.c.h.b16 %v1220
    %v4922 = vunpack.c.l.b16 %v1221
    %v4923 = vunpack.c.h.b16 %v1221
    %v4924 = vunpack.c.l.b16 %v1222
    %v4925 = vunpack.c.h.b16 %v1222
    %v4926 = vunpack.c.l.b16 %v1223
    %v4927 = vunpack.c.h.b16 %v1223
    %v4928 = vunpack.c.l.b16 %v1224
    %v4929 = vunpack.c.h.b16 %v1224
    %v4930 = vunpack.c.l.b16 %v1225
    %v4931 = vunpack.c.h.b16 %v1225
    %v4932 = vunpack.c.l.b16 %v1226
    %v4933 = vunpack.c.h.b16 %v1226
    %v4934 = vunpack.c.l.b16 %v1227
    %v4935 = vunpack.c.h.b16 %v1227
    %v4936 = vunpack.c.l.b16 %v1228
    %v4937 = vunpack.c.h.b16 %v1228
    %v4938 = vunpack.c.l.b16 %v1229
    %v4939 = vunpack.c.h.b16 %v1229
    %v4940 = vunpack.c.l.b16 %v1230
    %v4941 = vunpack.c.h.b16 %v1230
    %v4942 = vunpack.c.l.b16 %v1231
    %v4943 = vunpack.c.h.b16 %v1231
    %v4944 = vunpack.c.l.b16 %v1232
    %v4945 = vunpack.c.h.b16 %v1232
    %v4946 = vunpack.c.l.b16 %v1233
    %v4947 = vunpack.c.h.b16 %v1233
    %v4948 = vunpack.c.l.b16 %v1234
    %v4949 = vunpack.c.h.b16 %v1234
    %v4950 = vunpack.c.l.b16 %v1235
    %v4951 = vunpack.c.h.b16 %v1235
    %v4952 = vunpack.c.l.b16 %v1236
    %v4953 = vunpack.c.h.b16 %v1236
    %v4954 = vunpack.c.l.b16 %v1237
    %v4955 = vunpack.c.h.b16 %v1237
    %v4956 = vunpack.c.l.b16 %v1238
    %v4957 = vunpack.c.h.b16 %v1238
    %v4958 = vunpack.c.l.b16 %v1239
    %v4959 = vunpack.c.h.b16 %v1239
    %v4960 = vunpack.c.l.b16 %v1240
    %v4961 = vunpack.c.h.b16 %v1240
    %v4962 = vunpack.c.l.b16 %v1241
    %v4963 = vunpack.c.h.b16 %v1241
    %v4964 = vunpack.c.l.b16 %v1242
    %v4965 = vunpack.c.h.b16 %v1242
    %v4966 = vunpack.c.l.b16 %v1243
    %v4967 = vunpack.c.h.b16 %v1243
    %v4968 = vunpack.c.l.b16 %v1244
    %v4969 = vunpack.c.h.b16 %v1244
    %v4970 = vunpack.c.l.b16 %v1245
    %v4971 = vunpack.c.h.b16 %v1245
    %v4972 = vunpack.c.l.b16 %v1246
    %v4973 = vunpack.c.h.b16 %v1246
    %v4974 = vunpack.c.l.b16 %v1247
    %v4975 = vunpack.c.h.b16 %v1247
    %v4976 = vunpack.c.l.b16 %v1248
    %v4977 = vunpack.c.h.b16 %v1248
    %v4978 = vunpack.c.l.b16 %v1249
    %v4979 = vunpack.c.h.b16 %v1249
    %v4980 = vunpack.c.l.b16 %v1250
    %v4981 = vunpack.c.h.b16 %v1250
    %v4982 = vunpack.c.l.b16 %v1251
    %v4983 = vunpack.c.h.b16 %v1251
    %v4984 = vunpack.c.l.b16 %v1252
    %v4985 = vunpack.c.h.b16 %v1252
    %v4986 = vunpack.c.l.b16 %v1253
    %v4987 = vunpack.c.h.b16 %v1253
    %v4988 = vunpack.c.l.b16 %v1254
    %v4989 = vunpack.c.h.b16 %v1254
    %v4990 = vunpack.c.l.b16 %v1255
    %v4991 = vunpack.c.h.b16 %v1255
    %v4992 = vunpack.c.l.b16 %v1256
    %v4993 = vunpack.c.h.b16 %v1256
    %v4994 = vunpack.c.l.b16 %v1257
    %v4995 = vunpack.c.h.b16 %v1257
    %v4996 = vunpack.c.l.b16 %v1258
    %v4997 = vunpack.c.h.b16 %v1258
    %v4998 = vunpack.c.l.b16 %v1259
    %v4999 = vunpack.c.h.b16 %v1259
    %v5000 = vunpack.c.l.b16 %v1260
    %v5001 = vunpack.c.h.b16 %v1260
    %v5002 = vunpack.c.l.b16 %v1261
    %v5003 = vunpack.c.h.b16 %v1261
    %v5004 = vunpack.c.l.b16 %v1262
    %v5005 = vunpack.c.h.b16 %v1262
    %v5006 = vunpack.c.l.b16 %v1263
    %v5007 = vunpack.c.h.b16 %v1263
    %v5008 = vunpack.c.l.b16 %v1264
    %v5009 = vunpack.c.h.b16 %v1264
    %v5010 = vunpack.c.l.b16 %v1265
    %v5011 = vunpack.c.h.b16 %v1265
    %v5012 = vunpack.c.l.b16 %v1266
    %v5013 = vunpack.c.h.b16 %v1266
    %v5014 = vunpack.c.l.b16 %v1267
    %v5015 = vunpack.c.h.b16 %v1267
    %v5016 = vunpack.c.l.b16 %v1268
    %v5017 = vunpack.c.h.b16 %v1268
    %v5018 = vunpack.c.l.b16 %v1269
    %v5019 = vunpack.c.h.b16 %v1269
    %v5020 = vunpack.c.l.b16 %v1270
    %v5021 = vunpack.c.h.b16 %v1270
    %v5022 = vunpack.c.l.b16 %v1271
    %v5023 = vunpack.c.h.b16 %v1271
    %v5024 = vunpack.c.l.b16 %v1272
    %v5025 = vunpack.c.h.b16 %v1272
    %v5026 = vunpack.c.l.b16 %v1273
    %v5027 = vunpack.c.h.b16 %v1273
    %v5028 = vunpack.c.l.b16 %v1274
    %v5029 = vunpack.c.h.b16 %v1274
    %v5030 = vunpack.c.l.b16 %v1275
    %v5031 = vunpack.c.h.b16 %v1275
    %v5032 = vunpack.c.l.b16 %v1276
    %v5033 = vunpack.c.h.b16 %v1276
    %v5034 = vunpack.c.l.b16 %v1277
    %v5035 = vunpack.c.h.b16 %v1277
    %v5036 = vunpack.c.l.b16 %v1278
    %v5037 = vunpack.c.h.b16 %v1278
    %v5038 = vunpack.c.l.b16 %v1279
    %v5039 = vunpack.c.h.b16 %v1279
    %v5040 = vunpack.c.l.b16 %v1280
    %v5041 = vunpack.c.h.b16 %v1280
    %v5042 = vunpack.c.l.b16 %v1281
    %v5043 = vunpack.c.h.b16 %v1281
    %v5044 = vunpack.c.l.b16 %v1282
    %v5045 = vunpack.c.h.b16 %v1282
    %v5046 = vunpack.c.l.b16 %v1283
    %v5047 = vunpack.c.h.b16 %v1283
    %v5048 = vunpack.c.l.b16 %v1284
    %v5049 = vunpack.c.h.b16 %v1284
    %v5050 = vunpack.c.l.b16 %v1285
    %v5051 = vunpack.c.h.b16 %v1285
    %v5052 = vunpack.c.l.b16 %v1286
    %v5053 = vunpack.c.h.b16 %v1286
    %v5054 = vunpack.c.l.b16 %v1287
    %v5055 = vunpack.c.h.b16 %v1287
    %v5056 = vunpack.c.l.b16 %v1288
    %v5057 = vunpack.c.h.b16 %v1288
    %v5058 = vunpack.c.l.b16 %v1289
    %v5059 = vunpack.c.h.b16 %v1289
    %v5060 = vunpack.c.l.b16 %v1290
    %v5061 = vunpack.c.h.b16 %v1290
    %v5062 = vunpack.c.l.b16 %v1291
    %v5063 = vunpack.c.h.b16 %v1291
    %v5064 = vunpack.c.l.b16 %v1292
    %v5065 = vunpack.c.h.b16 %v1292
    %v5066 = vunpack.c.l.b16 %v1293
    %v5067 = vunpack.c.h.b16 %v1293
    %v5068 = vunpack.c.l.b16 %v1294
    %v5069 = vunpack.c.h.b16 %v1294
    %v5070 = vunpack.c.l.b16 %v1295
    %v5071 = vunpack.c.h.b16 %v1295
    %v5072 = vunpack.c.l.b16 %v1296
    %v5073 = vunpack.c.h.b16 %v1296
    %v5074 = vunpack.c.l.b16 %v1297
    %v5075 = vunpack.c.h.b16 %v1297
    %v5076 = vunpack.c.l.b16 %v1298
    %v5077 = vunpack.c.h.b16 %v1298
    %v5078 = vunpack.c.l.b16 %v1299
    %v5079 = vunpack.c.h.b16 %v1299
    %v5080 = vunpack.c.l.b16 %v1300
    %v5081 = vunpack.c.h.b16 %v1300
    %v5082 = vunpack.c.l.b16 %v1301
    %v5083 = vunpack.c.h.b16 %v1301
    %v5084 = vunpack.c.l.b16 %v1302
    %v5085 = vunpack.c.h.b16 %v1302
    %v5086 = vunpack.c.l.b16 %v1303
    %v5087 = vunpack.c.h.b16 %v1303
    %v5088 = vunpack.c.l.b16 %v1304
    %v5089 = vunpack.c.h.b16 %v1304
    %v5090 = vunpack.c.l.b16 %v1305
    %v5091 = vunpack.c.h.b16 %v1305
    %v5092 = vunpack.c.l.b16 %v1306
    %v5093 = vunpack.c.h.b16 %v1306
    %v5094 = vunpack.c.l.b16 %v1307
    %v5095 = vunpack.c.h.b16 %v1307
    %v5096 = vunpack.c.l.b16 %v1308
    %v5097 = vunpack.c.h.b16 %v1308
    %v5098 = vunpack.c.l.b16 %v1309
    %v5099 = vunpack.c.h.b16 %v1309
    %v5100 = vunpack.c.l.b16 %v1310
    %v5101 = vunpack.c.h.b16 %v1310
    %v5102 = vunpack.c.l.b16 %v1311
    %v5103 = vunpack.c.h.b16 %v1311
    %v5104 = vunpack.c.l.b16 %v1312
    %v5105 = vunpack.c.h.b16 %v1312
    %v5106 = vunpack.c.l.b16 %v1313
    %v5107 = vunpack.c.h.b16 %v1313
    %v5108 = vunpack.c.l.b16 %v1314
    %v5109 = vunpack.c.h.b16 %v1314
    %v5110 = vunpack.c.l.b16 %v1315
    %v5111 = vunpack.c.h.b16 %v1315
    %v5112 = vunpack.c.l.b16 %v1316
    %v5113 = vunpack.c.h.b16 %v1316
    %v5114 = vunpack.c.l.b16 %v1317
    %v5115 = vunpack.c.h.b16 %v1317
    %v5116 = vunpack.c.l.b16 %v1318
    %v5117 = vunpack.c.h.b16 %v1318
    %v5118 = vunpack.c.l.b16 %v1319
    %v5119 = vunpack.c.h.b16 %v1319
    %v5120 = vunpack.c.l.b16 %v1320
    %v5121 = vunpack.c.h.b16 %v1320
    %v5122 = vunpack.c.l.b16 %v1321
    %v5123 = vunpack.c.h.b16 %v1321
    %v5124 = vunpack.c.l.b16 %v1322
    %v5125 = vunpack.c.h.b16 %v1322
    %v5126 = vunpack.c.l.b16 %v1323
    %v5127 = vunpack.c.h.b16 %v1323
    %v5128 = vunpack.c.l.b16 %v1324
    %v5129 = vunpack.c.h.b16 %v1324
    %v5130 = vunpack.c.l.b16 %v1325
    %v5131 = vunpack.c.h.b16 %v1325
    %v5132 = vunpack.c.l.b16 %v1326
    %v5133 = vunpack.c.h.b16 %v1326
    %v5134 = vunpack.c.l.b16 %v1327
    %v5135 = vunpack.c.h.b16 %v1327
    %v5136 = vunpack.c.l.b16 %v1328
    %v5137 = vunpack.c.h.b16 %v1328
    %v5138 = vunpack.c.l.b16 %v1329
    %v5139 = vunpack.c.h.b16 %v1329
    %v5140 = vunpack.c.l.b16 %v1330
    %v5141 = vunpack.c.h.b16 %v1330
    %v5142 = vunpack.c.l.b16 %v1331
    %v5143 = vunpack.c.h.b16 %v1331
    %v5144 = vunpack.c.l.b16 %v1332
    %v5145 = vunpack.c.h.b16 %v1332
    %v5146 = vunpack.c.l.b16 %v1333
    %v5147 = vunpack.c.h.b16 %v1333
    %v5148 = vunpack.c.l.b16 %v1334
    %v5149 = vunpack.c.h.b16 %v1334
    %v5150 = vunpack.c.l.b16 %v1335
    %v5151 = vunpack.c.h.b16 %v1335
    %v5152 = vunpack.c.l.b16 %v1336
    %v5153 = vunpack.c.h.b16 %v1336
    %v5154 = vunpack.c.l.b16 %v1337
    %v5155 = vunpack.c.h.b16 %v1337
    %v5156 = vunpack.c.l.b16 %v1338
    %v5157 = vunpack.c.h.b16 %v1338
    %v5158 = vunpack.c.l.b16 %v1339
    %v5159 = vunpack.c.h.b16 %v1339
    %v5160 = vunpack.c.l.b16 %v1340
    %v5161 = vunpack.c.h.b16 %v1340
    %v5162 = vunpack.c.l.b16 %v1341
    %v5163 = vunpack.c.h.b16 %v1341
    %v5164 = vunpack.c.l.b16 %v1342
    %v5165 = vunpack.c.h.b16 %v1342
    %v5166 = vunpack.c.l.b16 %v1343
    %v5167 = vunpack.c.h.b16 %v1343
    %v5168 = vunpack.c.l.b16 %v1344
    %v5169 = vunpack.c.h.b16 %v1344
    %v5170 = vunpack.c.l.b16 %v1345
    %v5171 = vunpack.c.h.b16 %v1345
    %v5172 = vunpack.c.l.b16 %v1346
    %v5173 = vunpack.c.h.b16 %v1346
    %v5174 = vunpack.c.l.b16 %v1347
    %v5175 = vunpack.c.h.b16 %v1347
    %v5176 = vunpack.c.l.b16 %v1348
    %v5177 = vunpack.c.h.b16 %v1348
    %v5178 = vunpack.c.l.b16 %v1349
    %v5179 = vunpack.c.h.b16 %v1349
    %v5180 = vunpack.c.l.b16 %v1350
    %v5181 = vunpack.c.h.b16 %v1350
    %v5182 = vunpack.c.l.b16 %v1351
    %v5183 = vunpack.c.h.b16 %v1351
    %v5184 = vunpack.c.l.b16 %v1352
    %v5185 = vunpack.c.h.b16 %v1352
    %v5186 = vunpack.c.l.b16 %v1353
    %v5187 = vunpack.c.h.b16 %v1353
    %v5188 = vunpack.c.l.b16 %v1354
    %v5189 = vunpack.c.h.b16 %v1354
    %v5190 = vunpack.c.l.b16 %v1355
    %v5191 = vunpack.c.h.b16 %v1355
    %v5192 = vunpack.c.l.b16 %v1356
    %v5193 = vunpack.c.h.b16 %v1356
    %v5194 = vunpack.c.l.b16 %v1357
    %v5195 = vunpack.c.h.b16 %v1357
    %v5196 = vunpack.c.l.b16 %v1358
    %v5197 = vunpack.c.h.b16 %v1358
    %v5198 = vunpack.c.l.b16 %v1359
    %v5199 = vunpack.c.h.b16 %v1359
    %v5200 = vunpack.c.l.b16 %v1360
    %v5201 = vunpack.c.h.b16 %v1360
    %v5202 = vunpack.c.l.b16 %v1361
    %v5203 = vunpack.c.h.b16 %v1361
    %v5204 = vunpack.c.l.b16 %v1362
    %v5205 = vunpack.c.h.b16 %v1362
    %v5206 = vunpack.c.l.b16 %v1363
    %v5207 = vunpack.c.h.b16 %v1363
    %v5208 = vunpack.c.l.b16 %v1364
    %v5209 = vunpack.c.h.b16 %v1364
    %v5210 = vunpack.c.l.b16 %v1365
    %v5211 = vunpack.c.h.b16 %v1365
    %v5212 = vunpack.c.l.b16 %v1366
    %v5213 = vunpack.c.h.b16 %v1366
    %v5214 = vunpack.c.l.b16 %v1367
    %v5215 = vunpack.c.h.b16 %v1367
    %v5216 = vunpack.c.l.b16 %v1368
    %v5217 = vunpack.c.h.b16 %v1368
    %v5218 = vunpack.c.l.b16 %v1369
    %v5219 = vunpack.c.h.b16 %v1369
    %v5220 = vunpack.c.l.b16 %v1370
    %v5221 = vunpack.c.h.b16 %v1370
    %v5222 = vunpack.c.l.b16 %v1371
    %v5223 = vunpack.c.h.b16 %v1371
    %v5224 = vunpack.c.l.b16 %v1372
    %v5225 = vunpack.c.h.b16 %v1372
    %v5226 = vunpack.c.l.b16 %v1373
    %v5227 = vunpack.c.h.b16 %v1373
    %v5228 = vunpack.c.l.b16 %v1374
    %v5229 = vunpack.c.h.b16 %v1374
    %v5230 = vunpack.c.l.b16 %v1375
    %v5231 = vunpack.c.h.b16 %v1375
    %v5232 = vunpack.c.l.b16 %v1376
    %v5233 = vunpack.c.h.b16 %v1376
    %v5234 = vunpack.c.l.b16 %v1377
    %v5235 = vunpack.c.h.b16 %v1377
    %v5236 = vunpack.c.l.b16 %v1378
    %v5237 = vunpack.c.h.b16 %v1378
    %v5238 = vunpack.c.l.b16 %v1379
    %v5239 = vunpack.c.h.b16 %v1379
    %v5240 = vunpack.c.l.b16 %v1380
    %v5241 = vunpack.c.h.b16 %v1380
    %v5242 = vunpack.c.l.b16 %v1381
    %v5243 = vunpack.c.h.b16 %v1381
    %v5244 = vunpack.c.l.b16 %v1382
    %v5245 = vunpack.c.h.b16 %v1382
    %v5246 = vunpack.c.l.b16 %v1383
    %v5247 = vunpack.c.h.b16 %v1383
    %v5248 = vunpack.c.l.b16 %v1384
    %v5249 = vunpack.c.h.b16 %v1384
    %v5250 = vunpack.c.l.b16 %v1385
    %v5251 = vunpack.c.h.b16 %v1385
    %v5252 = vunpack.c.l.b16 %v1386
    %v5253 = vunpack.c.h.b16 %v1386
    %v5254 = vunpack.c.l.b16 %v1387
    %v5255 = vunpack.c.h.b16 %v1387
    %v5256 = vunpack.c.l.b16 %v1388
    %v5257 = vunpack.c.h.b16 %v1388
    %v5258 = vunpack.c.l.b16 %v1389
    %v5259 = vunpack.c.h.b16 %v1389
    %v5260 = vunpack.c.l.b16 %v1390
    %v5261 = vunpack.c.h.b16 %v1390
    %v5262 = vunpack.c.l.b16 %v1391
    %v5263 = vunpack.c.h.b16 %v1391
    %v5264 = vunpack.c.l.b16 %v1392
    %v5265 = vunpack.c.h.b16 %v1392
    %v5266 = vunpack.c.l.b16 %v1393
    %v5267 = vunpack.c.h.b16 %v1393
    %v5268 = vunpack.c.l.b16 %v1394
    %v5269 = vunpack.c.h.b16 %v1394
    %v5270 = vunpack.c.l.b16 %v1395
    %v5271 = vunpack.c.h.b16 %v1395
    %v5272 = vunpack.c.l.b16 %v1396
    %v5273 = vunpack.c.h.b16 %v1396
    %v5274 = vunpack.c.l.b16 %v1397
    %v5275 = vunpack.c.h.b16 %v1397
    %v5276 = vunpack.c.l.b16 %v1398
    %v5277 = vunpack.c.h.b16 %v1398
    %v5278 = vunpack.c.l.b16 %v1399
    %v5279 = vunpack.c.h.b16 %v1399
    %v5280 = vunpack.c.l.b16 %v1400
    %v5281 = vunpack.c.h.b16 %v1400
    %v5282 = vunpack.c.l.b16 %v1401
    %v5283 = vunpack.c.h.b16 %v1401
    %v5284 = vunpack.c.l.b16 %v1402
    %v5285 = vunpack.c.h.b16 %v1402
    %v5286 = vunpack.c.l.b16 %v1403
    %v5287 = vunpack.c.h.b16 %v1403
    %v5288 = vunpack.c.l.b16 %v1404
    %v5289 = vunpack.c.h.b16 %v1404
    %v5290 = vunpack.c.l.b16 %v1405
    %v5291 = vunpack.c.h.b16 %v1405
    %v5292 = vunpack.c.l.b16 %v1406
    %v5293 = vunpack.c.h.b16 %v1406
    %v5294 = vunpack.c.l.b16 %v1407
    %v5295 = vunpack.c.h.b16 %v1407
    %v5296 = vunpack.c.l.b16 %v1408
    %v5297 = vunpack.c.h.b16 %v1408
    %v5298 = vunpack.c.l.b16 %v1409
    %v5299 = vunpack.c.h.b16 %v1409
    %v5300 = vunpack.c.l.b16 %v1410
    %v5301 = vunpack.c.h.b16 %v1410
    %v5302 = vunpack.c.l.b16 %v1411
    %v5303 = vunpack.c.h.b16 %v1411
    %v5304 = vunpack.c.l.b16 %v1412
    %v5305 = vunpack.c.h.b16 %v1412
    %v5306 = vunpack.c.l.b16 %v1413
    %v5307 = vunpack.c.h.b16 %v1413
    %v5308 = vunpack.c.l.b16 %v1414
    %v5309 = vunpack.c.h.b16 %v1414
    %v5310 = vunpack.c.l.b16 %v1415
    %v5311 = vunpack.c.h.b16 %v1415
    %v5312 = vunpack.c.l.b16 %v1416
    %v5313 = vunpack.c.h.b16 %v1416
    %v5314 = vunpack.c.l.b16 %v1417
    %v5315 = vunpack.c.h.b16 %v1417
    %v5316 = vunpack.c.l.b16 %v1418
    %v5317 = vunpack.c.h.b16 %v1418
    %v5318 = vunpack.c.l.b16 %v1419
    %v5319 = vunpack.c.h.b16 %v1419
    %v5320 = vunpack.c.l.b16 %v1420
    %v5321 = vunpack.c.h.b16 %v1420
    %v5322 = vunpack.c.l.b16 %v1421
    %v5323 = vunpack.c.h.b16 %v1421
    %v5324 = vunpack.c.l.b16 %v1422
    %v5325 = vunpack.c.h.b16 %v1422
    %v5326 = vunpack.c.l.b16 %v1423
    %v5327 = vunpack.c.h.b16 %v1423
    %v5328 = vunpack.c.l.b16 %v1424
    %v5329 = vunpack.c.h.b16 %v1424
    %v5330 = vunpack.c.l.b16 %v1425
    %v5331 = vunpack.c.h.b16 %v1425
    %v5332 = vunpack.c.l.b16 %v1426
    %v5333 = vunpack.c.h.b16 %v1426
    %v5334 = vunpack.c.l.b16 %v1427
    %v5335 = vunpack.c.h.b16 %v1427
    %v5336 = vunpack.c.l.b16 %v1428
    %v5337 = vunpack.c.h.b16 %v1428
    %v5338 = vunpack.c.l.b16 %v1429
    %v5339 = vunpack.c.h.b16 %v1429
    %v5340 = vunpack.c.l.b16 %v1430
    %v5341 = vunpack.c.h.b16 %v1430
    %v5342 = vunpack.c.l.b16 %v1431
    %v5343 = vunpack.c.h.b16 %v1431
    %v5344 = vunpack.c.l.b16 %v1432
    %v5345 = vunpack.c.h.b16 %v1432
    %v5346 = vunpack.c.l.b16 %v1433
    %v5347 = vunpack.c.h.b16 %v1433
    %v5348 = vunpack.c.l.b16 %v1434
    %v5349 = vunpack.c.h.b16 %v1434
    %v5350 = vunpack.c.l.b16 %v1435
    %v5351 = vunpack.c.h.b16 %v1435
    %v5352 = vunpack.c.l.b16 %v1436
    %v5353 = vunpack.c.h.b16 %v1436
    %v5354 = vunpack.c.l.b16 %v1437
    %v5355 = vunpack.c.h.b16 %v1437
    %v5356 = vunpack.c.l.b16 %v1438
    %v5357 = vunpack.c.h.b16 %v1438
    %v5358 = vunpack.c.l.b16 %v1439
    %v5359 = vunpack.c.h.b16 %v1439
    %v5360 = vunpack.c.l.b16 %v1440
    %v5361 = vunpack.c.h.b16 %v1440
    %v5362 = vunpack.c.l.b16 %v1441
    %v5363 = vunpack.c.h.b16 %v1441
    %v5364 = vunpack.c.l.b16 %v1442
    %v5365 = vunpack.c.h.b16 %v1442
    %v5366 = vunpack.c.l.b16 %v1443
    %v5367 = vunpack.c.h.b16 %v1443
    %v5368 = vunpack.c.l.b16 %v1444
    %v5369 = vunpack.c.h.b16 %v1444
    %v5370 = vunpack.c.l.b16 %v1445
    %v5371 = vunpack.c.h.b16 %v1445
    %v5372 = vunpack.c.l.b16 %v1446
    %v5373 = vunpack.c.h.b16 %v1446
    %v5374 = vunpack.c.l.b16 %v1447
    %v5375 = vunpack.c.h.b16 %v1447
    %v5376 = vunpack.c.l.b16 %v1448
    %v5377 = vunpack.c.h.b16 %v1448
    %v5378 = vunpack.c.l.b16 %v1449
    %v5379 = vunpack.c.h.b16 %v1449
    %v5380 = vunpack.c.l.b16 %v1450
    %v5381 = vunpack.c.h.b16 %v1450
    %v5382 = vunpack.c.l.b16 %v1451
    %v5383 = vunpack.c.h.b16 %v1451
    %v5384 = vunpack.c.l.b16 %v1452
    %v5385 = vunpack.c.h.b16 %v1452
    %v5386 = vunpack.c.l.b16 %v1453
    %v5387 = vunpack.c.h.b16 %v1453
    %v5388 = vunpack.c.l.b16 %v1454
    %v5389 = vunpack.c.h.b16 %v1454
    %v5390 = vunpack.c.l.b16 %v1455
    %v5391 = vunpack.c.h.b16 %v1455
    %v5392 = vunpack.c.l.b16 %v1456
    %v5393 = vunpack.c.h.b16 %v1456
    %v5394 = vunpack.c.l.b16 %v1457
    %v5395 = vunpack.c.h.b16 %v1457
    %v5396 = vunpack.c.l.b16 %v1458
    %v5397 = vunpack.c.h.b16 %v1458
    %v5398 = vunpack.c.l.b16 %v1459
    %v5399 = vunpack.c.h.b16 %v1459
    %v5400 = vunpack.c.l.b16 %v1460
    %v5401 = vunpack.c.h.b16 %v1460
    %v5402 = vunpack.c.l.b16 %v1461
    %v5403 = vunpack.c.h.b16 %v1461
    %v5404 = vunpack.c.l.b16 %v1462
    %v5405 = vunpack.c.h.b16 %v1462
    %v5406 = vunpack.c.l.b16 %v1463
    %v5407 = vunpack.c.h.b16 %v1463
    %v5408 = vunpack.c.l.b16 %v1464
    %v5409 = vunpack.c.h.b16 %v1464
    %v5410 = vunpack.c.l.b16 %v1465
    %v5411 = vunpack.c.h.b16 %v1465
    %v5412 = vunpack.c.l.b16 %v1466
    %v5413 = vunpack.c.h.b16 %v1466
    %v5414 = vunpack.c.l.b16 %v1467
    %v5415 = vunpack.c.h.b16 %v1467
    %v5416 = vunpack.c.l.b16 %v1468
    %v5417 = vunpack.c.h.b16 %v1468
    %v5418 = vunpack.c.l.b16 %v1469
    %v5419 = vunpack.c.h.b16 %v1469
    %v5420 = vunpack.c.l.b16 %v1470
    %v5421 = vunpack.c.h.b16 %v1470
    %v5422 = vunpack.c.l.b16 %v1471
    %v5423 = vunpack.c.h.b16 %v1471
    %v5424 = vunpack.c.l.b16 %v1472
    %v5425 = vunpack.c.h.b16 %v1472
    %v5426 = vunpack.c.l.b16 %v1473
    %v5427 = vunpack.c.h.b16 %v1473
    %v5428 = vunpack.c.l.b16 %v1474
    %v5429 = vunpack.c.h.b16 %v1474
    %v5430 = vunpack.c.l.b16 %v1475
    %v5431 = vunpack.c.h.b16 %v1475
    %v5432 = vunpack.c.l.b16 %v1476
    %v5433 = vunpack.c.h.b16 %v1476
    %v5434 = vunpack.c.l.b16 %v1477
    %v5435 = vunpack.c.h.b16 %v1477
    %v5436 = vunpack.c.l.b16 %v1478
    %v5437 = vunpack.c.h.b16 %v1478
    %v5438 = vunpack.c.l.b16 %v1479
    %v5439 = vunpack.c.h.b16 %v1479
    %v5440 = vunpack.c.l.b16 %v1480
    %v5441 = vunpack.c.h.b16 %v1480
    %v5442 = vunpack.c.l.b16 %v1481
    %v5443 = vunpack.c.h.b16 %v1481
    %v5444 = vunpack.c.l.b16 %v1482
    %v5445 = vunpack.c.h.b16 %v1482
    %v5446 = vunpack.c.l.b16 %v1483
    %v5447 = vunpack.c.h.b16 %v1483
    %v5448 = vunpack.c.l.b16 %v1484
    %v5449 = vunpack.c.h.b16 %v1484
    %v5450 = vunpack.c.l.b16 %v1485
    %v5451 = vunpack.c.h.b16 %v1485
    %v5452 = vunpack.c.l.b16 %v1486
    %v5453 = vunpack.c.h.b16 %v1486
    %v5454 = vunpack.c.l.b16 %v1487
    %v5455 = vunpack.c.h.b16 %v1487
    %v5456 = vunpack.c.l.b16 %v1488
    %v5457 = vunpack.c.h.b16 %v1488
    %v5458 = vunpack.c.l.b16 %v1489
    %v5459 = vunpack.c.h.b16 %v1489
    %v5460 = vunpack.c.l.b16 %v1490
    %v5461 = vunpack.c.h.b16 %v1490
    %v5462 = vunpack.c.l.b16 %v1491
    %v5463 = vunpack.c.h.b16 %v1491
    %v5464 = vunpack.c.l.b16 %v1492
    %v5465 = vunpack.c.h.b16 %v1492
    %v5466 = vunpack.c.l.b16 %v1493
    %v5467 = vunpack.c.h.b16 %v1493
    %v5468 = vunpack.c.l.b16 %v1494
    %v5469 = vunpack.c.h.b16 %v1494
    %v5470 = vunpack.c.l.b16 %v1495
    %v5471 = vunpack.c.h.b16 %v1495
    %v5472 = vunpack.c.l.b16 %v1496
    %v5473 = vunpack.c.h.b16 %v1496
    %v5474 = vunpack.c.l.b16 %v1497
    %v5475 = vunpack.c.h.b16 %v1497
    %v5476 = vunpack.c.l.b16 %v1498
    %v5477 = vunpack.c.h.b16 %v1498
    %v5478 = vunpack.c.l.b16 %v1499
    %v5479 = vunpack.c.h.b16 %v1499
    %v5480 = vunpack.c.l.b16 %v1500
    %v5481 = vunpack.c.h.b16 %v1500
    %v5482 = vunpack.c.l.b16 %v1501
    %v5483 = vunpack.c.h.b16 %v1501
    %v5484 = vunpack.c.l.b16 %v1502
    %v5485 = vunpack.c.h.b16 %v1502
    %v5486 = vunpack.c.l.b16 %v1503
    %v5487 = vunpack.c.h.b16 %v1503
    %v5488 = vunpack.c.l.b16 %v1504
    %v5489 = vunpack.c.h.b16 %v1504
    %v5490 = vunpack.c.l.b16 %v1505
    %v5491 = vunpack.c.h.b16 %v1505
    %v5492 = vunpack.c.l.b16 %v1506
    %v5493 = vunpack.c.h.b16 %v1506
    %v5494 = vunpack.c.l.b16 %v1507
    %v5495 = vunpack.c.h.b16 %v1507
    %v5496 = vunpack.c.l.b16 %v1508
    %v5497 = vunpack.c.h.b16 %v1508
    %v5498 = vunpack.c.l.b16 %v1509
    %v5499 = vunpack.c.h.b16 %v1509
    %v5500 = vunpack.c.l.b16 %v1510
    %v5501 = vunpack.c.h.b16 %v1510
    %v5502 = vunpack.c.l.b16 %v1511
    %v5503 = vunpack.c.h.b16 %v1511
    %v5504 = vunpack.c.l.b16 %v1512
    %v5505 = vunpack.c.h.b16 %v1512
    %v5506 = vunpack.c.l.b16 %v1513
    %v5507 = vunpack.c.h.b16 %v1513
    %v5508 = vunpack.c.l.b16 %v1514
    %v5509 = vunpack.c.h.b16 %v1514
    %v5510 = vunpack.c.l.b16 %v1515
    %v5511 = vunpack.c.h.b16 %v1515
    %v5512 = vunpack.c.l.b16 %v1516
    %v5513 = vunpack.c.h.b16 %v1516
    %v5514 = vunpack.c.l.b16 %v1517
    %v5515 = vunpack.c.h.b16 %v1517
    %v5516 = vunpack.c.l.b16 %v1518
    %v5517 = vunpack.c.h.b16 %v1518
    %v5518 = vunpack.c.l.b16 %v1519
    %v5519 = vunpack.c.h.b16 %v1519
    %v5520 = vunpack.c.l.b16 %v1520
    %v5521 = vunpack.c.h.b16 %v1520
    %v5522 = vunpack.c.l.b16 %v1521
    %v5523 = vunpack.c.h.b16 %v1521
    %v5524 = vunpack.c.l.b16 %v1522
    %v5525 = vunpack.c.h.b16 %v1522
    %v5526 = vunpack.c.l.b16 %v1523
    %v5527 = vunpack.c.h.b16 %v1523
    %v5528 = vunpack.c.l.b16 %v1524
    %v5529 = vunpack.c.h.b16 %v1524
    %v5530 = vunpack.c.l.b16 %v1525
    %v5531 = vunpack.c.h.b16 %v1525
    %v5532 = vunpack.c.l.b16 %v1526
    %v5533 = vunpack.c.h.b16 %v1526
    %v5534 = vunpack.c.l.b16 %v1527
    %v5535 = vunpack.c.h.b16 %v1527
    %v5536 = vunpack.c.l.b16 %v1528
    %v5537 = vunpack.c.h.b16 %v1528
    %v5538 = vunpack.c.l.b16 %v1529
    %v5539 = vunpack.c.h.b16 %v1529
    %v5540 = vunpack.c.l.b16 %v1530
    %v5541 = vunpack.c.h.b16 %v1530
    %v5542 = vunpack.c.l.b16 %v1531
    %v5543 = vunpack.c.h.b16 %v1531
    %v5544 = vunpack.c.l.b16 %v1532
    %v5545 = vunpack.c.h.b16 %v1532
    %v5546 = vunpack.c.l.b16 %v1533
    %v5547 = vunpack.c.h.b16 %v1533
    %v5548 = vunpack.c.l.b16 %v1534
    %v5549 = vunpack.c.h.b16 %v1534
    %v5550 = vunpack.c.l.b16 %v1535
    %v5551 = vunpack.c.h.b16 %v1535
    %v5552 = vunpack.c.l.b16 %v1536
    %v5553 = vunpack.c.h.b16 %v1536
    %v5554 = vunpack.c.l.b16 %v1537
    %v5555 = vunpack.c.h.b16 %v1537
    %v5556 = vunpack.c.l.b16 %v1538
    %v5557 = vunpack.c.h.b16 %v1538
    %v5558 = vunpack.c.l.b16 %v1539
    %v5559 = vunpack.c.h.b16 %v1539
    %v5560 = vunpack.c.l.b16 %v1540
    %v5561 = vunpack.c.h.b16 %v1540
    %v5562 = vunpack.c.l.b16 %v1541
    %v5563 = vunpack.c.h.b16 %v1541
    %v5564 = vunpack.c.l.b16 %v1542
    %v5565 = vunpack.c.h.b16 %v1542
    %v5566 = vunpack.c.l.b16 %v1543
    %v5567 = vunpack.c.h.b16 %v1543
    %v5568 = vunpack.c.l.b16 %v1544
    %v5569 = vunpack.c.h.b16 %v1544
    %v5570 = vunpack.c.l.b16 %v1545
    %v5571 = vunpack.c.h.b16 %v1545
    %v5572 = vunpack.c.l.b16 %v1546
    %v5573 = vunpack.c.h.b16 %v1546
    %v5574 = vunpack.c.l.b16 %v1547
    %v5575 = vunpack.c.h.b16 %v1547
    %v5576 = vunpack.c.l.b16 %v1548
    %v5577 = vunpack.c.h.b16 %v1548
    %v5578 = vunpack.c.l.b16 %v1549
    %v5579 = vunpack.c.h.b16 %v1549
    %v5580 = vunpack.c.l.b16 %v1550
    %v5581 = vunpack.c.h.b16 %v1550
    %v5582 = vunpack.c.l.b16 %v1551
    %v5583 = vunpack.c.h.b16 %v1551
    %v5584 = vunpack.c.l.b16 %v1552
    %v5585 = vunpack.c.h.b16 %v1552
    %v5586 = vunpack.c.l.b16 %v1553
    %v5587 = vunpack.c.h.b16 %v1553
    %v5588 = vunpack.c.l.b16 %v1554
    %v5589 = vunpack.c.h.b16 %v1554
    %v5590 = vunpack.c.l.b16 %v1555
    %v5591 = vunpack.c.h.b16 %v1555
    %v5592 = vunpack.c.l.b16 %v1556
    %v5593 = vunpack.c.h.b16 %v1556
    %v5594 = vunpack.c.l.b16 %v1557
    %v5595 = vunpack.c.h.b16 %v1557
    %v5596 = vunpack.c.l.b16 %v1558
    %v5597 = vunpack.c.h.b16 %v1558
    %v5598 = vunpack.c.l.b16 %v1559
    %v5599 = vunpack.c.h.b16 %v1559
    %v5600 = vunpack.c.l.b16 %v1560
    %v5601 = vunpack.c.h.b16 %v1560
    %v5602 = vunpack.c.l.b16 %v1561
    %v5603 = vunpack.c.h.b16 %v1561
    %v5604 = vunpack.c.l.b16 %v1562
    %v5605 = vunpack.c.h.b16 %v1562
    %v5606 = vunpack.c.l.b16 %v1563
    %v5607 = vunpack.c.h.b16 %v1563
    %v5608 = vunpack.c.l.b16 %v1564
    %v5609 = vunpack.c.h.b16 %v1564
    %v5610 = vunpack.c.l.b16 %v1565
    %v5611 = vunpack.c.h.b16 %v1565
    %v5612 = vunpack.c.l.b16 %v1566
    %v5613 = vunpack.c.h.b16 %v1566
    %v5614 = vunpack.c.l.b16 %v1567
    %v5615 = vunpack.c.h.b16 %v1567
    %v5616 = vunpack.c.l.b16 %v1568
    %v5617 = vunpack.c.h.b16 %v1568
    %v5618 = vunpack.c.l.b16 %v1569
    %v5619 = vunpack.c.h.b16 %v1569
    %v5620 = vpack.c.b16 %v2940, %v2932
    %v5621 = vpack.c.b16 %v2941, %v2933
    %v5622 = vpack.c.b16 %v2942, %v2934
    %v5623 = vpack.c.b16 %v2943, %v2935
    %v5624 = vpack.c.b16 %v2944, %v2936
    %v5625 = vpack.c.b16 %v2945, %v2937
    %v5626 = vpack.c.b16 %v2946, %v2938
    %v5627 = vpack.c.b16 %v2947, %v2939
    %v5628 = vpack.c.b16 %v2956, %v2948
    %v5629 = vpack.c.b16 %v2957, %v2949
    %v5630 = vpack.c.b16 %v2958, %v2950
    %v5631 = vpack.c.b16 %v2959, %v2951
    %v5632 = vpack.c.b16 %v2960, %v2952
    %v5633 = vpack.c.b16 %v2961, %v2953
    %v5634 = vpack.c.b16 %v2962, %v2954
    %v5635 = vpack.c.b16 %v2963, %v2955
    %v5636 = vpack.c.b16 %v2972, %v2964
    %v5637 = vpack.c.b16 %v2973, %v2965
    %v5638 = vpack.c.b16 %v2974, %v2966
    %v5639 = vpack.c.b16 %v2975, %v2967
    %v5640 = vpack.c.b16 %v2976, %v2968
    %v5641 = vpack.c.b16 %v2977, %v2969
    %v5642 = vpack.c.b16 %v2978, %v2970
    %v5643 = vpack.c.b16 %v2979, %v2971
    %v5644 = vpack.c.b16 %v2988, %v2980
    %v5645 = vpack.c.b16 %v2989, %v2981
    %v5646 = vpack.c.b16 %v2990, %v2982
    %v5647 = vpack.c.b16 %v2991, %v2983
    %v5648 = vpack.c.b16 %v2992, %v2984
    %v5649 = vpack.c.b16 %v2993, %v2985
    %v5650 = vpack.c.b16 %v2994, %v2986
    %v5651 = vpack.c.b16 %v2995, %v2987
    %v5652 = vpack.c.b16 %v3004, %v2996
    %v5653 = vpack.c.b16 %v3005, %v2997
    %v5654 = vpack.c.b16 %v3006, %v2998
    %v5655 = vpack.c.b16 %v3007, %v2999
    %v5656 = vpack.c.b16 %v3008, %v3000
    %v5657 = vpack.c.b16 %v3009, %v3001
    %v5658 = vpack.c.b16 %v3010, %v3002
    %v5659 = vpack.c.b16 %v3011, %v3003
    %v5660 = vpack.c.b16 %v3020, %v3012
    %v5661 = vpack.c.b16 %v3021, %v3013
    %v5662 = vpack.c.b16 %v3022, %v3014
    %v5663 = vpack.c.b16 %v3023, %v3015
    %v5664 = vpack.c.b16 %v3024, %v3016
    %v5665 = vpack.c.b16 %v3025, %v3017
    %v5666 = vpack.c.b16 %v3026, %v3018
    %v5667 = vpack.c.b16 %v3027, %v3019
    %v5668 = vpack.c.b16 %v3036, %v3028
    %v5669 = vpack.c.b16 %v3037, %v3029
    %v5670 = vpack.c.b16 %v3038, %v3030
    %v5671 = vpack.c.b16 %v3039, %v3031
    %v5672 = vpack.c.b16 %v3040, %v3032
    %v5673 = vpack.c.b16 %v3041, %v3033
    %v5674 = vpack.c.b16 %v3042, %v3034
    %v5675 = vpack.c.b16 %v3043, %v3035
    %v5676 = vpack.c.b16 %v3052, %v3044
    %v5677 = vpack.c.b16 %v3053, %v3045
    %v5678 = vpack.c.b16 %v3054, %v3046
    %v5679 = vpack.c.b16 %v3055, %v3047
    %v5680 = vpack.c.b16 %v3056, %v3048
    %v5681 = vpack.c.b16 %v3057, %v3049
    %v5682 = vpack.c.b16 %v3058, %v3050
    %v5683 = vpack.c.b16 %v3059, %v3051
    %v5684 = vpack.c.b16 %v3068, %v3060
    %v5685 = vpack.c.b16 %v3069, %v3061
    %v5686 = vpack.c.b16 %v3070, %v3062
    %v5687 = vpack.c.b16 %v3071, %v3063
    %v5688 = vpack.c.b16 %v3072, %v3064
    %v5689 = vpack.c.b16 %v3073, %v3065
    %v5690 = vpack.c.b16 %v3074, %v3066
    %v5691 = vpack.c.b16 %v3075, %v3067
    %v5692 = vpack.c.b16 %v3084, %v3076
    %v5693 = vpack.c.b16 %v3085, %v3077
    %v5694 = vpack.c.b16 %v3086, %v3078
    %v5695 = vpack.c.b16 %v3087, %v3079
    %v5696 = vpack.c.b16 %v3088, %v3080
    %v5697 = vpack.c.b16 %v3089, %v3081
    %v5698 = vpack.c.b16 %v3090, %v3082
    %v5699 = vpack.c.b16 %v3091, %v3083
    %v5700 = vpack.c.b16 %v3100, %v3092
    %v5701 = vpack.c.b16 %v3101, %v3093
    %v5702 = vpack.c.b16 %v3102, %v3094
    %v5703 = vpack.c.b16 %v3103, %v3095
    %v5704 = vpack.c.b16 %v3104, %v3096
    %v5705 = vpack.c.b16 %v3105, %v3097
    %v5706 = vpack.c.b16 %v3106, %v3098
    %v5707 = vpack.c.b16 %v3107, %v3099
    %v5708 = vpack.c.b16 %v3116, %v3108
    %v5709 = vpack.c.b16 %v3117, %v3109
    %v5710 = vpack.c.b16 %v3118, %v3110
    %v5711 = vpack.c.b16 %v3119, %v3111
    %v5712 = vpack.c.b16 %v3120, %v3112
    %v5713 = vpack.c.b16 %v3121, %v3113
    %v5714 = vpack.c.b16 %v3122, %v3114
    %v5715 = vpack.c.b16 %v3123, %v3115
    %v5716 = vpack.c.b16 %v3132, %v3124
    %v5717 = vpack.c.b16 %v3133, %v3125
    %v5718 = vpack.c.b16 %v3134, %v3126
    %v5719 = vpack.c.b16 %v3135, %v3127
    %v5720 = vpack.c.b16 %v3136, %v3128
    %v5721 = vpack.c.b16 %v3137, %v3129
    %v5722 = vpack.c.b16 %v3138, %v3130
    %v5723 = vpack.c.b16 %v3139, %v3131
    %v5724 = vpack.c.b16 %v3148, %v3140
    %v5725 = vpack.c.b16 %v3149, %v3141
    %v5726 = vpack.c.b16 %v3150, %v3142
    %v5727 = vpack.c.b16 %v3151, %v3143
    %v5728 = vpack.c.b16 %v3152, %v3144
    %v5729 = vpack.c.b16 %v3153, %v3145
    %v5730 = vpack.c.b16 %v3154, %v3146
    %v5731 = vpack.c.b16 %v3155, %v3147
    %v5732 = vpack.c.b16 %v3164, %v3156
    %v5733 = vpack.c.b16 %v3165, %v3157
    %v5734 = vpack.c.b16 %v3166, %v3158
    %v5735 = vpack.c.b16 %v3167, %v3159
    %v5736 = vpack.c.b16 %v3168, %v3160
    %v5737 = vpack.c.b16 %v3169, %v3161
    %v5738 = vpack.c.b16 %v3170, %v3162
    %v5739 = vpack.c.b16 %v3171, %v3163
    %v5740 = vpack.c.b16 %v3180, %v3172
    %v5741 = vpack.c.b16 %v3181, %v3173
    %v5742 = vpack.c.b16 %v3182, %v3174
    %v5743 = vpack.c.b16 %v3183, %v3175
    %v5744 = vpack.c.b16 %v3184, %v3176
    %v5745 = vpack.c.b16 %v3185, %v3177
    %v5746 = vpack.c.b16 %v3186, %v3178
    %v5747 = vpack.c.b16 %v3187, %v3179
    %v5748 = vpack.c.b16 %v3196, %v3188
    %v5749 = vpack.c.b16 %v3197, %v3189
    %v5750 = vpack.c.b16 %v3198, %v3190
    %v5751 = vpack.c.b16 %v3199, %v3191
    %v5752 = vpack.c.b16 %v3200, %v3192
    %v5753 = vpack.c.b16 %v3201, %v3193
    %v5754 = vpack.c.b16 %v3202, %v3194
    %v5755 = vpack.c.b16 %v3203, %v3195
    %v5756 = vpack.c.b16 %v3212, %v3204
    %v5757 = vpack.c.b16 %v3213, %v3205
    %v5758 = vpack.c.b16 %v3214, %v3206
    %v5759 = vpack.c.b16 %v3215, %v3207
    %v5760 = vpack.c.b16 %v3216, %v3208
    %v5761 = vpack.c.b16 %v3217, %v3209
    %v5762 = vpack.c.b16 %v3218, %v3210
    %v5763 = vpack.c.b16 %v3219, %v3211
    %v5764 = vpack.c.b16 %v3228, %v3220
    %v5765 = vpack.c.b16 %v3229, %v3221
    %v5766 = vpack.c.b16 %v3230, %v3222
    %v5767 = vpack.c.b16 %v3231, %v3223
    %v5768 = vpack.c.b16 %v3232, %v3224
    %v5769 = vpack.c.b16 %v3233, %v3225
    %v5770 = vpack.c.b16 %v3234, %v3226
    %v5771 = vpack.c.b16 %v3235, %v3227
    %v5772 = vpack.c.b16 %v3244, %v3236
    %v5773 = vpack.c.b16 %v3245, %v3237
    %v5774 = vpack.c.b16 %v3246, %v3238
    %v5775 = vpack.c.b16 %v3247, %v3239
    %v5776 = vpack.c.b16 %v3248, %v3240
    %v5777 = vpack.c.b16 %v3249, %v3241
    %v5778 = vpack.c.b16 %v3250, %v3242
    %v5779 = vpack.c.b16 %v3251, %v3243
    %v5780 = vpack.c.b16 %v3260, %v3252
    %v5781 = vpack.c.b16 %v3261, %v3253
    %v5782 = vpack.c.b16 %v3262, %v3254
    %v5783 = vpack.c.b16 %v3263, %v3255
    %v5784 = vpack.c.b16 %v3264, %v3256
    %v5785 = vpack.c.b16 %v3265, %v3257
    %v5786 = vpack.c.b16 %v3266, %v3258
    %v5787 = vpack.c.b16 %v3267, %v3259
    %v5788 = vpack.c.b16 %v3276, %v3268
    %v5789 = vpack.c.b16 %v3277, %v3269
    %v5790 = vpack.c.b16 %v3278, %v3270
    %v5791 = vpack.c.b16 %v3279, %v3271
    %v5792 = vpack.c.b16 %v3280, %v3272
    %v5793 = vpack.c.b16 %v3281, %v3273
    %v5794 = vpack.c.b16 %v3282, %v3274
    %v5795 = vpack.c.b16 %v3283, %v3275
    %v5796 = vpack.c.b16 %v3292, %v3284
    %v5797 = vpack.c.b16 %v3293, %v3285
    %v5798 = vpack.c.b16 %v3294, %v3286
    %v5799 = vpack.c.b16 %v3295, %v3287
    %v5800 = vpack.c.b16 %v3296, %v3288
    %v5801 = vpack.c.b16 %v3297, %v3289
    %v5802 = vpack.c.b16 %v3298, %v3290
    %v5803 = vpack.c.b16 %v3299, %v3291
    %v5804 = vpack.c.b16 %v3308, %v3300
    %v5805 = vpack.c.b16 %v3309, %v3301
    %v5806 = vpack.c.b16 %v3310, %v3302
    %v5807 = vpack.c.b16 %v3311, %v3303
    %v5808 = vpack.c.b16 %v3312, %v3304
    %v5809 = vpack.c.b16 %v3313, %v3305
    %v5810 = vpack.c.b16 %v3314, %v3306
    %v5811 = vpack.c.b16 %v3315, %v3307
    %v5812 = vpack.c.b16 %v3324, %v3316
    %v5813 = vpack.c.b16 %v3325, %v3317
    %v5814 = vpack.c.b16 %v3326, %v3318
    %v5815 = vpack.c.b16 %v3327, %v3319
    %v5816 = vpack.c.b16 %v3328, %v3320
    %v5817 = vpack.c.b16 %v3329, %v3321
    %v5818 = vpack.c.b16 %v3330, %v3322
    %v5819 = vpack.c.b16 %v3331, %v3323
    %v5820 = vpack.c.b16 %v3340, %v3332
    %v5821 = vpack.c.b16 %v3341, %v3333
    %v5822 = vpack.c.b16 %v3342, %v3334
    %v5823 = vpack.c.b16 %v3343, %v3335
    %v5824 = vpack.c.b16 %v3344, %v3336
    %v5825 = vpack.c.b16 %v3345, %v3337
    %v5826 = vpack.c.b16 %v3346, %v3338
    %v5827 = vpack.c.b16 %v3347, %v3339
    %v5828 = vpack.c.b16 %v3356, %v3348
    %v5829 = vpack.c.b16 %v3357, %v3349
    %v5830 = vpack.c.b16 %v3358, %v3350
    %v5831 = vpack.c.b16 %v3359, %v3351
    %v5832 = vpack.c.b16 %v3360, %v3352
    %v5833 = vpack.c.b16 %v3361, %v3353
    %v5834 = vpack.c.b16 %v3362, %v3354
    %v5835 = vpack.c.b16 %v3363, %v3355
    %v5836 = vpack.c.b16 %v3372, %v3364
    %v5837 = vpack.c.b16 %v3373, %v3365
    %v5838 = vpack.c.b16 %v3374, %v3366
    %v5839 = vpack.c.b16 %v3375, %v3367
    %v5840 = vpack.c.b16 %v3376, %v3368
    %v5841 = vpack.c.b16 %v3377, %v3369
    %v5842 = vpack.c.b16 %v3378, %v3370
    %v5843 = vpack.c.b16 %v3379, %v3371
    %v5844 = vpack.c.b16 %v3388, %v3380
    %v5845 = vpack.c.b16 %v3389, %v3381
    %v5846 = vpack.c.b16 %v3390, %v3382
    %v5847 = vpack.c.b16 %v3391, %v3383
    %v5848 = vpack.c.b16 %v3392, %v3384
    %v5849 = vpack.c.b16 %v3393, %v3385
    %v5850 = vpack.c.b16 %v3394, %v3386
    %v5851 = vpack.c.b16 %v3395, %v3387
    %v5852 = vpack.c.b16 %v3404, %v3396
    %v5853 = vpack.c.b16 %v3405, %v3397
    %v5854 = vpack.c.b16 %v3406, %v3398
    %v5855 = vpack.c.b16 %v3407, %v3399
    %v5856 = vpack.c.b16 %v3408, %v3400
    %v5857 = vpack.c.b16 %v3409, %v3401
    %v5858 = vpack.c.b16 %v3410, %v3402
    %v5859 = vpack.c.b16 %v3411, %v3403
    %v5860 = vpack.c.b16 %v3420, %v3412
    %v5861 = vpack.c.b16 %v3421, %v3413
    %v5862 = vpack.c.b16 %v3422, %v3414
    %v5863 = vpack.c.b16 %v3423, %v3415
    %v5864 = vpack.c.b16 %v3424, %v3416
    %v5865 = vpack.c.b16 %v3425, %v3417
    %v5866 = vpack.c.b16 %v3426, %v3418
    %v5867 = vpack.c.b16 %v3427, %v3419
    %v5868 = vpack.c.b16 %v3436, %v3428
    %v5869 = vpack.c.b16 %v3437, %v3429
    %v5870 = vpack.c.b16 %v3438, %v3430
    %v5871 = vpack.c.b16 %v3439, %v3431
    %v5872 = vpack.c.b16 %v3440, %v3432
    %v5873 = vpack.c.b16 %v3441, %v3433
    %v5874 = vpack.c.b16 %v3442, %v3434
    %v5875 = vpack.c.b16 %v3443, %v3435
    %v5876 = vpack.c.b16 %v3452, %v3444
    %v5877 = vpack.c.b16 %v3453, %v3445
    %v5878 = vpack.c.b16 %v3454, %v3446
    %v5879 = vpack.c.b16 %v3455, %v3447
    %v5880 = vpack.c.b16 %v3456, %v3448
    %v5881 = vpack.c.b16 %v3457, %v3449
    %v5882 = vpack.c.b16 %v3458, %v3450
    %v5883 = vpack.c.b16 %v3459, %v3451
    %v5884 = vpack.c.b16 %v3468, %v3460
    %v5885 = vpack.c.b16 %v3469, %v3461
    %v5886 = vpack.c.b16 %v3470, %v3462
    %v5887 = vpack.c.b16 %v3471, %v3463
    %v5888 = vpack.c.b16 %v3472, %v3464
    %v5889 = vpack.c.b16 %v3473, %v3465
    %v5890 = vpack.c.b16 %v3474, %v3466
    %v5891 = vpack.c.b16 %v3475, %v3467
    %v5892 = vpack.c.b16 %v3484, %v3476
    %v5893 = vpack.c.b16 %v3485, %v3477
    %v5894 = vpack.c.b16 %v3486, %v3478
    %v5895 = vpack.c.b16 %v3487, %v3479
    %v5896 = vpack.c.b16 %v3488, %v3480
    %v5897 = vpack.c.b16 %v3489, %v3481
    %v5898 = vpack.c.b16 %v3490, %v3482
    %v5899 = vpack.c.b16 %v3491, %v3483
    %v5900 = vpack.c.b16 %v3500, %v3492
    %v5901 = vpack.c.b16 %v3501, %v3493
    %v5902 = vpack.c.b16 %v3502, %v3494
    %v5903 = vpack.c.b16 %v3503, %v3495
    %v5904 = vpack.c.b16 %v3504, %v3496
    %v5905 = vpack.c.b16 %v3505, %v3497
    %v5906 = vpack.c.b16 %v3506, %v3498
    %v5907 = vpack.c.b16 %v3507, %v3499
    %v5908 = vpack.c.b16 %v3516, %v3508
    %v5909 = vpack.c.b16 %v3517, %v3509
    %v5910 = vpack.c.b16 %v3518, %v3510
    %v5911 = vpack.c.b16 %v3519, %v3511
    %v5912 = vpack.c.b16 %v3520, %v3512
    %v5913 = vpack.c.b16 %v3521, %v3513
    %v5914 = vpack.c.b16 %v3522, %v3514
    %v5915 = vpack.c.b16 %v3523, %v3515
    %v5916 = vpack.c.b16 %v3532, %v3524
    %v5917 = vpack.c.b16 %v3533, %v3525
    %v5918 = vpack.c.b16 %v3534, %v3526
    %v5919 = vpack.c.b16 %v3535, %v3527
    %v5920 = vpack.c.b16 %v3536, %v3528
    %v5921 = vpack.c.b16 %v3537, %v3529
    %v5922 = vpack.c.b16 %v3538, %v3530
    %v5923 = vpack.c.b16 %v3539, %v3531
    %v5924 = vpack.c.b16 %v3548, %v3540
    %v5925 = vpack.c.b16 %v3549, %v3541
    %v5926 = vpack.c.b16 %v3550, %v3542
    %v5927 = vpack.c.b16 %v3551, %v3543
    %v5928 = vpack.c.b16 %v3552, %v3544
    %v5929 = vpack.c.b16 %v3553, %v3545
    %v5930 = vpack.c.b16 %v3554, %v3546
    %v5931 = vpack.c.b16 %v3555, %v3547
    %v5932 = vpack.c.b16 %v3564, %v3556
    %v5933 = vpack.c.b16 %v3565, %v3557
    %v5934 = vpack.c.b16 %v3566, %v3558
    %v5935 = vpack.c.b16 %v3567, %v3559
    %v5936 = vpack.c.b16 %v3568, %v3560
    %v5937 = vpack.c.b16 %v3569, %v3561
    %v5938 = vpack.c.b16 %v3570, %v3562
    %v5939 = vpack.c.b16 %v3571, %v3563
    %v5940 = vpack.c.b16 %v3580, %v3572
    %v5941 = vpack.c.b16 %v3581, %v3573
    %v5942 = vpack.c.b16 %v3582, %v3574
    %v5943 = vpack.c.b16 %v3583, %v3575
    %v5944 = vpack.c.b16 %v3584, %v3576
    %v5945 = vpack.c.b16 %v3585, %v3577
    %v5946 = vpack.c.b16 %v3586, %v3578
    %v5947 = vpack.c.b16 %v3587, %v3579
    %v5948 = vpack.c.b16 %v3596, %v3588
    %v5949 = vpack.c.b16 %v3597, %v3589
    %v5950 = vpack.c.b16 %v3598, %v3590
    %v5951 = vpack.c.b16 %v3599, %v3591
    %v5952 = vpack.c.b16 %v3600, %v3592
    %v5953 = vpack.c.b16 %v3601, %v3593
    %v5954 = vpack.c.b16 %v3602, %v3594
    %v5955 = vpack.c.b16 %v3603, %v3595
    %v5956 = vpack.c.b16 %v3612, %v3604
    %v5957 = vpack.c.b16 %v3613, %v3605
    %v5958 = vpack.c.b16 %v3614, %v3606
    %v5959 = vpack.c.b16 %v3615, %v3607
    %v5960 = vpack.c.b16 %v3616, %v3608
    %v5961 = vpack.c.b16 %v3617, %v3609
    %v5962 = vpack.c.b16 %v3618, %v3610
    %v5963 = vpack.c.b16 %v3619, %v3611
    %v5964 = vpack.c.b16 %v3628, %v3620
    %v5965 = vpack.c.b16 %v3629, %v3621
    %v5966 = vpack.c.b16 %v3630, %v3622
    %v5967 = vpack.c.b16 %v3631, %v3623
    %v5968 = vpack.c.b16 %v3632, %v3624
    %v5969 = vpack.c.b16 %v3633, %v3625
    %v5970 = vpack.c.b16 %v3634, %v3626
    %v5971 = vpack.c.b16 %v3635, %v3627
    %v5972 = vpack.c.b16 %v3644, %v3636
    %v5973 = vpack.c.b16 %v3645, %v3637
    %v5974 = vpack.c.b16 %v3646, %v3638
    %v5975 = vpack.c.b16 %v3647, %v3639
    %v5976 = vpack.c.b16 %v3648, %v3640
    %v5977 = vpack.c.b16 %v3649, %v3641
    %v5978 = vpack.c.b16 %v3650, %v3642
    %v5979 = vpack.c.b16 %v3651, %v3643
    %v5980 = vpack.c.b16 %v3660, %v3652
    %v5981 = vpack.c.b16 %v3661, %v3653
    %v5982 = vpack.c.b16 %v3662, %v3654
    %v5983 = vpack.c.b16 %v3663, %v3655
    %v5984 = vpack.c.b16 %v3664, %v3656
    %v5985 = vpack.c.b16 %v3665, %v3657
    %v5986 = vpack.c.b16 %v3666, %v3658
    %v5987 = vpack.c.b16 %v3667, %v3659
    %v5988 = vpack.c.b16 %v3676, %v3668
    %v5989 = vpack.c.b16 %v3677, %v3669
    %v5990 = vpack.c.b16 %v3678, %v3670
    %v5991 = vpack.c.b16 %v3679, %v3671
    %v5992 = vpack.c.b16 %v3680, %v3672
    %v5993 = vpack.c.b16 %v3681, %v3673
    %v5994 = vpack.c.b16 %v3682, %v3674
    %v5995 = vpack.c.b16 %v3683, %v3675
    %v5996 = vpack.c.b16 %v3692, %v3684
    %v5997 = vpack.c.b16 %v3693, %v3685
    %v5998 = vpack.c.b16 %v3694, %v3686
    %v5999 = vpack.c.b16 %v3695, %v3687
    %v6000 = vpack.c.b16 %v3696, %v3688
    %v6001 = vpack.c.b16 %v3697, %v3689
    %v6002 = vpack.c.b16 %v3698, %v3690
    %v6003 = vpack.c.b16 %v3699, %v3691
    %v6004 = vpack.c.b16 %v3708, %v3700
    %v6005 = vpack.c.b16 %v3709, %v3701
    %v6006 = vpack.c.b16 %v3710, %v3702
    %v6007 = vpack.c.b16 %v3711, %v3703
    %v6008 = vpack.c.b16 %v3712, %v3704
    %v6009 = vpack.c.b16 %v3713, %v3705
    %v6010 = vpack.c.b16 %v3714, %v3706
    %v6011 = vpack.c.b16 %v3715, %v3707
    %v6012 = vpack.c.b16 %v3724, %v3716
    %v6013 = vpack.c.b16 %v3725, %v3717
    %v6014 = vpack.c.b16 %v3726, %v3718
    %v6015 = vpack.c.b16 %v3727, %v3719
    %v6016 = vpack.c.b16 %v3728, %v3720
    %v6017 = vpack.c.b16 %v3729, %v3721
    %v6018 = vpack.c.b16 %v3730, %v3722
    %v6019 = vpack.c.b16 %v3731, %v3723
    %v6020 = vpack.c.b16 %v3740, %v3732
    %v6021 = vpack.c.b16 %v3741, %v3733
    %v6022 = vpack.c.b16 %v3742, %v3734
    %v6023 = vpack.c.b16 %v3743, %v3735
    %v6024 = vpack.c.b16 %v3744, %v3736
    %v6025 = vpack.c.b16 %v3745, %v3737
    %v6026 = vpack.c.b16 %v3746, %v3738
    %v6027 = vpack.c.b16 %v3747, %v3739
    %v6028 = vpack.c.b16 %v3756, %v3748
    %v6029 = vpack.c.b16 %v3757, %v3749
    %v6030 = vpack.c.b16 %v3758, %v3750
    %v6031 = vpack.c.b16 %v3759, %v3751
    %v6032 = vpack.c.b16 %v3760, %v3752
    %v6033 = vpack.c.b16 %v3761, %v3753
    %v6034 = vpack.c.b16 %v3762, %v3754
    %v6035 = vpack.c.b16 %v3763, %v3755
    %v6036 = vpack.c.b16 %v3772, %v3764
    %v6037 = vpack.c.b16 %v3773, %v3765
    %v6038 = vpack.c.b16 %v3774, %v3766
    %v6039 = vpack.c.b16 %v3775, %v3767
    %v6040 = vpack.c.b16 %v3776, %v3768
    %v6041 = vpack.c.b16 %v3777, %v3769
    %v6042 = vpack.c.b16 %v3778, %v3770
    %v6043 = vpack.c.b16 %v3779, %v3771
    %v6044 = vpack.c.b16 %v3788, %v3780
    %v6045 = vpack.c.b16 %v3789, %v3781
    %v6046 = vpack.c.b16 %v3790, %v3782
    %v6047 = vpack.c.b16 %v3791, %v3783
    %v6048 = vpack.c.b16 %v3792, %v3784
    %v6049 = vpack.c.b16 %v3793, %v3785
    %v6050 = vpack.c.b16 %v3794, %v3786
    %v6051 = vpack.c.b16 %v3795, %v3787
    %v6052 = vpack.c.b16 %v3804, %v3796
    %v6053 = vpack.c.b16 %v3805, %v3797
    %v6054 = vpack.c.b16 %v3806, %v3798
    %v6055 = vpack.c.b16 %v3807, %v3799
    %v6056 = vpack.c.b16 %v3808, %v3800
    %v6057 = vpack.c.b16 %v3809, %v3801
    %v6058 = vpack.c.b16 %v3810, %v3802
    %v6059 = vpack.c.b16 %v3811, %v3803
    %v6060 = vpack.c.b16 %v3820, %v3812
    %v6061 = vpack.c.b16 %v3821, %v3813
    %v6062 = vpack.c.b16 %v3822, %v3814
    %v6063 = vpack.c.b16 %v3823, %v3815
    %v6064 = vpack.c.b16 %v3824, %v3816
    %v6065 = vpack.c.b16 %v3825, %v3817
    %v6066 = vpack.c.b16 %v3826, %v3818
    %v6067 = vpack.c.b16 %v3827, %v3819
    %v6068 = vpack.c.b16 %v3836, %v3828
    %v6069 = vpack.c.b16 %v3837, %v3829
    %v6070 = vpack.c.b16 %v3838, %v3830
    %v6071 = vpack.c.b16 %v3839, %v3831
    %v6072 = vpack.c.b16 %v3840, %v3832
    %v6073 = vpack.c.b16 %v3841, %v3833
    %v6074 = vpack.c.b16 %v3842, %v3834
    %v6075 = vpack.c.b16 %v3843, %v3835
    %v6076 = vpack.c.b16 %v3852, %v3844
    %v6077 = vpack.c.b16 %v3853, %v3845
    %v6078 = vpack.c.b16 %v3854, %v3846
    %v6079 = vpack.c.b16 %v3855, %v3847
    %v6080 = vpack.c.b16 %v3856, %v3848
    %v6081 = vpack.c.b16 %v3857, %v3849
    %v6082 = vpack.c.b16 %v3858, %v3850
    %v6083 = vpack.c.b16 %v3859, %v3851
    %v6084 = vpack.c.b16 %v3868, %v3860
    %v6085 = vpack.c.b16 %v3869, %v3861
    %v6086 = vpack.c.b16 %v3870, %v3862
    %v6087 = vpack.c.b16 %v3871, %v3863
    %v6088 = vpack.c.b16 %v3872, %v3864
    %v6089 = vpack.c.b16 %v3873, %v3865
    %v6090 = vpack.c.b16 %v3874, %v3866
    %v6091 = vpack.c.b16 %v3875, %v3867
    %v6092 = vpack.c.b16 %v3884, %v3876
    %v6093 = vpack.c.b16 %v3885, %v3877
    %v6094 = vpack.c.b16 %v3886, %v3878
    %v6095 = vpack.c.b16 %v3887, %v3879
    %v6096 = vpack.c.b16 %v3888, %v3880
    %v6097 = vpack.c.b16 %v3889, %v3881
    %v6098 = vpack.c.b16 %v3890, %v3882
    %v6099 = vpack.c.b16 %v3891, %v3883
    %v6100 = vpack.c.b16 %v3900, %v3892
    %v6101 = vpack.c.b16 %v3901, %v3893
    %v6102 = vpack.c.b16 %v3902, %v3894
    %v6103 = vpack.c.b16 %v3903, %v3895
    %v6104 = vpack.c.b16 %v3904, %v3896
    %v6105 = vpack.c.b16 %v3905, %v3897
    %v6106 = vpack.c.b16 %v3906, %v3898
    %v6107 = vpack.c.b16 %v3907, %v3899
    %v6108 = vpack.c.b16 %v3916, %v3908
    %v6109 = vpack.c.b16 %v3917, %v3909
    %v6110 = vpack.c.b16 %v3918, %v3910
    %v6111 = vpack.c.b16 %v3919, %v3911
    %v6112 = vpack.c.b16 %v3920, %v3912
    %v6113 = vpack.c.b16 %v3921, %v3913
    %v6114 = vpack.c.b16 %v3922, %v3914
    %v6115 = vpack.c.b16 %v3923, %v3915
    %v6116 = vpack.c.b16 %v3932, %v3924
    %v6117 = vpack.c.b16 %v3933, %v3925
    %v6118 = vpack.c.b16 %v3934, %v3926
    %v6119 = vpack.c.b16 %v3935, %v3927
    %v6120 = vpack.c.b16 %v3936, %v3928
    %v6121 = vpack.c.b16 %v3937, %v3929
    %v6122 = vpack.c.b16 %v3938, %v3930
    %v6123 = vpack.c.b16 %v3939, %v3931
    %v6124 = vpack.c.b16 %v3948, %v3940
    %v6125 = vpack.c.b16 %v3949, %v3941
    %v6126 = vpack.c.b16 %v3950, %v3942
    %v6127 = vpack.c.b16 %v3951, %v3943
    %v6128 = vpack.c.b16 %v3952, %v3944
    %v6129 = vpack.c.b16 %v3953, %v3945
    %v6130 = vpack.c.b16 %v3954, %v3946
    %v6131 = vpack.c.b16 %v3955, %v3947
    %v6132 = vpack.c.b16 %v3964, %v3956
    %v6133 = vpack.c.b16 %v3965, %v3957
    %v6134 = vpack.c.b16 %v3966, %v3958
    %v6135 = vpack.c.b16 %v3967, %v3959
    %v6136 = vpack.c.b16 %v3968, %v3960
    %v6137 = vpack.c.b16 %v3969, %v3961
    %v6138 = vpack.c.b16 %v3970, %v3962
    %v6139 = vpack.c.b16 %v3971, %v3963
    %v6140 = vpack.c.b16 %v3980, %v3972
    %v6141 = vpack.c.b16 %v3981, %v3973
    %v6142 = vpack.c.b16 %v3982, %v3974
    %v6143 = vpack.c.b16 %v3983, %v3975
    %v6144 = vpack.c.b16 %v3984, %v3976
    %v6145 = vpack.c.b16 %v3985, %v3977
    %v6146 = vpack.c.b16 %v3986, %v3978
    %v6147 = vpack.c.b16 %v3987, %v3979
    %v6148 = vpack.c.b16 %v3996, %v3988
    %v6149 = vpack.c.b16 %v3997, %v3989
    %v6150 = vpack.c.b16 %v3998, %v3990
    %v6151 = vpack.c.b16 %v3999, %v3991
    %v6152 = vpack.c.b16 %v4000, %v3992
    %v6153 = vpack.c.b16 %v4001, %v3993
    %v6154 = vpack.c.b16 %v4002, %v3994
    %v6155 = vpack.c.b16 %v4003, %v3995
    %v6156 = vpack.c.b16 %v4012, %v4004
    %v6157 = vpack.c.b16 %v4013, %v4005
    %v6158 = vpack.c.b16 %v4014, %v4006
    %v6159 = vpack.c.b16 %v4015, %v4007
    %v6160 = vpack.c.b16 %v4016, %v4008
    %v6161 = vpack.c.b16 %v4017, %v4009
    %v6162 = vpack.c.b16 %v4018, %v4010
    %v6163 = vpack.c.b16 %v4019, %v4011
    %v6164 = vpack.c.b16 %v4028, %v4020
    %v6165 = vpack.c.b16 %v4029, %v4021
    %v6166 = vpack.c.b16 %v4030, %v4022
    %v6167 = vpack.c.b16 %v4031, %v4023
    %v6168 = vpack.c.b16 %v4032, %v4024
    %v6169 = vpack.c.b16 %v4033, %v4025
    %v6170 = vpack.c.b16 %v4034, %v4026
    %v6171 = vpack.c.b16 %v4035, %v4027
    %v6172 = vpack.c.b16 %v4044, %v4036
    %v6173 = vpack.c.b16 %v4045, %v4037
    %v6174 = vpack.c.b16 %v4046, %v4038
    %v6175 = vpack.c.b16 %v4047, %v4039
    %v6176 = vpack.c.b16 %v4048, %v4040
    %v6177 = vpack.c.b16 %v4049, %v4041
    %v6178 = vpack.c.b16 %v4050, %v4042
    %v6179 = vpack.c.b16 %v4051, %v4043
    %v6180 = vpack.c.b16 %v4060, %v4052
    %v6181 = vpack.c.b16 %v4061, %v4053
    %v6182 = vpack.c.b16 %v4062, %v4054
    %v6183 = vpack.c.b16 %v4063, %v4055
    %v6184 = vpack.c.b16 %v4064, %v4056
    %v6185 = vpack.c.b16 %v4065, %v4057
    %v6186 = vpack.c.b16 %v4066, %v4058
    %v6187 = vpack.c.b16 %v4067, %v4059
    %v6188 = vpack.c.b16 %v4076, %v4068
    %v6189 = vpack.c.b16 %v4077, %v4069
    %v6190 = vpack.c.b16 %v4078, %v4070
    %v6191 = vpack.c.b16 %v4079, %v4071
    %v6192 = vpack.c.b16 %v4080, %v4072
    %v6193 = vpack.c.b16 %v4081, %v4073
    %v6194 = vpack.c.b16 %v4082, %v4074
    %v6195 = vpack.c.b16 %v4083, %v4075
    %v6196 = vpack.c.b16 %v4092, %v4084
    %v6197 = vpack.c.b16 %v4093, %v4085
    %v6198 = vpack.c.b16 %v4094, %v4086
    %v6199 = vpack.c.b16 %v4095, %v4087
    %v6200 = vpack.c.b16 %v4096, %v4088
    %v6201 = vpack.c.b16 %v4097, %v4089
    %v6202 = vpack.c.b16 %v4098, %v4090
    %v6203 = vpack.c.b16 %v4099, %v4091
    %v6204 = vpack.c.b16 %v4108, %v4100
    %v6205 = vpack.c.b16 %v4109, %v4101
    %v6206 = vpack.c.b16 %v4110, %v4102
    %v6207 = vpack.c.b16 %v4111, %v4103
    %v6208 = vpack.c.b16 %v4112, %v4104
    %v6209 = vpack.c.b16 %v4113, %v4105
    %v6210 = vpack.c.b16 %v4114, %v4106
    %v6211 = vpack.c.b16 %v4115, %v4107
    %v6212 = vpack.c.b16 %v4124, %v4116
    %v6213 = vpack.c.b16 %v4125, %v4117
    %v6214 = vpack.c.b16 %v4126, %v4118
    %v6215 = vpack.c.b16 %v4127, %v4119
    %v6216 = vpack.c.b16 %v4128, %v4120
    %v6217 = vpack.c.b16 %v4129, %v4121
    %v6218 = vpack.c.b16 %v4130, %v4122
    %v6219 = vpack.c.b16 %v4131, %v4123
    %v6220 = vpack.c.b16 %v4140, %v4132
    %v6221 = vpack.c.b16 %v4141, %v4133
    %v6222 = vpack.c.b16 %v4142, %v4134
    %v6223 = vpack.c.b16 %v4143, %v4135
    %v6224 = vpack.c.b16 %v4144, %v4136
    %v6225 = vpack.c.b16 %v4145, %v4137
    %v6226 = vpack.c.b16 %v4146, %v4138
    %v6227 = vpack.c.b16 %v4147, %v4139
    %v6228 = vpack.c.b16 %v4156, %v4148
    %v6229 = vpack.c.b16 %v4157, %v4149
    %v6230 = vpack.c.b16 %v4158, %v4150
    %v6231 = vpack.c.b16 %v4159, %v4151
    %v6232 = vpack.c.b16 %v4160, %v4152
    %v6233 = vpack.c.b16 %v4161, %v4153
    %v6234 = vpack.c.b16 %v4162, %v4154
    %v6235 = vpack.c.b16 %v4163, %v4155
    %v6236 = vpack.c.b16 %v4172, %v4164
    %v6237 = vpack.c.b16 %v4173, %v4165
    %v6238 = vpack.c.b16 %v4174, %v4166
    %v6239 = vpack.c.b16 %v4175, %v4167
    %v6240 = vpack.c.b16 %v4176, %v4168
    %v6241 = vpack.c.b16 %v4177, %v4169
    %v6242 = vpack.c.b16 %v4178, %v4170
    %v6243 = vpack.c.b16 %v4179, %v4171
    %v6244 = vpack.c.b16 %v4188, %v4180
    %v6245 = vpack.c.b16 %v4189, %v4181
    %v6246 = vpack.c.b16 %v4190, %v4182
    %v6247 = vpack.c.b16 %v4191, %v4183
    %v6248 = vpack.c.b16 %v4192, %v4184
    %v6249 = vpack.c.b16 %v4193, %v4185
    %v6250 = vpack.c.b16 %v4194, %v4186
    %v6251 = vpack.c.b16 %v4195, %v4187
    %v6252 = vpack.c.b16 %v4204, %v4196
    %v6253 = vpack.c.b16 %v4205, %v4197
    %v6254 = vpack.c.b16 %v4206, %v4198
    %v6255 = vpack.c.b16 %v4207, %v4199
    %v6256 = vpack.c.b16 %v4208, %v4200
    %v6257 = vpack.c.b16 %v4209, %v4201
    %v6258 = vpack.c.b16 %v4210, %v4202
    %v6259 = vpack.c.b16 %v4211, %v4203
    %v6260 = vpack.c.b16 %v4220, %v4212
    %v6261 = vpack.c.b16 %v4221, %v4213
    %v6262 = vpack.c.b16 %v4222, %v4214
    %v6263 = vpack.c.b16 %v4223, %v4215
    %v6264 = vpack.c.b16 %v4224, %v4216
    %v6265 = vpack.c.b16 %v4225, %v4217
    %v6266 = vpack.c.b16 %v4226, %v4218
    %v6267 = vpack.c.b16 %v4227, %v4219
    %v6268 = vpack.c.b16 %v4236, %v4228
    %v6269 = vpack.c.b16 %v4237, %v4229
    %v6270 = vpack.c.b16 %v4238, %v4230
    %v6271 = vpack.c.b16 %v4239, %v4231
    %v6272 = vpack.c.b16 %v4240, %v4232
    %v6273 = vpack.c.b16 %v4241, %v4233
    %v6274 = vpack.c.b16 %v4242, %v4234
    %v6275 = vpack.c.b16 %v4243, %v4235
    %v6276 = vpack.c.b16 %v4252, %v4244
    %v6277 = vpack.c.b16 %v4253, %v4245
    %v6278 = vpack.c.b16 %v4254, %v4246
    %v6279 = vpack.c.b16 %v4255, %v4247
    %v6280 = vpack.c.b16 %v4256, %v4248
    %v6281 = vpack.c.b16 %v4257, %v4249
    %v6282 = vpack.c.b16 %v4258, %v4250
    %v6283 = vpack.c.b16 %v4259, %v4251
    %v6284 = vpack.c.b16 %v4268, %v4260
    %v6285 = vpack.c.b16 %v4269, %v4261
    %v6286 = vpack.c.b16 %v4270, %v4262
    %v6287 = vpack.c.b16 %v4271, %v4263
    %v6288 = vpack.c.b16 %v4272, %v4264
    %v6289 = vpack.c.b16 %v4273, %v4265
    %v6290 = vpack.c.b16 %v4274, %v4266
    %v6291 = vpack.c.b16 %v4275, %v4267
    %v6292 = vpack.c.b16 %v4284, %v4276
    %v6293 = vpack.c.b16 %v4285, %v4277
    %v6294 = vpack.c.b16 %v4286, %v4278
    %v6295 = vpack.c.b16 %v4287, %v4279
    %v6296 = vpack.c.b16 %v4288, %v4280
    %v6297 = vpack.c.b16 %v4289, %v4281
    %v6298 = vpack.c.b16 %v4290, %v4282
    %v6299 = vpack.c.b16 %v4291, %v4283
    %v6300 = vpack.c.b16 %v4300, %v4292
    %v6301 = vpack.c.b16 %v4301, %v4293
    %v6302 = vpack.c.b16 %v4302, %v4294
    %v6303 = vpack.c.b16 %v4303, %v4295
    %v6304 = vpack.c.b16 %v4304, %v4296
    %v6305 = vpack.c.b16 %v4305, %v4297
    %v6306 = vpack.c.b16 %v4306, %v4298
    %v6307 = vpack.c.b16 %v4307, %v4299
    %v6308 = vpack.c.b16 %v4316, %v4308
    %v6309 = vpack.c.b16 %v4317, %v4309
    %v6310 = vpack.c.b16 %v4318, %v4310
    %v6311 = vpack.c.b16 %v4319, %v4311
    %v6312 = vpack.c.b16 %v4320, %v4312
    %v6313 = vpack.c.b16 %v4321, %v4313
    %v6314 = vpack.c.b16 %v4322, %v4314
    %v6315 = vpack.c.b16 %v4323, %v4315
    %v6316 = vpack.c.b16 %v4332, %v4324
    %v6317 = vpack.c.b16 %v4333, %v4325
    %v6318 = vpack.c.b16 %v4334, %v4326
    %v6319 = vpack.c.b16 %v4335, %v4327
    %v6320 = vpack.c.b16 %v4336, %v4328
    %v6321 = vpack.c.b16 %v4337, %v4329
    %v6322 = vpack.c.b16 %v4338, %v4330
    %v6323 = vpack.c.b16 %v4339, %v4331
    %v6324 = vpack.c.b16 %v4348, %v4340
    %v6325 = vpack.c.b16 %v4349, %v4341
    %v6326 = vpack.c.b16 %v4350, %v4342
    %v6327 = vpack.c.b16 %v4351, %v4343
    %v6328 = vpack.c.b16 %v4352, %v4344
    %v6329 = vpack.c.b16 %v4353, %v4345
    %v6330 = vpack.c.b16 %v4354, %v4346
    %v6331 = vpack.c.b16 %v4355, %v4347
    %v6332 = vpack.c.b16 %v4364, %v4356
    %v6333 = vpack.c.b16 %v4365, %v4357
    %v6334 = vpack.c.b16 %v4366, %v4358
    %v6335 = vpack.c.b16 %v4367, %v4359
    %v6336 = vpack.c.b16 %v4368, %v4360
    %v6337 = vpack.c.b16 %v4369, %v4361
    %v6338 = vpack.c.b16 %v4370, %v4362
    %v6339 = vpack.c.b16 %v4371, %v4363
    %v6340 = vpack.c.b16 %v4380, %v4372
    %v6341 = vpack.c.b16 %v4381, %v4373
    %v6342 = vpack.c.b16 %v4382, %v4374
    %v6343 = vpack.c.b16 %v4383, %v4375
    %v6344 = vpack.c.b16 %v4384, %v4376
    %v6345 = vpack.c.b16 %v4385, %v4377
    %v6346 = vpack.c.b16 %v4386, %v4378
    %v6347 = vpack.c.b16 %v4387, %v4379
    %v6348 = vpack.c.b16 %v4396, %v4388
    %v6349 = vpack.c.b16 %v4397, %v4389
    %v6350 = vpack.c.b16 %v4398, %v4390
    %v6351 = vpack.c.b16 %v4399, %v4391
    %v6352 = vpack.c.b16 %v4400, %v4392
    %v6353 = vpack.c.b16 %v4401, %v4393
    %v6354 = vpack.c.b16 %v4402, %v4394
    %v6355 = vpack.c.b16 %v4403, %v4395
    %v6356 = vpack.c.b16 %v4412, %v4404
    %v6357 = vpack.c.b16 %v4413, %v4405
    %v6358 = vpack.c.b16 %v4414, %v4406
    %v6359 = vpack.c.b16 %v4415, %v4407
    %v6360 = vpack.c.b16 %v4416, %v4408
    %v6361 = vpack.c.b16 %v4417, %v4409
    %v6362 = vpack.c.b16 %v4418, %v4410
    %v6363 = vpack.c.b16 %v4419, %v4411
    %v6364 = vpack.c.b16 %v4428, %v4420
    %v6365 = vpack.c.b16 %v4429, %v4421
    %v6366 = vpack.c.b16 %v4430, %v4422
    %v6367 = vpack.c.b16 %v4431, %v4423
    %v6368 = vpack.c.b16 %v4432, %v4424
    %v6369 = vpack.c.b16 %v4433, %v4425
    %v6370 = vpack.c.b16 %v4434, %v4426
    %v6371 = vpack.c.b16 %v4435, %v4427
    %v6372 = vpack.c.b16 %v4444, %v4436
    %v6373 = vpack.c.b16 %v4445, %v4437
    %v6374 = vpack.c.b16 %v4446, %v4438
    %v6375 = vpack.c.b16 %v4447, %v4439
    %v6376 = vpack.c.b16 %v4448, %v4440
    %v6377 = vpack.c.b16 %v4449, %v4441
    %v6378 = vpack.c.b16 %v4450, %v4442
    %v6379 = vpack.c.b16 %v4451, %v4443
    %v6380 = vpack.c.b16 %v4460, %v4452
    %v6381 = vpack.c.b16 %v4461, %v4453
    %v6382 = vpack.c.b16 %v4462, %v4454
    %v6383 = vpack.c.b16 %v4463, %v4455
    %v6384 = vpack.c.b16 %v4464, %v4456
    %v6385 = vpack.c.b16 %v4465, %v4457
    %v6386 = vpack.c.b16 %v4466, %v4458
    %v6387 = vpack.c.b16 %v4467, %v4459
    %v6388 = vpack.c.b16 %v4476, %v4468
    %v6389 = vpack.c.b16 %v4477, %v4469
    %v6390 = vpack.c.b16 %v4478, %v4470
    %v6391 = vpack.c.b16 %v4479, %v4471
    %v6392 = vpack.c.b16 %v4480, %v4472
    %v6393 = vpack.c.b16 %v4481, %v4473
    %v6394 = vpack.c.b16 %v4482, %v4474
    %v6395 = vpack.c.b16 %v4483, %v4475
    %v6396 = vpack.c.b16 %v4492, %v4484
    %v6397 = vpack.c.b16 %v4493, %v4485
    %v6398 = vpack.c.b16 %v4494, %v4486
    %v6399 = vpack.c.b16 %v4495, %v4487
    %v6400 = vpack.c.b16 %v4496, %v4488
    %v6401 = vpack.c.b16 %v4497, %v4489
    %v6402 = vpack.c.b16 %v4498, %v4490
    %v6403 = vpack.c.b16 %v4499, %v4491
    %v6404 = vpack.c.b16 %v4508, %v4500
    %v6405 = vpack.c.b16 %v4509, %v4501
    %v6406 = vpack.c.b16 %v4510, %v4502
    %v6407 = vpack.c.b16 %v4511, %v4503
    %v6408 = vpack.c.b16 %v4512, %v4504
    %v6409 = vpack.c.b16 %v4513, %v4505
    %v6410 = vpack.c.b16 %v4514, %v4506
    %v6411 = vpack.c.b16 %v4515, %v4507
    %v6412 = vpack.c.b16 %v4524, %v4516
    %v6413 = vpack.c.b16 %v4525, %v4517
    %v6414 = vpack.c.b16 %v4526, %v4518
    %v6415 = vpack.c.b16 %v4527, %v4519
    %v6416 = vpack.c.b16 %v4528, %v4520
    %v6417 = vpack.c.b16 %v4529, %v4521
    %v6418 = vpack.c.b16 %v4530, %v4522
    %v6419 = vpack.c.b16 %v4531, %v4523
    %v6420 = vpack.c.b16 %v4540, %v4532
    %v6421 = vpack.c.b16 %v4541, %v4533
    %v6422 = vpack.c.b16 %v4542, %v4534
    %v6423 = vpack.c.b16 %v4543, %v4535
    %v6424 = vpack.c.b16 %v4544, %v4536
    %v6425 = vpack.c.b16 %v4545, %v4537
    %v6426 = vpack.c.b16 %v4546, %v4538
    %v6427 = vpack.c.b16 %v4547, %v4539
    %v6428 = vpack.c.b16 %v4556, %v4548
    %v6429 = vpack.c.b16 %v4557, %v4549
    %v6430 = vpack.c.b16 %v4558, %v4550
    %v6431 = vpack.c.b16 %v4559, %v4551
    %v6432 = vpack.c.b16 %v4560, %v4552
    %v6433 = vpack.c.b16 %v4561, %v4553
    %v6434 = vpack.c.b16 %v4562, %v4554
    %v6435 = vpack.c.b16 %v4563, %v4555
    %v6436 = vpack.c.b16 %v4572, %v4564
    %v6437 = vpack.c.b16 %v4573, %v4565
    %v6438 = vpack.c.b16 %v4574, %v4566
    %v6439 = vpack.c.b16 %v4575, %v4567
    %v6440 = vpack.c.b16 %v4576, %v4568
    %v6441 = vpack.c.b16 %v4577, %v4569
    %v6442 = vpack.c.b16 %v4578, %v4570
    %v6443 = vpack.c.b16 %v4579, %v4571
    %v6444 = vpack.c.b16 %v4588, %v4580
    %v6445 = vpack.c.b16 %v4589, %v4581
    %v6446 = vpack.c.b16 %v4590, %v4582
    %v6447 = vpack.c.b16 %v4591, %v4583
    %v6448 = vpack.c.b16 %v4592, %v4584
    %v6449 = vpack.c.b16 %v4593, %v4585
    %v6450 = vpack.c.b16 %v4594, %v4586
    %v6451 = vpack.c.b16 %v4595, %v4587
    %v6452 = vpack.c.b16 %v4604, %v4596
    %v6453 = vpack.c.b16 %v4605, %v4597
    %v6454 = vpack.c.b16 %v4606, %v4598
    %v6455 = vpack.c.b16 %v4607, %v4599
    %v6456 = vpack.c.b16 %v4608, %v4600
    %v6457 = vpack.c.b16 %v4609, %v4601
    %v6458 = vpack.c.b16 %v4610, %v4602
    %v6459 = vpack.c.b16 %v4611, %v4603
    %v6460 = vpack.c.b16 %v4620, %v4612
    %v6461 = vpack.c.b16 %v4621, %v4613
    %v6462 = vpack.c.b16 %v4622, %v4614
    %v6463 = vpack.c.b16 %v4623, %v4615
    %v6464 = vpack.c.b16 %v4624, %v4616
    %v6465 = vpack.c.b16 %v4625, %v4617
    %v6466 = vpack.c.b16 %v4626, %v4618
    %v6467 = vpack.c.b16 %v4627, %v4619
    %v6468 = vpack.c.b16 %v4636, %v4628
    %v6469 = vpack.c.b16 %v4637, %v4629
    %v6470 = vpack.c.b16 %v4638, %v4630
    %v6471 = vpack.c.b16 %v4639, %v4631
    %v6472 = vpack.c.b16 %v4640, %v4632
    %v6473 = vpack.c.b16 %v4641, %v4633
    %v6474 = vpack.c.b16 %v4642, %v4634
    %v6475 = vpack.c.b16 %v4643, %v4635
    %v6476 = vpack.c.b16 %v4652, %v4644
    %v6477 = vpack.c.b16 %v4653, %v4645
    %v6478 = vpack.c.b16 %v4654, %v4646
    %v6479 = vpack.c.b16 %v4655, %v4647
    %v6480 = vpack.c.b16 %v4656, %v4648
    %v6481 = vpack.c.b16 %v4657, %v4649
    %v6482 = vpack.c.b16 %v4658, %v4650
    %v6483 = vpack.c.b16 %v4659, %v4651
    %v6484 = vpack.c.b16 %v4668, %v4660
    %v6485 = vpack.c.b16 %v4669, %v4661
    %v6486 = vpack.c.b16 %v4670, %v4662
    %v6487 = vpack.c.b16 %v4671, %v4663
    %v6488 = vpack.c.b16 %v4672, %v4664
    %v6489 = vpack.c.b16 %v4673, %v4665
    %v6490 = vpack.c.b16 %v4674, %v4666
    %v6491 = vpack.c.b16 %v4675, %v4667
    %v6492 = vpack.c.b16 %v4684, %v4676
    %v6493 = vpack.c.b16 %v4685, %v4677
    %v6494 = vpack.c.b16 %v4686, %v4678
    %v6495 = vpack.c.b16 %v4687, %v4679
    %v6496 = vpack.c.b16 %v4688, %v4680
    %v6497 = vpack.c.b16 %v4689, %v4681
    %v6498 = vpack.c.b16 %v4690, %v4682
    %v6499 = vpack.c.b16 %v4691, %v4683
    %v6500 = vpack.c.b16 %v4700, %v4692
    %v6501 = vpack.c.b16 %v4701, %v4693
    %v6502 = vpack.c.b16 %v4702, %v4694
    %v6503 = vpack.c.b16 %v4703, %v4695
    %v6504 = vpack.c.b16 %v4704, %v4696
    %v6505 = vpack.c.b16 %v4705, %v4697
    %v6506 = vpack.c.b16 %v4706, %v4698
    %v6507 = vpack.c.b16 %v4707, %v4699
    %v6508 = vpack.c.b16 %v4716, %v4708
    %v6509 = vpack.c.b16 %v4717, %v4709
    %v6510 = vpack.c.b16 %v4718, %v4710
    %v6511 = vpack.c.b16 %v4719, %v4711
    %v6512 = vpack.c.b16 %v4720, %v4712
    %v6513 = vpack.c.b16 %v4721, %v4713
    %v6514 = vpack.c.b16 %v4722, %v4714
    %v6515 = vpack.c.b16 %v4723, %v4715
    %v6516 = vpack.c.b16 %v4732, %v4724
    %v6517 = vpack.c.b16 %v4733, %v4725
    %v6518 = vpack.c.b16 %v4734, %v4726
    %v6519 = vpack.c.b16 %v4735, %v4727
    %v6520 = vpack.c.b16 %v4736, %v4728
    %v6521 = vpack.c.b16 %v4737, %v4729
    %v6522 = vpack.c.b16 %v4738, %v4730
    %v6523 = vpack.c.b16 %v4739, %v4731
    %v6524 = vpack.c.b16 %v4748, %v4740
    %v6525 = vpack.c.b16 %v4749, %v4741
    %v6526 = vpack.c.b16 %v4750, %v4742
    %v6527 = vpack.c.b16 %v4751, %v4743
    %v6528 = vpack.c.b16 %v4752, %v4744
    %v6529 = vpack.c.b16 %v4753, %v4745
    %v6530 = vpack.c.b16 %v4754, %v4746
    %v6531 = vpack.c.b16 %v4755, %v4747
    %v6532 = vpack.c.b16 %v4764, %v4756
    %v6533 = vpack.c.b16 %v4765, %v4757
    %v6534 = vpack.c.b16 %v4766, %v4758
    %v6535 = vpack.c.b16 %v4767, %v4759
    %v6536 = vpack.c.b16 %v4768, %v4760
    %v6537 = vpack.c.b16 %v4769, %v4761
    %v6538 = vpack.c.b16 %v4770, %v4762
    %v6539 = vpack.c.b16 %v4771, %v4763
    %v6540 = vpack.c.b16 %v4780, %v4772
    %v6541 = vpack.c.b16 %v4781, %v4773
    %v6542 = vpack.c.b16 %v4782, %v4774
    %v6543 = vpack.c.b16 %v4783, %v4775
    %v6544 = vpack.c.b16 %v4784, %v4776
    %v6545 = vpack.c.b16 %v4785, %v4777
    %v6546 = vpack.c.b16 %v4786, %v4778
    %v6547 = vpack.c.b16 %v4787, %v4779
    %v6548 = vpack.c.b16 %v4796, %v4788
    %v6549 = vpack.c.b16 %v4797, %v4789
    %v6550 = vpack.c.b16 %v4798, %v4790
    %v6551 = vpack.c.b16 %v4799, %v4791
    %v6552 = vpack.c.b16 %v4800, %v4792
    %v6553 = vpack.c.b16 %v4801, %v4793
    %v6554 = vpack.c.b16 %v4802, %v4794
    %v6555 = vpack.c.b16 %v4803, %v4795
    %v6556 = vpack.c.b16 %v4812, %v4804
    %v6557 = vpack.c.b16 %v4813, %v4805
    %v6558 = vpack.c.b16 %v4814, %v4806
    %v6559 = vpack.c.b16 %v4815, %v4807
    %v6560 = vpack.c.b16 %v4816, %v4808
    %v6561 = vpack.c.b16 %v4817, %v4809
    %v6562 = vpack.c.b16 %v4818, %v4810
    %v6563 = vpack.c.b16 %v4819, %v4811
    %v6564 = vpack.c.b16 %v4828, %v4820
    %v6565 = vpack.c.b16 %v4829, %v4821
    %v6566 = vpack.c.b16 %v4830, %v4822
    %v6567 = vpack.c.b16 %v4831, %v4823
    %v6568 = vpack.c.b16 %v4832, %v4824
    %v6569 = vpack.c.b16 %v4833, %v4825
    %v6570 = vpack.c.b16 %v4834, %v4826
    %v6571 = vpack.c.b16 %v4835, %v4827
    %v6572 = vpack.c.b16 %v4844, %v4836
    %v6573 = vpack.c.b16 %v4845, %v4837
    %v6574 = vpack.c.b16 %v4846, %v4838
    %v6575 = vpack.c.b16 %v4847, %v4839
    %v6576 = vpack.c.b16 %v4848, %v4840
    %v6577 = vpack.c.b16 %v4849, %v4841
    %v6578 = vpack.c.b16 %v4850, %v4842
    %v6579 = vpack.c.b16 %v4851, %v4843
    %v6580 = vpack.c.b16 %v4860, %v4852
    %v6581 = vpack.c.b16 %v4861, %v4853
    %v6582 = vpack.c.b16 %v4862, %v4854
    %v6583 = vpack.c.b16 %v4863, %v4855
    %v6584 = vpack.c.b16 %v4864, %v4856
    %v6585 = vpack.c.b16 %v4865, %v4857
    %v6586 = vpack.c.b16 %v4866, %v4858
    %v6587 = vpack.c.b16 %v4867, %v4859
    %v6588 = vpack.c.b16 %v4876, %v4868
    %v6589 = vpack.c.b16 %v4877, %v4869
    %v6590 = vpack.c.b16 %v4878, %v4870
    %v6591 = vpack.c.b16 %v4879, %v4871
    %v6592 = vpack.c.b16 %v4880, %v4872
    %v6593 = vpack.c.b16 %v4881, %v4873
    %v6594 = vpack.c.b16 %v4882, %v4874
    %v6595 = vpack.c.b16 %v4883, %v4875
    %v6596 = vpack.c.b16 %v4892, %v4884
    %v6597 = vpack.c.b16 %v4893, %v4885
    %v6598 = vpack.c.b16 %v4894, %v4886
    %v6599 = vpack.c.b16 %v4895, %v4887
    %v6600 = vpack.c.b16 %v4896, %v4888
    %v6601 = vpack.c.b16 %v4897, %v4889
    %v6602 = vpack.c.b16 %v4898, %v4890
    %v6603 = vpack.c.b16 %v4899, %v4891
    %v6604 = vpack.c.b16 %v4908, %v4900
    %v6605 = vpack.c.b16 %v4909, %v4901
    %v6606 = vpack.c.b16 %v4910, %v4902
    %v6607 = vpack.c.b16 %v4911, %v4903
    %v6608 = vpack.c.b16 %v4912, %v4904
    %v6609 = vpack.c.b16 %v4913, %v4905
    %v6610 = vpack.c.b16 %v4914, %v4906
    %v6611 = vpack.c.b16 %v4915, %v4907
    %v6612 = vpack.c.b16 %v4924, %v4916
    %v6613 = vpack.c.b16 %v4925, %v4917
    %v6614 = vpack.c.b16 %v4926, %v4918
    %v6615 = vpack.c.b16 %v4927, %v4919
    %v6616 = vpack.c.b16 %v4928, %v4920
    %v6617 = vpack.c.b16 %v4929, %v4921
    %v6618 = vpack.c.b16 %v4930, %v4922
    %v6619 = vpack.c.b16 %v4931, %v4923
    %v6620 = vpack.c.b16 %v4940, %v4932
    %v6621 = vpack.c.b16 %v4941, %v4933
    %v6622 = vpack.c.b16 %v4942, %v4934
    %v6623 = vpack.c.b16 %v4943, %v4935
    %v6624 = vpack.c.b16 %v4944, %v4936
    %v6625 = vpack.c.b16 %v4945, %v4937
    %v6626 = vpack.c.b16 %v4946, %v4938
    %v6627 = vpack.c.b16 %v4947, %v4939
    %v6628 = vpack.c.b16 %v4956, %v4948
    %v6629 = vpack.c.b16 %v4957, %v4949
    %v6630 = vpack.c.b16 %v4958, %v4950
    %v6631 = vpack.c.b16 %v4959, %v4951
    %v6632 = vpack.c.b16 %v4960, %v4952
    %v6633 = vpack.c.b16 %v4961, %v4953
    %v6634 = vpack.c.b16 %v4962, %v4954
    %v6635 = vpack.c.b16 %v4963, %v4955
    %v6636 = vpack.c.b16 %v4972, %v4964
    %v6637 = vpack.c.b16 %v4973, %v4965
    %v6638 = vpack.c.b16 %v4974, %v4966
    %v6639 = vpack.c.b16 %v4975, %v4967
    %v6640 = vpack.c.b16 %v4976, %v4968
    %v6641 = vpack.c.b16 %v4977, %v4969
    %v6642 = vpack.c.b16 %v4978, %v4970
    %v6643 = vpack.c.b16 %v4979, %v4971
    %v6644 = vpack.c.b16 %v4988, %v4980
    %v6645 = vpack.c.b16 %v4989, %v4981
    %v6646 = vpack.c.b16 %v4990, %v4982
    %v6647 = vpack.c.b16 %v4991, %v4983
    %v6648 = vpack.c.b16 %v4992, %v4984
    %v6649 = vpack.c.b16 %v4993, %v4985
    %v6650 = vpack.c.b16 %v4994, %v4986
    %v6651 = vpack.c.b16 %v4995, %v4987
    %v6652 = vpack.c.b16 %v5004, %v4996
    %v6653 = vpack.c.b16 %v5005, %v4997
    %v6654 = vpack.c.b16 %v5006, %v4998
    %v6655 = vpack.c.b16 %v5007, %v4999
    %v6656 = vpack.c.b16 %v5008, %v5000
    %v6657 = vpack.c.b16 %v5009, %v5001
    %v6658 = vpack.c.b16 %v5010, %v5002
    %v6659 = vpack.c.b16 %v5011, %v5003
    %v6660 = vpack.c.b16 %v5020, %v5012
    %v6661 = vpack.c.b16 %v5021, %v5013
    %v6662 = vpack.c.b16 %v5022, %v5014
    %v6663 = vpack.c.b16 %v5023, %v5015
    %v6664 = vpack.c.b16 %v5024, %v5016
    %v6665 = vpack.c.b16 %v5025, %v5017
    %v6666 = vpack.c.b16 %v5026, %v5018
    %v6667 = vpack.c.b16 %v5027, %v5019
    %v6668 = vpack.c.b16 %v5036, %v5028
    %v6669 = vpack.c.b16 %v5037, %v5029
    %v6670 = vpack.c.b16 %v5038, %v5030
    %v6671 = vpack.c.b16 %v5039, %v5031
    %v6672 = vpack.c.b16 %v5040, %v5032
    %v6673 = vpack.c.b16 %v5041, %v5033
    %v6674 = vpack.c.b16 %v5042, %v5034
    %v6675 = vpack.c.b16 %v5043, %v5035
    %v6676 = vpack.c.b16 %v5052, %v5044
    %v6677 = vpack.c.b16 %v5053, %v5045
    %v6678 = vpack.c.b16 %v5054, %v5046
    %v6679 = vpack.c.b16 %v5055, %v5047
    %v6680 = vpack.c.b16 %v5056, %v5048
    %v6681 = vpack.c.b16 %v5057, %v5049
    %v6682 = vpack.c.b16 %v5058, %v5050
    %v6683 = vpack.c.b16 %v5059, %v5051
    %v6684 = vpack.c.b16 %v5068, %v5060
    %v6685 = vpack.c.b16 %v5069, %v5061
    %v6686 = vpack.c.b16 %v5070, %v5062
    %v6687 = vpack.c.b16 %v5071, %v5063
    %v6688 = vpack.c.b16 %v5072, %v5064
    %v6689 = vpack.c.b16 %v5073, %v5065
    %v6690 = vpack.c.b16 %v5074, %v5066
    %v6691 = vpack.c.b16 %v5075, %v5067
    %v6692 = vpack.c.b16 %v5084, %v5076
    %v6693 = vpack.c.b16 %v5085, %v5077
    %v6694 = vpack.c.b16 %v5086, %v5078
    %v6695 = vpack.c.b16 %v5087, %v5079
    %v6696 = vpack.c.b16 %v5088, %v5080
    %v6697 = vpack.c.b16 %v5089, %v5081
    %v6698 = vpack.c.b16 %v5090, %v5082
    %v6699 = vpack.c.b16 %v5091, %v5083
    %v6700 = vpack.c.b16 %v5100, %v5092
    %v6701 = vpack.c.b16 %v5101, %v5093
    %v6702 = vpack.c.b16 %v5102, %v5094
    %v6703 = vpack.c.b16 %v5103, %v5095
    %v6704 = vpack.c.b16 %v5104, %v5096
    %v6705 = vpack.c.b16 %v5105, %v5097
    %v6706 = vpack.c.b16 %v5106, %v5098
    %v6707 = vpack.c.b16 %v5107, %v5099
    %v6708 = vpack.c.b16 %v5116, %v5108
    %v6709 = vpack.c.b16 %v5117, %v5109
    %v6710 = vpack.c.b16 %v5118, %v5110
    %v6711 = vpack.c.b16 %v5119, %v5111
    %v6712 = vpack.c.b16 %v5120, %v5112
    %v6713 = vpack.c.b16 %v5121, %v5113
    %v6714 = vpack.c.b16 %v5122, %v5114
    %v6715 = vpack.c.b16 %v5123, %v5115
    %v6716 = vpack.c.b16 %v5132, %v5124
    %v6717 = vpack.c.b16 %v5133, %v5125
    %v6718 = vpack.c.b16 %v5134, %v5126
    %v6719 = vpack.c.b16 %v5135, %v5127
    %v6720 = vpack.c.b16 %v5136, %v5128
    %v6721 = vpack.c.b16 %v5137, %v5129
    %v6722 = vpack.c.b16 %v5138, %v5130
    %v6723 = vpack.c.b16 %v5139, %v5131
    %v6724 = vpack.c.b16 %v5148, %v5140
    %v6725 = vpack.c.b16 %v5149, %v5141
    %v6726 = vpack.c.b16 %v5150, %v5142
    %v6727 = vpack.c.b16 %v5151, %v5143
    %v6728 = vpack.c.b16 %v5152, %v5144
    %v6729 = vpack.c.b16 %v5153, %v5145
    %v6730 = vpack.c.b16 %v5154, %v5146
    %v6731 = vpack.c.b16 %v5155, %v5147
    %v6732 = vpack.c.b16 %v5164, %v5156
    %v6733 = vpack.c.b16 %v5165, %v5157
    %v6734 = vpack.c.b16 %v5166, %v5158
    %v6735 = vpack.c.b16 %v5167, %v5159
    %v6736 = vpack.c.b16 %v5168, %v5160
    %v6737 = vpack.c.b16 %v5169, %v5161
    %v6738 = vpack.c.b16 %v5170, %v5162
    %v6739 = vpack.c.b16 %v5171, %v5163
    %v6740 = vpack.c.b16 %v5180, %v5172
    %v6741 = vpack.c.b16 %v5181, %v5173
    %v6742 = vpack.c.b16 %v5182, %v5174
    %v6743 = vpack.c.b16 %v5183, %v5175
    %v6744 = vpack.c.b16 %v5184, %v5176
    %v6745 = vpack.c.b16 %v5185, %v5177
    %v6746 = vpack.c.b16 %v5186, %v5178
    %v6747 = vpack.c.b16 %v5187, %v5179
    %v6748 = vpack.c.b16 %v5196, %v5188
    %v6749 = vpack.c.b16 %v5197, %v5189
    %v6750 = vpack.c.b16 %v5198, %v5190
    %v6751 = vpack.c.b16 %v5199, %v5191
    %v6752 = vpack.c.b16 %v5200, %v5192
    %v6753 = vpack.c.b16 %v5201, %v5193
    %v6754 = vpack.c.b16 %v5202, %v5194
    %v6755 = vpack.c.b16 %v5203, %v5195
    %v6756 = vpack.c.b16 %v5212, %v5204
    %v6757 = vpack.c.b16 %v5213, %v5205
    %v6758 = vpack.c.b16 %v5214, %v5206
    %v6759 = vpack.c.b16 %v5215, %v5207
    %v6760 = vpack.c.b16 %v5216, %v5208
    %v6761 = vpack.c.b16 %v5217, %v5209
    %v6762 = vpack.c.b16 %v5218, %v5210
    %v6763 = vpack.c.b16 %v5219, %v5211
    %v6764 = vpack.c.b16 %v5228, %v5220
    %v6765 = vpack.c.b16 %v5229, %v5221
    %v6766 = vpack.c.b16 %v5230, %v5222
    %v6767 = vpack.c.b16 %v5231, %v5223
    %v6768 = vpack.c.b16 %v5232, %v5224
    %v6769 = vpack.c.b16 %v5233, %v5225
    %v6770 = vpack.c.b16 %v5234, %v5226
    %v6771 = vpack.c.b16 %v5235, %v5227
    %v6772 = vpack.c.b16 %v5244, %v5236
    %v6773 = vpack.c.b16 %v5245, %v5237
    %v6774 = vpack.c.b16 %v5246, %v5238
    %v6775 = vpack.c.b16 %v5247, %v5239
    %v6776 = vpack.c.b16 %v5248, %v5240
    %v6777 = vpack.c.b16 %v5249, %v5241
    %v6778 = vpack.c.b16 %v5250, %v5242
    %v6779 = vpack.c.b16 %v5251, %v5243
    %v6780 = vpack.c.b16 %v5260, %v5252
    %v6781 = vpack.c.b16 %v5261, %v5253
    %v6782 = vpack.c.b16 %v5262, %v5254
    %v6783 = vpack.c.b16 %v5263, %v5255
    %v6784 = vpack.c.b16 %v5264, %v5256
    %v6785 = vpack.c.b16 %v5265, %v5257
    %v6786 = vpack.c.b16 %v5266, %v5258
    %v6787 = vpack.c.b16 %v5267, %v5259
    %v6788 = vpack.c.b16 %v5276, %v5268
    %v6789 = vpack.c.b16 %v5277, %v5269
    %v6790 = vpack.c.b16 %v5278, %v5270
    %v6791 = vpack.c.b16 %v5279, %v5271
    %v6792 = vpack.c.b16 %v5280, %v5272
    %v6793 = vpack.c.b16 %v5281, %v5273
    %v6794 = vpack.c.b16 %v5282, %v5274
    %v6795 = vpack.c.b16 %v5283, %v5275
    %v6796 = vpack.c.b16 %v5292, %v5284
    %v6797 = vpack.c.b16 %v5293, %v5285
    %v6798 = vpack.c.b16 %v5294, %v5286
    %v6799 = vpack.c.b16 %v5295, %v5287
    %v6800 = vpack.c.b16 %v5296, %v5288
    %v6801 = vpack.c.b16 %v5297, %v5289
    %v6802 = vpack.c.b16 %v5298, %v5290
    %v6803 = vpack.c.b16 %v5299, %v5291
    %v6804 = vpack.c.b16 %v5308, %v5300
    %v6805 = vpack.c.b16 %v5309, %v5301
    %v6806 = vpack.c.b16 %v5310, %v5302
    %v6807 = vpack.c.b16 %v5311, %v5303
    %v6808 = vpack.c.b16 %v5312, %v5304
    %v6809 = vpack.c.b16 %v5313, %v5305
    %v6810 = vpack.c.b16 %v5314, %v5306
    %v6811 = vpack.c.b16 %v5315, %v5307
    %v6812 = vpack.c.b16 %v5324, %v5316
    %v6813 = vpack.c.b16 %v5325, %v5317
    %v6814 = vpack.c.b16 %v5326, %v5318
    %v6815 = vpack.c.b16 %v5327, %v5319
    %v6816 = vpack.c.b16 %v5328, %v5320
    %v6817 = vpack.c.b16 %v5329, %v5321
    %v6818 = vpack.c.b16 %v5330, %v5322
    %v6819 = vpack.c.b16 %v5331, %v5323
    %v6820 = vpack.c.b16 %v5340, %v5332
    %v6821 = vpack.c.b16 %v5341, %v5333
    %v6822 = vpack.c.b16 %v5342, %v5334
    %v6823 = vpack.c.b16 %v5343, %v5335
    %v6824 = vpack.c.b16 %v5344, %v5336
    %v6825 = vpack.c.b16 %v5345, %v5337
    %v6826 = vpack.c.b16 %v5346, %v5338
    %v6827 = vpack.c.b16 %v5347, %v5339
    %v6828 = vpack.c.b16 %v5356, %v5348
    %v6829 = vpack.c.b16 %v5357, %v5349
    %v6830 = vpack.c.b16 %v5358, %v5350
    %v6831 = vpack.c.b16 %v5359, %v5351
    %v6832 = vpack.c.b16 %v5360, %v5352
    %v6833 = vpack.c.b16 %v5361, %v5353
    %v6834 = vpack.c.b16 %v5362, %v5354
    %v6835 = vpack.c.b16 %v5363, %v5355
    %v6836 = vpack.c.b16 %v5372, %v5364
    %v6837 = vpack.c.b16 %v5373, %v5365
    %v6838 = vpack.c.b16 %v5374, %v5366
    %v6839 = vpack.c.b16 %v5375, %v5367
    %v6840 = vpack.c.b16 %v5376, %v5368
    %v6841 = vpack.c.b16 %v5377, %v5369
    %v6842 = vpack.c.b16 %v5378, %v5370
    %v6843 = vpack.c.b16 %v5379, %v5371
    %v6844 = vpack.c.b16 %v5388, %v5380
    %v6845 = vpack.c.b16 %v5389, %v5381
    %v6846 = vpack.c.b16 %v5390, %v5382
    %v6847 = vpack.c.b16 %v5391, %v5383
    %v6848 = vpack.c.b16 %v5392, %v5384
    %v6849 = vpack.c.b16 %v5393, %v5385
    %v6850 = vpack.c.b16 %v5394, %v5386
    %v6851 = vpack.c.b16 %v5395, %v5387
    %v6852 = vpack.c.b16 %v5404, %v5396
    %v6853 = vpack.c.b16 %v5405, %v5397
    %v6854 = vpack.c.b16 %v5406, %v5398
    %v6855 = vpack.c.b16 %v5407, %v5399
    %v6856 = vpack.c.b16 %v5408, %v5400
    %v6857 = vpack.c.b16 %v5409, %v5401
    %v6858 = vpack.c.b16 %v5410, %v5402
    %v6859 = vpack.c.b16 %v5411, %v5403
    %v6860 = vpack.c.b16 %v5420, %v5412
    %v6861 = vpack.c.b16 %v5421, %v5413
    %v6862 = vpack.c.b16 %v5422, %v5414
    %v6863 = vpack.c.b16 %v5423, %v5415
    %v6864 = vpack.c.b16 %v5424, %v5416
    %v6865 = vpack.c.b16 %v5425, %v5417
    %v6866 = vpack.c.b16 %v5426, %v5418
    %v6867 = vpack.c.b16 %v5427, %v5419
    %v6868 = vpack.c.b16 %v5436, %v5428
    %v6869 = vpack.c.b16 %v5437, %v5429
    %v6870 = vpack.c.b16 %v5438, %v5430
    %v6871 = vpack.c.b16 %v5439, %v5431
    %v6872 = vpack.c.b16 %v5440, %v5432
    %v6873 = vpack.c.b16 %v5441, %v5433
    %v6874 = vpack.c.b16 %v5442, %v5434
    %v6875 = vpack.c.b16 %v5443, %v5435
    %v6876 = vpack.c.b16 %v5452, %v5444
    %v6877 = vpack.c.b16 %v5453, %v5445
    %v6878 = vpack.c.b16 %v5454, %v5446
    %v6879 = vpack.c.b16 %v5455, %v5447
    %v6880 = vpack.c.b16 %v5456, %v5448
    %v6881 = vpack.c.b16 %v5457, %v5449
    %v6882 = vpack.c.b16 %v5458, %v5450
    %v6883 = vpack.c.b16 %v5459, %v5451
    %v6884 = vpack.c.b16 %v5468, %v5460
    %v6885 = vpack.c.b16 %v5469, %v5461
    %v6886 = vpack.c.b16 %v5470, %v5462
    %v6887 = vpack.c.b16 %v5471, %v5463
    %v6888 = vpack.c.b16 %v5472, %v5464
    %v6889 = vpack.c.b16 %v5473, %v5465
    %v6890 = vpack.c.b16 %v5474, %v5466
    %v6891 = vpack.c.b16 %v5475, %v5467
    %v6892 = vpack.c.b16 %v5484, %v5476
    %v6893 = vpack.c.b16 %v5485, %v5477
    %v6894 = vpack.c.b16 %v5486, %v5478
    %v6895 = vpack.c.b16 %v5487, %v5479
    %v6896 = vpack.c.b16 %v5488, %v5480
    %v6897 = vpack.c.b16 %v5489, %v5481
    %v6898 = vpack.c.b16 %v5490, %v5482
    %v6899 = vpack.c.b16 %v5491, %v5483
    %v6900 = vpack.c.b16 %v5500, %v5492
    %v6901 = vpack.c.b16 %v5501, %v5493
    %v6902 = vpack.c.b16 %v5502, %v5494
    %v6903 = vpack.c.b16 %v5503, %v5495
    %v6904 = vpack.c.b16 %v5504, %v5496
    %v6905 = vpack.c.b16 %v5505, %v5497
    %v6906 = vpack.c.b16 %v5506, %v5498
    %v6907 = vpack.c.b16 %v5507, %v5499
    %v6908 = vpack.c.b16 %v5516, %v5508
    %v6909 = vpack.c.b16 %v5517, %v5509
    %v6910 = vpack.c.b16 %v5518, %v5510
    %v6911 = vpack.c.b16 %v5519, %v5511
    %v6912 = vpack.c.b16 %v5520, %v5512
    %v6913 = vpack.c.b16 %v5521, %v5513
    %v6914 = vpack.c.b16 %v5522, %v5514
    %v6915 = vpack.c.b16 %v5523, %v5515
    %v6916 = vpack.c.b16 %v5532, %v5524
    %v6917 = vpack.c.b16 %v5533, %v5525
    %v6918 = vpack.c.b16 %v5534, %v5526
    %v6919 = vpack.c.b16 %v5535, %v5527
    %v6920 = vpack.c.b16 %v5536, %v5528
    %v6921 = vpack.c.b16 %v5537, %v5529
    %v6922 = vpack.c.b16 %v5538, %v5530
    %v6923 = vpack.c.b16 %v5539, %v5531
    %v6924 = vpack.c.b16 %v5548, %v5540
    %v6925 = vpack.c.b16 %v5549, %v5541
    %v6926 = vpack.c.b16 %v5550, %v5542
    %v6927 = vpack.c.b16 %v5551, %v5543
    %v6928 = vpack.c.b16 %v5552, %v5544
    %v6929 = vpack.c.b16 %v5553, %v5545
    %v6930 = vpack.c.b16 %v5554, %v5546
    %v6931 = vpack.c.b16 %v5555, %v5547
    %v6932 = vpack.c.b16 %v5564, %v5556
    %v6933 = vpack.c.b16 %v5565, %v5557
    %v6934 = vpack.c.b16 %v5566, %v5558
    %v6935 = vpack.c.b16 %v5567, %v5559
    %v6936 = vpack.c.b16 %v5568, %v5560
    %v6937 = vpack.c.b16 %v5569, %v5561
    %v6938 = vpack.c.b16 %v5570, %v5562
    %v6939 = vpack.c.b16 %v5571, %v5563
    %v6940 = vpack.c.b16 %v5580, %v5572
    %v6941 = vpack.c.b16 %v5581, %v5573
    %v6942 = vpack.c.b16 %v5582, %v5574
    %v6943 = vpack.c.b16 %v5583, %v5575
    %v6944 = vpack.c.b16 %v5584, %v5576
    %v6945 = vpack.c.b16 %v5585, %v5577
    %v6946 = vpack.c.b16 %v5586, %v5578
    %v6947 = vpack.c.b16 %v5587, %v5579
    %v6948 = vpack.c.b16 %v5596, %v5588
    %v6949 = vpack.c.b16 %v5597, %v5589
    %v6950 = vpack.c.b16 %v5598, %v5590
    %v6951 = vpack.c.b16 %v5599, %v5591
    %v6952 = vpack.c.b16 %v5600, %v5592
    %v6953 = vpack.c.b16 %v5601, %v5593
    %v6954 = vpack.c.b16 %v5602, %v5594
    %v6955 = vpack.c.b16 %v5603, %v5595
    %v6956 = vpack.c.b16 %v5612, %v5604
    %v6957 = vpack.c.b16 %v5613, %v5605
    %v6958 = vpack.c.b16 %v5614, %v5606
    %v6959 = vpack.c.b16 %v5615, %v5607
    %v6960 = vpack.c.b16 %v5616, %v5608
    %v6961 = vpack.c.b16 %v5617, %v5609
    %v6962 = vpack.c.b16 %v5618, %v5610
    %v6963 = vpack.c.b16 %v5619, %v5611
    %8308 = vmatpush.bf16.msra.mxu0 %v5676
    %8309 = vmatpush.bf16.msra.mxu0 %v5668
    %8310 = vmatpush.bf16.msra.mxu0 %v5660
    %8311 = vmatpush.bf16.msra.mxu0 %v5652
    %8312 = vmatpush.bf16.msra.mxu0 %v5644
    %8313 = vmatpush.bf16.msra.mxu0 %v5636
    %8314 = vmatpush.bf16.msra.mxu0 %v5628
    %8315 = vmatpush.bf16.msra.mxu0 %v5620
    %8316 = vmatmul.bf16.gmra.mxu0 %v205
    %v8317 = vpop.f32.mrf.mxu0
    %v8318 = vadd.f32 %v1572, %v8317
    %v8319 = vpop.f32.mrf.mxu0
    %8320 = vdwg.mxu0
    %8321 = vmatpush.bf16.msra.mxu0 %v5740
    %8322 = vmatpush.bf16.msra.mxu0 %v5732
    %8323 = vmatpush.bf16.msra.mxu0 %v5724
    %8324 = vmatpush.bf16.msra.mxu0 %v5716
    %8325 = vmatpush.bf16.msra.mxu0 %v5708
    %8326 = vmatpush.bf16.msra.mxu0 %v5700
    %8327 = vmatpush.bf16.msra.mxu0 %v5692
    %8328 = vmatpush.bf16.msra.mxu0 %v5684
    %8329 = vmatmul.bf16.gmra.mxu0 %v206
    %v8330 = vpop.f32.mrf.mxu0
    %v8331 = vadd.f32 %v8318, %v8330
    %v8332 = vpop.f32.mrf.mxu0
    %8333 = vdwg.mxu0
    %8334 = vmatpush.bf16.msra.mxu0 %v5804
    %8335 = vmatpush.bf16.msra.mxu0 %v5796
    %8336 = vmatpush.bf16.msra.mxu0 %v5788
    %8337 = vmatpush.bf16.msra.mxu0 %v5780
    %8338 = vmatpush.bf16.msra.mxu0 %v5772
    %8339 = vmatpush.bf16.msra.mxu0 %v5764
    %8340 = vmatpush.bf16.msra.mxu0 %v5756
    %8341 = vmatpush.bf16.msra.mxu0 %v5748
    %8342 = vmatmul.bf16.gmra.mxu0 %v207
    %v8343 = vpop.f32.mrf.mxu0
    %v8344 = vadd.f32 %v8331, %v8343
    %v8345 = vpop.f32.mrf.mxu0
    %8346 = vdwg.mxu0
    %8347 = vmatpush.bf16.msra.mxu0 %v5868
    %8348 = vmatpush.bf16.msra.mxu0 %v5860
    %8349 = vmatpush.bf16.msra.mxu0 %v5852
    %8350 = vmatpush.bf16.msra.mxu0 %v5844
    %8351 = vmatpush.bf16.msra.mxu0 %v5836
    %8352 = vmatpush.bf16.msra.mxu0 %v5828
    %8353 = vmatpush.bf16.msra.mxu0 %v5820
    %8354 = vmatpush.bf16.msra.mxu0 %v5812
    %8355 = vmatmul.bf16.gmra.mxu0 %v208
    %v8356 = vpop.f32.mrf.mxu0
    %v8357 = vadd.f32 %v8344, %v8356
    %v8358 = vpop.f32.mrf.mxu0
    %8359 = vdwg.mxu0
    %8360 = vmatpush.bf16.msra.mxu0 %v5932
    %8361 = vmatpush.bf16.msra.mxu0 %v5924
    %8362 = vmatpush.bf16.msra.mxu0 %v5916
    %8363 = vmatpush.bf16.msra.mxu0 %v5908
    %8364 = vmatpush.bf16.msra.mxu0 %v5900
    %8365 = vmatpush.bf16.msra.mxu0 %v5892
    %8366 = vmatpush.bf16.msra.mxu0 %v5884
    %8367 = vmatpush.bf16.msra.mxu0 %v5876
    %8368 = vmatmul.bf16.gmra.mxu0 %v209
    %v8369 = vpop.f32.mrf.mxu0
    %v8370 = vadd.f32 %v8357, %v8369
    %v8371 = vpop.f32.mrf.mxu0
    %8372 = vdwg.mxu0
    %8373 = vmatpush.bf16.msra.mxu0 %v5996
    %8374 = vmatpush.bf16.msra.mxu0 %v5988
    %8375 = vmatpush.bf16.msra.mxu0 %v5980
    %8376 = vmatpush.bf16.msra.mxu0 %v5972
    %8377 = vmatpush.bf16.msra.mxu0 %v5964
    %8378 = vmatpush.bf16.msra.mxu0 %v5956
    %8379 = vmatpush.bf16.msra.mxu0 %v5948
    %8380 = vmatpush.bf16.msra.mxu0 %v5940
    %8381 = vmatmul.bf16.gmra.mxu0 %v210
    %v8382 = vpop.f32.mrf.mxu0
    %v8383 = vadd.f32 %v8370, %v8382
    %v8384 = vpop.f32.mrf.mxu0
    %8385 = vdwg.mxu0
    %8386 = vmatpush.bf16.msra.mxu0 %v6060
    %8387 = vmatpush.bf16.msra.mxu0 %v6052
    %8388 = vmatpush.bf16.msra.mxu0 %v6044
    %8389 = vmatpush.bf16.msra.mxu0 %v6036
    %8390 = vmatpush.bf16.msra.mxu0 %v6028
    %8391 = vmatpush.bf16.msra.mxu0 %v6020
    %8392 = vmatpush.bf16.msra.mxu0 %v6012
    %8393 = vmatpush.bf16.msra.mxu0 %v6004
    %8394 = vmatmul.bf16.gmra.mxu0 %v211
    %v8395 = vpop.f32.mrf.mxu0
    %v8396 = vadd.f32 %v8383, %v8395
    %v8397 = vpop.f32.mrf.mxu0
    %8398 = vdwg.mxu0
    %8399 = vmatpush.bf16.msra.mxu0 %v6124
    %8400 = vmatpush.bf16.msra.mxu0 %v6116
    %8401 = vmatpush.bf16.msra.mxu0 %v6108
    %8402 = vmatpush.bf16.msra.mxu0 %v6100
    %8403 = vmatpush.bf16.msra.mxu0 %v6092
    %8404 = vmatpush.bf16.msra.mxu0 %v6084
    %8405 = vmatpush.bf16.msra.mxu0 %v6076
    %8406 = vmatpush.bf16.msra.mxu0 %v6068
    %8407 = vmatmul.bf16.gmra.mxu0 %v212
    %v8408 = vpop.f32.mrf.mxu0
    %v8409 = vadd.f32 %v8396, %v8408
    %v8410 = vpop.f32.mrf.mxu0
    %8411 = vdwg.mxu0
    %8412 = vmatpush.bf16.msra.mxu0 %v6188
    %8413 = vmatpush.bf16.msra.mxu0 %v6180
    %8414 = vmatpush.bf16.msra.mxu0 %v6172
    %8415 = vmatpush.bf16.msra.mxu0 %v6164
    %8416 = vmatpush.bf16.msra.mxu0 %v6156
    %8417 = vmatpush.bf16.msra.mxu0 %v6148
    %8418 = vmatpush.bf16.msra.mxu0 %v6140
    %8419 = vmatpush.bf16.msra.mxu0 %v6132
    %8420 = vmatmul.bf16.gmra.mxu0 %v213
    %v8421 = vpop.f32.mrf.mxu0
    %v8422 = vadd.f32 %v8409, %v8421
    %v8423 = vpop.f32.mrf.mxu0
    %8424 = vdwg.mxu0
    %8425 = vmatpush.bf16.msra.mxu0 %v6252
    %8426 = vmatpush.bf16.msra.mxu0 %v6244
    %8427 = vmatpush.bf16.msra.mxu0 %v6236
    %8428 = vmatpush.bf16.msra.mxu0 %v6228
    %8429 = vmatpush.bf16.msra.mxu0 %v6220
    %8430 = vmatpush.bf16.msra.mxu0 %v6212
    %8431 = vmatpush.bf16.msra.mxu0 %v6204
    %8432 = vmatpush.bf16.msra.mxu0 %v6196
    %8433 = vmatmul.bf16.gmra.mxu0 %v214
    %v8434 = vpop.f32.mrf.mxu0
    %v8435 = vadd.f32 %v8422, %v8434
    %v8436 = vpop.f32.mrf.mxu0
    %8437 = vdwg.mxu0
    %8438 = vmatpush.bf16.msra.mxu0 %v6316
    %8439 = vmatpush.bf16.msra.mxu0 %v6308
    %8440 = vmatpush.bf16.msra.mxu0 %v6300
    %8441 = vmatpush.bf16.msra.mxu0 %v6292
    %8442 = vmatpush.bf16.msra.mxu0 %v6284
    %8443 = vmatpush.bf16.msra.mxu0 %v6276
    %8444 = vmatpush.bf16.msra.mxu0 %v6268
    %8445 = vmatpush.bf16.msra.mxu0 %v6260
    %8446 = vmatmul.bf16.gmra.mxu0 %v215
    %v8447 = vpop.f32.mrf.mxu0
    %v8448 = vadd.f32 %v8435, %v8447
    %v8449 = vpop.f32.mrf.mxu0
    %8450 = vdwg.mxu0
    %8451 = vmatpush.bf16.msra.mxu0 %v6380
    %8452 = vmatpush.bf16.msra.mxu0 %v6372
    %8453 = vmatpush.bf16.msra.mxu0 %v6364
    %8454 = vmatpush.bf16.msra.mxu0 %v6356
    %8455 = vmatpush.bf16.msra.mxu0 %v6348
    %8456 = vmatpush.bf16.msra.mxu0 %v6340
    %8457 = vmatpush.bf16.msra.mxu0 %v6332
    %8458 = vmatpush.bf16.msra.mxu0 %v6324
    %8459 = vmatmul.bf16.gmra.mxu0 %v216
    %v8460 = vpop.f32.mrf.mxu0
    %v8461 = vadd.f32 %v8448, %v8460
    %v8462 = vpop.f32.mrf.mxu0
    %8463 = vdwg.mxu0
    %8464 = vmatpush.bf16.msra.mxu0 %v6444
    %8465 = vmatpush.bf16.msra.mxu0 %v6436
    %8466 = vmatpush.bf16.msra.mxu0 %v6428
    %8467 = vmatpush.bf16.msra.mxu0 %v6420
    %8468 = vmatpush.bf16.msra.mxu0 %v6412
    %8469 = vmatpush.bf16.msra.mxu0 %v6404
    %8470 = vmatpush.bf16.msra.mxu0 %v6396
    %8471 = vmatpush.bf16.msra.mxu0 %v6388
    %8472 = vmatmul.bf16.gmra.mxu0 %v217
    %v8473 = vpop.f32.mrf.mxu0
    %v8474 = vadd.f32 %v8461, %v8473
    %v8475 = vpop.f32.mrf.mxu0
    %8476 = vdwg.mxu0
    %8477 = vmatpush.bf16.msra.mxu0 %v6508
    %8478 = vmatpush.bf16.msra.mxu0 %v6500
    %8479 = vmatpush.bf16.msra.mxu0 %v6492
    %8480 = vmatpush.bf16.msra.mxu0 %v6484
    %8481 = vmatpush.bf16.msra.mxu0 %v6476
    %8482 = vmatpush.bf16.msra.mxu0 %v6468
    %8483 = vmatpush.bf16.msra.mxu0 %v6460
    %8484 = vmatpush.bf16.msra.mxu0 %v6452
    %8485 = vmatmul.bf16.gmra.mxu0 %v218
    %v8486 = vpop.f32.mrf.mxu0
    %v8487 = vadd.f32 %v8474, %v8486
    %v8488 = vpop.f32.mrf.mxu0
    %8489 = vdwg.mxu0
    %8490 = vmatpush.bf16.msra.mxu0 %v6572
    %8491 = vmatpush.bf16.msra.mxu0 %v6564
    %8492 = vmatpush.bf16.msra.mxu0 %v6556
    %8493 = vmatpush.bf16.msra.mxu0 %v6548
    %8494 = vmatpush.bf16.msra.mxu0 %v6540
    %8495 = vmatpush.bf16.msra.mxu0 %v6532
    %8496 = vmatpush.bf16.msra.mxu0 %v6524
    %8497 = vmatpush.bf16.msra.mxu0 %v6516
    %8498 = vmatmul.bf16.gmra.mxu0 %v219
    %v8499 = vpop.f32.mrf.mxu0
    %v8500 = vadd.f32 %v8487, %v8499
    %v8501 = vpop.f32.mrf.mxu0
    %8502 = vdwg.mxu0
    %8503 = vmatpush.bf16.msra.mxu0 %v6636
    %8504 = vmatpush.bf16.msra.mxu0 %v6628
    %8505 = vmatpush.bf16.msra.mxu0 %v6620
    %8506 = vmatpush.bf16.msra.mxu0 %v6612
    %8507 = vmatpush.bf16.msra.mxu0 %v6604
    %8508 = vmatpush.bf16.msra.mxu0 %v6596
    %8509 = vmatpush.bf16.msra.mxu0 %v6588
    %8510 = vmatpush.bf16.msra.mxu0 %v6580
    %8511 = vmatmul.bf16.gmra.mxu0 %v220
    %v8512 = vpop.f32.mrf.mxu0
    %v8513 = vadd.f32 %v8500, %v8512
    %v8514 = vpop.f32.mrf.mxu0
    %8515 = vdwg.mxu0
    %8516 = vmatpush.bf16.msra.mxu0 %v6700
    %8517 = vmatpush.bf16.msra.mxu0 %v6692
    %8518 = vmatpush.bf16.msra.mxu0 %v6684
    %8519 = vmatpush.bf16.msra.mxu0 %v6676
    %8520 = vmatpush.bf16.msra.mxu0 %v6668
    %8521 = vmatpush.bf16.msra.mxu0 %v6660
    %8522 = vmatpush.bf16.msra.mxu0 %v6652
    %8523 = vmatpush.bf16.msra.mxu0 %v6644
    %8524 = vmatmul.bf16.gmra.mxu0 %v221
    %v8525 = vpop.f32.mrf.mxu0
    %v8526 = vadd.f32 %v8513, %v8525
    %v8527 = vpop.f32.mrf.mxu0
    %8528 = vdwg.mxu0
    %8529 = vmatpush.bf16.msra.mxu0 %v6764
    %8530 = vmatpush.bf16.msra.mxu0 %v6756
    %8531 = vmatpush.bf16.msra.mxu0 %v6748
    %8532 = vmatpush.bf16.msra.mxu0 %v6740
    %8533 = vmatpush.bf16.msra.mxu0 %v6732
    %8534 = vmatpush.bf16.msra.mxu0 %v6724
    %8535 = vmatpush.bf16.msra.mxu0 %v6716
    %8536 = vmatpush.bf16.msra.mxu0 %v6708
    %8537 = vmatmul.bf16.gmra.mxu0 %v222
    %v8538 = vpop.f32.mrf.mxu0
    %v8539 = vadd.f32 %v8526, %v8538
    %v8540 = vpop.f32.mrf.mxu0
    %8541 = vdwg.mxu0
    %8542 = vmatpush.bf16.msra.mxu0 %v6828
    %8543 = vmatpush.bf16.msra.mxu0 %v6820
    %8544 = vmatpush.bf16.msra.mxu0 %v6812
    %8545 = vmatpush.bf16.msra.mxu0 %v6804
    %8546 = vmatpush.bf16.msra.mxu0 %v6796
    %8547 = vmatpush.bf16.msra.mxu0 %v6788
    %8548 = vmatpush.bf16.msra.mxu0 %v6780
    %8549 = vmatpush.bf16.msra.mxu0 %v6772
    %8550 = vmatmul.bf16.gmra.mxu0 %v223
    %v8551 = vpop.f32.mrf.mxu0
    %v8552 = vadd.f32 %v8539, %v8551
    %v8553 = vpop.f32.mrf.mxu0
    %8554 = vdwg.mxu0
    %8555 = vmatpush.bf16.msra.mxu0 %v6892
    %8556 = vmatpush.bf16.msra.mxu0 %v6884
    %8557 = vmatpush.bf16.msra.mxu0 %v6876
    %8558 = vmatpush.bf16.msra.mxu0 %v6868
    %8559 = vmatpush.bf16.msra.mxu0 %v6860
    %8560 = vmatpush.bf16.msra.mxu0 %v6852
    %8561 = vmatpush.bf16.msra.mxu0 %v6844
    %8562 = vmatpush.bf16.msra.mxu0 %v6836
    %8563 = vmatmul.bf16.gmra.mxu0 %v224
    %v8564 = vpop.f32.mrf.mxu0
    %v8565 = vadd.f32 %v8552, %v8564
    %v8566 = vpop.f32.mrf.mxu0
    %8567 = vdwg.mxu0
    %8568 = vmatpush.bf16.msra.mxu0 %v6956
    %8569 = vmatpush.bf16.msra.mxu0 %v6948
    %8570 = vmatpush.bf16.msra.mxu0 %v6940
    %8571 = vmatpush.bf16.msra.mxu0 %v6932
    %8572 = vmatpush.bf16.msra.mxu0 %v6924
    %8573 = vmatpush.bf16.msra.mxu0 %v6916
    %8574 = vmatpush.bf16.msra.mxu0 %v6908
    %8575 = vmatpush.bf16.msra.mxu0 %v6900
    %8576 = vmatmul.bf16.gmra.mxu0 %v225
    %v8577 = vpop.f32.mrf.mxu0
    %v8578 = vadd.f32 %v8565, %v8577
    %v8579 = vpop.f32.mrf.mxu0
    %8580 = vdwg.mxu0
    %8581 = vmatpush.bf16.msra.mxu0 %v5677
    %8582 = vmatpush.bf16.msra.mxu0 %v5669
    %8583 = vmatpush.bf16.msra.mxu0 %v5661
    %8584 = vmatpush.bf16.msra.mxu0 %v5653
    %8585 = vmatpush.bf16.msra.mxu0 %v5645
    %8586 = vmatpush.bf16.msra.mxu0 %v5637
    %8587 = vmatpush.bf16.msra.mxu0 %v5629
    %8588 = vmatpush.bf16.msra.mxu0 %v5621
    %8589 = vmatmul.bf16.gmra.mxu0 %v205
    %v8590 = vpop.f32.mrf.mxu0
    %v8591 = vadd.f32 %v1573, %v8590
    %v8592 = vpop.f32.mrf.mxu0
    %8593 = vdwg.mxu0
    %8594 = vmatpush.bf16.msra.mxu0 %v5741
    %8595 = vmatpush.bf16.msra.mxu0 %v5733
    %8596 = vmatpush.bf16.msra.mxu0 %v5725
    %8597 = vmatpush.bf16.msra.mxu0 %v5717
    %8598 = vmatpush.bf16.msra.mxu0 %v5709
    %8599 = vmatpush.bf16.msra.mxu0 %v5701
    %8600 = vmatpush.bf16.msra.mxu0 %v5693
    %8601 = vmatpush.bf16.msra.mxu0 %v5685
    %8602 = vmatmul.bf16.gmra.mxu0 %v206
    %v8603 = vpop.f32.mrf.mxu0
    %v8604 = vadd.f32 %v8591, %v8603
    %v8605 = vpop.f32.mrf.mxu0
    %8606 = vdwg.mxu0
    %8607 = vmatpush.bf16.msra.mxu0 %v5805
    %8608 = vmatpush.bf16.msra.mxu0 %v5797
    %8609 = vmatpush.bf16.msra.mxu0 %v5789
    %8610 = vmatpush.bf16.msra.mxu0 %v5781
    %8611 = vmatpush.bf16.msra.mxu0 %v5773
    %8612 = vmatpush.bf16.msra.mxu0 %v5765
    %8613 = vmatpush.bf16.msra.mxu0 %v5757
    %8614 = vmatpush.bf16.msra.mxu0 %v5749
    %8615 = vmatmul.bf16.gmra.mxu0 %v207
    %v8616 = vpop.f32.mrf.mxu0
    %v8617 = vadd.f32 %v8604, %v8616
    %v8618 = vpop.f32.mrf.mxu0
    %8619 = vdwg.mxu0
    %8620 = vmatpush.bf16.msra.mxu0 %v5869
    %8621 = vmatpush.bf16.msra.mxu0 %v5861
    %8622 = vmatpush.bf16.msra.mxu0 %v5853
    %8623 = vmatpush.bf16.msra.mxu0 %v5845
    %8624 = vmatpush.bf16.msra.mxu0 %v5837
    %8625 = vmatpush.bf16.msra.mxu0 %v5829
    %8626 = vmatpush.bf16.msra.mxu0 %v5821
    %8627 = vmatpush.bf16.msra.mxu0 %v5813
    %8628 = vmatmul.bf16.gmra.mxu0 %v208
    %v8629 = vpop.f32.mrf.mxu0
    %v8630 = vadd.f32 %v8617, %v8629
    %v8631 = vpop.f32.mrf.mxu0
    %8632 = vdwg.mxu0
    %8633 = vmatpush.bf16.msra.mxu0 %v5933
    %8634 = vmatpush.bf16.msra.mxu0 %v5925
    %8635 = vmatpush.bf16.msra.mxu0 %v5917
    %8636 = vmatpush.bf16.msra.mxu0 %v5909
    %8637 = vmatpush.bf16.msra.mxu0 %v5901
    %8638 = vmatpush.bf16.msra.mxu0 %v5893
    %8639 = vmatpush.bf16.msra.mxu0 %v5885
    %8640 = vmatpush.bf16.msra.mxu0 %v5877
    %8641 = vmatmul.bf16.gmra.mxu0 %v209
    %v8642 = vpop.f32.mrf.mxu0
    %v8643 = vadd.f32 %v8630, %v8642
    %v8644 = vpop.f32.mrf.mxu0
    %8645 = vdwg.mxu0
    %8646 = vmatpush.bf16.msra.mxu0 %v5997
    %8647 = vmatpush.bf16.msra.mxu0 %v5989
    %8648 = vmatpush.bf16.msra.mxu0 %v5981
    %8649 = vmatpush.bf16.msra.mxu0 %v5973
    %8650 = vmatpush.bf16.msra.mxu0 %v5965
    %8651 = vmatpush.bf16.msra.mxu0 %v5957
    %8652 = vmatpush.bf16.msra.mxu0 %v5949
    %8653 = vmatpush.bf16.msra.mxu0 %v5941
    %8654 = vmatmul.bf16.gmra.mxu0 %v210
    %v8655 = vpop.f32.mrf.mxu0
    %v8656 = vadd.f32 %v8643, %v8655
    %v8657 = vpop.f32.mrf.mxu0
    %8658 = vdwg.mxu0
    %8659 = vmatpush.bf16.msra.mxu0 %v6061
    %8660 = vmatpush.bf16.msra.mxu0 %v6053
    %8661 = vmatpush.bf16.msra.mxu0 %v6045
    %8662 = vmatpush.bf16.msra.mxu0 %v6037
    %8663 = vmatpush.bf16.msra.mxu0 %v6029
    %8664 = vmatpush.bf16.msra.mxu0 %v6021
    %8665 = vmatpush.bf16.msra.mxu0 %v6013
    %8666 = vmatpush.bf16.msra.mxu0 %v6005
    %8667 = vmatmul.bf16.gmra.mxu0 %v211
    %v8668 = vpop.f32.mrf.mxu0
    %v8669 = vadd.f32 %v8656, %v8668
    %v8670 = vpop.f32.mrf.mxu0
    %8671 = vdwg.mxu0
    %8672 = vmatpush.bf16.msra.mxu0 %v6125
    %8673 = vmatpush.bf16.msra.mxu0 %v6117
    %8674 = vmatpush.bf16.msra.mxu0 %v6109
    %8675 = vmatpush.bf16.msra.mxu0 %v6101
    %8676 = vmatpush.bf16.msra.mxu0 %v6093
    %8677 = vmatpush.bf16.msra.mxu0 %v6085
    %8678 = vmatpush.bf16.msra.mxu0 %v6077
    %8679 = vmatpush.bf16.msra.mxu0 %v6069
    %8680 = vmatmul.bf16.gmra.mxu0 %v212
    %v8681 = vpop.f32.mrf.mxu0
    %v8682 = vadd.f32 %v8669, %v8681
    %v8683 = vpop.f32.mrf.mxu0
    %8684 = vdwg.mxu0
    %8685 = vmatpush.bf16.msra.mxu0 %v6189
    %8686 = vmatpush.bf16.msra.mxu0 %v6181
    %8687 = vmatpush.bf16.msra.mxu0 %v6173
    %8688 = vmatpush.bf16.msra.mxu0 %v6165
    %8689 = vmatpush.bf16.msra.mxu0 %v6157
    %8690 = vmatpush.bf16.msra.mxu0 %v6149
    %8691 = vmatpush.bf16.msra.mxu0 %v6141
    %8692 = vmatpush.bf16.msra.mxu0 %v6133
    %8693 = vmatmul.bf16.gmra.mxu0 %v213
    %v8694 = vpop.f32.mrf.mxu0
    %v8695 = vadd.f32 %v8682, %v8694
    %v8696 = vpop.f32.mrf.mxu0
    %8697 = vdwg.mxu0
    %8698 = vmatpush.bf16.msra.mxu0 %v6253
    %8699 = vmatpush.bf16.msra.mxu0 %v6245
    %8700 = vmatpush.bf16.msra.mxu0 %v6237
    %8701 = vmatpush.bf16.msra.mxu0 %v6229
    %8702 = vmatpush.bf16.msra.mxu0 %v6221
    %8703 = vmatpush.bf16.msra.mxu0 %v6213
    %8704 = vmatpush.bf16.msra.mxu0 %v6205
    %8705 = vmatpush.bf16.msra.mxu0 %v6197
    %8706 = vmatmul.bf16.gmra.mxu0 %v214
    %v8707 = vpop.f32.mrf.mxu0
    %v8708 = vadd.f32 %v8695, %v8707
    %v8709 = vpop.f32.mrf.mxu0
    %8710 = vdwg.mxu0
    %8711 = vmatpush.bf16.msra.mxu0 %v6317
    %8712 = vmatpush.bf16.msra.mxu0 %v6309
    %8713 = vmatpush.bf16.msra.mxu0 %v6301
    %8714 = vmatpush.bf16.msra.mxu0 %v6293
    %8715 = vmatpush.bf16.msra.mxu0 %v6285
    %8716 = vmatpush.bf16.msra.mxu0 %v6277
    %8717 = vmatpush.bf16.msra.mxu0 %v6269
    %8718 = vmatpush.bf16.msra.mxu0 %v6261
    %8719 = vmatmul.bf16.gmra.mxu0 %v215
    %v8720 = vpop.f32.mrf.mxu0
    %v8721 = vadd.f32 %v8708, %v8720
    %v8722 = vpop.f32.mrf.mxu0
    %8723 = vdwg.mxu0
    %8724 = vmatpush.bf16.msra.mxu0 %v6381
    %8725 = vmatpush.bf16.msra.mxu0 %v6373
    %8726 = vmatpush.bf16.msra.mxu0 %v6365
    %8727 = vmatpush.bf16.msra.mxu0 %v6357
    %8728 = vmatpush.bf16.msra.mxu0 %v6349
    %8729 = vmatpush.bf16.msra.mxu0 %v6341
    %8730 = vmatpush.bf16.msra.mxu0 %v6333
    %8731 = vmatpush.bf16.msra.mxu0 %v6325
    %8732 = vmatmul.bf16.gmra.mxu0 %v216
    %v8733 = vpop.f32.mrf.mxu0
    %v8734 = vadd.f32 %v8721, %v8733
    %v8735 = vpop.f32.mrf.mxu0
    %8736 = vdwg.mxu0
    %8737 = vmatpush.bf16.msra.mxu0 %v6445
    %8738 = vmatpush.bf16.msra.mxu0 %v6437
    %8739 = vmatpush.bf16.msra.mxu0 %v6429
    %8740 = vmatpush.bf16.msra.mxu0 %v6421
    %8741 = vmatpush.bf16.msra.mxu0 %v6413
    %8742 = vmatpush.bf16.msra.mxu0 %v6405
    %8743 = vmatpush.bf16.msra.mxu0 %v6397
    %8744 = vmatpush.bf16.msra.mxu0 %v6389
    %8745 = vmatmul.bf16.gmra.mxu0 %v217
    %v8746 = vpop.f32.mrf.mxu0
    %v8747 = vadd.f32 %v8734, %v8746
    %v8748 = vpop.f32.mrf.mxu0
    %8749 = vdwg.mxu0
    %8750 = vmatpush.bf16.msra.mxu0 %v6509
    %8751 = vmatpush.bf16.msra.mxu0 %v6501
    %8752 = vmatpush.bf16.msra.mxu0 %v6493
    %8753 = vmatpush.bf16.msra.mxu0 %v6485
    %8754 = vmatpush.bf16.msra.mxu0 %v6477
    %8755 = vmatpush.bf16.msra.mxu0 %v6469
    %8756 = vmatpush.bf16.msra.mxu0 %v6461
    %8757 = vmatpush.bf16.msra.mxu0 %v6453
    %8758 = vmatmul.bf16.gmra.mxu0 %v218
    %v8759 = vpop.f32.mrf.mxu0
    %v8760 = vadd.f32 %v8747, %v8759
    %v8761 = vpop.f32.mrf.mxu0
    %8762 = vdwg.mxu0
    %8763 = vmatpush.bf16.msra.mxu0 %v6573
    %8764 = vmatpush.bf16.msra.mxu0 %v6565
    %8765 = vmatpush.bf16.msra.mxu0 %v6557
    %8766 = vmatpush.bf16.msra.mxu0 %v6549
    %8767 = vmatpush.bf16.msra.mxu0 %v6541
    %8768 = vmatpush.bf16.msra.mxu0 %v6533
    %8769 = vmatpush.bf16.msra.mxu0 %v6525
    %8770 = vmatpush.bf16.msra.mxu0 %v6517
    %8771 = vmatmul.bf16.gmra.mxu0 %v219
    %v8772 = vpop.f32.mrf.mxu0
    %v8773 = vadd.f32 %v8760, %v8772
    %v8774 = vpop.f32.mrf.mxu0
    %8775 = vdwg.mxu0
    %8776 = vmatpush.bf16.msra.mxu0 %v6637
    %8777 = vmatpush.bf16.msra.mxu0 %v6629
    %8778 = vmatpush.bf16.msra.mxu0 %v6621
    %8779 = vmatpush.bf16.msra.mxu0 %v6613
    %8780 = vmatpush.bf16.msra.mxu0 %v6605
    %8781 = vmatpush.bf16.msra.mxu0 %v6597
    %8782 = vmatpush.bf16.msra.mxu0 %v6589
    %8783 = vmatpush.bf16.msra.mxu0 %v6581
    %8784 = vmatmul.bf16.gmra.mxu0 %v220
    %v8785 = vpop.f32.mrf.mxu0
    %v8786 = vadd.f32 %v8773, %v8785
    %v8787 = vpop.f32.mrf.mxu0
    %8788 = vdwg.mxu0
    %8789 = vmatpush.bf16.msra.mxu0 %v6701
    %8790 = vmatpush.bf16.msra.mxu0 %v6693
    %8791 = vmatpush.bf16.msra.mxu0 %v6685
    %8792 = vmatpush.bf16.msra.mxu0 %v6677
    %8793 = vmatpush.bf16.msra.mxu0 %v6669
    %8794 = vmatpush.bf16.msra.mxu0 %v6661
    %8795 = vmatpush.bf16.msra.mxu0 %v6653
    %8796 = vmatpush.bf16.msra.mxu0 %v6645
    %8797 = vmatmul.bf16.gmra.mxu0 %v221
    %v8798 = vpop.f32.mrf.mxu0
    %v8799 = vadd.f32 %v8786, %v8798
    %v8800 = vpop.f32.mrf.mxu0
    %8801 = vdwg.mxu0
    %8802 = vmatpush.bf16.msra.mxu0 %v6765
    %8803 = vmatpush.bf16.msra.mxu0 %v6757
    %8804 = vmatpush.bf16.msra.mxu0 %v6749
    %8805 = vmatpush.bf16.msra.mxu0 %v6741
    %8806 = vmatpush.bf16.msra.mxu0 %v6733
    %8807 = vmatpush.bf16.msra.mxu0 %v6725
    %8808 = vmatpush.bf16.msra.mxu0 %v6717
    %8809 = vmatpush.bf16.msra.mxu0 %v6709
    %8810 = vmatmul.bf16.gmra.mxu0 %v222
    %v8811 = vpop.f32.mrf.mxu0
    %v8812 = vadd.f32 %v8799, %v8811
    %v8813 = vpop.f32.mrf.mxu0
    %8814 = vdwg.mxu0
    %8815 = vmatpush.bf16.msra.mxu0 %v6829
    %8816 = vmatpush.bf16.msra.mxu0 %v6821
    %8817 = vmatpush.bf16.msra.mxu0 %v6813
    %8818 = vmatpush.bf16.msra.mxu0 %v6805
    %8819 = vmatpush.bf16.msra.mxu0 %v6797
    %8820 = vmatpush.bf16.msra.mxu0 %v6789
    %8821 = vmatpush.bf16.msra.mxu0 %v6781
    %8822 = vmatpush.bf16.msra.mxu0 %v6773
    %8823 = vmatmul.bf16.gmra.mxu0 %v223
    %v8824 = vpop.f32.mrf.mxu0
    %v8825 = vadd.f32 %v8812, %v8824
    %v8826 = vpop.f32.mrf.mxu0
    %8827 = vdwg.mxu0
    %8828 = vmatpush.bf16.msra.mxu0 %v6893
    %8829 = vmatpush.bf16.msra.mxu0 %v6885
    %8830 = vmatpush.bf16.msra.mxu0 %v6877
    %8831 = vmatpush.bf16.msra.mxu0 %v6869
    %8832 = vmatpush.bf16.msra.mxu0 %v6861
    %8833 = vmatpush.bf16.msra.mxu0 %v6853
    %8834 = vmatpush.bf16.msra.mxu0 %v6845
    %8835 = vmatpush.bf16.msra.mxu0 %v6837
    %8836 = vmatmul.bf16.gmra.mxu0 %v224
    %v8837 = vpop.f32.mrf.mxu0
    %v8838 = vadd.f32 %v8825, %v8837
    %v8839 = vpop.f32.mrf.mxu0
    %8840 = vdwg.mxu0
    %8841 = vmatpush.bf16.msra.mxu0 %v6957
    %8842 = vmatpush.bf16.msra.mxu0 %v6949
    %8843 = vmatpush.bf16.msra.mxu0 %v6941
    %8844 = vmatpush.bf16.msra.mxu0 %v6933
    %8845 = vmatpush.bf16.msra.mxu0 %v6925
    %8846 = vmatpush.bf16.msra.mxu0 %v6917
    %8847 = vmatpush.bf16.msra.mxu0 %v6909
    %8848 = vmatpush.bf16.msra.mxu0 %v6901
    %8849 = vmatmul.bf16.gmra.mxu0 %v225
    %v8850 = vpop.f32.mrf.mxu0
    %v8851 = vadd.f32 %v8838, %v8850
    %v8852 = vpop.f32.mrf.mxu0
    %8853 = vdwg.mxu0
    %8854 = vmatpush.bf16.msra.mxu0 %v5678
    %8855 = vmatpush.bf16.msra.mxu0 %v5670
    %8856 = vmatpush.bf16.msra.mxu0 %v5662
    %8857 = vmatpush.bf16.msra.mxu0 %v5654
    %8858 = vmatpush.bf16.msra.mxu0 %v5646
    %8859 = vmatpush.bf16.msra.mxu0 %v5638
    %8860 = vmatpush.bf16.msra.mxu0 %v5630
    %8861 = vmatpush.bf16.msra.mxu0 %v5622
    %8862 = vmatmul.bf16.gmra.mxu0 %v205
    %v8863 = vpop.f32.mrf.mxu0
    %v8864 = vadd.f32 %v1574, %v8863
    %v8865 = vpop.f32.mrf.mxu0
    %8866 = vdwg.mxu0
    %8867 = vmatpush.bf16.msra.mxu0 %v5742
    %8868 = vmatpush.bf16.msra.mxu0 %v5734
    %8869 = vmatpush.bf16.msra.mxu0 %v5726
    %8870 = vmatpush.bf16.msra.mxu0 %v5718
    %8871 = vmatpush.bf16.msra.mxu0 %v5710
    %8872 = vmatpush.bf16.msra.mxu0 %v5702
    %8873 = vmatpush.bf16.msra.mxu0 %v5694
    %8874 = vmatpush.bf16.msra.mxu0 %v5686
    %8875 = vmatmul.bf16.gmra.mxu0 %v206
    %v8876 = vpop.f32.mrf.mxu0
    %v8877 = vadd.f32 %v8864, %v8876
    %v8878 = vpop.f32.mrf.mxu0
    %8879 = vdwg.mxu0
    %8880 = vmatpush.bf16.msra.mxu0 %v5806
    %8881 = vmatpush.bf16.msra.mxu0 %v5798
    %8882 = vmatpush.bf16.msra.mxu0 %v5790
    %8883 = vmatpush.bf16.msra.mxu0 %v5782
    %8884 = vmatpush.bf16.msra.mxu0 %v5774
    %8885 = vmatpush.bf16.msra.mxu0 %v5766
    %8886 = vmatpush.bf16.msra.mxu0 %v5758
    %8887 = vmatpush.bf16.msra.mxu0 %v5750
    %8888 = vmatmul.bf16.gmra.mxu0 %v207
    %v8889 = vpop.f32.mrf.mxu0
    %v8890 = vadd.f32 %v8877, %v8889
    %v8891 = vpop.f32.mrf.mxu0
    %8892 = vdwg.mxu0
    %8893 = vmatpush.bf16.msra.mxu0 %v5870
    %8894 = vmatpush.bf16.msra.mxu0 %v5862
    %8895 = vmatpush.bf16.msra.mxu0 %v5854
    %8896 = vmatpush.bf16.msra.mxu0 %v5846
    %8897 = vmatpush.bf16.msra.mxu0 %v5838
    %8898 = vmatpush.bf16.msra.mxu0 %v5830
    %8899 = vmatpush.bf16.msra.mxu0 %v5822
    %8900 = vmatpush.bf16.msra.mxu0 %v5814
    %8901 = vmatmul.bf16.gmra.mxu0 %v208
    %v8902 = vpop.f32.mrf.mxu0
    %v8903 = vadd.f32 %v8890, %v8902
    %v8904 = vpop.f32.mrf.mxu0
    %8905 = vdwg.mxu0
    %8906 = vmatpush.bf16.msra.mxu0 %v5934
    %8907 = vmatpush.bf16.msra.mxu0 %v5926
    %8908 = vmatpush.bf16.msra.mxu0 %v5918
    %8909 = vmatpush.bf16.msra.mxu0 %v5910
    %8910 = vmatpush.bf16.msra.mxu0 %v5902
    %8911 = vmatpush.bf16.msra.mxu0 %v5894
    %8912 = vmatpush.bf16.msra.mxu0 %v5886
    %8913 = vmatpush.bf16.msra.mxu0 %v5878
    %8914 = vmatmul.bf16.gmra.mxu0 %v209
    %v8915 = vpop.f32.mrf.mxu0
    %v8916 = vadd.f32 %v8903, %v8915
    %v8917 = vpop.f32.mrf.mxu0
    %8918 = vdwg.mxu0
    %8919 = vmatpush.bf16.msra.mxu0 %v5998
    %8920 = vmatpush.bf16.msra.mxu0 %v5990
    %8921 = vmatpush.bf16.msra.mxu0 %v5982
    %8922 = vmatpush.bf16.msra.mxu0 %v5974
    %8923 = vmatpush.bf16.msra.mxu0 %v5966
    %8924 = vmatpush.bf16.msra.mxu0 %v5958
    %8925 = vmatpush.bf16.msra.mxu0 %v5950
    %8926 = vmatpush.bf16.msra.mxu0 %v5942
    %8927 = vmatmul.bf16.gmra.mxu0 %v210
    %v8928 = vpop.f32.mrf.mxu0
    %v8929 = vadd.f32 %v8916, %v8928
    %v8930 = vpop.f32.mrf.mxu0
    %8931 = vdwg.mxu0
    %8932 = vmatpush.bf16.msra.mxu0 %v6062
    %8933 = vmatpush.bf16.msra.mxu0 %v6054
    %8934 = vmatpush.bf16.msra.mxu0 %v6046
    %8935 = vmatpush.bf16.msra.mxu0 %v6038
    %8936 = vmatpush.bf16.msra.mxu0 %v6030
    %8937 = vmatpush.bf16.msra.mxu0 %v6022
    %8938 = vmatpush.bf16.msra.mxu0 %v6014
    %8939 = vmatpush.bf16.msra.mxu0 %v6006
    %8940 = vmatmul.bf16.gmra.mxu0 %v211
    %v8941 = vpop.f32.mrf.mxu0
    %v8942 = vadd.f32 %v8929, %v8941
    %v8943 = vpop.f32.mrf.mxu0
    %8944 = vdwg.mxu0
    %8945 = vmatpush.bf16.msra.mxu0 %v6126
    %8946 = vmatpush.bf16.msra.mxu0 %v6118
    %8947 = vmatpush.bf16.msra.mxu0 %v6110
    %8948 = vmatpush.bf16.msra.mxu0 %v6102
    %8949 = vmatpush.bf16.msra.mxu0 %v6094
    %8950 = vmatpush.bf16.msra.mxu0 %v6086
    %8951 = vmatpush.bf16.msra.mxu0 %v6078
    %8952 = vmatpush.bf16.msra.mxu0 %v6070
    %8953 = vmatmul.bf16.gmra.mxu0 %v212
    %v8954 = vpop.f32.mrf.mxu0
    %v8955 = vadd.f32 %v8942, %v8954
    %v8956 = vpop.f32.mrf.mxu0
    %8957 = vdwg.mxu0
    %8958 = vmatpush.bf16.msra.mxu0 %v6190
    %8959 = vmatpush.bf16.msra.mxu0 %v6182
    %8960 = vmatpush.bf16.msra.mxu0 %v6174
    %8961 = vmatpush.bf16.msra.mxu0 %v6166
    %8962 = vmatpush.bf16.msra.mxu0 %v6158
    %8963 = vmatpush.bf16.msra.mxu0 %v6150
    %8964 = vmatpush.bf16.msra.mxu0 %v6142
    %8965 = vmatpush.bf16.msra.mxu0 %v6134
    %8966 = vmatmul.bf16.gmra.mxu0 %v213
    %v8967 = vpop.f32.mrf.mxu0
    %v8968 = vadd.f32 %v8955, %v8967
    %v8969 = vpop.f32.mrf.mxu0
    %8970 = vdwg.mxu0
    %8971 = vmatpush.bf16.msra.mxu0 %v6254
    %8972 = vmatpush.bf16.msra.mxu0 %v6246
    %8973 = vmatpush.bf16.msra.mxu0 %v6238
    %8974 = vmatpush.bf16.msra.mxu0 %v6230
    %8975 = vmatpush.bf16.msra.mxu0 %v6222
    %8976 = vmatpush.bf16.msra.mxu0 %v6214
    %8977 = vmatpush.bf16.msra.mxu0 %v6206
    %8978 = vmatpush.bf16.msra.mxu0 %v6198
    %8979 = vmatmul.bf16.gmra.mxu0 %v214
    %v8980 = vpop.f32.mrf.mxu0
    %v8981 = vadd.f32 %v8968, %v8980
    %v8982 = vpop.f32.mrf.mxu0
    %8983 = vdwg.mxu0
    %8984 = vmatpush.bf16.msra.mxu0 %v6318
    %8985 = vmatpush.bf16.msra.mxu0 %v6310
    %8986 = vmatpush.bf16.msra.mxu0 %v6302
    %8987 = vmatpush.bf16.msra.mxu0 %v6294
    %8988 = vmatpush.bf16.msra.mxu0 %v6286
    %8989 = vmatpush.bf16.msra.mxu0 %v6278
    %8990 = vmatpush.bf16.msra.mxu0 %v6270
    %8991 = vmatpush.bf16.msra.mxu0 %v6262
    %8992 = vmatmul.bf16.gmra.mxu0 %v215
    %v8993 = vpop.f32.mrf.mxu0
    %v8994 = vadd.f32 %v8981, %v8993
    %v8995 = vpop.f32.mrf.mxu0
    %8996 = vdwg.mxu0
    %8997 = vmatpush.bf16.msra.mxu0 %v6382
    %8998 = vmatpush.bf16.msra.mxu0 %v6374
    %8999 = vmatpush.bf16.msra.mxu0 %v6366
    %9000 = vmatpush.bf16.msra.mxu0 %v6358
    %9001 = vmatpush.bf16.msra.mxu0 %v6350
    %9002 = vmatpush.bf16.msra.mxu0 %v6342
    %9003 = vmatpush.bf16.msra.mxu0 %v6334
    %9004 = vmatpush.bf16.msra.mxu0 %v6326
    %9005 = vmatmul.bf16.gmra.mxu0 %v216
    %v9006 = vpop.f32.mrf.mxu0
    %v9007 = vadd.f32 %v8994, %v9006
    %v9008 = vpop.f32.mrf.mxu0
    %9009 = vdwg.mxu0
    %9010 = vmatpush.bf16.msra.mxu0 %v6446
    %9011 = vmatpush.bf16.msra.mxu0 %v6438
    %9012 = vmatpush.bf16.msra.mxu0 %v6430
    %9013 = vmatpush.bf16.msra.mxu0 %v6422
    %9014 = vmatpush.bf16.msra.mxu0 %v6414
    %9015 = vmatpush.bf16.msra.mxu0 %v6406
    %9016 = vmatpush.bf16.msra.mxu0 %v6398
    %9017 = vmatpush.bf16.msra.mxu0 %v6390
    %9018 = vmatmul.bf16.gmra.mxu0 %v217
    %v9019 = vpop.f32.mrf.mxu0
    %v9020 = vadd.f32 %v9007, %v9019
    %v9021 = vpop.f32.mrf.mxu0
    %9022 = vdwg.mxu0
    %9023 = vmatpush.bf16.msra.mxu0 %v6510
    %9024 = vmatpush.bf16.msra.mxu0 %v6502
    %9025 = vmatpush.bf16.msra.mxu0 %v6494
    %9026 = vmatpush.bf16.msra.mxu0 %v6486
    %9027 = vmatpush.bf16.msra.mxu0 %v6478
    %9028 = vmatpush.bf16.msra.mxu0 %v6470
    %9029 = vmatpush.bf16.msra.mxu0 %v6462
    %9030 = vmatpush.bf16.msra.mxu0 %v6454
    %9031 = vmatmul.bf16.gmra.mxu0 %v218
    %v9032 = vpop.f32.mrf.mxu0
    %v9033 = vadd.f32 %v9020, %v9032
    %v9034 = vpop.f32.mrf.mxu0
    %9035 = vdwg.mxu0
    %9036 = vmatpush.bf16.msra.mxu0 %v6574
    %9037 = vmatpush.bf16.msra.mxu0 %v6566
    %9038 = vmatpush.bf16.msra.mxu0 %v6558
    %9039 = vmatpush.bf16.msra.mxu0 %v6550
    %9040 = vmatpush.bf16.msra.mxu0 %v6542
    %9041 = vmatpush.bf16.msra.mxu0 %v6534
    %9042 = vmatpush.bf16.msra.mxu0 %v6526
    %9043 = vmatpush.bf16.msra.mxu0 %v6518
    %9044 = vmatmul.bf16.gmra.mxu0 %v219
    %v9045 = vpop.f32.mrf.mxu0
    %v9046 = vadd.f32 %v9033, %v9045
    %v9047 = vpop.f32.mrf.mxu0
    %9048 = vdwg.mxu0
    %9049 = vmatpush.bf16.msra.mxu0 %v6638
    %9050 = vmatpush.bf16.msra.mxu0 %v6630
    %9051 = vmatpush.bf16.msra.mxu0 %v6622
    %9052 = vmatpush.bf16.msra.mxu0 %v6614
    %9053 = vmatpush.bf16.msra.mxu0 %v6606
    %9054 = vmatpush.bf16.msra.mxu0 %v6598
    %9055 = vmatpush.bf16.msra.mxu0 %v6590
    %9056 = vmatpush.bf16.msra.mxu0 %v6582
    %9057 = vmatmul.bf16.gmra.mxu0 %v220
    %v9058 = vpop.f32.mrf.mxu0
    %v9059 = vadd.f32 %v9046, %v9058
    %v9060 = vpop.f32.mrf.mxu0
    %9061 = vdwg.mxu0
    %9062 = vmatpush.bf16.msra.mxu0 %v6702
    %9063 = vmatpush.bf16.msra.mxu0 %v6694
    %9064 = vmatpush.bf16.msra.mxu0 %v6686
    %9065 = vmatpush.bf16.msra.mxu0 %v6678
    %9066 = vmatpush.bf16.msra.mxu0 %v6670
    %9067 = vmatpush.bf16.msra.mxu0 %v6662
    %9068 = vmatpush.bf16.msra.mxu0 %v6654
    %9069 = vmatpush.bf16.msra.mxu0 %v6646
    %9070 = vmatmul.bf16.gmra.mxu0 %v221
    %v9071 = vpop.f32.mrf.mxu0
    %v9072 = vadd.f32 %v9059, %v9071
    %v9073 = vpop.f32.mrf.mxu0
    %9074 = vdwg.mxu0
    %9075 = vmatpush.bf16.msra.mxu0 %v6766
    %9076 = vmatpush.bf16.msra.mxu0 %v6758
    %9077 = vmatpush.bf16.msra.mxu0 %v6750
    %9078 = vmatpush.bf16.msra.mxu0 %v6742
    %9079 = vmatpush.bf16.msra.mxu0 %v6734
    %9080 = vmatpush.bf16.msra.mxu0 %v6726
    %9081 = vmatpush.bf16.msra.mxu0 %v6718
    %9082 = vmatpush.bf16.msra.mxu0 %v6710
    %9083 = vmatmul.bf16.gmra.mxu0 %v222
    %v9084 = vpop.f32.mrf.mxu0
    %v9085 = vadd.f32 %v9072, %v9084
    %v9086 = vpop.f32.mrf.mxu0
    %9087 = vdwg.mxu0
    %9088 = vmatpush.bf16.msra.mxu0 %v6830
    %9089 = vmatpush.bf16.msra.mxu0 %v6822
    %9090 = vmatpush.bf16.msra.mxu0 %v6814
    %9091 = vmatpush.bf16.msra.mxu0 %v6806
    %9092 = vmatpush.bf16.msra.mxu0 %v6798
    %9093 = vmatpush.bf16.msra.mxu0 %v6790
    %9094 = vmatpush.bf16.msra.mxu0 %v6782
    %9095 = vmatpush.bf16.msra.mxu0 %v6774
    %9096 = vmatmul.bf16.gmra.mxu0 %v223
    %v9097 = vpop.f32.mrf.mxu0
    %v9098 = vadd.f32 %v9085, %v9097
    %v9099 = vpop.f32.mrf.mxu0
    %9100 = vdwg.mxu0
    %9101 = vmatpush.bf16.msra.mxu0 %v6894
    %9102 = vmatpush.bf16.msra.mxu0 %v6886
    %9103 = vmatpush.bf16.msra.mxu0 %v6878
    %9104 = vmatpush.bf16.msra.mxu0 %v6870
    %9105 = vmatpush.bf16.msra.mxu0 %v6862
    %9106 = vmatpush.bf16.msra.mxu0 %v6854
    %9107 = vmatpush.bf16.msra.mxu0 %v6846
    %9108 = vmatpush.bf16.msra.mxu0 %v6838
    %9109 = vmatmul.bf16.gmra.mxu0 %v224
    %v9110 = vpop.f32.mrf.mxu0
    %v9111 = vadd.f32 %v9098, %v9110
    %v9112 = vpop.f32.mrf.mxu0
    %9113 = vdwg.mxu0
    %9114 = vmatpush.bf16.msra.mxu0 %v6958
    %9115 = vmatpush.bf16.msra.mxu0 %v6950
    %9116 = vmatpush.bf16.msra.mxu0 %v6942
    %9117 = vmatpush.bf16.msra.mxu0 %v6934
    %9118 = vmatpush.bf16.msra.mxu0 %v6926
    %9119 = vmatpush.bf16.msra.mxu0 %v6918
    %9120 = vmatpush.bf16.msra.mxu0 %v6910
    %9121 = vmatpush.bf16.msra.mxu0 %v6902
    %9122 = vmatmul.bf16.gmra.mxu0 %v225
    %v9123 = vpop.f32.mrf.mxu0
    %v9124 = vadd.f32 %v9111, %v9123
    %v9125 = vpop.f32.mrf.mxu0
    %9126 = vdwg.mxu0
    %9127 = vmatpush.bf16.msra.mxu0 %v5679
    %9128 = vmatpush.bf16.msra.mxu0 %v5671
    %9129 = vmatpush.bf16.msra.mxu0 %v5663
    %9130 = vmatpush.bf16.msra.mxu0 %v5655
    %9131 = vmatpush.bf16.msra.mxu0 %v5647
    %9132 = vmatpush.bf16.msra.mxu0 %v5639
    %9133 = vmatpush.bf16.msra.mxu0 %v5631
    %9134 = vmatpush.bf16.msra.mxu0 %v5623
    %9135 = vmatmul.bf16.gmra.mxu0 %v205
    %v9136 = vpop.f32.mrf.mxu0
    %v9137 = vadd.f32 %v1575, %v9136
    %v9138 = vpop.f32.mrf.mxu0
    %9139 = vdwg.mxu0
    %9140 = vmatpush.bf16.msra.mxu0 %v5743
    %9141 = vmatpush.bf16.msra.mxu0 %v5735
    %9142 = vmatpush.bf16.msra.mxu0 %v5727
    %9143 = vmatpush.bf16.msra.mxu0 %v5719
    %9144 = vmatpush.bf16.msra.mxu0 %v5711
    %9145 = vmatpush.bf16.msra.mxu0 %v5703
    %9146 = vmatpush.bf16.msra.mxu0 %v5695
    %9147 = vmatpush.bf16.msra.mxu0 %v5687
    %9148 = vmatmul.bf16.gmra.mxu0 %v206
    %v9149 = vpop.f32.mrf.mxu0
    %v9150 = vadd.f32 %v9137, %v9149
    %v9151 = vpop.f32.mrf.mxu0
    %9152 = vdwg.mxu0
    %9153 = vmatpush.bf16.msra.mxu0 %v5807
    %9154 = vmatpush.bf16.msra.mxu0 %v5799
    %9155 = vmatpush.bf16.msra.mxu0 %v5791
    %9156 = vmatpush.bf16.msra.mxu0 %v5783
    %9157 = vmatpush.bf16.msra.mxu0 %v5775
    %9158 = vmatpush.bf16.msra.mxu0 %v5767
    %9159 = vmatpush.bf16.msra.mxu0 %v5759
    %9160 = vmatpush.bf16.msra.mxu0 %v5751
    %9161 = vmatmul.bf16.gmra.mxu0 %v207
    %v9162 = vpop.f32.mrf.mxu0
    %v9163 = vadd.f32 %v9150, %v9162
    %v9164 = vpop.f32.mrf.mxu0
    %9165 = vdwg.mxu0
    %9166 = vmatpush.bf16.msra.mxu0 %v5871
    %9167 = vmatpush.bf16.msra.mxu0 %v5863
    %9168 = vmatpush.bf16.msra.mxu0 %v5855
    %9169 = vmatpush.bf16.msra.mxu0 %v5847
    %9170 = vmatpush.bf16.msra.mxu0 %v5839
    %9171 = vmatpush.bf16.msra.mxu0 %v5831
    %9172 = vmatpush.bf16.msra.mxu0 %v5823
    %9173 = vmatpush.bf16.msra.mxu0 %v5815
    %9174 = vmatmul.bf16.gmra.mxu0 %v208
    %v9175 = vpop.f32.mrf.mxu0
    %v9176 = vadd.f32 %v9163, %v9175
    %v9177 = vpop.f32.mrf.mxu0
    %9178 = vdwg.mxu0
    %9179 = vmatpush.bf16.msra.mxu0 %v5935
    %9180 = vmatpush.bf16.msra.mxu0 %v5927
    %9181 = vmatpush.bf16.msra.mxu0 %v5919
    %9182 = vmatpush.bf16.msra.mxu0 %v5911
    %9183 = vmatpush.bf16.msra.mxu0 %v5903
    %9184 = vmatpush.bf16.msra.mxu0 %v5895
    %9185 = vmatpush.bf16.msra.mxu0 %v5887
    %9186 = vmatpush.bf16.msra.mxu0 %v5879
    %9187 = vmatmul.bf16.gmra.mxu0 %v209
    %v9188 = vpop.f32.mrf.mxu0
    %v9189 = vadd.f32 %v9176, %v9188
    %v9190 = vpop.f32.mrf.mxu0
    %9191 = vdwg.mxu0
    %9192 = vmatpush.bf16.msra.mxu0 %v5999
    %9193 = vmatpush.bf16.msra.mxu0 %v5991
    %9194 = vmatpush.bf16.msra.mxu0 %v5983
    %9195 = vmatpush.bf16.msra.mxu0 %v5975
    %9196 = vmatpush.bf16.msra.mxu0 %v5967
    %9197 = vmatpush.bf16.msra.mxu0 %v5959
    %9198 = vmatpush.bf16.msra.mxu0 %v5951
    %9199 = vmatpush.bf16.msra.mxu0 %v5943
    %9200 = vmatmul.bf16.gmra.mxu0 %v210
    %v9201 = vpop.f32.mrf.mxu0
    %v9202 = vadd.f32 %v9189, %v9201
    %v9203 = vpop.f32.mrf.mxu0
    %9204 = vdwg.mxu0
    %9205 = vmatpush.bf16.msra.mxu0 %v6063
    %9206 = vmatpush.bf16.msra.mxu0 %v6055
    %9207 = vmatpush.bf16.msra.mxu0 %v6047
    %9208 = vmatpush.bf16.msra.mxu0 %v6039
    %9209 = vmatpush.bf16.msra.mxu0 %v6031
    %9210 = vmatpush.bf16.msra.mxu0 %v6023
    %9211 = vmatpush.bf16.msra.mxu0 %v6015
    %9212 = vmatpush.bf16.msra.mxu0 %v6007
    %9213 = vmatmul.bf16.gmra.mxu0 %v211
    %v9214 = vpop.f32.mrf.mxu0
    %v9215 = vadd.f32 %v9202, %v9214
    %v9216 = vpop.f32.mrf.mxu0
    %9217 = vdwg.mxu0
    %9218 = vmatpush.bf16.msra.mxu0 %v6127
    %9219 = vmatpush.bf16.msra.mxu0 %v6119
    %9220 = vmatpush.bf16.msra.mxu0 %v6111
    %9221 = vmatpush.bf16.msra.mxu0 %v6103
    %9222 = vmatpush.bf16.msra.mxu0 %v6095
    %9223 = vmatpush.bf16.msra.mxu0 %v6087
    %9224 = vmatpush.bf16.msra.mxu0 %v6079
    %9225 = vmatpush.bf16.msra.mxu0 %v6071
    %9226 = vmatmul.bf16.gmra.mxu0 %v212
    %v9227 = vpop.f32.mrf.mxu0
    %v9228 = vadd.f32 %v9215, %v9227
    %v9229 = vpop.f32.mrf.mxu0
    %9230 = vdwg.mxu0
    %9231 = vmatpush.bf16.msra.mxu0 %v6191
    %9232 = vmatpush.bf16.msra.mxu0 %v6183
    %9233 = vmatpush.bf16.msra.mxu0 %v6175
    %9234 = vmatpush.bf16.msra.mxu0 %v6167
    %9235 = vmatpush.bf16.msra.mxu0 %v6159
    %9236 = vmatpush.bf16.msra.mxu0 %v6151
    %9237 = vmatpush.bf16.msra.mxu0 %v6143
    %9238 = vmatpush.bf16.msra.mxu0 %v6135
    %9239 = vmatmul.bf16.gmra.mxu0 %v213
    %v9240 = vpop.f32.mrf.mxu0
    %v9241 = vadd.f32 %v9228, %v9240
    %v9242 = vpop.f32.mrf.mxu0
    %9243 = vdwg.mxu0
    %9244 = vmatpush.bf16.msra.mxu0 %v6255
    %9245 = vmatpush.bf16.msra.mxu0 %v6247
    %9246 = vmatpush.bf16.msra.mxu0 %v6239
    %9247 = vmatpush.bf16.msra.mxu0 %v6231
    %9248 = vmatpush.bf16.msra.mxu0 %v6223
    %9249 = vmatpush.bf16.msra.mxu0 %v6215
    %9250 = vmatpush.bf16.msra.mxu0 %v6207
    %9251 = vmatpush.bf16.msra.mxu0 %v6199
    %9252 = vmatmul.bf16.gmra.mxu0 %v214
    %v9253 = vpop.f32.mrf.mxu0
    %v9254 = vadd.f32 %v9241, %v9253
    %v9255 = vpop.f32.mrf.mxu0
    %9256 = vdwg.mxu0
    %9257 = vmatpush.bf16.msra.mxu0 %v6319
    %9258 = vmatpush.bf16.msra.mxu0 %v6311
    %9259 = vmatpush.bf16.msra.mxu0 %v6303
    %9260 = vmatpush.bf16.msra.mxu0 %v6295
    %9261 = vmatpush.bf16.msra.mxu0 %v6287
    %9262 = vmatpush.bf16.msra.mxu0 %v6279
    %9263 = vmatpush.bf16.msra.mxu0 %v6271
    %9264 = vmatpush.bf16.msra.mxu0 %v6263
    %9265 = vmatmul.bf16.gmra.mxu0 %v215
    %v9266 = vpop.f32.mrf.mxu0
    %v9267 = vadd.f32 %v9254, %v9266
    %v9268 = vpop.f32.mrf.mxu0
    %9269 = vdwg.mxu0
    %9270 = vmatpush.bf16.msra.mxu0 %v6383
    %9271 = vmatpush.bf16.msra.mxu0 %v6375
    %9272 = vmatpush.bf16.msra.mxu0 %v6367
    %9273 = vmatpush.bf16.msra.mxu0 %v6359
    %9274 = vmatpush.bf16.msra.mxu0 %v6351
    %9275 = vmatpush.bf16.msra.mxu0 %v6343
    %9276 = vmatpush.bf16.msra.mxu0 %v6335
    %9277 = vmatpush.bf16.msra.mxu0 %v6327
    %9278 = vmatmul.bf16.gmra.mxu0 %v216
    %v9279 = vpop.f32.mrf.mxu0
    %v9280 = vadd.f32 %v9267, %v9279
    %v9281 = vpop.f32.mrf.mxu0
    %9282 = vdwg.mxu0
    %9283 = vmatpush.bf16.msra.mxu0 %v6447
    %9284 = vmatpush.bf16.msra.mxu0 %v6439
    %9285 = vmatpush.bf16.msra.mxu0 %v6431
    %9286 = vmatpush.bf16.msra.mxu0 %v6423
    %9287 = vmatpush.bf16.msra.mxu0 %v6415
    %9288 = vmatpush.bf16.msra.mxu0 %v6407
    %9289 = vmatpush.bf16.msra.mxu0 %v6399
    %9290 = vmatpush.bf16.msra.mxu0 %v6391
    %9291 = vmatmul.bf16.gmra.mxu0 %v217
    %v9292 = vpop.f32.mrf.mxu0
    %v9293 = vadd.f32 %v9280, %v9292
    %v9294 = vpop.f32.mrf.mxu0
    %9295 = vdwg.mxu0
    %9296 = vmatpush.bf16.msra.mxu0 %v6511
    %9297 = vmatpush.bf16.msra.mxu0 %v6503
    %9298 = vmatpush.bf16.msra.mxu0 %v6495
    %9299 = vmatpush.bf16.msra.mxu0 %v6487
    %9300 = vmatpush.bf16.msra.mxu0 %v6479
    %9301 = vmatpush.bf16.msra.mxu0 %v6471
    %9302 = vmatpush.bf16.msra.mxu0 %v6463
    %9303 = vmatpush.bf16.msra.mxu0 %v6455
    %9304 = vmatmul.bf16.gmra.mxu0 %v218
    %v9305 = vpop.f32.mrf.mxu0
    %v9306 = vadd.f32 %v9293, %v9305
    %v9307 = vpop.f32.mrf.mxu0
    %9308 = vdwg.mxu0
    %9309 = vmatpush.bf16.msra.mxu0 %v6575
    %9310 = vmatpush.bf16.msra.mxu0 %v6567
    %9311 = vmatpush.bf16.msra.mxu0 %v6559
    %9312 = vmatpush.bf16.msra.mxu0 %v6551
    %9313 = vmatpush.bf16.msra.mxu0 %v6543
    %9314 = vmatpush.bf16.msra.mxu0 %v6535
    %9315 = vmatpush.bf16.msra.mxu0 %v6527
    %9316 = vmatpush.bf16.msra.mxu0 %v6519
    %9317 = vmatmul.bf16.gmra.mxu0 %v219
    %v9318 = vpop.f32.mrf.mxu0
    %v9319 = vadd.f32 %v9306, %v9318
    %v9320 = vpop.f32.mrf.mxu0
    %9321 = vdwg.mxu0
    %9322 = vmatpush.bf16.msra.mxu0 %v6639
    %9323 = vmatpush.bf16.msra.mxu0 %v6631
    %9324 = vmatpush.bf16.msra.mxu0 %v6623
    %9325 = vmatpush.bf16.msra.mxu0 %v6615
    %9326 = vmatpush.bf16.msra.mxu0 %v6607
    %9327 = vmatpush.bf16.msra.mxu0 %v6599
    %9328 = vmatpush.bf16.msra.mxu0 %v6591
    %9329 = vmatpush.bf16.msra.mxu0 %v6583
    %9330 = vmatmul.bf16.gmra.mxu0 %v220
    %v9331 = vpop.f32.mrf.mxu0
    %v9332 = vadd.f32 %v9319, %v9331
    %v9333 = vpop.f32.mrf.mxu0
    %9334 = vdwg.mxu0
    %9335 = vmatpush.bf16.msra.mxu0 %v6703
    %9336 = vmatpush.bf16.msra.mxu0 %v6695
    %9337 = vmatpush.bf16.msra.mxu0 %v6687
    %9338 = vmatpush.bf16.msra.mxu0 %v6679
    %9339 = vmatpush.bf16.msra.mxu0 %v6671
    %9340 = vmatpush.bf16.msra.mxu0 %v6663
    %9341 = vmatpush.bf16.msra.mxu0 %v6655
    %9342 = vmatpush.bf16.msra.mxu0 %v6647
    %9343 = vmatmul.bf16.gmra.mxu0 %v221
    %v9344 = vpop.f32.mrf.mxu0
    %v9345 = vadd.f32 %v9332, %v9344
    %v9346 = vpop.f32.mrf.mxu0
    %9347 = vdwg.mxu0
    %9348 = vmatpush.bf16.msra.mxu0 %v6767
    %9349 = vmatpush.bf16.msra.mxu0 %v6759
    %9350 = vmatpush.bf16.msra.mxu0 %v6751
    %9351 = vmatpush.bf16.msra.mxu0 %v6743
    %9352 = vmatpush.bf16.msra.mxu0 %v6735
    %9353 = vmatpush.bf16.msra.mxu0 %v6727
    %9354 = vmatpush.bf16.msra.mxu0 %v6719
    %9355 = vmatpush.bf16.msra.mxu0 %v6711
    %9356 = vmatmul.bf16.gmra.mxu0 %v222
    %v9357 = vpop.f32.mrf.mxu0
    %v9358 = vadd.f32 %v9345, %v9357
    %v9359 = vpop.f32.mrf.mxu0
    %9360 = vdwg.mxu0
    %9361 = vmatpush.bf16.msra.mxu0 %v6831
    %9362 = vmatpush.bf16.msra.mxu0 %v6823
    %9363 = vmatpush.bf16.msra.mxu0 %v6815
    %9364 = vmatpush.bf16.msra.mxu0 %v6807
    %9365 = vmatpush.bf16.msra.mxu0 %v6799
    %9366 = vmatpush.bf16.msra.mxu0 %v6791
    %9367 = vmatpush.bf16.msra.mxu0 %v6783
    %9368 = vmatpush.bf16.msra.mxu0 %v6775
    %9369 = vmatmul.bf16.gmra.mxu0 %v223
    %v9370 = vpop.f32.mrf.mxu0
    %v9371 = vadd.f32 %v9358, %v9370
    %v9372 = vpop.f32.mrf.mxu0
    %9373 = vdwg.mxu0
    %9374 = vmatpush.bf16.msra.mxu0 %v6895
    %9375 = vmatpush.bf16.msra.mxu0 %v6887
    %9376 = vmatpush.bf16.msra.mxu0 %v6879
    %9377 = vmatpush.bf16.msra.mxu0 %v6871
    %9378 = vmatpush.bf16.msra.mxu0 %v6863
    %9379 = vmatpush.bf16.msra.mxu0 %v6855
    %9380 = vmatpush.bf16.msra.mxu0 %v6847
    %9381 = vmatpush.bf16.msra.mxu0 %v6839
    %9382 = vmatmul.bf16.gmra.mxu0 %v224
    %v9383 = vpop.f32.mrf.mxu0
    %v9384 = vadd.f32 %v9371, %v9383
    %v9385 = vpop.f32.mrf.mxu0
    %9386 = vdwg.mxu0
    %9387 = vmatpush.bf16.msra.mxu0 %v6959
    %9388 = vmatpush.bf16.msra.mxu0 %v6951
    %9389 = vmatpush.bf16.msra.mxu0 %v6943
    %9390 = vmatpush.bf16.msra.mxu0 %v6935
    %9391 = vmatpush.bf16.msra.mxu0 %v6927
    %9392 = vmatpush.bf16.msra.mxu0 %v6919
    %9393 = vmatpush.bf16.msra.mxu0 %v6911
    %9394 = vmatpush.bf16.msra.mxu0 %v6903
    %9395 = vmatmul.bf16.gmra.mxu0 %v225
    %v9396 = vpop.f32.mrf.mxu0
    %v9397 = vadd.f32 %v9384, %v9396
    %v9398 = vpop.f32.mrf.mxu0
    %9399 = vdwg.mxu0
    %9400 = vmatpush.bf16.msra.mxu0 %v5680
    %9401 = vmatpush.bf16.msra.mxu0 %v5672
    %9402 = vmatpush.bf16.msra.mxu0 %v5664
    %9403 = vmatpush.bf16.msra.mxu0 %v5656
    %9404 = vmatpush.bf16.msra.mxu0 %v5648
    %9405 = vmatpush.bf16.msra.mxu0 %v5640
    %9406 = vmatpush.bf16.msra.mxu0 %v5632
    %9407 = vmatpush.bf16.msra.mxu0 %v5624
    %9408 = vmatmul.bf16.gmra.mxu0 %v205
    %v9409 = vpop.f32.mrf.mxu0
    %v9410 = vadd.f32 %v1576, %v9409
    %v9411 = vpop.f32.mrf.mxu0
    %9412 = vdwg.mxu0
    %9413 = vmatpush.bf16.msra.mxu0 %v5744
    %9414 = vmatpush.bf16.msra.mxu0 %v5736
    %9415 = vmatpush.bf16.msra.mxu0 %v5728
    %9416 = vmatpush.bf16.msra.mxu0 %v5720
    %9417 = vmatpush.bf16.msra.mxu0 %v5712
    %9418 = vmatpush.bf16.msra.mxu0 %v5704
    %9419 = vmatpush.bf16.msra.mxu0 %v5696
    %9420 = vmatpush.bf16.msra.mxu0 %v5688
    %9421 = vmatmul.bf16.gmra.mxu0 %v206
    %v9422 = vpop.f32.mrf.mxu0
    %v9423 = vadd.f32 %v9410, %v9422
    %v9424 = vpop.f32.mrf.mxu0
    %9425 = vdwg.mxu0
    %9426 = vmatpush.bf16.msra.mxu0 %v5808
    %9427 = vmatpush.bf16.msra.mxu0 %v5800
    %9428 = vmatpush.bf16.msra.mxu0 %v5792
    %9429 = vmatpush.bf16.msra.mxu0 %v5784
    %9430 = vmatpush.bf16.msra.mxu0 %v5776
    %9431 = vmatpush.bf16.msra.mxu0 %v5768
    %9432 = vmatpush.bf16.msra.mxu0 %v5760
    %9433 = vmatpush.bf16.msra.mxu0 %v5752
    %9434 = vmatmul.bf16.gmra.mxu0 %v207
    %v9435 = vpop.f32.mrf.mxu0
    %v9436 = vadd.f32 %v9423, %v9435
    %v9437 = vpop.f32.mrf.mxu0
    %9438 = vdwg.mxu0
    %9439 = vmatpush.bf16.msra.mxu0 %v5872
    %9440 = vmatpush.bf16.msra.mxu0 %v5864
    %9441 = vmatpush.bf16.msra.mxu0 %v5856
    %9442 = vmatpush.bf16.msra.mxu0 %v5848
    %9443 = vmatpush.bf16.msra.mxu0 %v5840
    %9444 = vmatpush.bf16.msra.mxu0 %v5832
    %9445 = vmatpush.bf16.msra.mxu0 %v5824
    %9446 = vmatpush.bf16.msra.mxu0 %v5816
    %9447 = vmatmul.bf16.gmra.mxu0 %v208
    %v9448 = vpop.f32.mrf.mxu0
    %v9449 = vadd.f32 %v9436, %v9448
    %v9450 = vpop.f32.mrf.mxu0
    %9451 = vdwg.mxu0
    %9452 = vmatpush.bf16.msra.mxu0 %v5936
    %9453 = vmatpush.bf16.msra.mxu0 %v5928
    %9454 = vmatpush.bf16.msra.mxu0 %v5920
    %9455 = vmatpush.bf16.msra.mxu0 %v5912
    %9456 = vmatpush.bf16.msra.mxu0 %v5904
    %9457 = vmatpush.bf16.msra.mxu0 %v5896
    %9458 = vmatpush.bf16.msra.mxu0 %v5888
    %9459 = vmatpush.bf16.msra.mxu0 %v5880
    %9460 = vmatmul.bf16.gmra.mxu0 %v209
    %v9461 = vpop.f32.mrf.mxu0
    %v9462 = vadd.f32 %v9449, %v9461
    %v9463 = vpop.f32.mrf.mxu0
    %9464 = vdwg.mxu0
    %9465 = vmatpush.bf16.msra.mxu0 %v6000
    %9466 = vmatpush.bf16.msra.mxu0 %v5992
    %9467 = vmatpush.bf16.msra.mxu0 %v5984
    %9468 = vmatpush.bf16.msra.mxu0 %v5976
    %9469 = vmatpush.bf16.msra.mxu0 %v5968
    %9470 = vmatpush.bf16.msra.mxu0 %v5960
    %9471 = vmatpush.bf16.msra.mxu0 %v5952
    %9472 = vmatpush.bf16.msra.mxu0 %v5944
    %9473 = vmatmul.bf16.gmra.mxu0 %v210
    %v9474 = vpop.f32.mrf.mxu0
    %v9475 = vadd.f32 %v9462, %v9474
    %v9476 = vpop.f32.mrf.mxu0
    %9477 = vdwg.mxu0
    %9478 = vmatpush.bf16.msra.mxu0 %v6064
    %9479 = vmatpush.bf16.msra.mxu0 %v6056
    %9480 = vmatpush.bf16.msra.mxu0 %v6048
    %9481 = vmatpush.bf16.msra.mxu0 %v6040
    %9482 = vmatpush.bf16.msra.mxu0 %v6032
    %9483 = vmatpush.bf16.msra.mxu0 %v6024
    %9484 = vmatpush.bf16.msra.mxu0 %v6016
    %9485 = vmatpush.bf16.msra.mxu0 %v6008
    %9486 = vmatmul.bf16.gmra.mxu0 %v211
    %v9487 = vpop.f32.mrf.mxu0
    %v9488 = vadd.f32 %v9475, %v9487
    %v9489 = vpop.f32.mrf.mxu0
    %9490 = vdwg.mxu0
    %9491 = vmatpush.bf16.msra.mxu0 %v6128
    %9492 = vmatpush.bf16.msra.mxu0 %v6120
    %9493 = vmatpush.bf16.msra.mxu0 %v6112
    %9494 = vmatpush.bf16.msra.mxu0 %v6104
    %9495 = vmatpush.bf16.msra.mxu0 %v6096
    %9496 = vmatpush.bf16.msra.mxu0 %v6088
    %9497 = vmatpush.bf16.msra.mxu0 %v6080
    %9498 = vmatpush.bf16.msra.mxu0 %v6072
    %9499 = vmatmul.bf16.gmra.mxu0 %v212
    %v9500 = vpop.f32.mrf.mxu0
    %v9501 = vadd.f32 %v9488, %v9500
    %v9502 = vpop.f32.mrf.mxu0
    %9503 = vdwg.mxu0
    %9504 = vmatpush.bf16.msra.mxu0 %v6192
    %9505 = vmatpush.bf16.msra.mxu0 %v6184
    %9506 = vmatpush.bf16.msra.mxu0 %v6176
    %9507 = vmatpush.bf16.msra.mxu0 %v6168
    %9508 = vmatpush.bf16.msra.mxu0 %v6160
    %9509 = vmatpush.bf16.msra.mxu0 %v6152
    %9510 = vmatpush.bf16.msra.mxu0 %v6144
    %9511 = vmatpush.bf16.msra.mxu0 %v6136
    %9512 = vmatmul.bf16.gmra.mxu0 %v213
    %v9513 = vpop.f32.mrf.mxu0
    %v9514 = vadd.f32 %v9501, %v9513
    %v9515 = vpop.f32.mrf.mxu0
    %9516 = vdwg.mxu0
    %9517 = vmatpush.bf16.msra.mxu0 %v6256
    %9518 = vmatpush.bf16.msra.mxu0 %v6248
    %9519 = vmatpush.bf16.msra.mxu0 %v6240
    %9520 = vmatpush.bf16.msra.mxu0 %v6232
    %9521 = vmatpush.bf16.msra.mxu0 %v6224
    %9522 = vmatpush.bf16.msra.mxu0 %v6216
    %9523 = vmatpush.bf16.msra.mxu0 %v6208
    %9524 = vmatpush.bf16.msra.mxu0 %v6200
    %9525 = vmatmul.bf16.gmra.mxu0 %v214
    %v9526 = vpop.f32.mrf.mxu0
    %v9527 = vadd.f32 %v9514, %v9526
    %v9528 = vpop.f32.mrf.mxu0
    %9529 = vdwg.mxu0
    %9530 = vmatpush.bf16.msra.mxu0 %v6320
    %9531 = vmatpush.bf16.msra.mxu0 %v6312
    %9532 = vmatpush.bf16.msra.mxu0 %v6304
    %9533 = vmatpush.bf16.msra.mxu0 %v6296
    %9534 = vmatpush.bf16.msra.mxu0 %v6288
    %9535 = vmatpush.bf16.msra.mxu0 %v6280
    %9536 = vmatpush.bf16.msra.mxu0 %v6272
    %9537 = vmatpush.bf16.msra.mxu0 %v6264
    %9538 = vmatmul.bf16.gmra.mxu0 %v215
    %v9539 = vpop.f32.mrf.mxu0
    %v9540 = vadd.f32 %v9527, %v9539
    %v9541 = vpop.f32.mrf.mxu0
    %9542 = vdwg.mxu0
    %9543 = vmatpush.bf16.msra.mxu0 %v6384
    %9544 = vmatpush.bf16.msra.mxu0 %v6376
    %9545 = vmatpush.bf16.msra.mxu0 %v6368
    %9546 = vmatpush.bf16.msra.mxu0 %v6360
    %9547 = vmatpush.bf16.msra.mxu0 %v6352
    %9548 = vmatpush.bf16.msra.mxu0 %v6344
    %9549 = vmatpush.bf16.msra.mxu0 %v6336
    %9550 = vmatpush.bf16.msra.mxu0 %v6328
    %9551 = vmatmul.bf16.gmra.mxu0 %v216
    %v9552 = vpop.f32.mrf.mxu0
    %v9553 = vadd.f32 %v9540, %v9552
    %v9554 = vpop.f32.mrf.mxu0
    %9555 = vdwg.mxu0
    %9556 = vmatpush.bf16.msra.mxu0 %v6448
    %9557 = vmatpush.bf16.msra.mxu0 %v6440
    %9558 = vmatpush.bf16.msra.mxu0 %v6432
    %9559 = vmatpush.bf16.msra.mxu0 %v6424
    %9560 = vmatpush.bf16.msra.mxu0 %v6416
    %9561 = vmatpush.bf16.msra.mxu0 %v6408
    %9562 = vmatpush.bf16.msra.mxu0 %v6400
    %9563 = vmatpush.bf16.msra.mxu0 %v6392
    %9564 = vmatmul.bf16.gmra.mxu0 %v217
    %v9565 = vpop.f32.mrf.mxu0
    %v9566 = vadd.f32 %v9553, %v9565
    %v9567 = vpop.f32.mrf.mxu0
    %9568 = vdwg.mxu0
    %9569 = vmatpush.bf16.msra.mxu0 %v6512
    %9570 = vmatpush.bf16.msra.mxu0 %v6504
    %9571 = vmatpush.bf16.msra.mxu0 %v6496
    %9572 = vmatpush.bf16.msra.mxu0 %v6488
    %9573 = vmatpush.bf16.msra.mxu0 %v6480
    %9574 = vmatpush.bf16.msra.mxu0 %v6472
    %9575 = vmatpush.bf16.msra.mxu0 %v6464
    %9576 = vmatpush.bf16.msra.mxu0 %v6456
    %9577 = vmatmul.bf16.gmra.mxu0 %v218
    %v9578 = vpop.f32.mrf.mxu0
    %v9579 = vadd.f32 %v9566, %v9578
    %v9580 = vpop.f32.mrf.mxu0
    %9581 = vdwg.mxu0
    %9582 = vmatpush.bf16.msra.mxu0 %v6576
    %9583 = vmatpush.bf16.msra.mxu0 %v6568
    %9584 = vmatpush.bf16.msra.mxu0 %v6560
    %9585 = vmatpush.bf16.msra.mxu0 %v6552
    %9586 = vmatpush.bf16.msra.mxu0 %v6544
    %9587 = vmatpush.bf16.msra.mxu0 %v6536
    %9588 = vmatpush.bf16.msra.mxu0 %v6528
    %9589 = vmatpush.bf16.msra.mxu0 %v6520
    %9590 = vmatmul.bf16.gmra.mxu0 %v219
    %v9591 = vpop.f32.mrf.mxu0
    %v9592 = vadd.f32 %v9579, %v9591
    %v9593 = vpop.f32.mrf.mxu0
    %9594 = vdwg.mxu0
    %9595 = vmatpush.bf16.msra.mxu0 %v6640
    %9596 = vmatpush.bf16.msra.mxu0 %v6632
    %9597 = vmatpush.bf16.msra.mxu0 %v6624
    %9598 = vmatpush.bf16.msra.mxu0 %v6616
    %9599 = vmatpush.bf16.msra.mxu0 %v6608
    %9600 = vmatpush.bf16.msra.mxu0 %v6600
    %9601 = vmatpush.bf16.msra.mxu0 %v6592
    %9602 = vmatpush.bf16.msra.mxu0 %v6584
    %9603 = vmatmul.bf16.gmra.mxu0 %v220
    %v9604 = vpop.f32.mrf.mxu0
    %v9605 = vadd.f32 %v9592, %v9604
    %v9606 = vpop.f32.mrf.mxu0
    %9607 = vdwg.mxu0
    %9608 = vmatpush.bf16.msra.mxu0 %v6704
    %9609 = vmatpush.bf16.msra.mxu0 %v6696
    %9610 = vmatpush.bf16.msra.mxu0 %v6688
    %9611 = vmatpush.bf16.msra.mxu0 %v6680
    %9612 = vmatpush.bf16.msra.mxu0 %v6672
    %9613 = vmatpush.bf16.msra.mxu0 %v6664
    %9614 = vmatpush.bf16.msra.mxu0 %v6656
    %9615 = vmatpush.bf16.msra.mxu0 %v6648
    %9616 = vmatmul.bf16.gmra.mxu0 %v221
    %v9617 = vpop.f32.mrf.mxu0
    %v9618 = vadd.f32 %v9605, %v9617
    %v9619 = vpop.f32.mrf.mxu0
    %9620 = vdwg.mxu0
    %9621 = vmatpush.bf16.msra.mxu0 %v6768
    %9622 = vmatpush.bf16.msra.mxu0 %v6760
    %9623 = vmatpush.bf16.msra.mxu0 %v6752
    %9624 = vmatpush.bf16.msra.mxu0 %v6744
    %9625 = vmatpush.bf16.msra.mxu0 %v6736
    %9626 = vmatpush.bf16.msra.mxu0 %v6728
    %9627 = vmatpush.bf16.msra.mxu0 %v6720
    %9628 = vmatpush.bf16.msra.mxu0 %v6712
    %9629 = vmatmul.bf16.gmra.mxu0 %v222
    %v9630 = vpop.f32.mrf.mxu0
    %v9631 = vadd.f32 %v9618, %v9630
    %v9632 = vpop.f32.mrf.mxu0
    %9633 = vdwg.mxu0
    %9634 = vmatpush.bf16.msra.mxu0 %v6832
    %9635 = vmatpush.bf16.msra.mxu0 %v6824
    %9636 = vmatpush.bf16.msra.mxu0 %v6816
    %9637 = vmatpush.bf16.msra.mxu0 %v6808
    %9638 = vmatpush.bf16.msra.mxu0 %v6800
    %9639 = vmatpush.bf16.msra.mxu0 %v6792
    %9640 = vmatpush.bf16.msra.mxu0 %v6784
    %9641 = vmatpush.bf16.msra.mxu0 %v6776
    %9642 = vmatmul.bf16.gmra.mxu0 %v223
    %v9643 = vpop.f32.mrf.mxu0
    %v9644 = vadd.f32 %v9631, %v9643
    %v9645 = vpop.f32.mrf.mxu0
    %9646 = vdwg.mxu0
    %9647 = vmatpush.bf16.msra.mxu0 %v6896
    %9648 = vmatpush.bf16.msra.mxu0 %v6888
    %9649 = vmatpush.bf16.msra.mxu0 %v6880
    %9650 = vmatpush.bf16.msra.mxu0 %v6872
    %9651 = vmatpush.bf16.msra.mxu0 %v6864
    %9652 = vmatpush.bf16.msra.mxu0 %v6856
    %9653 = vmatpush.bf16.msra.mxu0 %v6848
    %9654 = vmatpush.bf16.msra.mxu0 %v6840
    %9655 = vmatmul.bf16.gmra.mxu0 %v224
    %v9656 = vpop.f32.mrf.mxu0
    %v9657 = vadd.f32 %v9644, %v9656
    %v9658 = vpop.f32.mrf.mxu0
    %9659 = vdwg.mxu0
    %9660 = vmatpush.bf16.msra.mxu0 %v6960
    %9661 = vmatpush.bf16.msra.mxu0 %v6952
    %9662 = vmatpush.bf16.msra.mxu0 %v6944
    %9663 = vmatpush.bf16.msra.mxu0 %v6936
    %9664 = vmatpush.bf16.msra.mxu0 %v6928
    %9665 = vmatpush.bf16.msra.mxu0 %v6920
    %9666 = vmatpush.bf16.msra.mxu0 %v6912
    %9667 = vmatpush.bf16.msra.mxu0 %v6904
    %9668 = vmatmul.bf16.gmra.mxu0 %v225
    %v9669 = vpop.f32.mrf.mxu0
    %v9670 = vadd.f32 %v9657, %v9669
    %v9671 = vpop.f32.mrf.mxu0
    %9672 = vdwg.mxu0
    %9673 = vmatpush.bf16.msra.mxu0 %v5681
    %9674 = vmatpush.bf16.msra.mxu0 %v5673
    %9675 = vmatpush.bf16.msra.mxu0 %v5665
    %9676 = vmatpush.bf16.msra.mxu0 %v5657
    %9677 = vmatpush.bf16.msra.mxu0 %v5649
    %9678 = vmatpush.bf16.msra.mxu0 %v5641
    %9679 = vmatpush.bf16.msra.mxu0 %v5633
    %9680 = vmatpush.bf16.msra.mxu0 %v5625
    %9681 = vmatmul.bf16.gmra.mxu0 %v205
    %v9682 = vpop.f32.mrf.mxu0
    %v9683 = vadd.f32 %v1577, %v9682
    %v9684 = vpop.f32.mrf.mxu0
    %9685 = vdwg.mxu0
    %9686 = vmatpush.bf16.msra.mxu0 %v5745
    %9687 = vmatpush.bf16.msra.mxu0 %v5737
    %9688 = vmatpush.bf16.msra.mxu0 %v5729
    %9689 = vmatpush.bf16.msra.mxu0 %v5721
    %9690 = vmatpush.bf16.msra.mxu0 %v5713
    %9691 = vmatpush.bf16.msra.mxu0 %v5705
    %9692 = vmatpush.bf16.msra.mxu0 %v5697
    %9693 = vmatpush.bf16.msra.mxu0 %v5689
    %9694 = vmatmul.bf16.gmra.mxu0 %v206
    %v9695 = vpop.f32.mrf.mxu0
    %v9696 = vadd.f32 %v9683, %v9695
    %v9697 = vpop.f32.mrf.mxu0
    %9698 = vdwg.mxu0
    %9699 = vmatpush.bf16.msra.mxu0 %v5809
    %9700 = vmatpush.bf16.msra.mxu0 %v5801
    %9701 = vmatpush.bf16.msra.mxu0 %v5793
    %9702 = vmatpush.bf16.msra.mxu0 %v5785
    %9703 = vmatpush.bf16.msra.mxu0 %v5777
    %9704 = vmatpush.bf16.msra.mxu0 %v5769
    %9705 = vmatpush.bf16.msra.mxu0 %v5761
    %9706 = vmatpush.bf16.msra.mxu0 %v5753
    %9707 = vmatmul.bf16.gmra.mxu0 %v207
    %v9708 = vpop.f32.mrf.mxu0
    %v9709 = vadd.f32 %v9696, %v9708
    %v9710 = vpop.f32.mrf.mxu0
    %9711 = vdwg.mxu0
    %9712 = vmatpush.bf16.msra.mxu0 %v5873
    %9713 = vmatpush.bf16.msra.mxu0 %v5865
    %9714 = vmatpush.bf16.msra.mxu0 %v5857
    %9715 = vmatpush.bf16.msra.mxu0 %v5849
    %9716 = vmatpush.bf16.msra.mxu0 %v5841
    %9717 = vmatpush.bf16.msra.mxu0 %v5833
    %9718 = vmatpush.bf16.msra.mxu0 %v5825
    %9719 = vmatpush.bf16.msra.mxu0 %v5817
    %9720 = vmatmul.bf16.gmra.mxu0 %v208
    %v9721 = vpop.f32.mrf.mxu0
    %v9722 = vadd.f32 %v9709, %v9721
    %v9723 = vpop.f32.mrf.mxu0
    %9724 = vdwg.mxu0
    %9725 = vmatpush.bf16.msra.mxu0 %v5937
    %9726 = vmatpush.bf16.msra.mxu0 %v5929
    %9727 = vmatpush.bf16.msra.mxu0 %v5921
    %9728 = vmatpush.bf16.msra.mxu0 %v5913
    %9729 = vmatpush.bf16.msra.mxu0 %v5905
    %9730 = vmatpush.bf16.msra.mxu0 %v5897
    %9731 = vmatpush.bf16.msra.mxu0 %v5889
    %9732 = vmatpush.bf16.msra.mxu0 %v5881
    %9733 = vmatmul.bf16.gmra.mxu0 %v209
    %v9734 = vpop.f32.mrf.mxu0
    %v9735 = vadd.f32 %v9722, %v9734
    %v9736 = vpop.f32.mrf.mxu0
    %9737 = vdwg.mxu0
    %9738 = vmatpush.bf16.msra.mxu0 %v6001
    %9739 = vmatpush.bf16.msra.mxu0 %v5993
    %9740 = vmatpush.bf16.msra.mxu0 %v5985
    %9741 = vmatpush.bf16.msra.mxu0 %v5977
    %9742 = vmatpush.bf16.msra.mxu0 %v5969
    %9743 = vmatpush.bf16.msra.mxu0 %v5961
    %9744 = vmatpush.bf16.msra.mxu0 %v5953
    %9745 = vmatpush.bf16.msra.mxu0 %v5945
    %9746 = vmatmul.bf16.gmra.mxu0 %v210
    %v9747 = vpop.f32.mrf.mxu0
    %v9748 = vadd.f32 %v9735, %v9747
    %v9749 = vpop.f32.mrf.mxu0
    %9750 = vdwg.mxu0
    %9751 = vmatpush.bf16.msra.mxu0 %v6065
    %9752 = vmatpush.bf16.msra.mxu0 %v6057
    %9753 = vmatpush.bf16.msra.mxu0 %v6049
    %9754 = vmatpush.bf16.msra.mxu0 %v6041
    %9755 = vmatpush.bf16.msra.mxu0 %v6033
    %9756 = vmatpush.bf16.msra.mxu0 %v6025
    %9757 = vmatpush.bf16.msra.mxu0 %v6017
    %9758 = vmatpush.bf16.msra.mxu0 %v6009
    %9759 = vmatmul.bf16.gmra.mxu0 %v211
    %v9760 = vpop.f32.mrf.mxu0
    %v9761 = vadd.f32 %v9748, %v9760
    %v9762 = vpop.f32.mrf.mxu0
    %9763 = vdwg.mxu0
    %9764 = vmatpush.bf16.msra.mxu0 %v6129
    %9765 = vmatpush.bf16.msra.mxu0 %v6121
    %9766 = vmatpush.bf16.msra.mxu0 %v6113
    %9767 = vmatpush.bf16.msra.mxu0 %v6105
    %9768 = vmatpush.bf16.msra.mxu0 %v6097
    %9769 = vmatpush.bf16.msra.mxu0 %v6089
    %9770 = vmatpush.bf16.msra.mxu0 %v6081
    %9771 = vmatpush.bf16.msra.mxu0 %v6073
    %9772 = vmatmul.bf16.gmra.mxu0 %v212
    %v9773 = vpop.f32.mrf.mxu0
    %v9774 = vadd.f32 %v9761, %v9773
    %v9775 = vpop.f32.mrf.mxu0
    %9776 = vdwg.mxu0
    %9777 = vmatpush.bf16.msra.mxu0 %v6193
    %9778 = vmatpush.bf16.msra.mxu0 %v6185
    %9779 = vmatpush.bf16.msra.mxu0 %v6177
    %9780 = vmatpush.bf16.msra.mxu0 %v6169
    %9781 = vmatpush.bf16.msra.mxu0 %v6161
    %9782 = vmatpush.bf16.msra.mxu0 %v6153
    %9783 = vmatpush.bf16.msra.mxu0 %v6145
    %9784 = vmatpush.bf16.msra.mxu0 %v6137
    %9785 = vmatmul.bf16.gmra.mxu0 %v213
    %v9786 = vpop.f32.mrf.mxu0
    %v9787 = vadd.f32 %v9774, %v9786
    %v9788 = vpop.f32.mrf.mxu0
    %9789 = vdwg.mxu0
    %9790 = vmatpush.bf16.msra.mxu0 %v6257
    %9791 = vmatpush.bf16.msra.mxu0 %v6249
    %9792 = vmatpush.bf16.msra.mxu0 %v6241
    %9793 = vmatpush.bf16.msra.mxu0 %v6233
    %9794 = vmatpush.bf16.msra.mxu0 %v6225
    %9795 = vmatpush.bf16.msra.mxu0 %v6217
    %9796 = vmatpush.bf16.msra.mxu0 %v6209
    %9797 = vmatpush.bf16.msra.mxu0 %v6201
    %9798 = vmatmul.bf16.gmra.mxu0 %v214
    %v9799 = vpop.f32.mrf.mxu0
    %v9800 = vadd.f32 %v9787, %v9799
    %v9801 = vpop.f32.mrf.mxu0
    %9802 = vdwg.mxu0
    %9803 = vmatpush.bf16.msra.mxu0 %v6321
    %9804 = vmatpush.bf16.msra.mxu0 %v6313
    %9805 = vmatpush.bf16.msra.mxu0 %v6305
    %9806 = vmatpush.bf16.msra.mxu0 %v6297
    %9807 = vmatpush.bf16.msra.mxu0 %v6289
    %9808 = vmatpush.bf16.msra.mxu0 %v6281
    %9809 = vmatpush.bf16.msra.mxu0 %v6273
    %9810 = vmatpush.bf16.msra.mxu0 %v6265
    %9811 = vmatmul.bf16.gmra.mxu0 %v215
    %v9812 = vpop.f32.mrf.mxu0
    %v9813 = vadd.f32 %v9800, %v9812
    %v9814 = vpop.f32.mrf.mxu0
    %9815 = vdwg.mxu0
    %9816 = vmatpush.bf16.msra.mxu0 %v6385
    %9817 = vmatpush.bf16.msra.mxu0 %v6377
    %9818 = vmatpush.bf16.msra.mxu0 %v6369
    %9819 = vmatpush.bf16.msra.mxu0 %v6361
    %9820 = vmatpush.bf16.msra.mxu0 %v6353
    %9821 = vmatpush.bf16.msra.mxu0 %v6345
    %9822 = vmatpush.bf16.msra.mxu0 %v6337
    %9823 = vmatpush.bf16.msra.mxu0 %v6329
    %9824 = vmatmul.bf16.gmra.mxu0 %v216
    %v9825 = vpop.f32.mrf.mxu0
    %v9826 = vadd.f32 %v9813, %v9825
    %v9827 = vpop.f32.mrf.mxu0
    %9828 = vdwg.mxu0
    %9829 = vmatpush.bf16.msra.mxu0 %v6449
    %9830 = vmatpush.bf16.msra.mxu0 %v6441
    %9831 = vmatpush.bf16.msra.mxu0 %v6433
    %9832 = vmatpush.bf16.msra.mxu0 %v6425
    %9833 = vmatpush.bf16.msra.mxu0 %v6417
    %9834 = vmatpush.bf16.msra.mxu0 %v6409
    %9835 = vmatpush.bf16.msra.mxu0 %v6401
    %9836 = vmatpush.bf16.msra.mxu0 %v6393
    %9837 = vmatmul.bf16.gmra.mxu0 %v217
    %v9838 = vpop.f32.mrf.mxu0
    %v9839 = vadd.f32 %v9826, %v9838
    %v9840 = vpop.f32.mrf.mxu0
    %9841 = vdwg.mxu0
    %9842 = vmatpush.bf16.msra.mxu0 %v6513
    %9843 = vmatpush.bf16.msra.mxu0 %v6505
    %9844 = vmatpush.bf16.msra.mxu0 %v6497
    %9845 = vmatpush.bf16.msra.mxu0 %v6489
    %9846 = vmatpush.bf16.msra.mxu0 %v6481
    %9847 = vmatpush.bf16.msra.mxu0 %v6473
    %9848 = vmatpush.bf16.msra.mxu0 %v6465
    %9849 = vmatpush.bf16.msra.mxu0 %v6457
    %9850 = vmatmul.bf16.gmra.mxu0 %v218
    %v9851 = vpop.f32.mrf.mxu0
    %v9852 = vadd.f32 %v9839, %v9851
    %v9853 = vpop.f32.mrf.mxu0
    %9854 = vdwg.mxu0
    %9855 = vmatpush.bf16.msra.mxu0 %v6577
    %9856 = vmatpush.bf16.msra.mxu0 %v6569
    %9857 = vmatpush.bf16.msra.mxu0 %v6561
    %9858 = vmatpush.bf16.msra.mxu0 %v6553
    %9859 = vmatpush.bf16.msra.mxu0 %v6545
    %9860 = vmatpush.bf16.msra.mxu0 %v6537
    %9861 = vmatpush.bf16.msra.mxu0 %v6529
    %9862 = vmatpush.bf16.msra.mxu0 %v6521
    %9863 = vmatmul.bf16.gmra.mxu0 %v219
    %v9864 = vpop.f32.mrf.mxu0
    %v9865 = vadd.f32 %v9852, %v9864
    %v9866 = vpop.f32.mrf.mxu0
    %9867 = vdwg.mxu0
    %9868 = vmatpush.bf16.msra.mxu0 %v6641
    %9869 = vmatpush.bf16.msra.mxu0 %v6633
    %9870 = vmatpush.bf16.msra.mxu0 %v6625
    %9871 = vmatpush.bf16.msra.mxu0 %v6617
    %9872 = vmatpush.bf16.msra.mxu0 %v6609
    %9873 = vmatpush.bf16.msra.mxu0 %v6601
    %9874 = vmatpush.bf16.msra.mxu0 %v6593
    %9875 = vmatpush.bf16.msra.mxu0 %v6585
    %9876 = vmatmul.bf16.gmra.mxu0 %v220
    %v9877 = vpop.f32.mrf.mxu0
    %v9878 = vadd.f32 %v9865, %v9877
    %v9879 = vpop.f32.mrf.mxu0
    %9880 = vdwg.mxu0
    %9881 = vmatpush.bf16.msra.mxu0 %v6705
    %9882 = vmatpush.bf16.msra.mxu0 %v6697
    %9883 = vmatpush.bf16.msra.mxu0 %v6689
    %9884 = vmatpush.bf16.msra.mxu0 %v6681
    %9885 = vmatpush.bf16.msra.mxu0 %v6673
    %9886 = vmatpush.bf16.msra.mxu0 %v6665
    %9887 = vmatpush.bf16.msra.mxu0 %v6657
    %9888 = vmatpush.bf16.msra.mxu0 %v6649
    %9889 = vmatmul.bf16.gmra.mxu0 %v221
    %v9890 = vpop.f32.mrf.mxu0
    %v9891 = vadd.f32 %v9878, %v9890
    %v9892 = vpop.f32.mrf.mxu0
    %9893 = vdwg.mxu0
    %9894 = vmatpush.bf16.msra.mxu0 %v6769
    %9895 = vmatpush.bf16.msra.mxu0 %v6761
    %9896 = vmatpush.bf16.msra.mxu0 %v6753
    %9897 = vmatpush.bf16.msra.mxu0 %v6745
    %9898 = vmatpush.bf16.msra.mxu0 %v6737
    %9899 = vmatpush.bf16.msra.mxu0 %v6729
    %9900 = vmatpush.bf16.msra.mxu0 %v6721
    %9901 = vmatpush.bf16.msra.mxu0 %v6713
    %9902 = vmatmul.bf16.gmra.mxu0 %v222
    %v9903 = vpop.f32.mrf.mxu0
    %v9904 = vadd.f32 %v9891, %v9903
    %v9905 = vpop.f32.mrf.mxu0
    %9906 = vdwg.mxu0
    %9907 = vmatpush.bf16.msra.mxu0 %v6833
    %9908 = vmatpush.bf16.msra.mxu0 %v6825
    %9909 = vmatpush.bf16.msra.mxu0 %v6817
    %9910 = vmatpush.bf16.msra.mxu0 %v6809
    %9911 = vmatpush.bf16.msra.mxu0 %v6801
    %9912 = vmatpush.bf16.msra.mxu0 %v6793
    %9913 = vmatpush.bf16.msra.mxu0 %v6785
    %9914 = vmatpush.bf16.msra.mxu0 %v6777
    %9915 = vmatmul.bf16.gmra.mxu0 %v223
    %v9916 = vpop.f32.mrf.mxu0
    %v9917 = vadd.f32 %v9904, %v9916
    %v9918 = vpop.f32.mrf.mxu0
    %9919 = vdwg.mxu0
    %9920 = vmatpush.bf16.msra.mxu0 %v6897
    %9921 = vmatpush.bf16.msra.mxu0 %v6889
    %9922 = vmatpush.bf16.msra.mxu0 %v6881
    %9923 = vmatpush.bf16.msra.mxu0 %v6873
    %9924 = vmatpush.bf16.msra.mxu0 %v6865
    %9925 = vmatpush.bf16.msra.mxu0 %v6857
    %9926 = vmatpush.bf16.msra.mxu0 %v6849
    %9927 = vmatpush.bf16.msra.mxu0 %v6841
    %9928 = vmatmul.bf16.gmra.mxu0 %v224
    %v9929 = vpop.f32.mrf.mxu0
    %v9930 = vadd.f32 %v9917, %v9929
    %v9931 = vpop.f32.mrf.mxu0
    %9932 = vdwg.mxu0
    %9933 = vmatpush.bf16.msra.mxu0 %v6961
    %9934 = vmatpush.bf16.msra.mxu0 %v6953
    %9935 = vmatpush.bf16.msra.mxu0 %v6945
    %9936 = vmatpush.bf16.msra.mxu0 %v6937
    %9937 = vmatpush.bf16.msra.mxu0 %v6929
    %9938 = vmatpush.bf16.msra.mxu0 %v6921
    %9939 = vmatpush.bf16.msra.mxu0 %v6913
    %9940 = vmatpush.bf16.msra.mxu0 %v6905
    %9941 = vmatmul.bf16.gmra.mxu0 %v225
    %v9942 = vpop.f32.mrf.mxu0
    %v9943 = vadd.f32 %v9930, %v9942
    %v9944 = vpop.f32.mrf.mxu0
    %9945 = vdwg.mxu0
    %9946 = vmatpush.bf16.msra.mxu0 %v5682
    %9947 = vmatpush.bf16.msra.mxu0 %v5674
    %9948 = vmatpush.bf16.msra.mxu0 %v5666
    %9949 = vmatpush.bf16.msra.mxu0 %v5658
    %9950 = vmatpush.bf16.msra.mxu0 %v5650
    %9951 = vmatpush.bf16.msra.mxu0 %v5642
    %9952 = vmatpush.bf16.msra.mxu0 %v5634
    %9953 = vmatpush.bf16.msra.mxu0 %v5626
    %9954 = vmatmul.bf16.gmra.mxu0 %v205
    %v9955 = vpop.f32.mrf.mxu0
    %v9956 = vadd.f32 %v1578, %v9955
    %v9957 = vpop.f32.mrf.mxu0
    %9958 = vdwg.mxu0
    %9959 = vmatpush.bf16.msra.mxu0 %v5746
    %9960 = vmatpush.bf16.msra.mxu0 %v5738
    %9961 = vmatpush.bf16.msra.mxu0 %v5730
    %9962 = vmatpush.bf16.msra.mxu0 %v5722
    %9963 = vmatpush.bf16.msra.mxu0 %v5714
    %9964 = vmatpush.bf16.msra.mxu0 %v5706
    %9965 = vmatpush.bf16.msra.mxu0 %v5698
    %9966 = vmatpush.bf16.msra.mxu0 %v5690
    %9967 = vmatmul.bf16.gmra.mxu0 %v206
    %v9968 = vpop.f32.mrf.mxu0
    %v9969 = vadd.f32 %v9956, %v9968
    %v9970 = vpop.f32.mrf.mxu0
    %9971 = vdwg.mxu0
    %9972 = vmatpush.bf16.msra.mxu0 %v5810
    %9973 = vmatpush.bf16.msra.mxu0 %v5802
    %9974 = vmatpush.bf16.msra.mxu0 %v5794
    %9975 = vmatpush.bf16.msra.mxu0 %v5786
    %9976 = vmatpush.bf16.msra.mxu0 %v5778
    %9977 = vmatpush.bf16.msra.mxu0 %v5770
    %9978 = vmatpush.bf16.msra.mxu0 %v5762
    %9979 = vmatpush.bf16.msra.mxu0 %v5754
    %9980 = vmatmul.bf16.gmra.mxu0 %v207
    %v9981 = vpop.f32.mrf.mxu0
    %v9982 = vadd.f32 %v9969, %v9981
    %v9983 = vpop.f32.mrf.mxu0
    %9984 = vdwg.mxu0
    %9985 = vmatpush.bf16.msra.mxu0 %v5874
    %9986 = vmatpush.bf16.msra.mxu0 %v5866
    %9987 = vmatpush.bf16.msra.mxu0 %v5858
    %9988 = vmatpush.bf16.msra.mxu0 %v5850
    %9989 = vmatpush.bf16.msra.mxu0 %v5842
    %9990 = vmatpush.bf16.msra.mxu0 %v5834
    %9991 = vmatpush.bf16.msra.mxu0 %v5826
    %9992 = vmatpush.bf16.msra.mxu0 %v5818
    %9993 = vmatmul.bf16.gmra.mxu0 %v208
    %v9994 = vpop.f32.mrf.mxu0
    %v9995 = vadd.f32 %v9982, %v9994
    %v9996 = vpop.f32.mrf.mxu0
    %9997 = vdwg.mxu0
    %9998 = vmatpush.bf16.msra.mxu0 %v5938
    %9999 = vmatpush.bf16.msra.mxu0 %v5930
    %10000 = vmatpush.bf16.msra.mxu0 %v5922
    %10001 = vmatpush.bf16.msra.mxu0 %v5914
    %10002 = vmatpush.bf16.msra.mxu0 %v5906
    %10003 = vmatpush.bf16.msra.mxu0 %v5898
    %10004 = vmatpush.bf16.msra.mxu0 %v5890
    %10005 = vmatpush.bf16.msra.mxu0 %v5882
    %10006 = vmatmul.bf16.gmra.mxu0 %v209
    %v10007 = vpop.f32.mrf.mxu0
    %v10008 = vadd.f32 %v9995, %v10007
    %v10009 = vpop.f32.mrf.mxu0
    %10010 = vdwg.mxu0
    %10011 = vmatpush.bf16.msra.mxu0 %v6002
    %10012 = vmatpush.bf16.msra.mxu0 %v5994
    %10013 = vmatpush.bf16.msra.mxu0 %v5986
    %10014 = vmatpush.bf16.msra.mxu0 %v5978
    %10015 = vmatpush.bf16.msra.mxu0 %v5970
    %10016 = vmatpush.bf16.msra.mxu0 %v5962
    %10017 = vmatpush.bf16.msra.mxu0 %v5954
    %10018 = vmatpush.bf16.msra.mxu0 %v5946
    %10019 = vmatmul.bf16.gmra.mxu0 %v210
    %v10020 = vpop.f32.mrf.mxu0
    %v10021 = vadd.f32 %v10008, %v10020
    %v10022 = vpop.f32.mrf.mxu0
    %10023 = vdwg.mxu0
    %10024 = vmatpush.bf16.msra.mxu0 %v6066
    %10025 = vmatpush.bf16.msra.mxu0 %v6058
    %10026 = vmatpush.bf16.msra.mxu0 %v6050
    %10027 = vmatpush.bf16.msra.mxu0 %v6042
    %10028 = vmatpush.bf16.msra.mxu0 %v6034
    %10029 = vmatpush.bf16.msra.mxu0 %v6026
    %10030 = vmatpush.bf16.msra.mxu0 %v6018
    %10031 = vmatpush.bf16.msra.mxu0 %v6010
    %10032 = vmatmul.bf16.gmra.mxu0 %v211
    %v10033 = vpop.f32.mrf.mxu0
    %v10034 = vadd.f32 %v10021, %v10033
    %v10035 = vpop.f32.mrf.mxu0
    %10036 = vdwg.mxu0
    %10037 = vmatpush.bf16.msra.mxu0 %v6130
    %10038 = vmatpush.bf16.msra.mxu0 %v6122
    %10039 = vmatpush.bf16.msra.mxu0 %v6114
    %10040 = vmatpush.bf16.msra.mxu0 %v6106
    %10041 = vmatpush.bf16.msra.mxu0 %v6098
    %10042 = vmatpush.bf16.msra.mxu0 %v6090
    %10043 = vmatpush.bf16.msra.mxu0 %v6082
    %10044 = vmatpush.bf16.msra.mxu0 %v6074
    %10045 = vmatmul.bf16.gmra.mxu0 %v212
    %v10046 = vpop.f32.mrf.mxu0
    %v10047 = vadd.f32 %v10034, %v10046
    %v10048 = vpop.f32.mrf.mxu0
    %10049 = vdwg.mxu0
    %10050 = vmatpush.bf16.msra.mxu0 %v6194
    %10051 = vmatpush.bf16.msra.mxu0 %v6186
    %10052 = vmatpush.bf16.msra.mxu0 %v6178
    %10053 = vmatpush.bf16.msra.mxu0 %v6170
    %10054 = vmatpush.bf16.msra.mxu0 %v6162
    %10055 = vmatpush.bf16.msra.mxu0 %v6154
    %10056 = vmatpush.bf16.msra.mxu0 %v6146
    %10057 = vmatpush.bf16.msra.mxu0 %v6138
    %10058 = vmatmul.bf16.gmra.mxu0 %v213
    %v10059 = vpop.f32.mrf.mxu0
    %v10060 = vadd.f32 %v10047, %v10059
    %v10061 = vpop.f32.mrf.mxu0
    %10062 = vdwg.mxu0
    %10063 = vmatpush.bf16.msra.mxu0 %v6258
    %10064 = vmatpush.bf16.msra.mxu0 %v6250
    %10065 = vmatpush.bf16.msra.mxu0 %v6242
    %10066 = vmatpush.bf16.msra.mxu0 %v6234
    %10067 = vmatpush.bf16.msra.mxu0 %v6226
    %10068 = vmatpush.bf16.msra.mxu0 %v6218
    %10069 = vmatpush.bf16.msra.mxu0 %v6210
    %10070 = vmatpush.bf16.msra.mxu0 %v6202
    %10071 = vmatmul.bf16.gmra.mxu0 %v214
    %v10072 = vpop.f32.mrf.mxu0
    %v10073 = vadd.f32 %v10060, %v10072
    %v10074 = vpop.f32.mrf.mxu0
    %10075 = vdwg.mxu0
    %10076 = vmatpush.bf16.msra.mxu0 %v6322
    %10077 = vmatpush.bf16.msra.mxu0 %v6314
    %10078 = vmatpush.bf16.msra.mxu0 %v6306
    %10079 = vmatpush.bf16.msra.mxu0 %v6298
    %10080 = vmatpush.bf16.msra.mxu0 %v6290
    %10081 = vmatpush.bf16.msra.mxu0 %v6282
    %10082 = vmatpush.bf16.msra.mxu0 %v6274
    %10083 = vmatpush.bf16.msra.mxu0 %v6266
    %10084 = vmatmul.bf16.gmra.mxu0 %v215
    %v10085 = vpop.f32.mrf.mxu0
    %v10086 = vadd.f32 %v10073, %v10085
    %v10087 = vpop.f32.mrf.mxu0
    %10088 = vdwg.mxu0
    %10089 = vmatpush.bf16.msra.mxu0 %v6386
    %10090 = vmatpush.bf16.msra.mxu0 %v6378
    %10091 = vmatpush.bf16.msra.mxu0 %v6370
    %10092 = vmatpush.bf16.msra.mxu0 %v6362
    %10093 = vmatpush.bf16.msra.mxu0 %v6354
    %10094 = vmatpush.bf16.msra.mxu0 %v6346
    %10095 = vmatpush.bf16.msra.mxu0 %v6338
    %10096 = vmatpush.bf16.msra.mxu0 %v6330
    %10097 = vmatmul.bf16.gmra.mxu0 %v216
    %v10098 = vpop.f32.mrf.mxu0
    %v10099 = vadd.f32 %v10086, %v10098
    %v10100 = vpop.f32.mrf.mxu0
    %10101 = vdwg.mxu0
    %10102 = vmatpush.bf16.msra.mxu0 %v6450
    %10103 = vmatpush.bf16.msra.mxu0 %v6442
    %10104 = vmatpush.bf16.msra.mxu0 %v6434
    %10105 = vmatpush.bf16.msra.mxu0 %v6426
    %10106 = vmatpush.bf16.msra.mxu0 %v6418
    %10107 = vmatpush.bf16.msra.mxu0 %v6410
    %10108 = vmatpush.bf16.msra.mxu0 %v6402
    %10109 = vmatpush.bf16.msra.mxu0 %v6394
    %10110 = vmatmul.bf16.gmra.mxu0 %v217
    %v10111 = vpop.f32.mrf.mxu0
    %v10112 = vadd.f32 %v10099, %v10111
    %v10113 = vpop.f32.mrf.mxu0
    %10114 = vdwg.mxu0
    %10115 = vmatpush.bf16.msra.mxu0 %v6514
    %10116 = vmatpush.bf16.msra.mxu0 %v6506
    %10117 = vmatpush.bf16.msra.mxu0 %v6498
    %10118 = vmatpush.bf16.msra.mxu0 %v6490
    %10119 = vmatpush.bf16.msra.mxu0 %v6482
    %10120 = vmatpush.bf16.msra.mxu0 %v6474
    %10121 = vmatpush.bf16.msra.mxu0 %v6466
    %10122 = vmatpush.bf16.msra.mxu0 %v6458
    %10123 = vmatmul.bf16.gmra.mxu0 %v218
    %v10124 = vpop.f32.mrf.mxu0
    %v10125 = vadd.f32 %v10112, %v10124
    %v10126 = vpop.f32.mrf.mxu0
    %10127 = vdwg.mxu0
    %10128 = vmatpush.bf16.msra.mxu0 %v6578
    %10129 = vmatpush.bf16.msra.mxu0 %v6570
    %10130 = vmatpush.bf16.msra.mxu0 %v6562
    %10131 = vmatpush.bf16.msra.mxu0 %v6554
    %10132 = vmatpush.bf16.msra.mxu0 %v6546
    %10133 = vmatpush.bf16.msra.mxu0 %v6538
    %10134 = vmatpush.bf16.msra.mxu0 %v6530
    %10135 = vmatpush.bf16.msra.mxu0 %v6522
    %10136 = vmatmul.bf16.gmra.mxu0 %v219
    %v10137 = vpop.f32.mrf.mxu0
    %v10138 = vadd.f32 %v10125, %v10137
    %v10139 = vpop.f32.mrf.mxu0
    %10140 = vdwg.mxu0
    %10141 = vmatpush.bf16.msra.mxu0 %v6642
    %10142 = vmatpush.bf16.msra.mxu0 %v6634
    %10143 = vmatpush.bf16.msra.mxu0 %v6626
    %10144 = vmatpush.bf16.msra.mxu0 %v6618
    %10145 = vmatpush.bf16.msra.mxu0 %v6610
    %10146 = vmatpush.bf16.msra.mxu0 %v6602
    %10147 = vmatpush.bf16.msra.mxu0 %v6594
    %10148 = vmatpush.bf16.msra.mxu0 %v6586
    %10149 = vmatmul.bf16.gmra.mxu0 %v220
    %v10150 = vpop.f32.mrf.mxu0
    %v10151 = vadd.f32 %v10138, %v10150
    %v10152 = vpop.f32.mrf.mxu0
    %10153 = vdwg.mxu0
    %10154 = vmatpush.bf16.msra.mxu0 %v6706
    %10155 = vmatpush.bf16.msra.mxu0 %v6698
    %10156 = vmatpush.bf16.msra.mxu0 %v6690
    %10157 = vmatpush.bf16.msra.mxu0 %v6682
    %10158 = vmatpush.bf16.msra.mxu0 %v6674
    %10159 = vmatpush.bf16.msra.mxu0 %v6666
    %10160 = vmatpush.bf16.msra.mxu0 %v6658
    %10161 = vmatpush.bf16.msra.mxu0 %v6650
    %10162 = vmatmul.bf16.gmra.mxu0 %v221
    %v10163 = vpop.f32.mrf.mxu0
    %v10164 = vadd.f32 %v10151, %v10163
    %v10165 = vpop.f32.mrf.mxu0
    %10166 = vdwg.mxu0
    %10167 = vmatpush.bf16.msra.mxu0 %v6770
    %10168 = vmatpush.bf16.msra.mxu0 %v6762
    %10169 = vmatpush.bf16.msra.mxu0 %v6754
    %10170 = vmatpush.bf16.msra.mxu0 %v6746
    %10171 = vmatpush.bf16.msra.mxu0 %v6738
    %10172 = vmatpush.bf16.msra.mxu0 %v6730
    %10173 = vmatpush.bf16.msra.mxu0 %v6722
    %10174 = vmatpush.bf16.msra.mxu0 %v6714
    %10175 = vmatmul.bf16.gmra.mxu0 %v222
    %v10176 = vpop.f32.mrf.mxu0
    %v10177 = vadd.f32 %v10164, %v10176
    %v10178 = vpop.f32.mrf.mxu0
    %10179 = vdwg.mxu0
    %10180 = vmatpush.bf16.msra.mxu0 %v6834
    %10181 = vmatpush.bf16.msra.mxu0 %v6826
    %10182 = vmatpush.bf16.msra.mxu0 %v6818
    %10183 = vmatpush.bf16.msra.mxu0 %v6810
    %10184 = vmatpush.bf16.msra.mxu0 %v6802
    %10185 = vmatpush.bf16.msra.mxu0 %v6794
    %10186 = vmatpush.bf16.msra.mxu0 %v6786
    %10187 = vmatpush.bf16.msra.mxu0 %v6778
    %10188 = vmatmul.bf16.gmra.mxu0 %v223
    %v10189 = vpop.f32.mrf.mxu0
    %v10190 = vadd.f32 %v10177, %v10189
    %v10191 = vpop.f32.mrf.mxu0
    %10192 = vdwg.mxu0
    %10193 = vmatpush.bf16.msra.mxu0 %v6898
    %10194 = vmatpush.bf16.msra.mxu0 %v6890
    %10195 = vmatpush.bf16.msra.mxu0 %v6882
    %10196 = vmatpush.bf16.msra.mxu0 %v6874
    %10197 = vmatpush.bf16.msra.mxu0 %v6866
    %10198 = vmatpush.bf16.msra.mxu0 %v6858
    %10199 = vmatpush.bf16.msra.mxu0 %v6850
    %10200 = vmatpush.bf16.msra.mxu0 %v6842
    %10201 = vmatmul.bf16.gmra.mxu0 %v224
    %v10202 = vpop.f32.mrf.mxu0
    %v10203 = vadd.f32 %v10190, %v10202
    %v10204 = vpop.f32.mrf.mxu0
    %10205 = vdwg.mxu0
    %10206 = vmatpush.bf16.msra.mxu0 %v6962
    %10207 = vmatpush.bf16.msra.mxu0 %v6954
    %10208 = vmatpush.bf16.msra.mxu0 %v6946
    %10209 = vmatpush.bf16.msra.mxu0 %v6938
    %10210 = vmatpush.bf16.msra.mxu0 %v6930
    %10211 = vmatpush.bf16.msra.mxu0 %v6922
    %10212 = vmatpush.bf16.msra.mxu0 %v6914
    %10213 = vmatpush.bf16.msra.mxu0 %v6906
    %10214 = vmatmul.bf16.gmra.mxu0 %v225
    %v10215 = vpop.f32.mrf.mxu0
    %v10216 = vadd.f32 %v10203, %v10215
    %v10217 = vpop.f32.mrf.mxu0
    %10218 = vdwg.mxu0
    %10219 = vmatpush.bf16.msra.mxu0 %v5683
    %10220 = vmatpush.bf16.msra.mxu0 %v5675
    %10221 = vmatpush.bf16.msra.mxu0 %v5667
    %10222 = vmatpush.bf16.msra.mxu0 %v5659
    %10223 = vmatpush.bf16.msra.mxu0 %v5651
    %10224 = vmatpush.bf16.msra.mxu0 %v5643
    %10225 = vmatpush.bf16.msra.mxu0 %v5635
    %10226 = vmatpush.bf16.msra.mxu0 %v5627
    %10227 = vmatmul.bf16.gmra.mxu0 %v205
    %v10228 = vpop.f32.mrf.mxu0
    %v10229 = vadd.f32 %v1579, %v10228
    %v10230 = vpop.f32.mrf.mxu0
    %10231 = vdwg.mxu0
    %10232 = vmatpush.bf16.msra.mxu0 %v5747
    %10233 = vmatpush.bf16.msra.mxu0 %v5739
    %10234 = vmatpush.bf16.msra.mxu0 %v5731
    %10235 = vmatpush.bf16.msra.mxu0 %v5723
    %10236 = vmatpush.bf16.msra.mxu0 %v5715
    %10237 = vmatpush.bf16.msra.mxu0 %v5707
    %10238 = vmatpush.bf16.msra.mxu0 %v5699
    %10239 = vmatpush.bf16.msra.mxu0 %v5691
    %10240 = vmatmul.bf16.gmra.mxu0 %v206
    %v10241 = vpop.f32.mrf.mxu0
    %v10242 = vadd.f32 %v10229, %v10241
    %v10243 = vpop.f32.mrf.mxu0
    %10244 = vdwg.mxu0
    %10245 = vmatpush.bf16.msra.mxu0 %v5811
    %10246 = vmatpush.bf16.msra.mxu0 %v5803
    %10247 = vmatpush.bf16.msra.mxu0 %v5795
    %10248 = vmatpush.bf16.msra.mxu0 %v5787
    %10249 = vmatpush.bf16.msra.mxu0 %v5779
    %10250 = vmatpush.bf16.msra.mxu0 %v5771
    %10251 = vmatpush.bf16.msra.mxu0 %v5763
    %10252 = vmatpush.bf16.msra.mxu0 %v5755
    %10253 = vmatmul.bf16.gmra.mxu0 %v207
    %v10254 = vpop.f32.mrf.mxu0
    %v10255 = vadd.f32 %v10242, %v10254
    %v10256 = vpop.f32.mrf.mxu0
    %10257 = vdwg.mxu0
    %10258 = vmatpush.bf16.msra.mxu0 %v5875
    %10259 = vmatpush.bf16.msra.mxu0 %v5867
    %10260 = vmatpush.bf16.msra.mxu0 %v5859
    %10261 = vmatpush.bf16.msra.mxu0 %v5851
    %10262 = vmatpush.bf16.msra.mxu0 %v5843
    %10263 = vmatpush.bf16.msra.mxu0 %v5835
    %10264 = vmatpush.bf16.msra.mxu0 %v5827
    %10265 = vmatpush.bf16.msra.mxu0 %v5819
    %10266 = vmatmul.bf16.gmra.mxu0 %v208
    %v10267 = vpop.f32.mrf.mxu0
    %v10268 = vadd.f32 %v10255, %v10267
    %v10269 = vpop.f32.mrf.mxu0
    %10270 = vdwg.mxu0
    %10271 = vmatpush.bf16.msra.mxu0 %v5939
    %10272 = vmatpush.bf16.msra.mxu0 %v5931
    %10273 = vmatpush.bf16.msra.mxu0 %v5923
    %10274 = vmatpush.bf16.msra.mxu0 %v5915
    %10275 = vmatpush.bf16.msra.mxu0 %v5907
    %10276 = vmatpush.bf16.msra.mxu0 %v5899
    %10277 = vmatpush.bf16.msra.mxu0 %v5891
    %10278 = vmatpush.bf16.msra.mxu0 %v5883
    %10279 = vmatmul.bf16.gmra.mxu0 %v209
    %v10280 = vpop.f32.mrf.mxu0
    %v10281 = vadd.f32 %v10268, %v10280
    %v10282 = vpop.f32.mrf.mxu0
    %10283 = vdwg.mxu0
    %10284 = vmatpush.bf16.msra.mxu0 %v6003
    %10285 = vmatpush.bf16.msra.mxu0 %v5995
    %10286 = vmatpush.bf16.msra.mxu0 %v5987
    %10287 = vmatpush.bf16.msra.mxu0 %v5979
    %10288 = vmatpush.bf16.msra.mxu0 %v5971
    %10289 = vmatpush.bf16.msra.mxu0 %v5963
    %10290 = vmatpush.bf16.msra.mxu0 %v5955
    %10291 = vmatpush.bf16.msra.mxu0 %v5947
    %10292 = vmatmul.bf16.gmra.mxu0 %v210
    %v10293 = vpop.f32.mrf.mxu0
    %v10294 = vadd.f32 %v10281, %v10293
    %v10295 = vpop.f32.mrf.mxu0
    %10296 = vdwg.mxu0
    %10297 = vmatpush.bf16.msra.mxu0 %v6067
    %10298 = vmatpush.bf16.msra.mxu0 %v6059
    %10299 = vmatpush.bf16.msra.mxu0 %v6051
    %10300 = vmatpush.bf16.msra.mxu0 %v6043
    %10301 = vmatpush.bf16.msra.mxu0 %v6035
    %10302 = vmatpush.bf16.msra.mxu0 %v6027
    %10303 = vmatpush.bf16.msra.mxu0 %v6019
    %10304 = vmatpush.bf16.msra.mxu0 %v6011
    %10305 = vmatmul.bf16.gmra.mxu0 %v211
    %v10306 = vpop.f32.mrf.mxu0
    %v10307 = vadd.f32 %v10294, %v10306
    %v10308 = vpop.f32.mrf.mxu0
    %10309 = vdwg.mxu0
    %10310 = vmatpush.bf16.msra.mxu0 %v6131
    %10311 = vmatpush.bf16.msra.mxu0 %v6123
    %10312 = vmatpush.bf16.msra.mxu0 %v6115
    %10313 = vmatpush.bf16.msra.mxu0 %v6107
    %10314 = vmatpush.bf16.msra.mxu0 %v6099
    %10315 = vmatpush.bf16.msra.mxu0 %v6091
    %10316 = vmatpush.bf16.msra.mxu0 %v6083
    %10317 = vmatpush.bf16.msra.mxu0 %v6075
    %10318 = vmatmul.bf16.gmra.mxu0 %v212
    %v10319 = vpop.f32.mrf.mxu0
    %v10320 = vadd.f32 %v10307, %v10319
    %v10321 = vpop.f32.mrf.mxu0
    %10322 = vdwg.mxu0
    %10323 = vmatpush.bf16.msra.mxu0 %v6195
    %10324 = vmatpush.bf16.msra.mxu0 %v6187
    %10325 = vmatpush.bf16.msra.mxu0 %v6179
    %10326 = vmatpush.bf16.msra.mxu0 %v6171
    %10327 = vmatpush.bf16.msra.mxu0 %v6163
    %10328 = vmatpush.bf16.msra.mxu0 %v6155
    %10329 = vmatpush.bf16.msra.mxu0 %v6147
    %10330 = vmatpush.bf16.msra.mxu0 %v6139
    %10331 = vmatmul.bf16.gmra.mxu0 %v213
    %v10332 = vpop.f32.mrf.mxu0
    %v10333 = vadd.f32 %v10320, %v10332
    %v10334 = vpop.f32.mrf.mxu0
    %10335 = vdwg.mxu0
    %10336 = vmatpush.bf16.msra.mxu0 %v6259
    %10337 = vmatpush.bf16.msra.mxu0 %v6251
    %10338 = vmatpush.bf16.msra.mxu0 %v6243
    %10339 = vmatpush.bf16.msra.mxu0 %v6235
    %10340 = vmatpush.bf16.msra.mxu0 %v6227
    %10341 = vmatpush.bf16.msra.mxu0 %v6219
    %10342 = vmatpush.bf16.msra.mxu0 %v6211
    %10343 = vmatpush.bf16.msra.mxu0 %v6203
    %10344 = vmatmul.bf16.gmra.mxu0 %v214
    %v10345 = vpop.f32.mrf.mxu0
    %v10346 = vadd.f32 %v10333, %v10345
    %v10347 = vpop.f32.mrf.mxu0
    %10348 = vdwg.mxu0
    %10349 = vmatpush.bf16.msra.mxu0 %v6323
    %10350 = vmatpush.bf16.msra.mxu0 %v6315
    %10351 = vmatpush.bf16.msra.mxu0 %v6307
    %10352 = vmatpush.bf16.msra.mxu0 %v6299
    %10353 = vmatpush.bf16.msra.mxu0 %v6291
    %10354 = vmatpush.bf16.msra.mxu0 %v6283
    %10355 = vmatpush.bf16.msra.mxu0 %v6275
    %10356 = vmatpush.bf16.msra.mxu0 %v6267
    %10357 = vmatmul.bf16.gmra.mxu0 %v215
    %v10358 = vpop.f32.mrf.mxu0
    %v10359 = vadd.f32 %v10346, %v10358
    %v10360 = vpop.f32.mrf.mxu0
    %10361 = vdwg.mxu0
    %10362 = vmatpush.bf16.msra.mxu0 %v6387
    %10363 = vmatpush.bf16.msra.mxu0 %v6379
    %10364 = vmatpush.bf16.msra.mxu0 %v6371
    %10365 = vmatpush.bf16.msra.mxu0 %v6363
    %10366 = vmatpush.bf16.msra.mxu0 %v6355
    %10367 = vmatpush.bf16.msra.mxu0 %v6347
    %10368 = vmatpush.bf16.msra.mxu0 %v6339
    %10369 = vmatpush.bf16.msra.mxu0 %v6331
    %10370 = vmatmul.bf16.gmra.mxu0 %v216
    %v10371 = vpop.f32.mrf.mxu0
    %v10372 = vadd.f32 %v10359, %v10371
    %v10373 = vpop.f32.mrf.mxu0
    %10374 = vdwg.mxu0
    %10375 = vmatpush.bf16.msra.mxu0 %v6451
    %10376 = vmatpush.bf16.msra.mxu0 %v6443
    %10377 = vmatpush.bf16.msra.mxu0 %v6435
    %10378 = vmatpush.bf16.msra.mxu0 %v6427
    %10379 = vmatpush.bf16.msra.mxu0 %v6419
    %10380 = vmatpush.bf16.msra.mxu0 %v6411
    %10381 = vmatpush.bf16.msra.mxu0 %v6403
    %10382 = vmatpush.bf16.msra.mxu0 %v6395
    %10383 = vmatmul.bf16.gmra.mxu0 %v217
    %v10384 = vpop.f32.mrf.mxu0
    %v10385 = vadd.f32 %v10372, %v10384
    %v10386 = vpop.f32.mrf.mxu0
    %10387 = vdwg.mxu0
    %10388 = vmatpush.bf16.msra.mxu0 %v6515
    %10389 = vmatpush.bf16.msra.mxu0 %v6507
    %10390 = vmatpush.bf16.msra.mxu0 %v6499
    %10391 = vmatpush.bf16.msra.mxu0 %v6491
    %10392 = vmatpush.bf16.msra.mxu0 %v6483
    %10393 = vmatpush.bf16.msra.mxu0 %v6475
    %10394 = vmatpush.bf16.msra.mxu0 %v6467
    %10395 = vmatpush.bf16.msra.mxu0 %v6459
    %10396 = vmatmul.bf16.gmra.mxu0 %v218
    %v10397 = vpop.f32.mrf.mxu0
    %v10398 = vadd.f32 %v10385, %v10397
    %v10399 = vpop.f32.mrf.mxu0
    %10400 = vdwg.mxu0
    %10401 = vmatpush.bf16.msra.mxu0 %v6579
    %10402 = vmatpush.bf16.msra.mxu0 %v6571
    %10403 = vmatpush.bf16.msra.mxu0 %v6563
    %10404 = vmatpush.bf16.msra.mxu0 %v6555
    %10405 = vmatpush.bf16.msra.mxu0 %v6547
    %10406 = vmatpush.bf16.msra.mxu0 %v6539
    %10407 = vmatpush.bf16.msra.mxu0 %v6531
    %10408 = vmatpush.bf16.msra.mxu0 %v6523
    %10409 = vmatmul.bf16.gmra.mxu0 %v219
    %v10410 = vpop.f32.mrf.mxu0
    %v10411 = vadd.f32 %v10398, %v10410
    %v10412 = vpop.f32.mrf.mxu0
    %10413 = vdwg.mxu0
    %10414 = vmatpush.bf16.msra.mxu0 %v6643
    %10415 = vmatpush.bf16.msra.mxu0 %v6635
    %10416 = vmatpush.bf16.msra.mxu0 %v6627
    %10417 = vmatpush.bf16.msra.mxu0 %v6619
    %10418 = vmatpush.bf16.msra.mxu0 %v6611
    %10419 = vmatpush.bf16.msra.mxu0 %v6603
    %10420 = vmatpush.bf16.msra.mxu0 %v6595
    %10421 = vmatpush.bf16.msra.mxu0 %v6587
    %10422 = vmatmul.bf16.gmra.mxu0 %v220
    %v10423 = vpop.f32.mrf.mxu0
    %v10424 = vadd.f32 %v10411, %v10423
    %v10425 = vpop.f32.mrf.mxu0
    %10426 = vdwg.mxu0
    %10427 = vmatpush.bf16.msra.mxu0 %v6707
    %10428 = vmatpush.bf16.msra.mxu0 %v6699
    %10429 = vmatpush.bf16.msra.mxu0 %v6691
    %10430 = vmatpush.bf16.msra.mxu0 %v6683
    %10431 = vmatpush.bf16.msra.mxu0 %v6675
    %10432 = vmatpush.bf16.msra.mxu0 %v6667
    %10433 = vmatpush.bf16.msra.mxu0 %v6659
    %10434 = vmatpush.bf16.msra.mxu0 %v6651
    %10435 = vmatmul.bf16.gmra.mxu0 %v221
    %v10436 = vpop.f32.mrf.mxu0
    %v10437 = vadd.f32 %v10424, %v10436
    %v10438 = vpop.f32.mrf.mxu0
    %10439 = vdwg.mxu0
    %10440 = vmatpush.bf16.msra.mxu0 %v6771
    %10441 = vmatpush.bf16.msra.mxu0 %v6763
    %10442 = vmatpush.bf16.msra.mxu0 %v6755
    %10443 = vmatpush.bf16.msra.mxu0 %v6747
    %10444 = vmatpush.bf16.msra.mxu0 %v6739
    %10445 = vmatpush.bf16.msra.mxu0 %v6731
    %10446 = vmatpush.bf16.msra.mxu0 %v6723
    %10447 = vmatpush.bf16.msra.mxu0 %v6715
    %10448 = vmatmul.bf16.gmra.mxu0 %v222
    %v10449 = vpop.f32.mrf.mxu0
    %v10450 = vadd.f32 %v10437, %v10449
    %v10451 = vpop.f32.mrf.mxu0
    %10452 = vdwg.mxu0
    %10453 = vmatpush.bf16.msra.mxu0 %v6835
    %10454 = vmatpush.bf16.msra.mxu0 %v6827
    %10455 = vmatpush.bf16.msra.mxu0 %v6819
    %10456 = vmatpush.bf16.msra.mxu0 %v6811
    %10457 = vmatpush.bf16.msra.mxu0 %v6803
    %10458 = vmatpush.bf16.msra.mxu0 %v6795
    %10459 = vmatpush.bf16.msra.mxu0 %v6787
    %10460 = vmatpush.bf16.msra.mxu0 %v6779
    %10461 = vmatmul.bf16.gmra.mxu0 %v223
    %v10462 = vpop.f32.mrf.mxu0
    %v10463 = vadd.f32 %v10450, %v10462
    %v10464 = vpop.f32.mrf.mxu0
    %10465 = vdwg.mxu0
    %10466 = vmatpush.bf16.msra.mxu0 %v6899
    %10467 = vmatpush.bf16.msra.mxu0 %v6891
    %10468 = vmatpush.bf16.msra.mxu0 %v6883
    %10469 = vmatpush.bf16.msra.mxu0 %v6875
    %10470 = vmatpush.bf16.msra.mxu0 %v6867
    %10471 = vmatpush.bf16.msra.mxu0 %v6859
    %10472 = vmatpush.bf16.msra.mxu0 %v6851
    %10473 = vmatpush.bf16.msra.mxu0 %v6843
    %10474 = vmatmul.bf16.gmra.mxu0 %v224
    %v10475 = vpop.f32.mrf.mxu0
    %v10476 = vadd.f32 %v10463, %v10475
    %v10477 = vpop.f32.mrf.mxu0
    %10478 = vdwg.mxu0
    %10479 = vmatpush.bf16.msra.mxu0 %v6963
    %10480 = vmatpush.bf16.msra.mxu0 %v6955
    %10481 = vmatpush.bf16.msra.mxu0 %v6947
    %10482 = vmatpush.bf16.msra.mxu0 %v6939
    %10483 = vmatpush.bf16.msra.mxu0 %v6931
    %10484 = vmatpush.bf16.msra.mxu0 %v6923
    %10485 = vmatpush.bf16.msra.mxu0 %v6915
    %10486 = vmatpush.bf16.msra.mxu0 %v6907
    %10487 = vmatmul.bf16.gmra.mxu0 %v225
    %v10488 = vpop.f32.mrf.mxu0
    %v10489 = vadd.f32 %v10476, %v10488
    %v10490 = vpop.f32.mrf.mxu0
    %10491 = vdwg.mxu0
    %v10492 = vmax.f32 %v8578, 0.0
    %v10493 = vmax.f32 %v8851, 0.0
    %v10494 = vmax.f32 %v9124, 0.0
    %v10495 = vmax.f32 %v9397, 0.0
    %v10496 = vmax.f32 %v9670, 0.0
    %v10497 = vmax.f32 %v9943, 0.0
    %v10498 = vmax.f32 %v10216, 0.0
    %v10499 = vmax.f32 %v10489, 0.0
    %v10500 = vpack.c.bf16 %v10492, %v10492
    %v10501 = vpack.c.bf16 %v10493, %v10493
    %v10502 = vpack.c.bf16 %v10494, %v10494
    %v10503 = vpack.c.bf16 %v10495, %v10495
    %v10504 = vpack.c.bf16 %v10496, %v10496
    %v10505 = vpack.c.bf16 %v10497, %v10497
    %v10506 = vpack.c.bf16 %v10498, %v10498
    %v10507 = vpack.c.bf16 %v10499, %v10499
    %v10508 = vld [vmem:[#allocation8] sm:$0xff]
    %v10509 = vld [vmem:[#allocation8 + $0x8] sm:$0xff]
    %v10510 = vld [vmem:[#allocation8 + $0x10] sm:$0xff]
    %v10511 = vld [vmem:[#allocation8 + $0x18] sm:$0xff]
    %v10512 = vld [vmem:[#allocation8 + $0x20] sm:$0xff]
    %v10513 = vld [vmem:[#allocation8 + $0x28] sm:$0xff]
    %v10514 = vld [vmem:[#allocation8 + $0x30] sm:$0xff]
    %v10515 = vld [vmem:[#allocation8 + $0x38] sm:$0xff]
    %v10516 = vld [vmem:[#allocation8 + $0x40] sm:$0xff]
    %v10517 = vld [vmem:[#allocation8 + $0x48] sm:$0xff]
    %v10518 = vld [vmem:[#allocation8 + $0x50] sm:$0xff]
    %v10519 = vld [vmem:[#allocation8 + $0x58] sm:$0xff]
    %v10520 = vld [vmem:[#allocation8 + $0x60] sm:$0xff]
    %v10521 = vld [vmem:[#allocation8 + $0x68] sm:$0xff]
    %v10522 = vld [vmem:[#allocation8 + $0x70] sm:$0xff]
    %v10523 = vld [vmem:[#allocation8 + $0x78] sm:$0xff]
    %v10524 = vld [vmem:[#allocation8 + $0x80] sm:$0xff]
    %v10525 = vld [vmem:[#allocation8 + $0x88] sm:$0xff]
    %v10526 = vld [vmem:[#allocation8 + $0x90] sm:$0xff]
    %v10527 = vld [vmem:[#allocation8 + $0x98] sm:$0xff]
    %v10528 = vld [vmem:[#allocation8 + $0xa0] sm:$0xff]
    %v10529 = vld [vmem:[#allocation8 + $0xa8] sm:$0xff]
    %v10530 = vld [vmem:[#allocation8 + $0xb0] sm:$0xff]
    %v10531 = vld [vmem:[#allocation8 + $0xb8] sm:$0xff]
    %v10532 = vld [vmem:[#allocation8 + $0xc0] sm:$0xff]
    %v10533 = vld [vmem:[#allocation8 + $0xc8] sm:$0xff]
    %v10534 = vld [vmem:[#allocation8 + $0xd0] sm:$0xff]
    %v10535 = vld [vmem:[#allocation8 + $0xd8] sm:$0xff]
    %v10536 = vld [vmem:[#allocation8 + $0xe0] sm:$0xff]
    %v10537 = vld [vmem:[#allocation8 + $0xe8] sm:$0xff]
    %v10538 = vld [vmem:[#allocation8 + $0xf0] sm:$0xff]
    %v10539 = vld [vmem:[#allocation8 + $0xf8] sm:$0xff]
    %v10540 = vld [vmem:[#allocation8 + $0x100] sm:$0xff]
    %v10541 = vld [vmem:[#allocation8 + $0x108] sm:$0xff]
    %v10542 = vld [vmem:[#allocation8 + $0x110] sm:$0xff]
    %v10543 = vld [vmem:[#allocation8 + $0x118] sm:$0xff]
    %v10544 = vld [vmem:[#allocation8 + $0x120] sm:$0xff]
    %v10545 = vld [vmem:[#allocation8 + $0x128] sm:$0xff]
    %v10546 = vld [vmem:[#allocation8 + $0x130] sm:$0xff]
    %v10547 = vld [vmem:[#allocation8 + $0x138] sm:$0xff]
    %v10548 = vld [vmem:[#allocation8 + $0x140] sm:$0xff]
    %v10549 = vld [vmem:[#allocation8 + $0x148] sm:$0xff]
    %v10550 = vld [vmem:[#allocation8 + $0x150] sm:$0xff]
    %v10551 = vld [vmem:[#allocation8 + $0x158] sm:$0xff]
    %v10552 = vld [vmem:[#allocation8 + $0x160] sm:$0xff]
    %v10553 = vld [vmem:[#allocation8 + $0x168] sm:$0xff]
    %v10554 = vld [vmem:[#allocation8 + $0x170] sm:$0xff]
    %v10555 = vld [vmem:[#allocation8 + $0x178] sm:$0xff]
    %v10556 = vld [vmem:[#allocation8 + $0x180] sm:$0xff]
    %v10557 = vld [vmem:[#allocation8 + $0x188] sm:$0xff]
    %v10558 = vld [vmem:[#allocation8 + $0x190] sm:$0xff]
    %v10559 = vld [vmem:[#allocation8 + $0x198] sm:$0xff]
    %v10560 = vld [vmem:[#allocation8 + $0x1a0] sm:$0xff]
    %v10561 = vld [vmem:[#allocation8 + $0x1a8] sm:$0xff]
    %v10562 = vld [vmem:[#allocation8 + $0x1b0] sm:$0xff]
    %v10563 = vld [vmem:[#allocation8 + $0x1b8] sm:$0xff]
    %v10564 = vld [vmem:[#allocation8 + $0x1c0] sm:$0xff]
    %v10565 = vld [vmem:[#allocation8 + $0x1c8] sm:$0xff]
    %v10566 = vld [vmem:[#allocation8 + $0x1d0] sm:$0xff]
    %v10567 = vld [vmem:[#allocation8 + $0x1d8] sm:$0xff]
    %v10568 = vld [vmem:[#allocation8 + $0x1e0] sm:$0xff]
    %v10569 = vld [vmem:[#allocation8 + $0x1e8] sm:$0xff]
    %v10570 = vld [vmem:[#allocation8 + $0x1f0] sm:$0xff]
    %v10571 = vld [vmem:[#allocation8 + $0x1f8] sm:$0xff]
    %v10572 = vld [vmem:[#allocation8 + $0x200] sm:$0xff]
    %v10573 = vld [vmem:[#allocation8 + $0x208] sm:$0xff]
    %v10574 = vld [vmem:[#allocation8 + $0x210] sm:$0xff]
    %v10575 = vld [vmem:[#allocation8 + $0x218] sm:$0xff]
    %v10576 = vld [vmem:[#allocation8 + $0x220] sm:$0xff]
    %v10577 = vld [vmem:[#allocation8 + $0x228] sm:$0xff]
    %v10578 = vld [vmem:[#allocation8 + $0x230] sm:$0xff]
    %v10579 = vld [vmem:[#allocation8 + $0x238] sm:$0xff]
    %v10580 = vld [vmem:[#allocation8 + $0x240] sm:$0xff]
    %v10581 = vld [vmem:[#allocation8 + $0x248] sm:$0xff]
    %v10582 = vld [vmem:[#allocation8 + $0x250] sm:$0xff]
    %v10583 = vld [vmem:[#allocation8 + $0x258] sm:$0xff]
    %v10584 = vld [vmem:[#allocation8 + $0x260] sm:$0xff]
    %v10585 = vld [vmem:[#allocation8 + $0x268] sm:$0xff]
    %v10586 = vld [vmem:[#allocation8 + $0x270] sm:$0xff]
    %v10587 = vld [vmem:[#allocation8 + $0x278] sm:$0xff]
    %v10588 = vld [vmem:[#allocation8 + $0x280] sm:$0xff]
    %v10589 = vld [vmem:[#allocation8 + $0x288] sm:$0xff]
    %v10590 = vld [vmem:[#allocation8 + $0x290] sm:$0xff]
    %v10591 = vld [vmem:[#allocation8 + $0x298] sm:$0xff]
    %v10592 = vld [vmem:[#allocation8 + $0x2a0] sm:$0xff]
    %v10593 = vld [vmem:[#allocation8 + $0x2a8] sm:$0xff]
    %v10594 = vld [vmem:[#allocation8 + $0x2b0] sm:$0xff]
    %v10595 = vld [vmem:[#allocation8 + $0x2b8] sm:$0xff]
    %v10596 = vld [vmem:[#allocation8 + $0x2c0] sm:$0xff]
    %v10597 = vld [vmem:[#allocation8 + $0x2c8] sm:$0xff]
    %v10598 = vld [vmem:[#allocation8 + $0x2d0] sm:$0xff]
    %v10599 = vld [vmem:[#allocation8 + $0x2d8] sm:$0xff]
    %v10600 = vld [vmem:[#allocation8 + $0x2e0] sm:$0xff]
    %v10601 = vld [vmem:[#allocation8 + $0x2e8] sm:$0xff]
    %v10602 = vld [vmem:[#allocation8 + $0x2f0] sm:$0xff]
    %v10603 = vld [vmem:[#allocation8 + $0x2f8] sm:$0xff]
    %v10604 = vld [vmem:[#allocation8 + $0x300] sm:$0xff]
    %v10605 = vld [vmem:[#allocation8 + $0x308] sm:$0xff]
    %v10606 = vld [vmem:[#allocation8 + $0x310] sm:$0xff]
    %v10607 = vld [vmem:[#allocation8 + $0x318] sm:$0xff]
    %v10608 = vld [vmem:[#allocation8 + $0x320] sm:$0xff]
    %v10609 = vld [vmem:[#allocation8 + $0x328] sm:$0xff]
    %v10610 = vld [vmem:[#allocation8 + $0x330] sm:$0xff]
    %v10611 = vld [vmem:[#allocation8 + $0x338] sm:$0xff]
    %v10612 = vld [vmem:[#allocation8 + $0x340] sm:$0xff]
    %v10613 = vld [vmem:[#allocation8 + $0x348] sm:$0xff]
    %v10614 = vld [vmem:[#allocation8 + $0x350] sm:$0xff]
    %v10615 = vld [vmem:[#allocation8 + $0x358] sm:$0xff]
    %v10616 = vld [vmem:[#allocation8 + $0x360] sm:$0xff]
    %v10617 = vld [vmem:[#allocation8 + $0x368] sm:$0xff]
    %v10618 = vld [vmem:[#allocation8 + $0x370] sm:$0xff]
    %v10619 = vld [vmem:[#allocation8 + $0x378] sm:$0xff]
    %v10620 = vld [vmem:[#allocation8 + $0x380] sm:$0xff]
    %v10621 = vld [vmem:[#allocation8 + $0x388] sm:$0xff]
    %v10622 = vld [vmem:[#allocation8 + $0x390] sm:$0xff]
    %v10623 = vld [vmem:[#allocation8 + $0x398] sm:$0xff]
    %v10624 = vld [vmem:[#allocation8 + $0x3a0] sm:$0xff]
    %v10625 = vld [vmem:[#allocation8 + $0x3a8] sm:$0xff]
    %v10626 = vld [vmem:[#allocation8 + $0x3b0] sm:$0xff]
    %v10627 = vld [vmem:[#allocation8 + $0x3b8] sm:$0xff]
    %v10628 = vld [vmem:[#allocation8 + $0x3c0] sm:$0xff]
    %v10629 = vld [vmem:[#allocation8 + $0x3c8] sm:$0xff]
    %v10630 = vld [vmem:[#allocation8 + $0x3d0] sm:$0xff]
    %v10631 = vld [vmem:[#allocation8 + $0x3d8] sm:$0xff]
    %v10632 = vld [vmem:[#allocation8 + $0x3e0] sm:$0xff]
    %v10633 = vld [vmem:[#allocation8 + $0x3e8] sm:$0xff]
    %v10634 = vld [vmem:[#allocation8 + $0x3f0] sm:$0xff]
    %v10635 = vld [vmem:[#allocation8 + $0x3f8] sm:$0xff]
    %v10636 = vld [vmem:[#allocation8 + $0x400] sm:$0xff]
    %v10637 = vld [vmem:[#allocation8 + $0x408] sm:$0xff]
    %v10638 = vld [vmem:[#allocation8 + $0x410] sm:$0xff]
    %v10639 = vld [vmem:[#allocation8 + $0x418] sm:$0xff]
    %v10640 = vld [vmem:[#allocation8 + $0x420] sm:$0xff]
    %v10641 = vld [vmem:[#allocation8 + $0x428] sm:$0xff]
    %v10642 = vld [vmem:[#allocation8 + $0x430] sm:$0xff]
    %v10643 = vld [vmem:[#allocation8 + $0x438] sm:$0xff]
    %v10644 = vld [vmem:[#allocation8 + $0x440] sm:$0xff]
    %v10645 = vld [vmem:[#allocation8 + $0x448] sm:$0xff]
    %v10646 = vld [vmem:[#allocation8 + $0x450] sm:$0xff]
    %v10647 = vld [vmem:[#allocation8 + $0x458] sm:$0xff]
    %v10648 = vld [vmem:[#allocation8 + $0x460] sm:$0xff]
    %v10649 = vld [vmem:[#allocation8 + $0x468] sm:$0xff]
    %v10650 = vld [vmem:[#allocation8 + $0x470] sm:$0xff]
    %v10651 = vld [vmem:[#allocation8 + $0x478] sm:$0xff]
    %v10652 = vld [vmem:[#allocation8 + $0x480] sm:$0xff]
    %v10653 = vld [vmem:[#allocation8 + $0x488] sm:$0xff]
    %v10654 = vld [vmem:[#allocation8 + $0x490] sm:$0xff]
    %v10655 = vld [vmem:[#allocation8 + $0x498] sm:$0xff]
    %v10656 = vld [vmem:[#allocation8 + $0x4a0] sm:$0xff]
    %v10657 = vld [vmem:[#allocation8 + $0x4a8] sm:$0xff]
    %v10658 = vld [vmem:[#allocation8 + $0x4b0] sm:$0xff]
    %v10659 = vld [vmem:[#allocation8 + $0x4b8] sm:$0xff]
    %v10660 = vld [vmem:[#allocation8 + $0x4c0] sm:$0xff]
    %v10661 = vld [vmem:[#allocation8 + $0x4c8] sm:$0xff]
    %v10662 = vld [vmem:[#allocation8 + $0x4d0] sm:$0xff]
    %v10663 = vld [vmem:[#allocation8 + $0x4d8] sm:$0xff]
    %v10664 = vld [vmem:[#allocation8 + $0x4e0] sm:$0xff]
    %v10665 = vld [vmem:[#allocation8 + $0x4e8] sm:$0xff]
    %v10666 = vld [vmem:[#allocation8 + $0x4f0] sm:$0xff]
    %v10667 = vld [vmem:[#allocation8 + $0x4f8] sm:$0xff]
    %v10668 = vld [vmem:[#allocation8 + $0x500] sm:$0xff]
    %v10669 = vld [vmem:[#allocation8 + $0x508] sm:$0xff]
    %v10670 = vld [vmem:[#allocation8 + $0x510] sm:$0xff]
    %v10671 = vld [vmem:[#allocation8 + $0x518] sm:$0xff]
    %v10672 = vld [vmem:[#allocation8 + $0x520] sm:$0xff]
    %v10673 = vld [vmem:[#allocation8 + $0x528] sm:$0xff]
    %v10674 = vld [vmem:[#allocation8 + $0x530] sm:$0xff]
    %v10675 = vld [vmem:[#allocation8 + $0x538] sm:$0xff]
    %v10676 = vld [vmem:[#allocation8 + $0x540] sm:$0xff]
    %v10677 = vld [vmem:[#allocation8 + $0x548] sm:$0xff]
    %v10678 = vld [vmem:[#allocation8 + $0x550] sm:$0xff]
    %v10679 = vld [vmem:[#allocation8 + $0x558] sm:$0xff]
    %v10680 = vld [vmem:[#allocation8 + $0x560] sm:$0xff]
    %v10681 = vld [vmem:[#allocation8 + $0x568] sm:$0xff]
    %v10682 = vld [vmem:[#allocation8 + $0x570] sm:$0xff]
    %v10683 = vld [vmem:[#allocation8 + $0x578] sm:$0xff]
    %v10684 = vld [vmem:[#allocation8 + $0x580] sm:$0xff]
    %v10685 = vld [vmem:[#allocation8 + $0x588] sm:$0xff]
    %v10686 = vld [vmem:[#allocation8 + $0x590] sm:$0xff]
    %v10687 = vld [vmem:[#allocation8 + $0x598] sm:$0xff]
    %v10688 = vld [vmem:[#allocation8 + $0x5a0] sm:$0xff]
    %v10689 = vld [vmem:[#allocation8 + $0x5a8] sm:$0xff]
    %v10690 = vld [vmem:[#allocation8 + $0x5b0] sm:$0xff]
    %v10691 = vld [vmem:[#allocation8 + $0x5b8] sm:$0xff]
    %v10692 = vld [vmem:[#allocation8 + $0x5c0] sm:$0xff]
    %v10693 = vld [vmem:[#allocation8 + $0x5c8] sm:$0xff]
    %v10694 = vld [vmem:[#allocation8 + $0x5d0] sm:$0xff]
    %v10695 = vld [vmem:[#allocation8 + $0x5d8] sm:$0xff]
    %v10696 = vld [vmem:[#allocation8 + $0x5e0] sm:$0xff]
    %v10697 = vld [vmem:[#allocation8 + $0x5e8] sm:$0xff]
    %v10698 = vld [vmem:[#allocation8 + $0x5f0] sm:$0xff]
    %v10699 = vld [vmem:[#allocation8 + $0x5f8] sm:$0xff]
    %v10700 = vld [vmem:[#allocation8 + $0x600] sm:$0xff]
    %v10701 = vld [vmem:[#allocation8 + $0x608] sm:$0xff]
    %v10702 = vld [vmem:[#allocation8 + $0x610] sm:$0xff]
    %v10703 = vld [vmem:[#allocation8 + $0x618] sm:$0xff]
    %v10704 = vld [vmem:[#allocation8 + $0x620] sm:$0xff]
    %v10705 = vld [vmem:[#allocation8 + $0x628] sm:$0xff]
    %v10706 = vld [vmem:[#allocation8 + $0x630] sm:$0xff]
    %v10707 = vld [vmem:[#allocation8 + $0x638] sm:$0xff]
    %v10708 = vld [vmem:[#allocation8 + $0x640] sm:$0xff]
    %v10709 = vld [vmem:[#allocation8 + $0x648] sm:$0xff]
    %v10710 = vld [vmem:[#allocation8 + $0x650] sm:$0xff]
    %v10711 = vld [vmem:[#allocation8 + $0x658] sm:$0xff]
    %v10712 = vld [vmem:[#allocation8 + $0x660] sm:$0xff]
    %v10713 = vld [vmem:[#allocation8 + $0x668] sm:$0xff]
    %v10714 = vld [vmem:[#allocation8 + $0x670] sm:$0xff]
    %v10715 = vld [vmem:[#allocation8 + $0x678] sm:$0xff]
    %v10716 = vld [vmem:[#allocation8 + $0x680] sm:$0xff]
    %v10717 = vld [vmem:[#allocation8 + $0x688] sm:$0xff]
    %v10718 = vld [vmem:[#allocation8 + $0x690] sm:$0xff]
    %v10719 = vld [vmem:[#allocation8 + $0x698] sm:$0xff]
    %v10720 = vld [vmem:[#allocation8 + $0x6a0] sm:$0xff]
    %v10721 = vld [vmem:[#allocation8 + $0x6a8] sm:$0xff]
    %v10722 = vld [vmem:[#allocation8 + $0x6b0] sm:$0xff]
    %v10723 = vld [vmem:[#allocation8 + $0x6b8] sm:$0xff]
    %v10724 = vld [vmem:[#allocation8 + $0x6c0] sm:$0xff]
    %v10725 = vld [vmem:[#allocation8 + $0x6c8] sm:$0xff]
    %v10726 = vld [vmem:[#allocation8 + $0x6d0] sm:$0xff]
    %v10727 = vld [vmem:[#allocation8 + $0x6d8] sm:$0xff]
    %v10728 = vld [vmem:[#allocation8 + $0x6e0] sm:$0xff]
    %v10729 = vld [vmem:[#allocation8 + $0x6e8] sm:$0xff]
    %v10730 = vld [vmem:[#allocation8 + $0x6f0] sm:$0xff]
    %v10731 = vld [vmem:[#allocation8 + $0x6f8] sm:$0xff]
    %v10732 = vld [vmem:[#allocation8 + $0x700] sm:$0xff]
    %v10733 = vld [vmem:[#allocation8 + $0x708] sm:$0xff]
    %v10734 = vld [vmem:[#allocation8 + $0x710] sm:$0xff]
    %v10735 = vld [vmem:[#allocation8 + $0x718] sm:$0xff]
    %v10736 = vld [vmem:[#allocation8 + $0x720] sm:$0xff]
    %v10737 = vld [vmem:[#allocation8 + $0x728] sm:$0xff]
    %v10738 = vld [vmem:[#allocation8 + $0x730] sm:$0xff]
    %v10739 = vld [vmem:[#allocation8 + $0x738] sm:$0xff]
    %v10740 = vld [vmem:[#allocation8 + $0x740] sm:$0xff]
    %v10741 = vld [vmem:[#allocation8 + $0x748] sm:$0xff]
    %v10742 = vld [vmem:[#allocation8 + $0x750] sm:$0xff]
    %v10743 = vld [vmem:[#allocation8 + $0x758] sm:$0xff]
    %v10744 = vld [vmem:[#allocation8 + $0x760] sm:$0xff]
    %v10745 = vld [vmem:[#allocation8 + $0x768] sm:$0xff]
    %v10746 = vld [vmem:[#allocation8 + $0x770] sm:$0xff]
    %v10747 = vld [vmem:[#allocation8 + $0x778] sm:$0xff]
    %v10748 = vld [vmem:[#allocation8 + $0x780] sm:$0xff]
    %v10749 = vld [vmem:[#allocation8 + $0x788] sm:$0xff]
    %v10750 = vld [vmem:[#allocation8 + $0x790] sm:$0xff]
    %v10751 = vld [vmem:[#allocation8 + $0x798] sm:$0xff]
    %v10752 = vld [vmem:[#allocation8 + $0x7a0] sm:$0xff]
    %v10753 = vld [vmem:[#allocation8 + $0x7a8] sm:$0xff]
    %v10754 = vld [vmem:[#allocation8 + $0x7b0] sm:$0xff]
    %v10755 = vld [vmem:[#allocation8 + $0x7b8] sm:$0xff]
    %v10756 = vld [vmem:[#allocation8 + $0x7c0] sm:$0xff]
    %v10757 = vld [vmem:[#allocation8 + $0x7c8] sm:$0xff]
    %v10758 = vld [vmem:[#allocation8 + $0x7d0] sm:$0xff]
    %v10759 = vld [vmem:[#allocation8 + $0x7d8] sm:$0xff]
    %v10760 = vld [vmem:[#allocation8 + $0x7e0] sm:$0xff]
    %v10761 = vld [vmem:[#allocation8 + $0x7e8] sm:$0xff]
    %v10762 = vld [vmem:[#allocation8 + $0x7f0] sm:$0xff]
    %v10763 = vld [vmem:[#allocation8 + $0x7f8] sm:$0xff]
    %v10764 = vld [vmem:[#allocation10] sm:$0xf]
    %v10766 = vperm.slane %v10764, 0
    %v10767 = vperm.slane %v10764, 1
    %v10768 = vperm.slane %v10764, 2
    %v10769 = vperm.slane %v10764, 3
    %v11030 = vunpack.c.l.b16 %v10508
    %v11031 = vunpack.c.h.b16 %v10508
    %v11032 = vunpack.c.l.b16 %v10509
    %v11033 = vunpack.c.h.b16 %v10509
    %v11034 = vunpack.c.l.b16 %v10510
    %v11035 = vunpack.c.h.b16 %v10510
    %v11036 = vunpack.c.l.b16 %v10511
    %v11037 = vunpack.c.h.b16 %v10511
    %v11038 = vunpack.c.l.b16 %v10512
    %v11039 = vunpack.c.h.b16 %v10512
    %v11040 = vunpack.c.l.b16 %v10513
    %v11041 = vunpack.c.h.b16 %v10513
    %v11042 = vunpack.c.l.b16 %v10514
    %v11043 = vunpack.c.h.b16 %v10514
    %v11044 = vunpack.c.l.b16 %v10515
    %v11045 = vunpack.c.h.b16 %v10515
    %v11046 = vunpack.c.l.b16 %v10516
    %v11047 = vunpack.c.h.b16 %v10516
    %v11048 = vunpack.c.l.b16 %v10517
    %v11049 = vunpack.c.h.b16 %v10517
    %v11050 = vunpack.c.l.b16 %v10518
    %v11051 = vunpack.c.h.b16 %v10518
    %v11052 = vunpack.c.l.b16 %v10519
    %v11053 = vunpack.c.h.b16 %v10519
    %v11054 = vunpack.c.l.b16 %v10520
    %v11055 = vunpack.c.h.b16 %v10520
    %v11056 = vunpack.c.l.b16 %v10521
    %v11057 = vunpack.c.h.b16 %v10521
    %v11058 = vunpack.c.l.b16 %v10522
    %v11059 = vunpack.c.h.b16 %v10522
    %v11060 = vunpack.c.l.b16 %v10523
    %v11061 = vunpack.c.h.b16 %v10523
    %v11062 = vunpack.c.l.b16 %v10524
    %v11063 = vunpack.c.h.b16 %v10524
    %v11064 = vunpack.c.l.b16 %v10525
    %v11065 = vunpack.c.h.b16 %v10525
    %v11066 = vunpack.c.l.b16 %v10526
    %v11067 = vunpack.c.h.b16 %v10526
    %v11068 = vunpack.c.l.b16 %v10527
    %v11069 = vunpack.c.h.b16 %v10527
    %v11070 = vunpack.c.l.b16 %v10528
    %v11071 = vunpack.c.h.b16 %v10528
    %v11072 = vunpack.c.l.b16 %v10529
    %v11073 = vunpack.c.h.b16 %v10529
    %v11074 = vunpack.c.l.b16 %v10530
    %v11075 = vunpack.c.h.b16 %v10530
    %v11076 = vunpack.c.l.b16 %v10531
    %v11077 = vunpack.c.h.b16 %v10531
    %v11078 = vunpack.c.l.b16 %v10532
    %v11079 = vunpack.c.h.b16 %v10532
    %v11080 = vunpack.c.l.b16 %v10533
    %v11081 = vunpack.c.h.b16 %v10533
    %v11082 = vunpack.c.l.b16 %v10534
    %v11083 = vunpack.c.h.b16 %v10534
    %v11084 = vunpack.c.l.b16 %v10535
    %v11085 = vunpack.c.h.b16 %v10535
    %v11086 = vunpack.c.l.b16 %v10536
    %v11087 = vunpack.c.h.b16 %v10536
    %v11088 = vunpack.c.l.b16 %v10537
    %v11089 = vunpack.c.h.b16 %v10537
    %v11090 = vunpack.c.l.b16 %v10538
    %v11091 = vunpack.c.h.b16 %v10538
    %v11092 = vunpack.c.l.b16 %v10539
    %v11093 = vunpack.c.h.b16 %v10539
    %v11094 = vunpack.c.l.b16 %v10540
    %v11095 = vunpack.c.h.b16 %v10540
    %v11096 = vunpack.c.l.b16 %v10541
    %v11097 = vunpack.c.h.b16 %v10541
    %v11098 = vunpack.c.l.b16 %v10542
    %v11099 = vunpack.c.h.b16 %v10542
    %v11100 = vunpack.c.l.b16 %v10543
    %v11101 = vunpack.c.h.b16 %v10543
    %v11102 = vunpack.c.l.b16 %v10544
    %v11103 = vunpack.c.h.b16 %v10544
    %v11104 = vunpack.c.l.b16 %v10545
    %v11105 = vunpack.c.h.b16 %v10545
    %v11106 = vunpack.c.l.b16 %v10546
    %v11107 = vunpack.c.h.b16 %v10546
    %v11108 = vunpack.c.l.b16 %v10547
    %v11109 = vunpack.c.h.b16 %v10547
    %v11110 = vunpack.c.l.b16 %v10548
    %v11111 = vunpack.c.h.b16 %v10548
    %v11112 = vunpack.c.l.b16 %v10549
    %v11113 = vunpack.c.h.b16 %v10549
    %v11114 = vunpack.c.l.b16 %v10550
    %v11115 = vunpack.c.h.b16 %v10550
    %v11116 = vunpack.c.l.b16 %v10551
    %v11117 = vunpack.c.h.b16 %v10551
    %v11118 = vunpack.c.l.b16 %v10552
    %v11119 = vunpack.c.h.b16 %v10552
    %v11120 = vunpack.c.l.b16 %v10553
    %v11121 = vunpack.c.h.b16 %v10553
    %v11122 = vunpack.c.l.b16 %v10554
    %v11123 = vunpack.c.h.b16 %v10554
    %v11124 = vunpack.c.l.b16 %v10555
    %v11125 = vunpack.c.h.b16 %v10555
    %v11126 = vunpack.c.l.b16 %v10556
    %v11127 = vunpack.c.h.b16 %v10556
    %v11128 = vunpack.c.l.b16 %v10557
    %v11129 = vunpack.c.h.b16 %v10557
    %v11130 = vunpack.c.l.b16 %v10558
    %v11131 = vunpack.c.h.b16 %v10558
    %v11132 = vunpack.c.l.b16 %v10559
    %v11133 = vunpack.c.h.b16 %v10559
    %v11134 = vunpack.c.l.b16 %v10560
    %v11135 = vunpack.c.h.b16 %v10560
    %v11136 = vunpack.c.l.b16 %v10561
    %v11137 = vunpack.c.h.b16 %v10561
    %v11138 = vunpack.c.l.b16 %v10562
    %v11139 = vunpack.c.h.b16 %v10562
    %v11140 = vunpack.c.l.b16 %v10563
    %v11141 = vunpack.c.h.b16 %v10563
    %v11142 = vunpack.c.l.b16 %v10564
    %v11143 = vunpack.c.h.b16 %v10564
    %v11144 = vunpack.c.l.b16 %v10565
    %v11145 = vunpack.c.h.b16 %v10565
    %v11146 = vunpack.c.l.b16 %v10566
    %v11147 = vunpack.c.h.b16 %v10566
    %v11148 = vunpack.c.l.b16 %v10567
    %v11149 = vunpack.c.h.b16 %v10567
    %v11150 = vunpack.c.l.b16 %v10568
    %v11151 = vunpack.c.h.b16 %v10568
    %v11152 = vunpack.c.l.b16 %v10569
    %v11153 = vunpack.c.h.b16 %v10569
    %v11154 = vunpack.c.l.b16 %v10570
    %v11155 = vunpack.c.h.b16 %v10570
    %v11156 = vunpack.c.l.b16 %v10571
    %v11157 = vunpack.c.h.b16 %v10571
    %v11158 = vunpack.c.l.b16 %v10572
    %v11159 = vunpack.c.h.b16 %v10572
    %v11160 = vunpack.c.l.b16 %v10573
    %v11161 = vunpack.c.h.b16 %v10573
    %v11162 = vunpack.c.l.b16 %v10574
    %v11163 = vunpack.c.h.b16 %v10574
    %v11164 = vunpack.c.l.b16 %v10575
    %v11165 = vunpack.c.h.b16 %v10575
    %v11166 = vunpack.c.l.b16 %v10576
    %v11167 = vunpack.c.h.b16 %v10576
    %v11168 = vunpack.c.l.b16 %v10577
    %v11169 = vunpack.c.h.b16 %v10577
    %v11170 = vunpack.c.l.b16 %v10578
    %v11171 = vunpack.c.h.b16 %v10578
    %v11172 = vunpack.c.l.b16 %v10579
    %v11173 = vunpack.c.h.b16 %v10579
    %v11174 = vunpack.c.l.b16 %v10580
    %v11175 = vunpack.c.h.b16 %v10580
    %v11176 = vunpack.c.l.b16 %v10581
    %v11177 = vunpack.c.h.b16 %v10581
    %v11178 = vunpack.c.l.b16 %v10582
    %v11179 = vunpack.c.h.b16 %v10582
    %v11180 = vunpack.c.l.b16 %v10583
    %v11181 = vunpack.c.h.b16 %v10583
    %v11182 = vunpack.c.l.b16 %v10584
    %v11183 = vunpack.c.h.b16 %v10584
    %v11184 = vunpack.c.l.b16 %v10585
    %v11185 = vunpack.c.h.b16 %v10585
    %v11186 = vunpack.c.l.b16 %v10586
    %v11187 = vunpack.c.h.b16 %v10586
    %v11188 = vunpack.c.l.b16 %v10587
    %v11189 = vunpack.c.h.b16 %v10587
    %v11190 = vunpack.c.l.b16 %v10588
    %v11191 = vunpack.c.h.b16 %v10588
    %v11192 = vunpack.c.l.b16 %v10589
    %v11193 = vunpack.c.h.b16 %v10589
    %v11194 = vunpack.c.l.b16 %v10590
    %v11195 = vunpack.c.h.b16 %v10590
    %v11196 = vunpack.c.l.b16 %v10591
    %v11197 = vunpack.c.h.b16 %v10591
    %v11198 = vunpack.c.l.b16 %v10592
    %v11199 = vunpack.c.h.b16 %v10592
    %v11200 = vunpack.c.l.b16 %v10593
    %v11201 = vunpack.c.h.b16 %v10593
    %v11202 = vunpack.c.l.b16 %v10594
    %v11203 = vunpack.c.h.b16 %v10594
    %v11204 = vunpack.c.l.b16 %v10595
    %v11205 = vunpack.c.h.b16 %v10595
    %v11206 = vunpack.c.l.b16 %v10596
    %v11207 = vunpack.c.h.b16 %v10596
    %v11208 = vunpack.c.l.b16 %v10597
    %v11209 = vunpack.c.h.b16 %v10597
    %v11210 = vunpack.c.l.b16 %v10598
    %v11211 = vunpack.c.h.b16 %v10598
    %v11212 = vunpack.c.l.b16 %v10599
    %v11213 = vunpack.c.h.b16 %v10599
    %v11214 = vunpack.c.l.b16 %v10600
    %v11215 = vunpack.c.h.b16 %v10600
    %v11216 = vunpack.c.l.b16 %v10601
    %v11217 = vunpack.c.h.b16 %v10601
    %v11218 = vunpack.c.l.b16 %v10602
    %v11219 = vunpack.c.h.b16 %v10602
    %v11220 = vunpack.c.l.b16 %v10603
    %v11221 = vunpack.c.h.b16 %v10603
    %v11222 = vunpack.c.l.b16 %v10604
    %v11223 = vunpack.c.h.b16 %v10604
    %v11224 = vunpack.c.l.b16 %v10605
    %v11225 = vunpack.c.h.b16 %v10605
    %v11226 = vunpack.c.l.b16 %v10606
    %v11227 = vunpack.c.h.b16 %v10606
    %v11228 = vunpack.c.l.b16 %v10607
    %v11229 = vunpack.c.h.b16 %v10607
    %v11230 = vunpack.c.l.b16 %v10608
    %v11231 = vunpack.c.h.b16 %v10608
    %v11232 = vunpack.c.l.b16 %v10609
    %v11233 = vunpack.c.h.b16 %v10609
    %v11234 = vunpack.c.l.b16 %v10610
    %v11235 = vunpack.c.h.b16 %v10610
    %v11236 = vunpack.c.l.b16 %v10611
    %v11237 = vunpack.c.h.b16 %v10611
    %v11238 = vunpack.c.l.b16 %v10612
    %v11239 = vunpack.c.h.b16 %v10612
    %v11240 = vunpack.c.l.b16 %v10613
    %v11241 = vunpack.c.h.b16 %v10613
    %v11242 = vunpack.c.l.b16 %v10614
    %v11243 = vunpack.c.h.b16 %v10614
    %v11244 = vunpack.c.l.b16 %v10615
    %v11245 = vunpack.c.h.b16 %v10615
    %v11246 = vunpack.c.l.b16 %v10616
    %v11247 = vunpack.c.h.b16 %v10616
    %v11248 = vunpack.c.l.b16 %v10617
    %v11249 = vunpack.c.h.b16 %v10617
    %v11250 = vunpack.c.l.b16 %v10618
    %v11251 = vunpack.c.h.b16 %v10618
    %v11252 = vunpack.c.l.b16 %v10619
    %v11253 = vunpack.c.h.b16 %v10619
    %v11254 = vunpack.c.l.b16 %v10620
    %v11255 = vunpack.c.h.b16 %v10620
    %v11256 = vunpack.c.l.b16 %v10621
    %v11257 = vunpack.c.h.b16 %v10621
    %v11258 = vunpack.c.l.b16 %v10622
    %v11259 = vunpack.c.h.b16 %v10622
    %v11260 = vunpack.c.l.b16 %v10623
    %v11261 = vunpack.c.h.b16 %v10623
    %v11262 = vunpack.c.l.b16 %v10624
    %v11263 = vunpack.c.h.b16 %v10624
    %v11264 = vunpack.c.l.b16 %v10625
    %v11265 = vunpack.c.h.b16 %v10625
    %v11266 = vunpack.c.l.b16 %v10626
    %v11267 = vunpack.c.h.b16 %v10626
    %v11268 = vunpack.c.l.b16 %v10627
    %v11269 = vunpack.c.h.b16 %v10627
    %v11270 = vunpack.c.l.b16 %v10628
    %v11271 = vunpack.c.h.b16 %v10628
    %v11272 = vunpack.c.l.b16 %v10629
    %v11273 = vunpack.c.h.b16 %v10629
    %v11274 = vunpack.c.l.b16 %v10630
    %v11275 = vunpack.c.h.b16 %v10630
    %v11276 = vunpack.c.l.b16 %v10631
    %v11277 = vunpack.c.h.b16 %v10631
    %v11278 = vunpack.c.l.b16 %v10632
    %v11279 = vunpack.c.h.b16 %v10632
    %v11280 = vunpack.c.l.b16 %v10633
    %v11281 = vunpack.c.h.b16 %v10633
    %v11282 = vunpack.c.l.b16 %v10634
    %v11283 = vunpack.c.h.b16 %v10634
    %v11284 = vunpack.c.l.b16 %v10635
    %v11285 = vunpack.c.h.b16 %v10635
    %v11286 = vunpack.c.l.b16 %v10636
    %v11287 = vunpack.c.h.b16 %v10636
    %v11288 = vunpack.c.l.b16 %v10637
    %v11289 = vunpack.c.h.b16 %v10637
    %v11290 = vunpack.c.l.b16 %v10638
    %v11291 = vunpack.c.h.b16 %v10638
    %v11292 = vunpack.c.l.b16 %v10639
    %v11293 = vunpack.c.h.b16 %v10639
    %v11294 = vunpack.c.l.b16 %v10640
    %v11295 = vunpack.c.h.b16 %v10640
    %v11296 = vunpack.c.l.b16 %v10641
    %v11297 = vunpack.c.h.b16 %v10641
    %v11298 = vunpack.c.l.b16 %v10642
    %v11299 = vunpack.c.h.b16 %v10642
    %v11300 = vunpack.c.l.b16 %v10643
    %v11301 = vunpack.c.h.b16 %v10643
    %v11302 = vunpack.c.l.b16 %v10644
    %v11303 = vunpack.c.h.b16 %v10644
    %v11304 = vunpack.c.l.b16 %v10645
    %v11305 = vunpack.c.h.b16 %v10645
    %v11306 = vunpack.c.l.b16 %v10646
    %v11307 = vunpack.c.h.b16 %v10646
    %v11308 = vunpack.c.l.b16 %v10647
    %v11309 = vunpack.c.h.b16 %v10647
    %v11310 = vunpack.c.l.b16 %v10648
    %v11311 = vunpack.c.h.b16 %v10648
    %v11312 = vunpack.c.l.b16 %v10649
    %v11313 = vunpack.c.h.b16 %v10649
    %v11314 = vunpack.c.l.b16 %v10650
    %v11315 = vunpack.c.h.b16 %v10650
    %v11316 = vunpack.c.l.b16 %v10651
    %v11317 = vunpack.c.h.b16 %v10651
    %v11318 = vunpack.c.l.b16 %v10652
    %v11319 = vunpack.c.h.b16 %v10652
    %v11320 = vunpack.c.l.b16 %v10653
    %v11321 = vunpack.c.h.b16 %v10653
    %v11322 = vunpack.c.l.b16 %v10654
    %v11323 = vunpack.c.h.b16 %v10654
    %v11324 = vunpack.c.l.b16 %v10655
    %v11325 = vunpack.c.h.b16 %v10655
    %v11326 = vunpack.c.l.b16 %v10656
    %v11327 = vunpack.c.h.b16 %v10656
    %v11328 = vunpack.c.l.b16 %v10657
    %v11329 = vunpack.c.h.b16 %v10657
    %v11330 = vunpack.c.l.b16 %v10658
    %v11331 = vunpack.c.h.b16 %v10658
    %v11332 = vunpack.c.l.b16 %v10659
    %v11333 = vunpack.c.h.b16 %v10659
    %v11334 = vunpack.c.l.b16 %v10660
    %v11335 = vunpack.c.h.b16 %v10660
    %v11336 = vunpack.c.l.b16 %v10661
    %v11337 = vunpack.c.h.b16 %v10661
    %v11338 = vunpack.c.l.b16 %v10662
    %v11339 = vunpack.c.h.b16 %v10662
    %v11340 = vunpack.c.l.b16 %v10663
    %v11341 = vunpack.c.h.b16 %v10663
    %v11342 = vunpack.c.l.b16 %v10664
    %v11343 = vunpack.c.h.b16 %v10664
    %v11344 = vunpack.c.l.b16 %v10665
    %v11345 = vunpack.c.h.b16 %v10665
    %v11346 = vunpack.c.l.b16 %v10666
    %v11347 = vunpack.c.h.b16 %v10666
    %v11348 = vunpack.c.l.b16 %v10667
    %v11349 = vunpack.c.h.b16 %v10667
    %v11350 = vunpack.c.l.b16 %v10668
    %v11351 = vunpack.c.h.b16 %v10668
    %v11352 = vunpack.c.l.b16 %v10669
    %v11353 = vunpack.c.h.b16 %v10669
    %v11354 = vunpack.c.l.b16 %v10670
    %v11355 = vunpack.c.h.b16 %v10670
    %v11356 = vunpack.c.l.b16 %v10671
    %v11357 = vunpack.c.h.b16 %v10671
    %v11358 = vunpack.c.l.b16 %v10672
    %v11359 = vunpack.c.h.b16 %v10672
    %v11360 = vunpack.c.l.b16 %v10673
    %v11361 = vunpack.c.h.b16 %v10673
    %v11362 = vunpack.c.l.b16 %v10674
    %v11363 = vunpack.c.h.b16 %v10674
    %v11364 = vunpack.c.l.b16 %v10675
    %v11365 = vunpack.c.h.b16 %v10675
    %v11366 = vunpack.c.l.b16 %v10676
    %v11367 = vunpack.c.h.b16 %v10676
    %v11368 = vunpack.c.l.b16 %v10677
    %v11369 = vunpack.c.h.b16 %v10677
    %v11370 = vunpack.c.l.b16 %v10678
    %v11371 = vunpack.c.h.b16 %v10678
    %v11372 = vunpack.c.l.b16 %v10679
    %v11373 = vunpack.c.h.b16 %v10679
    %v11374 = vunpack.c.l.b16 %v10680
    %v11375 = vunpack.c.h.b16 %v10680
    %v11376 = vunpack.c.l.b16 %v10681
    %v11377 = vunpack.c.h.b16 %v10681
    %v11378 = vunpack.c.l.b16 %v10682
    %v11379 = vunpack.c.h.b16 %v10682
    %v11380 = vunpack.c.l.b16 %v10683
    %v11381 = vunpack.c.h.b16 %v10683
    %v11382 = vunpack.c.l.b16 %v10684
    %v11383 = vunpack.c.h.b16 %v10684
    %v11384 = vunpack.c.l.b16 %v10685
    %v11385 = vunpack.c.h.b16 %v10685
    %v11386 = vunpack.c.l.b16 %v10686
    %v11387 = vunpack.c.h.b16 %v10686
    %v11388 = vunpack.c.l.b16 %v10687
    %v11389 = vunpack.c.h.b16 %v10687
    %v11390 = vunpack.c.l.b16 %v10688
    %v11391 = vunpack.c.h.b16 %v10688
    %v11392 = vunpack.c.l.b16 %v10689
    %v11393 = vunpack.c.h.b16 %v10689
    %v11394 = vunpack.c.l.b16 %v10690
    %v11395 = vunpack.c.h.b16 %v10690
    %v11396 = vunpack.c.l.b16 %v10691
    %v11397 = vunpack.c.h.b16 %v10691
    %v11398 = vunpack.c.l.b16 %v10692
    %v11399 = vunpack.c.h.b16 %v10692
    %v11400 = vunpack.c.l.b16 %v10693
    %v11401 = vunpack.c.h.b16 %v10693
    %v11402 = vunpack.c.l.b16 %v10694
    %v11403 = vunpack.c.h.b16 %v10694
    %v11404 = vunpack.c.l.b16 %v10695
    %v11405 = vunpack.c.h.b16 %v10695
    %v11406 = vunpack.c.l.b16 %v10696
    %v11407 = vunpack.c.h.b16 %v10696
    %v11408 = vunpack.c.l.b16 %v10697
    %v11409 = vunpack.c.h.b16 %v10697
    %v11410 = vunpack.c.l.b16 %v10698
    %v11411 = vunpack.c.h.b16 %v10698
    %v11412 = vunpack.c.l.b16 %v10699
    %v11413 = vunpack.c.h.b16 %v10699
    %v11414 = vunpack.c.l.b16 %v10700
    %v11415 = vunpack.c.h.b16 %v10700
    %v11416 = vunpack.c.l.b16 %v10701
    %v11417 = vunpack.c.h.b16 %v10701
    %v11418 = vunpack.c.l.b16 %v10702
    %v11419 = vunpack.c.h.b16 %v10702
    %v11420 = vunpack.c.l.b16 %v10703
    %v11421 = vunpack.c.h.b16 %v10703
    %v11422 = vunpack.c.l.b16 %v10704
    %v11423 = vunpack.c.h.b16 %v10704
    %v11424 = vunpack.c.l.b16 %v10705
    %v11425 = vunpack.c.h.b16 %v10705
    %v11426 = vunpack.c.l.b16 %v10706
    %v11427 = vunpack.c.h.b16 %v10706
    %v11428 = vunpack.c.l.b16 %v10707
    %v11429 = vunpack.c.h.b16 %v10707
    %v11430 = vunpack.c.l.b16 %v10708
    %v11431 = vunpack.c.h.b16 %v10708
    %v11432 = vunpack.c.l.b16 %v10709
    %v11433 = vunpack.c.h.b16 %v10709
    %v11434 = vunpack.c.l.b16 %v10710
    %v11435 = vunpack.c.h.b16 %v10710
    %v11436 = vunpack.c.l.b16 %v10711
    %v11437 = vunpack.c.h.b16 %v10711
    %v11438 = vunpack.c.l.b16 %v10712
    %v11439 = vunpack.c.h.b16 %v10712
    %v11440 = vunpack.c.l.b16 %v10713
    %v11441 = vunpack.c.h.b16 %v10713
    %v11442 = vunpack.c.l.b16 %v10714
    %v11443 = vunpack.c.h.b16 %v10714
    %v11444 = vunpack.c.l.b16 %v10715
    %v11445 = vunpack.c.h.b16 %v10715
    %v11446 = vunpack.c.l.b16 %v10716
    %v11447 = vunpack.c.h.b16 %v10716
    %v11448 = vunpack.c.l.b16 %v10717
    %v11449 = vunpack.c.h.b16 %v10717
    %v11450 = vunpack.c.l.b16 %v10718
    %v11451 = vunpack.c.h.b16 %v10718
    %v11452 = vunpack.c.l.b16 %v10719
    %v11453 = vunpack.c.h.b16 %v10719
    %v11454 = vunpack.c.l.b16 %v10720
    %v11455 = vunpack.c.h.b16 %v10720
    %v11456 = vunpack.c.l.b16 %v10721
    %v11457 = vunpack.c.h.b16 %v10721
    %v11458 = vunpack.c.l.b16 %v10722
    %v11459 = vunpack.c.h.b16 %v10722
    %v11460 = vunpack.c.l.b16 %v10723
    %v11461 = vunpack.c.h.b16 %v10723
    %v11462 = vunpack.c.l.b16 %v10724
    %v11463 = vunpack.c.h.b16 %v10724
    %v11464 = vunpack.c.l.b16 %v10725
    %v11465 = vunpack.c.h.b16 %v10725
    %v11466 = vunpack.c.l.b16 %v10726
    %v11467 = vunpack.c.h.b16 %v10726
    %v11468 = vunpack.c.l.b16 %v10727
    %v11469 = vunpack.c.h.b16 %v10727
    %v11470 = vunpack.c.l.b16 %v10728
    %v11471 = vunpack.c.h.b16 %v10728
    %v11472 = vunpack.c.l.b16 %v10729
    %v11473 = vunpack.c.h.b16 %v10729
    %v11474 = vunpack.c.l.b16 %v10730
    %v11475 = vunpack.c.h.b16 %v10730
    %v11476 = vunpack.c.l.b16 %v10731
    %v11477 = vunpack.c.h.b16 %v10731
    %v11478 = vunpack.c.l.b16 %v10732
    %v11479 = vunpack.c.h.b16 %v10732
    %v11480 = vunpack.c.l.b16 %v10733
    %v11481 = vunpack.c.h.b16 %v10733
    %v11482 = vunpack.c.l.b16 %v10734
    %v11483 = vunpack.c.h.b16 %v10734
    %v11484 = vunpack.c.l.b16 %v10735
    %v11485 = vunpack.c.h.b16 %v10735
    %v11486 = vunpack.c.l.b16 %v10736
    %v11487 = vunpack.c.h.b16 %v10736
    %v11488 = vunpack.c.l.b16 %v10737
    %v11489 = vunpack.c.h.b16 %v10737
    %v11490 = vunpack.c.l.b16 %v10738
    %v11491 = vunpack.c.h.b16 %v10738
    %v11492 = vunpack.c.l.b16 %v10739
    %v11493 = vunpack.c.h.b16 %v10739
    %v11494 = vunpack.c.l.b16 %v10740
    %v11495 = vunpack.c.h.b16 %v10740
    %v11496 = vunpack.c.l.b16 %v10741
    %v11497 = vunpack.c.h.b16 %v10741
    %v11498 = vunpack.c.l.b16 %v10742
    %v11499 = vunpack.c.h.b16 %v10742
    %v11500 = vunpack.c.l.b16 %v10743
    %v11501 = vunpack.c.h.b16 %v10743
    %v11502 = vunpack.c.l.b16 %v10744
    %v11503 = vunpack.c.h.b16 %v10744
    %v11504 = vunpack.c.l.b16 %v10745
    %v11505 = vunpack.c.h.b16 %v10745
    %v11506 = vunpack.c.l.b16 %v10746
    %v11507 = vunpack.c.h.b16 %v10746
    %v11508 = vunpack.c.l.b16 %v10747
    %v11509 = vunpack.c.h.b16 %v10747
    %v11510 = vunpack.c.l.b16 %v10748
    %v11511 = vunpack.c.h.b16 %v10748
    %v11512 = vunpack.c.l.b16 %v10749
    %v11513 = vunpack.c.h.b16 %v10749
    %v11514 = vunpack.c.l.b16 %v10750
    %v11515 = vunpack.c.h.b16 %v10750
    %v11516 = vunpack.c.l.b16 %v10751
    %v11517 = vunpack.c.h.b16 %v10751
    %v11518 = vunpack.c.l.b16 %v10752
    %v11519 = vunpack.c.h.b16 %v10752
    %v11520 = vunpack.c.l.b16 %v10753
    %v11521 = vunpack.c.h.b16 %v10753
    %v11522 = vunpack.c.l.b16 %v10754
    %v11523 = vunpack.c.h.b16 %v10754
    %v11524 = vunpack.c.l.b16 %v10755
    %v11525 = vunpack.c.h.b16 %v10755
    %v11526 = vunpack.c.l.b16 %v10756
    %v11527 = vunpack.c.h.b16 %v10756
    %v11528 = vunpack.c.l.b16 %v10757
    %v11529 = vunpack.c.h.b16 %v10757
    %v11530 = vunpack.c.l.b16 %v10758
    %v11531 = vunpack.c.h.b16 %v10758
    %v11532 = vunpack.c.l.b16 %v10759
    %v11533 = vunpack.c.h.b16 %v10759
    %v11534 = vunpack.c.l.b16 %v10760
    %v11535 = vunpack.c.h.b16 %v10760
    %v11536 = vunpack.c.l.b16 %v10761
    %v11537 = vunpack.c.h.b16 %v10761
    %v11538 = vunpack.c.l.b16 %v10762
    %v11539 = vunpack.c.h.b16 %v10762
    %v11540 = vunpack.c.l.b16 %v10763
    %v11541 = vunpack.c.h.b16 %v10763
    %v11542 = vpack.c.b16 %v11034, %v11030
    %v11543 = vpack.c.b16 %v11035, %v11031
    %v11544 = vpack.c.b16 %v11036, %v11032
    %v11545 = vpack.c.b16 %v11037, %v11033
    %v11546 = vpack.c.b16 %v11042, %v11038
    %v11547 = vpack.c.b16 %v11043, %v11039
    %v11548 = vpack.c.b16 %v11044, %v11040
    %v11549 = vpack.c.b16 %v11045, %v11041
    %v11550 = vpack.c.b16 %v11050, %v11046
    %v11551 = vpack.c.b16 %v11051, %v11047
    %v11552 = vpack.c.b16 %v11052, %v11048
    %v11553 = vpack.c.b16 %v11053, %v11049
    %v11554 = vpack.c.b16 %v11058, %v11054
    %v11555 = vpack.c.b16 %v11059, %v11055
    %v11556 = vpack.c.b16 %v11060, %v11056
    %v11557 = vpack.c.b16 %v11061, %v11057
    %v11558 = vpack.c.b16 %v11066, %v11062
    %v11559 = vpack.c.b16 %v11067, %v11063
    %v11560 = vpack.c.b16 %v11068, %v11064
    %v11561 = vpack.c.b16 %v11069, %v11065
    %v11562 = vpack.c.b16 %v11074, %v11070
    %v11563 = vpack.c.b16 %v11075, %v11071
    %v11564 = vpack.c.b16 %v11076, %v11072
    %v11565 = vpack.c.b16 %v11077, %v11073
    %v11566 = vpack.c.b16 %v11082, %v11078
    %v11567 = vpack.c.b16 %v11083, %v11079
    %v11568 = vpack.c.b16 %v11084, %v11080
    %v11569 = vpack.c.b16 %v11085, %v11081
    %v11570 = vpack.c.b16 %v11090, %v11086
    %v11571 = vpack.c.b16 %v11091, %v11087
    %v11572 = vpack.c.b16 %v11092, %v11088
    %v11573 = vpack.c.b16 %v11093, %v11089
    %v11574 = vpack.c.b16 %v11098, %v11094
    %v11575 = vpack.c.b16 %v11099, %v11095
    %v11576 = vpack.c.b16 %v11100, %v11096
    %v11577 = vpack.c.b16 %v11101, %v11097
    %v11578 = vpack.c.b16 %v11106, %v11102
    %v11579 = vpack.c.b16 %v11107, %v11103
    %v11580 = vpack.c.b16 %v11108, %v11104
    %v11581 = vpack.c.b16 %v11109, %v11105
    %v11582 = vpack.c.b16 %v11114, %v11110
    %v11583 = vpack.c.b16 %v11115, %v11111
    %v11584 = vpack.c.b16 %v11116, %v11112
    %v11585 = vpack.c.b16 %v11117, %v11113
    %v11586 = vpack.c.b16 %v11122, %v11118
    %v11587 = vpack.c.b16 %v11123, %v11119
    %v11588 = vpack.c.b16 %v11124, %v11120
    %v11589 = vpack.c.b16 %v11125, %v11121
    %v11590 = vpack.c.b16 %v11130, %v11126
    %v11591 = vpack.c.b16 %v11131, %v11127
    %v11592 = vpack.c.b16 %v11132, %v11128
    %v11593 = vpack.c.b16 %v11133, %v11129
    %v11594 = vpack.c.b16 %v11138, %v11134
    %v11595 = vpack.c.b16 %v11139, %v11135
    %v11596 = vpack.c.b16 %v11140, %v11136
    %v11597 = vpack.c.b16 %v11141, %v11137
    %v11598 = vpack.c.b16 %v11146, %v11142
    %v11599 = vpack.c.b16 %v11147, %v11143
    %v11600 = vpack.c.b16 %v11148, %v11144
    %v11601 = vpack.c.b16 %v11149, %v11145
    %v11602 = vpack.c.b16 %v11154, %v11150
    %v11603 = vpack.c.b16 %v11155, %v11151
    %v11604 = vpack.c.b16 %v11156, %v11152
    %v11605 = vpack.c.b16 %v11157, %v11153
    %v11606 = vpack.c.b16 %v11162, %v11158
    %v11607 = vpack.c.b16 %v11163, %v11159
    %v11608 = vpack.c.b16 %v11164, %v11160
    %v11609 = vpack.c.b16 %v11165, %v11161
    %v11610 = vpack.c.b16 %v11170, %v11166
    %v11611 = vpack.c.b16 %v11171, %v11167
    %v11612 = vpack.c.b16 %v11172, %v11168
    %v11613 = vpack.c.b16 %v11173, %v11169
    %v11614 = vpack.c.b16 %v11178, %v11174
    %v11615 = vpack.c.b16 %v11179, %v11175
    %v11616 = vpack.c.b16 %v11180, %v11176
    %v11617 = vpack.c.b16 %v11181, %v11177
    %v11618 = vpack.c.b16 %v11186, %v11182
    %v11619 = vpack.c.b16 %v11187, %v11183
    %v11620 = vpack.c.b16 %v11188, %v11184
    %v11621 = vpack.c.b16 %v11189, %v11185
    %v11622 = vpack.c.b16 %v11194, %v11190
    %v11623 = vpack.c.b16 %v11195, %v11191
    %v11624 = vpack.c.b16 %v11196, %v11192
    %v11625 = vpack.c.b16 %v11197, %v11193
    %v11626 = vpack.c.b16 %v11202, %v11198
    %v11627 = vpack.c.b16 %v11203, %v11199
    %v11628 = vpack.c.b16 %v11204, %v11200
    %v11629 = vpack.c.b16 %v11205, %v11201
    %v11630 = vpack.c.b16 %v11210, %v11206
    %v11631 = vpack.c.b16 %v11211, %v11207
    %v11632 = vpack.c.b16 %v11212, %v11208
    %v11633 = vpack.c.b16 %v11213, %v11209
    %v11634 = vpack.c.b16 %v11218, %v11214
    %v11635 = vpack.c.b16 %v11219, %v11215
    %v11636 = vpack.c.b16 %v11220, %v11216
    %v11637 = vpack.c.b16 %v11221, %v11217
    %v11638 = vpack.c.b16 %v11226, %v11222
    %v11639 = vpack.c.b16 %v11227, %v11223
    %v11640 = vpack.c.b16 %v11228, %v11224
    %v11641 = vpack.c.b16 %v11229, %v11225
    %v11642 = vpack.c.b16 %v11234, %v11230
    %v11643 = vpack.c.b16 %v11235, %v11231
    %v11644 = vpack.c.b16 %v11236, %v11232
    %v11645 = vpack.c.b16 %v11237, %v11233
    %v11646 = vpack.c.b16 %v11242, %v11238
    %v11647 = vpack.c.b16 %v11243, %v11239
    %v11648 = vpack.c.b16 %v11244, %v11240
    %v11649 = vpack.c.b16 %v11245, %v11241
    %v11650 = vpack.c.b16 %v11250, %v11246
    %v11651 = vpack.c.b16 %v11251, %v11247
    %v11652 = vpack.c.b16 %v11252, %v11248
    %v11653 = vpack.c.b16 %v11253, %v11249
    %v11654 = vpack.c.b16 %v11258, %v11254
    %v11655 = vpack.c.b16 %v11259, %v11255
    %v11656 = vpack.c.b16 %v11260, %v11256
    %v11657 = vpack.c.b16 %v11261, %v11257
    %v11658 = vpack.c.b16 %v11266, %v11262
    %v11659 = vpack.c.b16 %v11267, %v11263
    %v11660 = vpack.c.b16 %v11268, %v11264
    %v11661 = vpack.c.b16 %v11269, %v11265
    %v11662 = vpack.c.b16 %v11274, %v11270
    %v11663 = vpack.c.b16 %v11275, %v11271
    %v11664 = vpack.c.b16 %v11276, %v11272
    %v11665 = vpack.c.b16 %v11277, %v11273
    %v11666 = vpack.c.b16 %v11282, %v11278
    %v11667 = vpack.c.b16 %v11283, %v11279
    %v11668 = vpack.c.b16 %v11284, %v11280
    %v11669 = vpack.c.b16 %v11285, %v11281
    %v11670 = vpack.c.b16 %v11290, %v11286
    %v11671 = vpack.c.b16 %v11291, %v11287
    %v11672 = vpack.c.b16 %v11292, %v11288
    %v11673 = vpack.c.b16 %v11293, %v11289
    %v11674 = vpack.c.b16 %v11298, %v11294
    %v11675 = vpack.c.b16 %v11299, %v11295
    %v11676 = vpack.c.b16 %v11300, %v11296
    %v11677 = vpack.c.b16 %v11301, %v11297
    %v11678 = vpack.c.b16 %v11306, %v11302
    %v11679 = vpack.c.b16 %v11307, %v11303
    %v11680 = vpack.c.b16 %v11308, %v11304
    %v11681 = vpack.c.b16 %v11309, %v11305
    %v11682 = vpack.c.b16 %v11314, %v11310
    %v11683 = vpack.c.b16 %v11315, %v11311
    %v11684 = vpack.c.b16 %v11316, %v11312
    %v11685 = vpack.c.b16 %v11317, %v11313
    %v11686 = vpack.c.b16 %v11322, %v11318
    %v11687 = vpack.c.b16 %v11323, %v11319
    %v11688 = vpack.c.b16 %v11324, %v11320
    %v11689 = vpack.c.b16 %v11325, %v11321
    %v11690 = vpack.c.b16 %v11330, %v11326
    %v11691 = vpack.c.b16 %v11331, %v11327
    %v11692 = vpack.c.b16 %v11332, %v11328
    %v11693 = vpack.c.b16 %v11333, %v11329
    %v11694 = vpack.c.b16 %v11338, %v11334
    %v11695 = vpack.c.b16 %v11339, %v11335
    %v11696 = vpack.c.b16 %v11340, %v11336
    %v11697 = vpack.c.b16 %v11341, %v11337
    %v11698 = vpack.c.b16 %v11346, %v11342
    %v11699 = vpack.c.b16 %v11347, %v11343
    %v11700 = vpack.c.b16 %v11348, %v11344
    %v11701 = vpack.c.b16 %v11349, %v11345
    %v11702 = vpack.c.b16 %v11354, %v11350
    %v11703 = vpack.c.b16 %v11355, %v11351
    %v11704 = vpack.c.b16 %v11356, %v11352
    %v11705 = vpack.c.b16 %v11357, %v11353
    %v11706 = vpack.c.b16 %v11362, %v11358
    %v11707 = vpack.c.b16 %v11363, %v11359
    %v11708 = vpack.c.b16 %v11364, %v11360
    %v11709 = vpack.c.b16 %v11365, %v11361
    %v11710 = vpack.c.b16 %v11370, %v11366
    %v11711 = vpack.c.b16 %v11371, %v11367
    %v11712 = vpack.c.b16 %v11372, %v11368
    %v11713 = vpack.c.b16 %v11373, %v11369
    %v11714 = vpack.c.b16 %v11378, %v11374
    %v11715 = vpack.c.b16 %v11379, %v11375
    %v11716 = vpack.c.b16 %v11380, %v11376
    %v11717 = vpack.c.b16 %v11381, %v11377
    %v11718 = vpack.c.b16 %v11386, %v11382
    %v11719 = vpack.c.b16 %v11387, %v11383
    %v11720 = vpack.c.b16 %v11388, %v11384
    %v11721 = vpack.c.b16 %v11389, %v11385
    %v11722 = vpack.c.b16 %v11394, %v11390
    %v11723 = vpack.c.b16 %v11395, %v11391
    %v11724 = vpack.c.b16 %v11396, %v11392
    %v11725 = vpack.c.b16 %v11397, %v11393
    %v11726 = vpack.c.b16 %v11402, %v11398
    %v11727 = vpack.c.b16 %v11403, %v11399
    %v11728 = vpack.c.b16 %v11404, %v11400
    %v11729 = vpack.c.b16 %v11405, %v11401
    %v11730 = vpack.c.b16 %v11410, %v11406
    %v11731 = vpack.c.b16 %v11411, %v11407
    %v11732 = vpack.c.b16 %v11412, %v11408
    %v11733 = vpack.c.b16 %v11413, %v11409
    %v11734 = vpack.c.b16 %v11418, %v11414
    %v11735 = vpack.c.b16 %v11419, %v11415
    %v11736 = vpack.c.b16 %v11420, %v11416
    %v11737 = vpack.c.b16 %v11421, %v11417
    %v11738 = vpack.c.b16 %v11426, %v11422
    %v11739 = vpack.c.b16 %v11427, %v11423
    %v11740 = vpack.c.b16 %v11428, %v11424
    %v11741 = vpack.c.b16 %v11429, %v11425
    %v11742 = vpack.c.b16 %v11434, %v11430
    %v11743 = vpack.c.b16 %v11435, %v11431
    %v11744 = vpack.c.b16 %v11436, %v11432
    %v11745 = vpack.c.b16 %v11437, %v11433
    %v11746 = vpack.c.b16 %v11442, %v11438
    %v11747 = vpack.c.b16 %v11443, %v11439
    %v11748 = vpack.c.b16 %v11444, %v11440
    %v11749 = vpack.c.b16 %v11445, %v11441
    %v11750 = vpack.c.b16 %v11450, %v11446
    %v11751 = vpack.c.b16 %v11451, %v11447
    %v11752 = vpack.c.b16 %v11452, %v11448
    %v11753 = vpack.c.b16 %v11453, %v11449
    %v11754 = vpack.c.b16 %v11458, %v11454
    %v11755 = vpack.c.b16 %v11459, %v11455
    %v11756 = vpack.c.b16 %v11460, %v11456
    %v11757 = vpack.c.b16 %v11461, %v11457
    %v11758 = vpack.c.b16 %v11466, %v11462
    %v11759 = vpack.c.b16 %v11467, %v11463
    %v11760 = vpack.c.b16 %v11468, %v11464
    %v11761 = vpack.c.b16 %v11469, %v11465
    %v11762 = vpack.c.b16 %v11474, %v11470
    %v11763 = vpack.c.b16 %v11475, %v11471
    %v11764 = vpack.c.b16 %v11476, %v11472
    %v11765 = vpack.c.b16 %v11477, %v11473
    %v11766 = vpack.c.b16 %v11482, %v11478
    %v11767 = vpack.c.b16 %v11483, %v11479
    %v11768 = vpack.c.b16 %v11484, %v11480
    %v11769 = vpack.c.b16 %v11485, %v11481
    %v11770 = vpack.c.b16 %v11490, %v11486
    %v11771 = vpack.c.b16 %v11491, %v11487
    %v11772 = vpack.c.b16 %v11492, %v11488
    %v11773 = vpack.c.b16 %v11493, %v11489
    %v11774 = vpack.c.b16 %v11498, %v11494
    %v11775 = vpack.c.b16 %v11499, %v11495
    %v11776 = vpack.c.b16 %v11500, %v11496
    %v11777 = vpack.c.b16 %v11501, %v11497
    %v11778 = vpack.c.b16 %v11506, %v11502
    %v11779 = vpack.c.b16 %v11507, %v11503
    %v11780 = vpack.c.b16 %v11508, %v11504
    %v11781 = vpack.c.b16 %v11509, %v11505
    %v11782 = vpack.c.b16 %v11514, %v11510
    %v11783 = vpack.c.b16 %v11515, %v11511
    %v11784 = vpack.c.b16 %v11516, %v11512
    %v11785 = vpack.c.b16 %v11517, %v11513
    %v11786 = vpack.c.b16 %v11522, %v11518
    %v11787 = vpack.c.b16 %v11523, %v11519
    %v11788 = vpack.c.b16 %v11524, %v11520
    %v11789 = vpack.c.b16 %v11525, %v11521
    %v11790 = vpack.c.b16 %v11530, %v11526
    %v11791 = vpack.c.b16 %v11531, %v11527
    %v11792 = vpack.c.b16 %v11532, %v11528
    %v11793 = vpack.c.b16 %v11533, %v11529
    %v11794 = vpack.c.b16 %v11538, %v11534
    %v11795 = vpack.c.b16 %v11539, %v11535
    %v11796 = vpack.c.b16 %v11540, %v11536
    %v11797 = vpack.c.b16 %v11541, %v11537
    %12054 = vmatpush.bf16.msra.mxu0 %v11570
    %12055 = vmatpush.bf16.msra.mxu0 %v11566
    %12056 = vmatpush.bf16.msra.mxu0 %v11562
    %12057 = vmatpush.bf16.msra.mxu0 %v11558
    %12058 = vmatpush.bf16.msra.mxu0 %v11554
    %12059 = vmatpush.bf16.msra.mxu0 %v11550
    %12060 = vmatpush.bf16.msra.mxu0 %v11546
    %12061 = vmatpush.bf16.msra.mxu0 %v11542
    %12062 = vmatmul.bf16.gmra.mxu0 %v10500
    %v12063 = vpop.f32.mrf.mxu0
    %v12064 = vadd.f32 %v10766, %v12063
    %v12065 = vpop.f32.mrf.mxu0
    %12066 = vdwg.mxu0
    %12067 = vmatpush.bf16.msra.mxu0 %v11602
    %12068 = vmatpush.bf16.msra.mxu0 %v11598
    %12069 = vmatpush.bf16.msra.mxu0 %v11594
    %12070 = vmatpush.bf16.msra.mxu0 %v11590
    %12071 = vmatpush.bf16.msra.mxu0 %v11586
    %12072 = vmatpush.bf16.msra.mxu0 %v11582
    %12073 = vmatpush.bf16.msra.mxu0 %v11578
    %12074 = vmatpush.bf16.msra.mxu0 %v11574
    %12075 = vmatmul.bf16.gmra.mxu0 %v10501
    %v12076 = vpop.f32.mrf.mxu0
    %v12077 = vadd.f32 %v12064, %v12076
    %v12078 = vpop.f32.mrf.mxu0
    %12079 = vdwg.mxu0
    %12080 = vmatpush.bf16.msra.mxu0 %v11634
    %12081 = vmatpush.bf16.msra.mxu0 %v11630
    %12082 = vmatpush.bf16.msra.mxu0 %v11626
    %12083 = vmatpush.bf16.msra.mxu0 %v11622
    %12084 = vmatpush.bf16.msra.mxu0 %v11618
    %12085 = vmatpush.bf16.msra.mxu0 %v11614
    %12086 = vmatpush.bf16.msra.mxu0 %v11610
    %12087 = vmatpush.bf16.msra.mxu0 %v11606
    %12088 = vmatmul.bf16.gmra.mxu0 %v10502
    %v12089 = vpop.f32.mrf.mxu0
    %v12090 = vadd.f32 %v12077, %v12089
    %v12091 = vpop.f32.mrf.mxu0
    %12092 = vdwg.mxu0
    %12093 = vmatpush.bf16.msra.mxu0 %v11666
    %12094 = vmatpush.bf16.msra.mxu0 %v11662
    %12095 = vmatpush.bf16.msra.mxu0 %v11658
    %12096 = vmatpush.bf16.msra.mxu0 %v11654
    %12097 = vmatpush.bf16.msra.mxu0 %v11650
    %12098 = vmatpush.bf16.msra.mxu0 %v11646
    %12099 = vmatpush.bf16.msra.mxu0 %v11642
    %12100 = vmatpush.bf16.msra.mxu0 %v11638
    %12101 = vmatmul.bf16.gmra.mxu0 %v10503
    %v12102 = vpop.f32.mrf.mxu0
    %v12103 = vadd.f32 %v12090, %v12102
    %v12104 = vpop.f32.mrf.mxu0
    %12105 = vdwg.mxu0
    %12106 = vmatpush.bf16.msra.mxu0 %v11698
    %12107 = vmatpush.bf16.msra.mxu0 %v11694
    %12108 = vmatpush.bf16.msra.mxu0 %v11690
    %12109 = vmatpush.bf16.msra.mxu0 %v11686
    %12110 = vmatpush.bf16.msra.mxu0 %v11682
    %12111 = vmatpush.bf16.msra.mxu0 %v11678
    %12112 = vmatpush.bf16.msra.mxu0 %v11674
    %12113 = vmatpush.bf16.msra.mxu0 %v11670
    %12114 = vmatmul.bf16.gmra.mxu0 %v10504
    %v12115 = vpop.f32.mrf.mxu0
    %v12116 = vadd.f32 %v12103, %v12115
    %v12117 = vpop.f32.mrf.mxu0
    %12118 = vdwg.mxu0
    %12119 = vmatpush.bf16.msra.mxu0 %v11730
    %12120 = vmatpush.bf16.msra.mxu0 %v11726
    %12121 = vmatpush.bf16.msra.mxu0 %v11722
    %12122 = vmatpush.bf16.msra.mxu0 %v11718
    %12123 = vmatpush.bf16.msra.mxu0 %v11714
    %12124 = vmatpush.bf16.msra.mxu0 %v11710
    %12125 = vmatpush.bf16.msra.mxu0 %v11706
    %12126 = vmatpush.bf16.msra.mxu0 %v11702
    %12127 = vmatmul.bf16.gmra.mxu0 %v10505
    %v12128 = vpop.f32.mrf.mxu0
    %v12129 = vadd.f32 %v12116, %v12128
    %v12130 = vpop.f32.mrf.mxu0
    %12131 = vdwg.mxu0
    %12132 = vmatpush.bf16.msra.mxu0 %v11762
    %12133 = vmatpush.bf16.msra.mxu0 %v11758
    %12134 = vmatpush.bf16.msra.mxu0 %v11754
    %12135 = vmatpush.bf16.msra.mxu0 %v11750
    %12136 = vmatpush.bf16.msra.mxu0 %v11746
    %12137 = vmatpush.bf16.msra.mxu0 %v11742
    %12138 = vmatpush.bf16.msra.mxu0 %v11738
    %12139 = vmatpush.bf16.msra.mxu0 %v11734
    %12140 = vmatmul.bf16.gmra.mxu0 %v10506
    %v12141 = vpop.f32.mrf.mxu0
    %v12142 = vadd.f32 %v12129, %v12141
    %v12143 = vpop.f32.mrf.mxu0
    %12144 = vdwg.mxu0
    %12145 = vmatpush.bf16.msra.mxu0 %v11794
    %12146 = vmatpush.bf16.msra.mxu0 %v11790
    %12147 = vmatpush.bf16.msra.mxu0 %v11786
    %12148 = vmatpush.bf16.msra.mxu0 %v11782
    %12149 = vmatpush.bf16.msra.mxu0 %v11778
    %12150 = vmatpush.bf16.msra.mxu0 %v11774
    %12151 = vmatpush.bf16.msra.mxu0 %v11770
    %12152 = vmatpush.bf16.msra.mxu0 %v11766
    %12153 = vmatmul.bf16.gmra.mxu0 %v10507
    %v12154 = vpop.f32.mrf.mxu0
    %v12155 = vadd.f32 %v12142, %v12154
    %v12156 = vpop.f32.mrf.mxu0
    %12157 = vdwg.mxu0
    %12158 = vmatpush.bf16.msra.mxu0 %v11571
    %12159 = vmatpush.bf16.msra.mxu0 %v11567
    %12160 = vmatpush.bf16.msra.mxu0 %v11563
    %12161 = vmatpush.bf16.msra.mxu0 %v11559
    %12162 = vmatpush.bf16.msra.mxu0 %v11555
    %12163 = vmatpush.bf16.msra.mxu0 %v11551
    %12164 = vmatpush.bf16.msra.mxu0 %v11547
    %12165 = vmatpush.bf16.msra.mxu0 %v11543
    %12166 = vmatmul.bf16.gmra.mxu0 %v10500
    %v12167 = vpop.f32.mrf.mxu0
    %v12168 = vadd.f32 %v10767, %v12167
    %v12169 = vpop.f32.mrf.mxu0
    %12170 = vdwg.mxu0
    %12171 = vmatpush.bf16.msra.mxu0 %v11603
    %12172 = vmatpush.bf16.msra.mxu0 %v11599
    %12173 = vmatpush.bf16.msra.mxu0 %v11595
    %12174 = vmatpush.bf16.msra.mxu0 %v11591
    %12175 = vmatpush.bf16.msra.mxu0 %v11587
    %12176 = vmatpush.bf16.msra.mxu0 %v11583
    %12177 = vmatpush.bf16.msra.mxu0 %v11579
    %12178 = vmatpush.bf16.msra.mxu0 %v11575
    %12179 = vmatmul.bf16.gmra.mxu0 %v10501
    %v12180 = vpop.f32.mrf.mxu0
    %v12181 = vadd.f32 %v12168, %v12180
    %v12182 = vpop.f32.mrf.mxu0
    %12183 = vdwg.mxu0
    %12184 = vmatpush.bf16.msra.mxu0 %v11635
    %12185 = vmatpush.bf16.msra.mxu0 %v11631
    %12186 = vmatpush.bf16.msra.mxu0 %v11627
    %12187 = vmatpush.bf16.msra.mxu0 %v11623
    %12188 = vmatpush.bf16.msra.mxu0 %v11619
    %12189 = vmatpush.bf16.msra.mxu0 %v11615
    %12190 = vmatpush.bf16.msra.mxu0 %v11611
    %12191 = vmatpush.bf16.msra.mxu0 %v11607
    %12192 = vmatmul.bf16.gmra.mxu0 %v10502
    %v12193 = vpop.f32.mrf.mxu0
    %v12194 = vadd.f32 %v12181, %v12193
    %v12195 = vpop.f32.mrf.mxu0
    %12196 = vdwg.mxu0
    %12197 = vmatpush.bf16.msra.mxu0 %v11667
    %12198 = vmatpush.bf16.msra.mxu0 %v11663
    %12199 = vmatpush.bf16.msra.mxu0 %v11659
    %12200 = vmatpush.bf16.msra.mxu0 %v11655
    %12201 = vmatpush.bf16.msra.mxu0 %v11651
    %12202 = vmatpush.bf16.msra.mxu0 %v11647
    %12203 = vmatpush.bf16.msra.mxu0 %v11643
    %12204 = vmatpush.bf16.msra.mxu0 %v11639
    %12205 = vmatmul.bf16.gmra.mxu0 %v10503
    %v12206 = vpop.f32.mrf.mxu0
    %v12207 = vadd.f32 %v12194, %v12206
    %v12208 = vpop.f32.mrf.mxu0
    %12209 = vdwg.mxu0
    %12210 = vmatpush.bf16.msra.mxu0 %v11699
    %12211 = vmatpush.bf16.msra.mxu0 %v11695
    %12212 = vmatpush.bf16.msra.mxu0 %v11691
    %12213 = vmatpush.bf16.msra.mxu0 %v11687
    %12214 = vmatpush.bf16.msra.mxu0 %v11683
    %12215 = vmatpush.bf16.msra.mxu0 %v11679
    %12216 = vmatpush.bf16.msra.mxu0 %v11675
    %12217 = vmatpush.bf16.msra.mxu0 %v11671
    %12218 = vmatmul.bf16.gmra.mxu0 %v10504
    %v12219 = vpop.f32.mrf.mxu0
    %v12220 = vadd.f32 %v12207, %v12219
    %v12221 = vpop.f32.mrf.mxu0
    %12222 = vdwg.mxu0
    %12223 = vmatpush.bf16.msra.mxu0 %v11731
    %12224 = vmatpush.bf16.msra.mxu0 %v11727
    %12225 = vmatpush.bf16.msra.mxu0 %v11723
    %12226 = vmatpush.bf16.msra.mxu0 %v11719
    %12227 = vmatpush.bf16.msra.mxu0 %v11715
    %12228 = vmatpush.bf16.msra.mxu0 %v11711
    %12229 = vmatpush.bf16.msra.mxu0 %v11707
    %12230 = vmatpush.bf16.msra.mxu0 %v11703
    %12231 = vmatmul.bf16.gmra.mxu0 %v10505
    %v12232 = vpop.f32.mrf.mxu0
    %v12233 = vadd.f32 %v12220, %v12232
    %v12234 = vpop.f32.mrf.mxu0
    %12235 = vdwg.mxu0
    %12236 = vmatpush.bf16.msra.mxu0 %v11763
    %12237 = vmatpush.bf16.msra.mxu0 %v11759
    %12238 = vmatpush.bf16.msra.mxu0 %v11755
    %12239 = vmatpush.bf16.msra.mxu0 %v11751
    %12240 = vmatpush.bf16.msra.mxu0 %v11747
    %12241 = vmatpush.bf16.msra.mxu0 %v11743
    %12242 = vmatpush.bf16.msra.mxu0 %v11739
    %12243 = vmatpush.bf16.msra.mxu0 %v11735
    %12244 = vmatmul.bf16.gmra.mxu0 %v10506
    %v12245 = vpop.f32.mrf.mxu0
    %v12246 = vadd.f32 %v12233, %v12245
    %v12247 = vpop.f32.mrf.mxu0
    %12248 = vdwg.mxu0
    %12249 = vmatpush.bf16.msra.mxu0 %v11795
    %12250 = vmatpush.bf16.msra.mxu0 %v11791
    %12251 = vmatpush.bf16.msra.mxu0 %v11787
    %12252 = vmatpush.bf16.msra.mxu0 %v11783
    %12253 = vmatpush.bf16.msra.mxu0 %v11779
    %12254 = vmatpush.bf16.msra.mxu0 %v11775
    %12255 = vmatpush.bf16.msra.mxu0 %v11771
    %12256 = vmatpush.bf16.msra.mxu0 %v11767
    %12257 = vmatmul.bf16.gmra.mxu0 %v10507
    %v12258 = vpop.f32.mrf.mxu0
    %v12259 = vadd.f32 %v12246, %v12258
    %v12260 = vpop.f32.mrf.mxu0
    %12261 = vdwg.mxu0
    %12262 = vmatpush.bf16.msra.mxu0 %v11572
    %12263 = vmatpush.bf16.msra.mxu0 %v11568
    %12264 = vmatpush.bf16.msra.mxu0 %v11564
    %12265 = vmatpush.bf16.msra.mxu0 %v11560
    %12266 = vmatpush.bf16.msra.mxu0 %v11556
    %12267 = vmatpush.bf16.msra.mxu0 %v11552
    %12268 = vmatpush.bf16.msra.mxu0 %v11548
    %12269 = vmatpush.bf16.msra.mxu0 %v11544
    %12270 = vmatmul.bf16.gmra.mxu0 %v10500
    %v12271 = vpop.f32.mrf.mxu0
    %v12272 = vadd.f32 %v10768, %v12271
    %v12273 = vpop.f32.mrf.mxu0
    %12274 = vdwg.mxu0
    %12275 = vmatpush.bf16.msra.mxu0 %v11604
    %12276 = vmatpush.bf16.msra.mxu0 %v11600
    %12277 = vmatpush.bf16.msra.mxu0 %v11596
    %12278 = vmatpush.bf16.msra.mxu0 %v11592
    %12279 = vmatpush.bf16.msra.mxu0 %v11588
    %12280 = vmatpush.bf16.msra.mxu0 %v11584
    %12281 = vmatpush.bf16.msra.mxu0 %v11580
    %12282 = vmatpush.bf16.msra.mxu0 %v11576
    %12283 = vmatmul.bf16.gmra.mxu0 %v10501
    %v12284 = vpop.f32.mrf.mxu0
    %v12285 = vadd.f32 %v12272, %v12284
    %v12286 = vpop.f32.mrf.mxu0
    %12287 = vdwg.mxu0
    %12288 = vmatpush.bf16.msra.mxu0 %v11636
    %12289 = vmatpush.bf16.msra.mxu0 %v11632
    %12290 = vmatpush.bf16.msra.mxu0 %v11628
    %12291 = vmatpush.bf16.msra.mxu0 %v11624
    %12292 = vmatpush.bf16.msra.mxu0 %v11620
    %12293 = vmatpush.bf16.msra.mxu0 %v11616
    %12294 = vmatpush.bf16.msra.mxu0 %v11612
    %12295 = vmatpush.bf16.msra.mxu0 %v11608
    %12296 = vmatmul.bf16.gmra.mxu0 %v10502
    %v12297 = vpop.f32.mrf.mxu0
    %v12298 = vadd.f32 %v12285, %v12297
    %v12299 = vpop.f32.mrf.mxu0
    %12300 = vdwg.mxu0
    %12301 = vmatpush.bf16.msra.mxu0 %v11668
    %12302 = vmatpush.bf16.msra.mxu0 %v11664
    %12303 = vmatpush.bf16.msra.mxu0 %v11660
    %12304 = vmatpush.bf16.msra.mxu0 %v11656
    %12305 = vmatpush.bf16.msra.mxu0 %v11652
    %12306 = vmatpush.bf16.msra.mxu0 %v11648
    %12307 = vmatpush.bf16.msra.mxu0 %v11644
    %12308 = vmatpush.bf16.msra.mxu0 %v11640
    %12309 = vmatmul.bf16.gmra.mxu0 %v10503
    %v12310 = vpop.f32.mrf.mxu0
    %v12311 = vadd.f32 %v12298, %v12310
    %v12312 = vpop.f32.mrf.mxu0
    %12313 = vdwg.mxu0
    %12314 = vmatpush.bf16.msra.mxu0 %v11700
    %12315 = vmatpush.bf16.msra.mxu0 %v11696
    %12316 = vmatpush.bf16.msra.mxu0 %v11692
    %12317 = vmatpush.bf16.msra.mxu0 %v11688
    %12318 = vmatpush.bf16.msra.mxu0 %v11684
    %12319 = vmatpush.bf16.msra.mxu0 %v11680
    %12320 = vmatpush.bf16.msra.mxu0 %v11676
    %12321 = vmatpush.bf16.msra.mxu0 %v11672
    %12322 = vmatmul.bf16.gmra.mxu0 %v10504
    %v12323 = vpop.f32.mrf.mxu0
    %v12324 = vadd.f32 %v12311, %v12323
    %v12325 = vpop.f32.mrf.mxu0
    %12326 = vdwg.mxu0
    %12327 = vmatpush.bf16.msra.mxu0 %v11732
    %12328 = vmatpush.bf16.msra.mxu0 %v11728
    %12329 = vmatpush.bf16.msra.mxu0 %v11724
    %12330 = vmatpush.bf16.msra.mxu0 %v11720
    %12331 = vmatpush.bf16.msra.mxu0 %v11716
    %12332 = vmatpush.bf16.msra.mxu0 %v11712
    %12333 = vmatpush.bf16.msra.mxu0 %v11708
    %12334 = vmatpush.bf16.msra.mxu0 %v11704
    %12335 = vmatmul.bf16.gmra.mxu0 %v10505
    %v12336 = vpop.f32.mrf.mxu0
    %v12337 = vadd.f32 %v12324, %v12336
    %v12338 = vpop.f32.mrf.mxu0
    %12339 = vdwg.mxu0
    %12340 = vmatpush.bf16.msra.mxu0 %v11764
    %12341 = vmatpush.bf16.msra.mxu0 %v11760
    %12342 = vmatpush.bf16.msra.mxu0 %v11756
    %12343 = vmatpush.bf16.msra.mxu0 %v11752
    %12344 = vmatpush.bf16.msra.mxu0 %v11748
    %12345 = vmatpush.bf16.msra.mxu0 %v11744
    %12346 = vmatpush.bf16.msra.mxu0 %v11740
    %12347 = vmatpush.bf16.msra.mxu0 %v11736
    %12348 = vmatmul.bf16.gmra.mxu0 %v10506
    %v12349 = vpop.f32.mrf.mxu0
    %v12350 = vadd.f32 %v12337, %v12349
    %v12351 = vpop.f32.mrf.mxu0
    %12352 = vdwg.mxu0
    %12353 = vmatpush.bf16.msra.mxu0 %v11796
    %12354 = vmatpush.bf16.msra.mxu0 %v11792
    %12355 = vmatpush.bf16.msra.mxu0 %v11788
    %12356 = vmatpush.bf16.msra.mxu0 %v11784
    %12357 = vmatpush.bf16.msra.mxu0 %v11780
    %12358 = vmatpush.bf16.msra.mxu0 %v11776
    %12359 = vmatpush.bf16.msra.mxu0 %v11772
    %12360 = vmatpush.bf16.msra.mxu0 %v11768
    %12361 = vmatmul.bf16.gmra.mxu0 %v10507
    %v12362 = vpop.f32.mrf.mxu0
    %v12363 = vadd.f32 %v12350, %v12362
    %v12364 = vpop.f32.mrf.mxu0
    %12365 = vdwg.mxu0
    %12366 = vmatpush.bf16.msra.mxu0 %v11573
    %12367 = vmatpush.bf16.msra.mxu0 %v11569
    %12368 = vmatpush.bf16.msra.mxu0 %v11565
    %12369 = vmatpush.bf16.msra.mxu0 %v11561
    %12370 = vmatpush.bf16.msra.mxu0 %v11557
    %12371 = vmatpush.bf16.msra.mxu0 %v11553
    %12372 = vmatpush.bf16.msra.mxu0 %v11549
    %12373 = vmatpush.bf16.msra.mxu0 %v11545
    %12374 = vmatmul.bf16.gmra.mxu0 %v10500
    %v12375 = vpop.f32.mrf.mxu0
    %v12376 = vadd.f32 %v10769, %v12375
    %v12377 = vpop.f32.mrf.mxu0
    %12378 = vdwg.mxu0
    %12379 = vmatpush.bf16.msra.mxu0 %v11605
    %12380 = vmatpush.bf16.msra.mxu0 %v11601
    %12381 = vmatpush.bf16.msra.mxu0 %v11597
    %12382 = vmatpush.bf16.msra.mxu0 %v11593
    %12383 = vmatpush.bf16.msra.mxu0 %v11589
    %12384 = vmatpush.bf16.msra.mxu0 %v11585
    %12385 = vmatpush.bf16.msra.mxu0 %v11581
    %12386 = vmatpush.bf16.msra.mxu0 %v11577
    %12387 = vmatmul.bf16.gmra.mxu0 %v10501
    %v12388 = vpop.f32.mrf.mxu0
    %v12389 = vadd.f32 %v12376, %v12388
    %v12390 = vpop.f32.mrf.mxu0
    %12391 = vdwg.mxu0
    %12392 = vmatpush.bf16.msra.mxu0 %v11637
    %12393 = vmatpush.bf16.msra.mxu0 %v11633
    %12394 = vmatpush.bf16.msra.mxu0 %v11629
    %12395 = vmatpush.bf16.msra.mxu0 %v11625
    %12396 = vmatpush.bf16.msra.mxu0 %v11621
    %12397 = vmatpush.bf16.msra.mxu0 %v11617
    %12398 = vmatpush.bf16.msra.mxu0 %v11613
    %12399 = vmatpush.bf16.msra.mxu0 %v11609
    %12400 = vmatmul.bf16.gmra.mxu0 %v10502
    %v12401 = vpop.f32.mrf.mxu0
    %v12402 = vadd.f32 %v12389, %v12401
    %v12403 = vpop.f32.mrf.mxu0
    %12404 = vdwg.mxu0
    %12405 = vmatpush.bf16.msra.mxu0 %v11669
    %12406 = vmatpush.bf16.msra.mxu0 %v11665
    %12407 = vmatpush.bf16.msra.mxu0 %v11661
    %12408 = vmatpush.bf16.msra.mxu0 %v11657
    %12409 = vmatpush.bf16.msra.mxu0 %v11653
    %12410 = vmatpush.bf16.msra.mxu0 %v11649
    %12411 = vmatpush.bf16.msra.mxu0 %v11645
    %12412 = vmatpush.bf16.msra.mxu0 %v11641
    %12413 = vmatmul.bf16.gmra.mxu0 %v10503
    %v12414 = vpop.f32.mrf.mxu0
    %v12415 = vadd.f32 %v12402, %v12414
    %v12416 = vpop.f32.mrf.mxu0
    %12417 = vdwg.mxu0
    %12418 = vmatpush.bf16.msra.mxu0 %v11701
    %12419 = vmatpush.bf16.msra.mxu0 %v11697
    %12420 = vmatpush.bf16.msra.mxu0 %v11693
    %12421 = vmatpush.bf16.msra.mxu0 %v11689
    %12422 = vmatpush.bf16.msra.mxu0 %v11685
    %12423 = vmatpush.bf16.msra.mxu0 %v11681
    %12424 = vmatpush.bf16.msra.mxu0 %v11677
    %12425 = vmatpush.bf16.msra.mxu0 %v11673
    %12426 = vmatmul.bf16.gmra.mxu0 %v10504
    %v12427 = vpop.f32.mrf.mxu0
    %v12428 = vadd.f32 %v12415, %v12427
    %v12429 = vpop.f32.mrf.mxu0
    %12430 = vdwg.mxu0
    %12431 = vmatpush.bf16.msra.mxu0 %v11733
    %12432 = vmatpush.bf16.msra.mxu0 %v11729
    %12433 = vmatpush.bf16.msra.mxu0 %v11725
    %12434 = vmatpush.bf16.msra.mxu0 %v11721
    %12435 = vmatpush.bf16.msra.mxu0 %v11717
    %12436 = vmatpush.bf16.msra.mxu0 %v11713
    %12437 = vmatpush.bf16.msra.mxu0 %v11709
    %12438 = vmatpush.bf16.msra.mxu0 %v11705
    %12439 = vmatmul.bf16.gmra.mxu0 %v10505
    %v12440 = vpop.f32.mrf.mxu0
    %v12441 = vadd.f32 %v12428, %v12440
    %v12442 = vpop.f32.mrf.mxu0
    %12443 = vdwg.mxu0
    %12444 = vmatpush.bf16.msra.mxu0 %v11765
    %12445 = vmatpush.bf16.msra.mxu0 %v11761
    %12446 = vmatpush.bf16.msra.mxu0 %v11757
    %12447 = vmatpush.bf16.msra.mxu0 %v11753
    %12448 = vmatpush.bf16.msra.mxu0 %v11749
    %12449 = vmatpush.bf16.msra.mxu0 %v11745
    %12450 = vmatpush.bf16.msra.mxu0 %v11741
    %12451 = vmatpush.bf16.msra.mxu0 %v11737
    %12452 = vmatmul.bf16.gmra.mxu0 %v10506
    %v12453 = vpop.f32.mrf.mxu0
    %v12454 = vadd.f32 %v12441, %v12453
    %v12455 = vpop.f32.mrf.mxu0
    %12456 = vdwg.mxu0
    %12457 = vmatpush.bf16.msra.mxu0 %v11797
    %12458 = vmatpush.bf16.msra.mxu0 %v11793
    %12459 = vmatpush.bf16.msra.mxu0 %v11789
    %12460 = vmatpush.bf16.msra.mxu0 %v11785
    %12461 = vmatpush.bf16.msra.mxu0 %v11781
    %12462 = vmatpush.bf16.msra.mxu0 %v11777
    %12463 = vmatpush.bf16.msra.mxu0 %v11773
    %12464 = vmatpush.bf16.msra.mxu0 %v11769
    %12465 = vmatmul.bf16.gmra.mxu0 %v10507
    %v12466 = vpop.f32.mrf.mxu0
    %v12467 = vadd.f32 %v12454, %v12466
    %v12468 = vpop.f32.mrf.mxu0
    %12469 = vdwg.mxu0
    %v12470 = vmax.f32 %v12155, 0.0
    %v12471 = vmax.f32 %v12259, 0.0
    %v12472 = vmax.f32 %v12363, 0.0
    %v12473 = vmax.f32 %v12467, 0.0
    %v12474 = vpack.c.bf16 %v12470, %v12470
    %v12475 = vpack.c.bf16 %v12471, %v12471
    %v12476 = vpack.c.bf16 %v12472, %v12472
    %v12477 = vpack.c.bf16 %v12473, %v12473
    %v12478 = vld [vmem:[#allocation11] sm:$0xff]
    %v12479 = vld [vmem:[#allocation11 + $0x8] sm:$0xff]
    %v12480 = vld [vmem:[#allocation11 + $0x10] sm:$0xff]
    %v12481 = vld [vmem:[#allocation11 + $0x18] sm:$0xff]
    %v12482 = vld [vmem:[#allocation11 + $0x20] sm:$0xff]
    %v12483 = vld [vmem:[#allocation11 + $0x28] sm:$0xff]
    %v12484 = vld [vmem:[#allocation11 + $0x30] sm:$0xff]
    %v12485 = vld [vmem:[#allocation11 + $0x38] sm:$0xff]
    %v12486 = vld [vmem:[#allocation11 + $0x40] sm:$0xff]
    %v12487 = vld [vmem:[#allocation11 + $0x48] sm:$0xff]
    %v12488 = vld [vmem:[#allocation11 + $0x50] sm:$0xff]
    %v12489 = vld [vmem:[#allocation11 + $0x58] sm:$0xff]
    %v12490 = vld [vmem:[#allocation11 + $0x60] sm:$0xff]
    %v12491 = vld [vmem:[#allocation11 + $0x68] sm:$0xff]
    %v12492 = vld [vmem:[#allocation11 + $0x70] sm:$0xff]
    %v12493 = vld [vmem:[#allocation11 + $0x78] sm:$0xff]
    %v12494 = vld [vmem:[#allocation11 + $0x80] sm:$0xff]
    %v12495 = vld [vmem:[#allocation11 + $0x88] sm:$0xff]
    %v12496 = vld [vmem:[#allocation11 + $0x90] sm:$0xff]
    %v12497 = vld [vmem:[#allocation11 + $0x98] sm:$0xff]
    %v12498 = vld [vmem:[#allocation11 + $0xa0] sm:$0xff]
    %v12499 = vld [vmem:[#allocation11 + $0xa8] sm:$0xff]
    %v12500 = vld [vmem:[#allocation11 + $0xb0] sm:$0xff]
    %v12501 = vld [vmem:[#allocation11 + $0xb8] sm:$0xff]
    %v12502 = vld [vmem:[#allocation11 + $0xc0] sm:$0xff]
    %v12503 = vld [vmem:[#allocation11 + $0xc8] sm:$0xff]
    %v12504 = vld [vmem:[#allocation11 + $0xd0] sm:$0xff]
    %v12505 = vld [vmem:[#allocation11 + $0xd8] sm:$0xff]
    %v12506 = vld [vmem:[#allocation11 + $0xe0] sm:$0xff]
    %v12507 = vld [vmem:[#allocation11 + $0xe8] sm:$0xff]
    %v12508 = vld [vmem:[#allocation11 + $0xf0] sm:$0xff]
    %v12509 = vld [vmem:[#allocation11 + $0xf8] sm:$0xff]
    %v12510 = vld [vmem:[#allocation11 + $0x100] sm:$0xff]
    %v12511 = vld [vmem:[#allocation11 + $0x108] sm:$0xff]
    %v12512 = vld [vmem:[#allocation11 + $0x110] sm:$0xff]
    %v12513 = vld [vmem:[#allocation11 + $0x118] sm:$0xff]
    %v12514 = vld [vmem:[#allocation11 + $0x120] sm:$0xff]
    %v12515 = vld [vmem:[#allocation11 + $0x128] sm:$0xff]
    %v12516 = vld [vmem:[#allocation11 + $0x130] sm:$0xff]
    %v12517 = vld [vmem:[#allocation11 + $0x138] sm:$0xff]
    %v12518 = vld [vmem:[#allocation11 + $0x140] sm:$0xff]
    %v12519 = vld [vmem:[#allocation11 + $0x148] sm:$0xff]
    %v12520 = vld [vmem:[#allocation11 + $0x150] sm:$0xff]
    %v12521 = vld [vmem:[#allocation11 + $0x158] sm:$0xff]
    %v12522 = vld [vmem:[#allocation11 + $0x160] sm:$0xff]
    %v12523 = vld [vmem:[#allocation11 + $0x168] sm:$0xff]
    %v12524 = vld [vmem:[#allocation11 + $0x170] sm:$0xff]
    %v12525 = vld [vmem:[#allocation11 + $0x178] sm:$0xff]
    %v12526 = vld [vmem:[#allocation11 + $0x180] sm:$0xff]
    %v12527 = vld [vmem:[#allocation11 + $0x188] sm:$0xff]
    %v12528 = vld [vmem:[#allocation11 + $0x190] sm:$0xff]
    %v12529 = vld [vmem:[#allocation11 + $0x198] sm:$0xff]
    %v12530 = vld [vmem:[#allocation11 + $0x1a0] sm:$0xff]
    %v12531 = vld [vmem:[#allocation11 + $0x1a8] sm:$0xff]
    %v12532 = vld [vmem:[#allocation11 + $0x1b0] sm:$0xff]
    %v12533 = vld [vmem:[#allocation11 + $0x1b8] sm:$0xff]
    %v12534 = vld [vmem:[#allocation11 + $0x1c0] sm:$0xff]
    %v12535 = vld [vmem:[#allocation11 + $0x1c8] sm:$0xff]
    %v12536 = vld [vmem:[#allocation11 + $0x1d0] sm:$0xff]
    %v12537 = vld [vmem:[#allocation11 + $0x1d8] sm:$0xff]
    %v12538 = vld [vmem:[#allocation11 + $0x1e0] sm:$0xff]
    %v12539 = vld [vmem:[#allocation11 + $0x1e8] sm:$0xff]
    %v12540 = vld [vmem:[#allocation11 + $0x1f0] sm:$0xff]
    %v12541 = vld [vmem:[#allocation11 + $0x1f8] sm:$0xff]
    %v12542 = vld [vmem:[#allocation13] sm:$0x3]
    %v12544 = vperm.slane %v12542, 0
    %v12545 = vperm.slane %v12542, 1
    %v12612 = vunpack.c.l.b16 %v12478
    %v12613 = vunpack.c.h.b16 %v12478
    %v12614 = vunpack.c.l.b16 %v12479
    %v12615 = vunpack.c.h.b16 %v12479
    %v12616 = vunpack.c.l.b16 %v12480
    %v12617 = vunpack.c.h.b16 %v12480
    %v12618 = vunpack.c.l.b16 %v12481
    %v12619 = vunpack.c.h.b16 %v12481
    %v12620 = vunpack.c.l.b16 %v12482
    %v12621 = vunpack.c.h.b16 %v12482
    %v12622 = vunpack.c.l.b16 %v12483
    %v12623 = vunpack.c.h.b16 %v12483
    %v12624 = vunpack.c.l.b16 %v12484
    %v12625 = vunpack.c.h.b16 %v12484
    %v12626 = vunpack.c.l.b16 %v12485
    %v12627 = vunpack.c.h.b16 %v12485
    %v12628 = vunpack.c.l.b16 %v12486
    %v12629 = vunpack.c.h.b16 %v12486
    %v12630 = vunpack.c.l.b16 %v12487
    %v12631 = vunpack.c.h.b16 %v12487
    %v12632 = vunpack.c.l.b16 %v12488
    %v12633 = vunpack.c.h.b16 %v12488
    %v12634 = vunpack.c.l.b16 %v12489
    %v12635 = vunpack.c.h.b16 %v12489
    %v12636 = vunpack.c.l.b16 %v12490
    %v12637 = vunpack.c.h.b16 %v12490
    %v12638 = vunpack.c.l.b16 %v12491
    %v12639 = vunpack.c.h.b16 %v12491
    %v12640 = vunpack.c.l.b16 %v12492
    %v12641 = vunpack.c.h.b16 %v12492
    %v12642 = vunpack.c.l.b16 %v12493
    %v12643 = vunpack.c.h.b16 %v12493
    %v12644 = vunpack.c.l.b16 %v12494
    %v12645 = vunpack.c.h.b16 %v12494
    %v12646 = vunpack.c.l.b16 %v12495
    %v12647 = vunpack.c.h.b16 %v12495
    %v12648 = vunpack.c.l.b16 %v12496
    %v12649 = vunpack.c.h.b16 %v12496
    %v12650 = vunpack.c.l.b16 %v12497
    %v12651 = vunpack.c.h.b16 %v12497
    %v12652 = vunpack.c.l.b16 %v12498
    %v12653 = vunpack.c.h.b16 %v12498
    %v12654 = vunpack.c.l.b16 %v12499
    %v12655 = vunpack.c.h.b16 %v12499
    %v12656 = vunpack.c.l.b16 %v12500
    %v12657 = vunpack.c.h.b16 %v12500
    %v12658 = vunpack.c.l.b16 %v12501
    %v12659 = vunpack.c.h.b16 %v12501
    %v12660 = vunpack.c.l.b16 %v12502
    %v12661 = vunpack.c.h.b16 %v12502
    %v12662 = vunpack.c.l.b16 %v12503
    %v12663 = vunpack.c.h.b16 %v12503
    %v12664 = vunpack.c.l.b16 %v12504
    %v12665 = vunpack.c.h.b16 %v12504
    %v12666 = vunpack.c.l.b16 %v12505
    %v12667 = vunpack.c.h.b16 %v12505
    %v12668 = vunpack.c.l.b16 %v12506
    %v12669 = vunpack.c.h.b16 %v12506
    %v12670 = vunpack.c.l.b16 %v12507
    %v12671 = vunpack.c.h.b16 %v12507
    %v12672 = vunpack.c.l.b16 %v12508
    %v12673 = vunpack.c.h.b16 %v12508
    %v12674 = vunpack.c.l.b16 %v12509
    %v12675 = vunpack.c.h.b16 %v12509
    %v12676 = vunpack.c.l.b16 %v12510
    %v12677 = vunpack.c.h.b16 %v12510
    %v12678 = vunpack.c.l.b16 %v12511
    %v12679 = vunpack.c.h.b16 %v12511
    %v12680 = vunpack.c.l.b16 %v12512
    %v12681 = vunpack.c.h.b16 %v12512
    %v12682 = vunpack.c.l.b16 %v12513
    %v12683 = vunpack.c.h.b16 %v12513
    %v12684 = vunpack.c.l.b16 %v12514
    %v12685 = vunpack.c.h.b16 %v12514
    %v12686 = vunpack.c.l.b16 %v12515
    %v12687 = vunpack.c.h.b16 %v12515
    %v12688 = vunpack.c.l.b16 %v12516
    %v12689 = vunpack.c.h.b16 %v12516
    %v12690 = vunpack.c.l.b16 %v12517
    %v12691 = vunpack.c.h.b16 %v12517
    %v12692 = vunpack.c.l.b16 %v12518
    %v12693 = vunpack.c.h.b16 %v12518
    %v12694 = vunpack.c.l.b16 %v12519
    %v12695 = vunpack.c.h.b16 %v12519
    %v12696 = vunpack.c.l.b16 %v12520
    %v12697 = vunpack.c.h.b16 %v12520
    %v12698 = vunpack.c.l.b16 %v12521
    %v12699 = vunpack.c.h.b16 %v12521
    %v12700 = vunpack.c.l.b16 %v12522
    %v12701 = vunpack.c.h.b16 %v12522
    %v12702 = vunpack.c.l.b16 %v12523
    %v12703 = vunpack.c.h.b16 %v12523
    %v12704 = vunpack.c.l.b16 %v12524
    %v12705 = vunpack.c.h.b16 %v12524
    %v12706 = vunpack.c.l.b16 %v12525
    %v12707 = vunpack.c.h.b16 %v12525
    %v12708 = vunpack.c.l.b16 %v12526
    %v12709 = vunpack.c.h.b16 %v12526
    %v12710 = vunpack.c.l.b16 %v12527
    %v12711 = vunpack.c.h.b16 %v12527
    %v12712 = vunpack.c.l.b16 %v12528
    %v12713 = vunpack.c.h.b16 %v12528
    %v12714 = vunpack.c.l.b16 %v12529
    %v12715 = vunpack.c.h.b16 %v12529
    %v12716 = vunpack.c.l.b16 %v12530
    %v12717 = vunpack.c.h.b16 %v12530
    %v12718 = vunpack.c.l.b16 %v12531
    %v12719 = vunpack.c.h.b16 %v12531
    %v12720 = vunpack.c.l.b16 %v12532
    %v12721 = vunpack.c.h.b16 %v12532
    %v12722 = vunpack.c.l.b16 %v12533
    %v12723 = vunpack.c.h.b16 %v12533
    %v12724 = vunpack.c.l.b16 %v12534
    %v12725 = vunpack.c.h.b16 %v12534
    %v12726 = vunpack.c.l.b16 %v12535
    %v12727 = vunpack.c.h.b16 %v12535
    %v12728 = vunpack.c.l.b16 %v12536
    %v12729 = vunpack.c.h.b16 %v12536
    %v12730 = vunpack.c.l.b16 %v12537
    %v12731 = vunpack.c.h.b16 %v12537
    %v12732 = vunpack.c.l.b16 %v12538
    %v12733 = vunpack.c.h.b16 %v12538
    %v12734 = vunpack.c.l.b16 %v12539
    %v12735 = vunpack.c.h.b16 %v12539
    %v12736 = vunpack.c.l.b16 %v12540
    %v12737 = vunpack.c.h.b16 %v12540
    %v12738 = vunpack.c.l.b16 %v12541
    %v12739 = vunpack.c.h.b16 %v12541
    %v12740 = vpack.c.b16 %v12614, %v12612
    %v12741 = vpack.c.b16 %v12615, %v12613
    %v12742 = vpack.c.b16 %v12618, %v12616
    %v12743 = vpack.c.b16 %v12619, %v12617
    %v12744 = vpack.c.b16 %v12622, %v12620
    %v12745 = vpack.c.b16 %v12623, %v12621
    %v12746 = vpack.c.b16 %v12626, %v12624
    %v12747 = vpack.c.b16 %v12627, %v12625
    %v12748 = vpack.c.b16 %v12630, %v12628
    %v12749 = vpack.c.b16 %v12631, %v12629
    %v12750 = vpack.c.b16 %v12634, %v12632
    %v12751 = vpack.c.b16 %v12635, %v12633
    %v12752 = vpack.c.b16 %v12638, %v12636
    %v12753 = vpack.c.b16 %v12639, %v12637
    %v12754 = vpack.c.b16 %v12642, %v12640
    %v12755 = vpack.c.b16 %v12643, %v12641
    %v12756 = vpack.c.b16 %v12646, %v12644
    %v12757 = vpack.c.b16 %v12647, %v12645
    %v12758 = vpack.c.b16 %v12650, %v12648
    %v12759 = vpack.c.b16 %v12651, %v12649
    %v12760 = vpack.c.b16 %v12654, %v12652
    %v12761 = vpack.c.b16 %v12655, %v12653
    %v12762 = vpack.c.b16 %v12658, %v12656
    %v12763 = vpack.c.b16 %v12659, %v12657
    %v12764 = vpack.c.b16 %v12662, %v12660
    %v12765 = vpack.c.b16 %v12663, %v12661
    %v12766 = vpack.c.b16 %v12666, %v12664
    %v12767 = vpack.c.b16 %v12667, %v12665
    %v12768 = vpack.c.b16 %v12670, %v12668
    %v12769 = vpack.c.b16 %v12671, %v12669
    %v12770 = vpack.c.b16 %v12674, %v12672
    %v12771 = vpack.c.b16 %v12675, %v12673
    %v12772 = vpack.c.b16 %v12678, %v12676
    %v12773 = vpack.c.b16 %v12679, %v12677
    %v12774 = vpack.c.b16 %v12682, %v12680
    %v12775 = vpack.c.b16 %v12683, %v12681
    %v12776 = vpack.c.b16 %v12686, %v12684
    %v12777 = vpack.c.b16 %v12687, %v12685
    %v12778 = vpack.c.b16 %v12690, %v12688
    %v12779 = vpack.c.b16 %v12691, %v12689
    %v12780 = vpack.c.b16 %v12694, %v12692
    %v12781 = vpack.c.b16 %v12695, %v12693
    %v12782 = vpack.c.b16 %v12698, %v12696
    %v12783 = vpack.c.b16 %v12699, %v12697
    %v12784 = vpack.c.b16 %v12702, %v12700
    %v12785 = vpack.c.b16 %v12703, %v12701
    %v12786 = vpack.c.b16 %v12706, %v12704
    %v12787 = vpack.c.b16 %v12707, %v12705
    %v12788 = vpack.c.b16 %v12710, %v12708
    %v12789 = vpack.c.b16 %v12711, %v12709
    %v12790 = vpack.c.b16 %v12714, %v12712
    %v12791 = vpack.c.b16 %v12715, %v12713
    %v12792 = vpack.c.b16 %v12718, %v12716
    %v12793 = vpack.c.b16 %v12719, %v12717
    %v12794 = vpack.c.b16 %v12722, %v12720
    %v12795 = vpack.c.b16 %v12723, %v12721
    %v12796 = vpack.c.b16 %v12726, %v12724
    %v12797 = vpack.c.b16 %v12727, %v12725
    %v12798 = vpack.c.b16 %v12730, %v12728
    %v12799 = vpack.c.b16 %v12731, %v12729
    %v12800 = vpack.c.b16 %v12734, %v12732
    %v12801 = vpack.c.b16 %v12735, %v12733
    %v12802 = vpack.c.b16 %v12738, %v12736
    %v12803 = vpack.c.b16 %v12739, %v12737
    %12868 = vmatpush.bf16.msra.mxu0 %v12754
    %12869 = vmatpush.bf16.msra.mxu0 %v12752
    %12870 = vmatpush.bf16.msra.mxu0 %v12750
    %12871 = vmatpush.bf16.msra.mxu0 %v12748
    %12872 = vmatpush.bf16.msra.mxu0 %v12746
    %12873 = vmatpush.bf16.msra.mxu0 %v12744
    %12874 = vmatpush.bf16.msra.mxu0 %v12742
    %12875 = vmatpush.bf16.msra.mxu0 %v12740
    %12876 = vmatmul.bf16.gmra.mxu0 %v12474
    %v12877 = vpop.f32.mrf.mxu0
    %v12878 = vadd.f32 %v12544, %v12877
    %v12879 = vpop.f32.mrf.mxu0
    %12880 = vdwg.mxu0
    %12881 = vmatpush.bf16.msra.mxu0 %v12770
    %12882 = vmatpush.bf16.msra.mxu0 %v12768
    %12883 = vmatpush.bf16.msra.mxu0 %v12766
    %12884 = vmatpush.bf16.msra.mxu0 %v12764
    %12885 = vmatpush.bf16.msra.mxu0 %v12762
    %12886 = vmatpush.bf16.msra.mxu0 %v12760
    %12887 = vmatpush.bf16.msra.mxu0 %v12758
    %12888 = vmatpush.bf16.msra.mxu0 %v12756
    %12889 = vmatmul.bf16.gmra.mxu0 %v12475
    %v12890 = vpop.f32.mrf.mxu0
    %v12891 = vadd.f32 %v12878, %v12890
    %v12892 = vpop.f32.mrf.mxu0
    %12893 = vdwg.mxu0
    %12894 = vmatpush.bf16.msra.mxu0 %v12786
    %12895 = vmatpush.bf16.msra.mxu0 %v12784
    %12896 = vmatpush.bf16.msra.mxu0 %v12782
    %12897 = vmatpush.bf16.msra.mxu0 %v12780
    %12898 = vmatpush.bf16.msra.mxu0 %v12778
    %12899 = vmatpush.bf16.msra.mxu0 %v12776
    %12900 = vmatpush.bf16.msra.mxu0 %v12774
    %12901 = vmatpush.bf16.msra.mxu0 %v12772
    %12902 = vmatmul.bf16.gmra.mxu0 %v12476
    %v12903 = vpop.f32.mrf.mxu0
    %v12904 = vadd.f32 %v12891, %v12903
    %v12905 = vpop.f32.mrf.mxu0
    %12906 = vdwg.mxu0
    %12907 = vmatpush.bf16.msra.mxu0 %v12802
    %12908 = vmatpush.bf16.msra.mxu0 %v12800
    %12909 = vmatpush.bf16.msra.mxu0 %v12798
    %12910 = vmatpush.bf16.msra.mxu0 %v12796
    %12911 = vmatpush.bf16.msra.mxu0 %v12794
    %12912 = vmatpush.bf16.msra.mxu0 %v12792
    %12913 = vmatpush.bf16.msra.mxu0 %v12790
    %12914 = vmatpush.bf16.msra.mxu0 %v12788
    %12915 = vmatmul.bf16.gmra.mxu0 %v12477
    %v12916 = vpop.f32.mrf.mxu0
    %v12917 = vadd.f32 %v12904, %v12916
    %v12918 = vpop.f32.mrf.mxu0
    %12919 = vdwg.mxu0
    %12920 = vmatpush.bf16.msra.mxu0 %v12755
    %12921 = vmatpush.bf16.msra.mxu0 %v12753
    %12922 = vmatpush.bf16.msra.mxu0 %v12751
    %12923 = vmatpush.bf16.msra.mxu0 %v12749
    %12924 = vmatpush.bf16.msra.mxu0 %v12747
    %12925 = vmatpush.bf16.msra.mxu0 %v12745
    %12926 = vmatpush.bf16.msra.mxu0 %v12743
    %12927 = vmatpush.bf16.msra.mxu0 %v12741
    %12928 = vmatmul.bf16.gmra.mxu0 %v12474
    %v12929 = vpop.f32.mrf.mxu0
    %v12930 = vadd.f32 %v12545, %v12929
    %v12931 = vpop.f32.mrf.mxu0
    %12932 = vdwg.mxu0
    %12933 = vmatpush.bf16.msra.mxu0 %v12771
    %12934 = vmatpush.bf16.msra.mxu0 %v12769
    %12935 = vmatpush.bf16.msra.mxu0 %v12767
    %12936 = vmatpush.bf16.msra.mxu0 %v12765
    %12937 = vmatpush.bf16.msra.mxu0 %v12763
    %12938 = vmatpush.bf16.msra.mxu0 %v12761
    %12939 = vmatpush.bf16.msra.mxu0 %v12759
    %12940 = vmatpush.bf16.msra.mxu0 %v12757
    %12941 = vmatmul.bf16.gmra.mxu0 %v12475
    %v12942 = vpop.f32.mrf.mxu0
    %v12943 = vadd.f32 %v12930, %v12942
    %v12944 = vpop.f32.mrf.mxu0
    %12945 = vdwg.mxu0
    %12946 = vmatpush.bf16.msra.mxu0 %v12787
    %12947 = vmatpush.bf16.msra.mxu0 %v12785
    %12948 = vmatpush.bf16.msra.mxu0 %v12783
    %12949 = vmatpush.bf16.msra.mxu0 %v12781
    %12950 = vmatpush.bf16.msra.mxu0 %v12779
    %12951 = vmatpush.bf16.msra.mxu0 %v12777
    %12952 = vmatpush.bf16.msra.mxu0 %v12775
    %12953 = vmatpush.bf16.msra.mxu0 %v12773
    %12954 = vmatmul.bf16.gmra.mxu0 %v12476
    %v12955 = vpop.f32.mrf.mxu0
    %v12956 = vadd.f32 %v12943, %v12955
    %v12957 = vpop.f32.mrf.mxu0
    %12958 = vdwg.mxu0
    %12959 = vmatpush.bf16.msra.mxu0 %v12803
    %12960 = vmatpush.bf16.msra.mxu0 %v12801
    %12961 = vmatpush.bf16.msra.mxu0 %v12799
    %12962 = vmatpush.bf16.msra.mxu0 %v12797
    %12963 = vmatpush.bf16.msra.mxu0 %v12795
    %12964 = vmatpush.bf16.msra.mxu0 %v12793
    %12965 = vmatpush.bf16.msra.mxu0 %v12791
    %12966 = vmatpush.bf16.msra.mxu0 %v12789
    %12967 = vmatmul.bf16.gmra.mxu0 %v12477
    %v12968 = vpop.f32.mrf.mxu0
    %v12969 = vadd.f32 %v12956, %v12968
    %v12970 = vpop.f32.mrf.mxu0
    %12971 = vdwg.mxu0
    %v12972 = vmax.f32 %v12917, 0.0
    %v12973 = vmax.f32 %v12969, 0.0
    %v12974 = vpack.c.bf16 %v12972, %v12972
    %v12975 = vpack.c.bf16 %v12973, %v12973
    %v12976 = vld [vmem:[%s7] sm:$0xf]
    %v12977 = vld [vmem:[%s7 + $0x4] sm:$0xf]
    %v12978 = vld [vmem:[%s7 + $0x8] sm:$0xf]
    %v12979 = vld [vmem:[%s7 + $0xc] sm:$0xf]
    %v12980 = vld [vmem:[%s7 + $0x10] sm:$0xf]
    %v12981 = vld [vmem:[%s7 + $0x14] sm:$0xf]
    %v12982 = vld [vmem:[%s7 + $0x18] sm:$0xf]
    %v12983 = vld [vmem:[%s7 + $0x1c] sm:$0xf]
    %v12984 = vld [vmem:[%s7 + $0x20] sm:$0xf]
    %v12985 = vld [vmem:[%s7 + $0x24] sm:$0xf]
    %v12986 = vld [vmem:[%s7 + $0x28] sm:$0xf]
    %v12987 = vld [vmem:[%s7 + $0x2c] sm:$0xf]
    %v12988 = vld [vmem:[%s7 + $0x30] sm:$0xf]
    %v12989 = vld [vmem:[%s7 + $0x34] sm:$0xf]
    %v12990 = vld [vmem:[%s7 + $0x38] sm:$0xf]
    %v12991 = vld [vmem:[%s7 + $0x3c] sm:$0xf]
    %v12992 = vld [vmem:[%s7 + $0x40] sm:$0xf]
    %v12993 = vld [vmem:[%s7 + $0x44] sm:$0xf]
    %v12994 = vld [vmem:[%s7 + $0x48] sm:$0xf]
    %v12995 = vld [vmem:[%s7 + $0x4c] sm:$0xf]
    %v12996 = vld [vmem:[%s7 + $0x50] sm:$0xf]
    %v12997 = vld [vmem:[%s7 + $0x54] sm:$0xf]
    %v12998 = vld [vmem:[%s7 + $0x58] sm:$0xf]
    %v12999 = vld [vmem:[%s7 + $0x5c] sm:$0xf]
    %v13000 = vld [vmem:[%s7 + $0x60] sm:$0xf]
    %v13001 = vld [vmem:[%s7 + $0x64] sm:$0xf]
    %v13002 = vld [vmem:[%s7 + $0x68] sm:$0xf]
    %v13003 = vld [vmem:[%s7 + $0x6c] sm:$0xf]
    %v13004 = vld [vmem:[%s7 + $0x70] sm:$0xf]
    %v13005 = vld [vmem:[%s7 + $0x74] sm:$0xf]
    %v13006 = vld [vmem:[%s7 + $0x78] sm:$0xf]
    %v13007 = vld [vmem:[%s7 + $0x7c] sm:$0xf]
    %v13008 = vld [vmem:[#allocation14] sm:$0x1]
    %v13010 = vperm.slane %v13008, 0
    %v13044 = vunpack.c.l.b16 %v12976
    %v13045 = vunpack.c.l.b16 %v12977
    %v13046 = vunpack.c.l.b16 %v12978
    %v13047 = vunpack.c.l.b16 %v12979
    %v13048 = vunpack.c.l.b16 %v12980
    %v13049 = vunpack.c.l.b16 %v12981
    %v13050 = vunpack.c.l.b16 %v12982
    %v13051 = vunpack.c.l.b16 %v12983
    %v13052 = vunpack.c.l.b16 %v12984
    %v13053 = vunpack.c.l.b16 %v12985
    %v13054 = vunpack.c.l.b16 %v12986
    %v13055 = vunpack.c.l.b16 %v12987
    %v13056 = vunpack.c.l.b16 %v12988
    %v13057 = vunpack.c.l.b16 %v12989
    %v13058 = vunpack.c.l.b16 %v12990
    %v13059 = vunpack.c.l.b16 %v12991
    %v13060 = vunpack.c.l.b16 %v12992
    %v13061 = vunpack.c.l.b16 %v12993
    %v13062 = vunpack.c.l.b16 %v12994
    %v13063 = vunpack.c.l.b16 %v12995
    %v13064 = vunpack.c.l.b16 %v12996
    %v13065 = vunpack.c.l.b16 %v12997
    %v13066 = vunpack.c.l.b16 %v12998
    %v13067 = vunpack.c.l.b16 %v12999
    %v13068 = vunpack.c.l.b16 %v13000
    %v13069 = vunpack.c.l.b16 %v13001
    %v13070 = vunpack.c.l.b16 %v13002
    %v13071 = vunpack.c.l.b16 %v13003
    %v13072 = vunpack.c.l.b16 %v13004
    %v13073 = vunpack.c.l.b16 %v13005
    %v13074 = vunpack.c.l.b16 %v13006
    %v13075 = vunpack.c.l.b16 %v13007
    %v13076 = vpack.c.b16 %v13045, %v13044
    %v13077 = vpack.c.b16 %v13047, %v13046
    %v13078 = vpack.c.b16 %v13049, %v13048
    %v13079 = vpack.c.b16 %v13051, %v13050
    %v13080 = vpack.c.b16 %v13053, %v13052
    %v13081 = vpack.c.b16 %v13055, %v13054
    %v13082 = vpack.c.b16 %v13057, %v13056
    %v13083 = vpack.c.b16 %v13059, %v13058
    %v13084 = vpack.c.b16 %v13061, %v13060
    %v13085 = vpack.c.b16 %v13063, %v13062
    %v13086 = vpack.c.b16 %v13065, %v13064
    %v13087 = vpack.c.b16 %v13067, %v13066
    %v13088 = vpack.c.b16 %v13069, %v13068
    %v13089 = vpack.c.b16 %v13071, %v13070
    %v13090 = vpack.c.b16 %v13073, %v13072
    %v13091 = vpack.c.b16 %v13075, %v13074
    %13108 = vmatpush.bf16.msra.mxu0 %v13083
    %13109 = vmatpush.bf16.msra.mxu0 %v13082
    %13110 = vmatpush.bf16.msra.mxu0 %v13081
    %13111 = vmatpush.bf16.msra.mxu0 %v13080
    %13112 = vmatpush.bf16.msra.mxu0 %v13079
    %13113 = vmatpush.bf16.msra.mxu0 %v13078
    %13114 = vmatpush.bf16.msra.mxu0 %v13077
    %13115 = vmatpush.bf16.msra.mxu0 %v13076
    %13116 = vmatmul.bf16.gmra.mxu0 %v12974
    %v13117 = vpop.f32.mrf.mxu0
    %v13118 = vadd.f32 %v13010, %v13117
    %v13119 = vpop.f32.mrf.mxu0
    %13120 = vdwg.mxu0
    %13121 = vmatpush.bf16.msra.mxu0 %v13091
    %13122 = vmatpush.bf16.msra.mxu0 %v13090
    %13123 = vmatpush.bf16.msra.mxu0 %v13089
    %13124 = vmatpush.bf16.msra.mxu0 %v13088
    %13125 = vmatpush.bf16.msra.mxu0 %v13087
    %13126 = vmatpush.bf16.msra.mxu0 %v13086
    %13127 = vmatpush.bf16.msra.mxu0 %v13085
    %13128 = vmatpush.bf16.msra.mxu0 %v13084
    %13129 = vmatmul.bf16.gmra.mxu0 %v12975
    %v13130 = vpop.f32.mrf.mxu0
    %v13131 = vadd.f32 %v13118, %v13130
    %v13132 = vpop.f32.mrf.mxu0
    %13133 = vdwg.mxu0
    %v13134 = vmax.f32 %v13131, 0.0
    %v13135 = vpack.c.bf16 %v13134, %v13134
    %v13136 = vld [vmem:[#allocation16] sm:$0xf]
    %v13137 = vld [vmem:[#allocation16 + $0x4] sm:$0xf]
    %v13138 = vld [vmem:[#allocation16 + $0x8] sm:$0xf]
    %v13139 = vld [vmem:[#allocation16 + $0xc] sm:$0xf]
    %v13140 = vld [vmem:[#allocation16 + $0x10] sm:$0xf]
    %v13141 = vld [vmem:[#allocation16 + $0x14] sm:$0xf]
    %v13142 = vld [vmem:[#allocation16 + $0x18] sm:$0xf]
    %v13143 = vld [vmem:[#allocation16 + $0x1c] sm:$0xf]
    %v13144 = vld [vmem:[#allocation17] sm:$0x1]
    %v13146 = vperm.slane %v13144, 0
    %v13156 = vunpack.c.l.b16 %v13136
    %v13157 = vunpack.c.l.b16 %v13137
    %v13158 = vunpack.c.l.b16 %v13138
    %v13159 = vunpack.c.l.b16 %v13139
    %v13160 = vunpack.c.l.b16 %v13140
    %v13161 = vunpack.c.l.b16 %v13141
    %v13162 = vunpack.c.l.b16 %v13142
    %v13163 = vunpack.c.l.b16 %v13143
    %v13164 = vpack.c.b16 %v13157, %v13156
    %v13165 = vpack.c.b16 %v13159, %v13158
    %v13166 = vpack.c.b16 %v13161, %v13160
    %v13167 = vpack.c.b16 %v13163, %v13162
    %vm13172 = vcmask 523264
    %v13174 = vsel %vm13172, %v13135, 0
    %13176 = vmatpush.bf16.msra.mxu0 0
    %13177 = vmatpush.bf16.msra.mxu0 0
    %13178 = vmatpush.bf16.msra.mxu0 0
    %13179 = vmatpush.bf16.msra.mxu0 0
    %13180 = vmatpush.bf16.msra.mxu0 %v13167
    %13181 = vmatpush.bf16.msra.mxu0 %v13166
    %13182 = vmatpush.bf16.msra.mxu0 %v13165
    %13183 = vmatpush.bf16.msra.mxu0 %v13164
    %13184 = vmatmul.bf16.gmra.mxu0 %v13174
    %v13185 = vpop.f32.mrf.mxu0
    %v13186 = vadd.f32 %v13146, %v13185
    %v13187 = vpop.f32.mrf.mxu0
    %13188 = vdwg.mxu0
    %13189 = vst [vmem:[#allocation19] sm:$0xff] %v13186
    // Predicated region
    $region86: #{tpu_custom_call.1} parent=1 // pred_check
      _
    $region87: #{tpu_custom_call.1} parent=1 // pred_check_branch
      %13191 = sbr.rel (0) target = $region89
    $region88: #{tpu_custom_call.1} parent=1 // pred_region
      %13193 = vsyncadd [#allocation4], 0
      %s13195 = sshll.u32 [#allocation19], 4
      %s13196 = int_to_ptr.vmem [resolvable:$true] %s13195
      %s13197 = sshll.u32 %s11, 4
      %s13198 = int_to_ptr.hbm [resolvable:$true] %s13197
      %13200 = dma.vmem_to_hbm [thread:$0]  %s13196, 128, %s13198, [#allocation4]
    $region89: #{tpu_custom_call.1} parent=1 // pred_fallthru
      _
    // Predicated region
    $region90: #{tpu_custom_call.1} parent=1 // pred_check
      _
    $region91: #{tpu_custom_call.1} parent=1 // pred_check_branch
      %13202 = sbr.rel (0) target = $region93
    $region92: #{tpu_custom_call.1} parent=1 // pred_region
      %13204 = dma.done [#allocation4], 128
    $region93: #{tpu_custom_call.1} parent=1 // pred_fallthru
      _
    %13205 = vsyncpa [#allocation3], 1
    %13206 = vsyncpa [#allocation6], 1
    %13207 = vsyncpa [#allocation9], 1
    %13208 = vsyncpa [#allocation12], 1
    %13209 = vsyncpa [#allocation15], 1
    %13210 = vsyncpa [#allocation18], 1
    %13211 = vsyncpa [#allocation4], 1

</llo_original>
